<compile_context>
chip_gen: v7x
topology: tpu7x:2x2x1
jax: 0.10.0
libtpu: 0.0.40
codegen_flags: <defaults>
</compile_context>

<pallas_src>
import functools
import math

import numpy as np
import jax
import jax.numpy as jnp
from jax import lax
from jax.experimental import pallas as pl
from jax.experimental.pallas import tpu as pltpu


# ---------------------------------------------------------------------------
# static helpers (evaluated at trace time)
# ---------------------------------------------------------------------------
def _round_up(v, m):
    return ((v + m - 1) // m) * m


def _divisor_tile(total, target, multiple):
    """Largest d <= target with total % d == 0 and d % multiple == 0, else total."""
    for d in range(min(target, total), 0, -1):
        if total % d == 0 and d % multiple == 0:
            return d
    return total


def _pick_conv_row_tile(A, Rp, max_rows=2048):
    """Largest divisor T_A of A with T_A * Rp <= max_rows (bounds per-chunk temps)."""
    best = 1
    for t in range(1, A + 1):
        if A % t == 0 and t * Rp <= max_rows:
            best = t
    return best


@functools.lru_cache(maxsize=None)
def _vmem_limit_bytes():
    """Generation-aware scoped-VMEM budget (~75% of physical, capped at 96 MiB)."""
    try:
        cap = int(pltpu.get_tpu_info().vmem_capacity_bytes)
    except Exception:
        cap = 0
    if cap < 32 * 1024 * 1024:
        cap = 64 * 1024 * 1024          # conservative fallback (v7x-sized)
    return int(min(cap * 3 // 4, 96 * 1024 * 1024))


# ---------------------------------------------------------------------------
# Pallas kernels
# ---------------------------------------------------------------------------
def _pointwise_kernel(x_ref, w_ref, scale_ref, bias_ref, o_ref):
    """o[0] = relu((w @ x) * scale + bias)  -- 1x1 conv + folded BN + ReLU.

    x_ref : (1, Cin, T_hw) f32   (NCHW pixels, no pre-transpose needed)
    w_ref : (dim, Cin)     bf16  (transposed 1x1 conv weight)
    scale/bias : (dim, 1)  f32
    o_ref : (1, dim, T_hw) bf16
    """
    x = x_ref[0].astype(jnp.bfloat16)
    acc = jnp.dot(w_ref[...], x, preferred_element_type=jnp.float32)   # (dim, T_hw)
    y = jnp.maximum(acc * scale_ref[...] + bias_ref[...], 0.0)
    o_ref[0] = y.astype(o_ref.dtype)


def _dht_kernel(v_ref, f_ref, o_ref, acc_ref, *, N):
    """accum[n, bins, c] += votes[bins, k] * feat[n, c, k]   (HW tiled, batch inside).

    v_ref : (T_AR, T_K)    int8  vote tile (exact 0/1) -- streamed once for all n
    f_ref : (N, dim, T_K)  bf16
    o_ref : (N, T_AR, dim) bf16
    acc_ref: VMEM (N, T_AR, dim) f32
    """
    @pl.when(pl.program_id(1) == 0)
    def _():
        acc_ref[...] = jnp.zeros_like(acc_ref)

    v = v_ref[...].astype(jnp.float32).astype(jnp.bfloat16)   # int8 -> bf16 (exact)
    for n in range(N):                      # static loop: batch reuse of the vote tile
        acc_ref[n] += lax.dot_general(
            v, f_ref[n],
            dimension_numbers=(((1,), (1,)), ((), ())),        # votes @ feat_n^T
            preferred_element_type=jnp.float32)

    @pl.when(pl.program_id(1) == pl.num_programs(1) - 1)
    def _():
        o_ref[...] = acc_ref[...].astype(o_ref.dtype)


def _shift_cols(xs, d):
    """new[:, r, :] = xs[:, r + d, :], zero-filled (d in {-1, 0, +1}).

    The fill only ever lands in pad columns, which are masked to zero anyway.
    """
    if d == 0:
        return xs
    z = jnp.zeros_like(xs[:, :1, :])
    if d > 0:
        return jnp.concatenate([xs[:, 1:, :], z], axis=1)
    return jnp.concatenate([z, xs[:, :-1, :]], axis=1)


def _conv3x3_kernel(x_ref, w_ref, scale_ref, bias_ref, o_ref, *, A, R, T_A, fold_k):
    """Direct 3x3 conv (stride 1, pad 1) + folded BN + ReLU for one batch element.

    x_ref : (1, A+2, Rp, dim) bf16  padded activation slab (halo rows/cols zero)
    w_ref : (3, 3*dim, dim) bf16 if fold_k else (3, 3, dim, dim) bf16
    scale/bias : (1, dim) f32
    o_ref : (1, A+2, Rp, dim) bf16  (halo rows/cols re-zeroed here)
    """
    Rp = o_ref.shape[2]
    dim = o_ref.shape[3]
    L = T_A * Rp

    # halo rows for the next layer
    zero_row = jnp.zeros((Rp, dim), o_ref.dtype)
    o_ref[0, 0] = zero_row
    o_ref[0, A + 1] = zero_row

    # columns that are R-padding inside each row -> forced to zero
    col = lax.broadcasted_iota(jnp.int32, (L, 1), 0) % Rp
    valid = jnp.logical_and(col >= 1, col <= R)

    scale = scale_ref[...]                 # (1, dim) f32
    bias = bias_ref[...]

    for c in range(A // T_A):              # static row-chunk loop
        y = None
        for dh in range(3):                # aligned row-slice per dh tap
            xs = x_ref[0, c * T_A + dh: c * T_A + dh + T_A]     # (T_A, Rp, dim) bf16
            if fold_k:
                # fold the 3 dw taps into the contraction dim: K = 3*dim
                lhs = jnp.concatenate(
                    [_shift_cols(xs, -1), xs, _shift_cols(xs, 1)], axis=2)
                t = jnp.dot(lhs.reshape(L, 3 * dim), w_ref[dh],
                            preferred_element_type=jnp.float32)
                y = t if y is None else y + t
            else:
                for dw in range(3):
                    xsw = _shift_cols(xs, dw - 1)
                    t = jnp.dot(xsw.reshape(L, dim), w_ref[dh, dw],
                                preferred_element_type=jnp.float32)
                    y = t if y is None else y + t
        y = jnp.maximum(y * scale + bias, 0.0)
        y = jnp.where(valid, y, 0.0)
        o_ref[0, 1 + c * T_A: 1 + (c + 1) * T_A] = (
            y.reshape(T_A, Rp, dim).astype(o_ref.dtype))


# ---------------------------------------------------------------------------
# pallas_call wrappers
# ---------------------------------------------------------------------------
def _pointwise_conv_bn_relu(x3, w_t, scale, bias):
    N, Cin, HW = x3.shape
    dim = w_t.shape[0]
    T_hw = _divisor_tile(HW, 4096, 128)      # large, lane-dense pixel tiles
    return pl.pallas_call(
        _pointwise_kernel,
        out_shape=jax.ShapeDtypeStruct((N, dim, HW), jnp.bfloat16),
        grid=(N, HW // T_hw),
        in_specs=[pl.BlockSpec((1, Cin, T_hw), lambda n, i: (n, 0, i)),
                  pl.BlockSpec((dim, Cin), lambda n, i: (0, 0)),
                  pl.BlockSpec((dim, 1), lambda n, i: (0, 0)),
                  pl.BlockSpec((dim, 1), lambda n, i: (0, 0))],
        out_specs=pl.BlockSpec((1, dim, T_hw), lambda n, i: (n, 0, i)),
        compiler_params=pltpu.CompilerParams(
            dimension_semantics=("parallel", "parallel"),
            vmem_limit_bytes=_vmem_limit_bytes()),
    )(x3, w_t, scale, bias)


def _dht_transform(votes_T, feat):
    AR, HW = votes_T.shape
    N, dim, _ = feat.shape
    big_vmem = _vmem_limit_bytes() > 64 * 1024 * 1024      # v5e/v6e (128 MiB parts)
    T_AR = _divisor_tile(AR, 2048 if big_vmem else 1024, 32)
    T_K = _divisor_tile(HW, 4096 if big_vmem else 2048, 128)
    kernel = functools.partial(_dht_kernel, N=N)
    return pl.pallas_call(
        kernel,
        out_shape=jax.ShapeDtypeStruct((N, AR, dim), jnp.bfloat16),
        grid=(AR // T_AR, HW // T_K),
        in_specs=[pl.BlockSpec((T_AR, T_K), lambda m, k: (m, k)),
                  pl.BlockSpec((N, dim, T_K), lambda m, k: (0, 0, k))],
        out_specs=pl.BlockSpec((N, T_AR, dim), lambda m, k: (0, m, 0)),
        scratch_shapes=[pltpu.VMEM((N, T_AR, dim), jnp.float32)],
        compiler_params=pltpu.CompilerParams(
            dimension_semantics=("parallel", "arbitrary"),
            vmem_limit_bytes=_vmem_limit_bytes()),
    )(votes_T, feat)


def _conv3x3_bn_relu(h, w, scale, bias, A, R):
    N, Ap2, Rp, dim = h.shape
    T_A = _pick_conv_row_tile(A, Rp)
    fold_k = (dim % 128 == 0)                # K=3*dim folding only for lane-dense dims
    w_k = w.reshape(3, 3 * dim, dim) if fold_k else w
    kernel = functools.partial(_conv3x3_kernel, A=A, R=R, T_A=T_A, fold_k=fold_k)
    return pl.pallas_call(
        kernel,
        out_shape=jax.ShapeDtypeStruct((N, Ap2, Rp, dim), jnp.bfloat16),
        grid=(N,),
        in_specs=[pl.BlockSpec((1, Ap2, Rp, dim), lambda n: (n, 0, 0, 0)),
                  pl.BlockSpec(w_k.shape, lambda n: (0,) * w_k.ndim),
                  pl.BlockSpec((1, dim), lambda n: (0, 0)),
                  pl.BlockSpec((1, dim), lambda n: (0, 0))],
        out_specs=pl.BlockSpec((1, Ap2, Rp, dim), lambda n: (n, 0, 0, 0)),
        compiler_params=pltpu.CompilerParams(
            dimension_semantics=("parallel",),
            vmem_limit_bytes=_vmem_limit_bytes()),
    )(h, w_k, scale, bias)


# ---------------------------------------------------------------------------
# Parameters / constants (vote matrix precomputed OUTSIDE the jitted forward)
# ---------------------------------------------------------------------------
def _fold_bn(gamma, beta, mean, var, eps=1e-5):
    scale = gamma / jnp.sqrt(var + eps)
    bias = beta - mean * scale
    return scale, bias


def _build_vote_matrix_T(H, W, num_angle, num_rho, row_align=256):
    """Transposed Deep-Hough vote matrix (AR_pad, H*W) as int8 (exact 0/1).

    Rows are padded up to a multiple of `row_align` so the DHT kernel always
    gets int8-friendly (multiple-of-32) bin tiles; padded rows never vote.
    """
    irho = float(int(math.sqrt(H * H + W * W) + 1)) / float(num_rho - 1)
    itheta = math.pi / num_angle
    angles = np.arange(num_angle, dtype=np.float64) * itheta
    tab_cos = np.cos(angles) / irho
    tab_sin = np.sin(angles) / irho
    ys, xs = np.meshgrid(np.arange(H), np.arange(W), indexing="ij")
    xc = (xs - W // 2).astype(np.float64)
    yc = (ys - H // 2).astype(np.float64)
    r = np.round(xc[None] * tab_cos[:, None, None]
                 + yc[None] * tab_sin[:, None, None]).astype(np.int64) + num_rho // 2
    AR = num_angle * num_rho
    AR_pad = _round_up(AR, row_align)
    M = np.zeros((AR_pad, H * W), np.int8)
    a_idx, y_idx, x_idx = np.nonzero((r >= 0) & (r < num_rho))
    pix = y_idx * W + x_idx
    bins = a_idx * num_rho + r[a_idx, y_idx, x_idx]
    M[bins, pix] = 1
    return jnp.asarray(M, dtype=jnp.int8)


def init_dht_layer_params(key, input_dim, dim):
    keys = jax.random.split(key, 16)
    p = {}
    # fist_conv: Conv2d(input_dim, dim, 1) (has bias) + BatchNorm2d(dim)
    p["w_first"] = 0.2 * jax.random.normal(keys[0], (input_dim, dim), jnp.float32)
    p["b_first"] = 0.1 * jax.random.normal(keys[1], (dim,), jnp.float32)
    p["bn_first_gamma"] = 1.0 + 0.1 * jax.random.normal(keys[2], (dim,), jnp.float32)
    p["bn_first_beta"] = 0.1 * jax.random.normal(keys[3], (dim,), jnp.float32)
    p["bn_first_mean"] = jnp.zeros((dim,), jnp.float32)
    p["bn_first_var"] = jnp.ones((dim,), jnp.float32)
    # convs: 2x ConvAct = 4x (Conv2d(dim, dim, 3, 1, 1, bias=None) + BN + ReLU)
    for idx in range(4):
        k = keys[4 + 3 * idx: 7 + 3 * idx]
        p[f"w_conv{idx}"] = 0.1 * jax.random.normal(k[0], (3, 3, dim, dim), jnp.float32)
        p[f"bn{idx}_gamma"] = 1.0 + 0.1 * jax.random.normal(k[1], (dim,), jnp.float32)
        p[f"bn{idx}_beta"] = 0.1 * jax.random.normal(k[2], (dim,), jnp.float32)
        p[f"bn{idx}_mean"] = jnp.zeros((dim,), jnp.float32)
        p[f"bn{idx}_var"] = jnp.ones((dim,), jnp.float32)
    return p


# ---------------------------------------------------------------------------
# Forward pass (mirrors DHT_Layer.forward), fully jittable
# ---------------------------------------------------------------------------
@functools.partial(jax.jit, static_argnames=("num_angle", "num_rho"))
def dht_layer_forward(x, params, votes_T, *, num_angle, num_rho):
    # x: (N, Cin, H, W) NCHW like the PyTorch module input.
    N, Cin, H, W = x.shape
    dim = params["w_first"].shape[1]
    A, R = num_angle, num_rho
    Rp = _round_up(R + 2, 16)          # bf16-sublane-aligned padded row width

    # --- fist_conv: 1x1 conv (+bias) + BN(eval) + ReLU, channels-first blocks --
    bn_s, bn_b = _fold_bn(params["bn_first_gamma"], params["bn_first_beta"],
                          params["bn_first_mean"], params["bn_first_var"])
    eff_scale = bn_s.reshape(dim, 1)
    eff_bias = (params["b_first"] * bn_s + bn_b).reshape(dim, 1)
    w_t = jnp.transpose(params["w_first"]).astype(jnp.bfloat16)      # (dim, Cin)
    x3 = x.reshape(N, Cin, H * W)                                    # free reshape
    feat = _pointwise_conv_bn_relu(x3, w_t, eff_scale, eff_bias)     # (N, dim, HW) bf16

    # --- DHT: votes @ feat^T, vote matrix streamed once for the whole batch ----
    accum = _dht_transform(votes_T, feat)                            # (N, AR_pad, dim)
    accum = accum[:, :A * R, :]                                      # drop align rows

    # --- convs: enter padded slab once, then 4x (3x3 conv + BN + ReLU) ---------
    h = accum.reshape(N, A, R, dim)
    h = jnp.pad(h, ((0, 0), (1, 1), (1, Rp - R - 1), (0, 0)))        # (N, A+2, Rp, dim)
    for idx in range(4):
        s, b = _fold_bn(params[f"bn{idx}_gamma"], params[f"bn{idx}_beta"],
                        params[f"bn{idx}_mean"], params[f"bn{idx}_var"])
        h = _conv3x3_bn_relu(h, params[f"w_conv{idx}"].astype(jnp.bfloat16),
                             s.reshape(1, dim), b.reshape(1, dim), A, R)

    # --- extract interior, back to NCHW: (N, dim, numAngle, numRho) ------------
    core = h[:, 1:A + 1, 1:R + 1, :]
    return jnp.transpose(core, (0, 3, 1, 2)).astype(jnp.float32)


if __name__ == "__main__":
    N, input_dim, H, W = 2, 4, 16, 16
    dim, num_angle, num_rho = 8, 16, 16

    key = jax.random.PRNGKey(0)
    kx, kp = jax.random.split(key)
    x = jax.random.normal(kx, (N, input_dim, H, W), jnp.float32)
    params = init_dht_layer_params(kp, input_dim, dim)
    votes_T = _build_vote_matrix_T(H, W, num_angle, num_rho)   # precomputed once

    out = dht_layer_forward(x, params, votes_T,
                            num_angle=num_angle, num_rho=num_rho)
    out = jax.block_until_ready(out)
    assert out.shape == (N, dim, num_angle, num_rho), out.shape
    assert bool(jnp.all(jnp.isfinite(out)))
    print("KERNEL_OK")
</pallas_src>

<mosaic_0001>
module attributes {stable_mosaic.version = 11 : i64} {
  func.func @_pointwise_kernel(%arg0: i32, %arg1: i32, %arg2: memref<1x4x256xf32, #tpu.memory_space<vmem>>, %arg3: memref<8x4xbf16, #tpu.memory_space<vmem>>, %arg4: memref<8x1xf32, #tpu.memory_space<vmem>>, %arg5: memref<8x1xf32, #tpu.memory_space<vmem>>, %arg6: memref<1x8x256xbf16, #tpu.memory_space<vmem>>) attributes {dimension_semantics = [#tpu.dimension_semantics<parallel>, #tpu.dimension_semantics<parallel>], iteration_bounds = array<i64: 2, 1>, scalar_prefetch = 0 : i64, scratch_operands = 0 : i64, tpu.core_type = #tpu.core_type<tc>, window_params = [{transform_indices = @transform_0, window_bounds = array<i64: 1, 4, 256>}, {pipeline_mode = #tpu.pipeline_mode<synchronous>, transform_indices = @transform_1, window_bounds = array<i64: 8, 4>}, {pipeline_mode = #tpu.pipeline_mode<synchronous>, transform_indices = @transform_2, window_bounds = array<i64: 8, 1>}, {pipeline_mode = #tpu.pipeline_mode<synchronous>, transform_indices = @transform_3, window_bounds = array<i64: 8, 1>}, {transform_indices = @transform_4, window_bounds = array<i64: 1, 8, 256>}]} {
    %c0 = arith.constant 0 : index
    %c0_0 = arith.constant 0 : index
    %c0_1 = arith.constant 0 : index
    %0 = vector.load %arg2[%c0, %c0_0, %c0_1] : memref<1x4x256xf32, #tpu.memory_space<vmem>>, vector<1x4x256xf32>
    %1 = vector.shape_cast %0 : vector<1x4x256xf32> to vector<4x256xf32>
    %2 = arith.truncf %1 : vector<4x256xf32> to vector<4x256xbf16>
    %c0_2 = arith.constant 0 : index
    %c0_3 = arith.constant 0 : index
    %3 = vector.load %arg3[%c0_2, %c0_3] : memref<8x4xbf16, #tpu.memory_space<vmem>>, vector<8x4xbf16>
    %cst = arith.constant dense<0.000000e+00> : vector<8x256xf32>
    %4 = tpu.matmul %3, %2, %cst {dimension_numbers = #tpu.dot_dimension_numbers<[1], [0], [0], [1], [0, 0, 1, 1], [], []>} : vector<8x4xbf16>, vector<4x256xbf16>, vector<8x256xf32> -> vector<8x256xf32>
    %c0_4 = arith.constant 0 : index
    %c0_5 = arith.constant 0 : index
    %5 = vector.load %arg4[%c0_4, %c0_5] : memref<8x1xf32, #tpu.memory_space<vmem>>, vector<8x1xf32>
    %6 = vector.broadcast %5 : vector<8x1xf32> to vector<8x256xf32>
    %7 = arith.mulf %4, %6 : vector<8x256xf32>
    %c0_6 = arith.constant 0 : index
    %c0_7 = arith.constant 0 : index
    %8 = vector.load %arg5[%c0_6, %c0_7] : memref<8x1xf32, #tpu.memory_space<vmem>>, vector<8x1xf32>
    %9 = vector.broadcast %8 : vector<8x1xf32> to vector<8x256xf32>
    %10 = arith.addf %7, %9 : vector<8x256xf32>
    %cst_8 = arith.constant 0.000000e+00 : f32
    %11 = vector.broadcast %cst_8 : f32 to vector<8x256xf32>
    %12 = arith.maximumf %10, %11 : vector<8x256xf32>
    %13 = arith.truncf %12 : vector<8x256xf32> to vector<8x256xbf16>
    %c0_9 = arith.constant 0 : index
    %c0_10 = arith.constant 0 : index
    %c0_11 = arith.constant 0 : index
    %14 = vector.load %arg6[%c0_9, %c0_10, %c0_11] : memref<1x8x256xbf16, #tpu.memory_space<vmem>>, vector<1x8x256xbf16>
    %15 = vector.shape_cast %14 : vector<1x8x256xbf16> to vector<8x256xbf16>
    %16 = vector.shape_cast %13 : vector<8x256xbf16> to vector<1x8x256xbf16>
    tpu.vector_store %arg6[%c0_9, %c0_10, %c0_11], %16 {strides = array<i32>} : memref<1x8x256xbf16, #tpu.memory_space<vmem>>, vector<1x8x256xbf16>,
    return
  }
  func.func @transform_0(%arg0: i32, %arg1: i32) -> (i32, i32, i32) {
    %c0_i32 = arith.constant 0 : i32
    %c0_i32_0 = arith.constant 0 : i32
    return %arg0, %c0_i32, %arg1 : i32, i32, i32
  }
  func.func @transform_1(%arg0: i32, %arg1: i32) -> (i32, i32) {
    %c0_i32 = arith.constant 0 : i32
    %c0_i32_0 = arith.constant 0 : i32
    %c0_i32_1 = arith.constant 0 : i32
    return %c0_i32, %c0_i32_0 : i32, i32
  }
  func.func @transform_2(%arg0: i32, %arg1: i32) -> (i32, i32) {
    %c0_i32 = arith.constant 0 : i32
    %c0_i32_0 = arith.constant 0 : i32
    %c0_i32_1 = arith.constant 0 : i32
    return %c0_i32, %c0_i32_0 : i32, i32
  }
  func.func @transform_3(%arg0: i32, %arg1: i32) -> (i32, i32) {
    %c0_i32 = arith.constant 0 : i32
    %c0_i32_0 = arith.constant 0 : i32
    %c0_i32_1 = arith.constant 0 : i32
    return %c0_i32, %c0_i32_0 : i32, i32
  }
  func.func @transform_4(%arg0: i32, %arg1: i32) -> (i32, i32, i32) {
    %c0_i32 = arith.constant 0 : i32
    %c0_i32_0 = arith.constant 0 : i32
    return %arg0, %c0_i32, %arg1 : i32, i32, i32
  }
}

module attributes {stable_mosaic.version = 11 : i64} {
  func.func @_dht_kernel(%arg0: i32, %arg1: i32, %arg2: memref<256x256xi8, #tpu.memory_space<vmem>>, %arg3: memref<2x8x256xbf16, #tpu.memory_space<vmem>>, %arg4: memref<2x256x8xbf16, #tpu.memory_space<vmem>>, %arg5: memref<2x256x8xf32, #tpu.memory_space<vmem>>) attributes {dimension_semantics = [#tpu.dimension_semantics<parallel>, #tpu.dimension_semantics<arbitrary>], iteration_bounds = array<i64: 1, 1>, scalar_prefetch = 0 : i64, scratch_operands = 1 : i64, tpu.core_type = #tpu.core_type<tc>, window_params = [{transform_indices = @transform_0, window_bounds = array<i64: 256, 256>}, {transform_indices = @transform_1, window_bounds = array<i64: 2, 8, 256>}, {transform_indices = @transform_2, window_bounds = array<i64: 2, 256, 8>}]} {
    %c0_i32 = arith.constant 0 : i32
    %0 = arith.cmpi eq, %arg1, %c0_i32 : i32
    %1 = arith.extui %0 : i1 to i32
    %c0_i32_0 = arith.constant 0 : i32
    %2 = arith.cmpi ne, %1, %c0_i32_0 : i32
    scf.if %2 {
      %cst_22 = arith.constant 0.000000e+00 : f32
      %27 = vector.broadcast %cst_22 : f32 to vector<2x256x8xf32>
      %c0_23 = arith.constant 0 : index
      %c0_24 = arith.constant 0 : index
      %c0_25 = arith.constant 0 : index
      %28 = vector.load %arg5[%c0_23, %c0_24, %c0_25] : memref<2x256x8xf32, #tpu.memory_space<vmem>>, vector<2x256x8xf32>
      tpu.vector_store %arg5[%c0_23, %c0_24, %c0_25], %27 {strides = array<i32>} : memref<2x256x8xf32, #tpu.memory_space<vmem>>, vector<2x256x8xf32>,
    } else {
    }
    %c0 = arith.constant 0 : index
    %c0_1 = arith.constant 0 : index
    %3 = vector.load %arg2[%c0, %c0_1] : memref<256x256xi8, #tpu.memory_space<vmem>>, vector<256x256xi8>
    %4 = arith.sitofp %3 : vector<256x256xi8> to vector<256x256xf32>
    %5 = arith.truncf %4 : vector<256x256xf32> to vector<256x256xbf16>
    %c0_2 = arith.constant 0 : index
    %c0_3 = arith.constant 0 : index
    %c0_4 = arith.constant 0 : index
    %6 = vector.load %arg5[%c0_2, %c0_3, %c0_4] : memref<2x256x8xf32, #tpu.memory_space<vmem>>, vector<1x256x8xf32>
    %7 = vector.shape_cast %6 : vector<1x256x8xf32> to vector<256x8xf32>
    %c0_5 = arith.constant 0 : index
    %c0_6 = arith.constant 0 : index
    %c0_7 = arith.constant 0 : index
    %8 = vector.load %arg3[%c0_5, %c0_6, %c0_7] : memref<2x8x256xbf16, #tpu.memory_space<vmem>>, vector<1x8x256xbf16>
    %9 = vector.shape_cast %8 : vector<1x8x256xbf16> to vector<8x256xbf16>
    %cst = arith.constant dense<0.000000e+00> : vector<256x8xf32>
    %10 = tpu.matmul %5, %9, %cst {dimension_numbers = #tpu.dot_dimension_numbers<[1], [1], [0], [0], [0, 0, 1, 0], [], []>} : vector<256x256xbf16>, vector<8x256xbf16>, vector<256x8xf32> -> vector<256x8xf32>
    %11 = arith.addf %7, %10 : vector<256x8xf32>
    %c0_8 = arith.constant 0 : index
    %c0_9 = arith.constant 0 : index
    %c0_10 = arith.constant 0 : index
    %12 = vector.load %arg5[%c0_8, %c0_9, %c0_10] : memref<2x256x8xf32, #tpu.memory_space<vmem>>, vector<1x256x8xf32>
    %13 = vector.shape_cast %12 : vector<1x256x8xf32> to vector<256x8xf32>
    %14 = vector.shape_cast %11 : vector<256x8xf32> to vector<1x256x8xf32>
    tpu.vector_store %arg5[%c0_8, %c0_9, %c0_10], %14 {strides = array<i32>} : memref<2x256x8xf32, #tpu.memory_space<vmem>>, vector<1x256x8xf32>,
    %c1 = arith.constant 1 : index
    %c0_11 = arith.constant 0 : index
    %c0_12 = arith.constant 0 : index
    %15 = vector.load %arg5[%c1, %c0_11, %c0_12] : memref<2x256x8xf32, #tpu.memory_space<vmem>>, vector<1x256x8xf32>
    %16 = vector.shape_cast %15 : vector<1x256x8xf32> to vector<256x8xf32>
    %c1_13 = arith.constant 1 : index
    %c0_14 = arith.constant 0 : index
    %c0_15 = arith.constant 0 : index
    %17 = vector.load %arg3[%c1_13, %c0_14, %c0_15] : memref<2x8x256xbf16, #tpu.memory_space<vmem>>, vector<1x8x256xbf16>
    %18 = vector.shape_cast %17 : vector<1x8x256xbf16> to vector<8x256xbf16>
    %cst_16 = arith.constant dense<0.000000e+00> : vector<256x8xf32>
    %19 = tpu.matmul %5, %18, %cst_16 {dimension_numbers = #tpu.dot_dimension_numbers<[1], [1], [0], [0], [0, 0, 1, 0], [], []>} : vector<256x256xbf16>, vector<8x256xbf16>, vector<256x8xf32> -> vector<256x8xf32>
    %20 = arith.addf %16, %19 : vector<256x8xf32>
    %c1_17 = arith.constant 1 : index
    %c0_18 = arith.constant 0 : index
    %c0_19 = arith.constant 0 : index
    %21 = vector.load %arg5[%c1_17, %c0_18, %c0_19] : memref<2x256x8xf32, #tpu.memory_space<vmem>>, vector<1x256x8xf32>
    %22 = vector.shape_cast %21 : vector<1x256x8xf32> to vector<256x8xf32>
    %23 = vector.shape_cast %20 : vector<256x8xf32> to vector<1x256x8xf32>
    tpu.vector_store %arg5[%c1_17, %c0_18, %c0_19], %23 {strides = array<i32>} : memref<2x256x8xf32, #tpu.memory_space<vmem>>, vector<1x256x8xf32>,
    %c0_i32_20 = arith.constant 0 : i32
    %24 = arith.cmpi eq, %arg1, %c0_i32_20 : i32
    %25 = arith.extui %24 : i1 to i32
    %c0_i32_21 = arith.constant 0 : i32
    %26 = arith.cmpi ne, %25, %c0_i32_21 : i32
    scf.if %26 {
      %c0_22 = arith.constant 0 : index
      %c0_23 = arith.constant 0 : index
      %c0_24 = arith.constant 0 : index
      %27 = vector.load %arg5[%c0_22, %c0_23, %c0_24] : memref<2x256x8xf32, #tpu.memory_space<vmem>>, vector<2x256x8xf32>
      %28 = arith.truncf %27 : vector<2x256x8xf32> to vector<2x256x8xbf16>
      %c0_25 = arith.constant 0 : index
      %c0_26 = arith.constant 0 : index
      %c0_27 = arith.constant 0 : index
      %29 = vector.load %arg4[%c0_25, %c0_26, %c0_27] : memref<2x256x8xbf16, #tpu.memory_space<vmem>>, vector<2x256x8xbf16>
      tpu.vector_store %arg4[%c0_25, %c0_26, %c0_27], %28 {strides = array<i32>} : memref<2x256x8xbf16, #tpu.memory_space<vmem>>, vector<2x256x8xbf16>,
    } else {
    }
    return
  }
  func.func @transform_0(%arg0: i32, %arg1: i32) -> (i32, i32) {
    %c0_i32 = arith.constant 0 : i32
    return %arg0, %arg1 : i32, i32
  }
  func.func @transform_1(%arg0: i32, %arg1: i32) -> (i32, i32, i32) {
    %c0_i32 = arith.constant 0 : i32
    %c0_i32_0 = arith.constant 0 : i32
    %c0_i32_1 = arith.constant 0 : i32
    return %c0_i32, %c0_i32_0, %arg1 : i32, i32, i32
  }
  func.func @transform_2(%arg0: i32, %arg1: i32) -> (i32, i32, i32) {
    %c0_i32 = arith.constant 0 : i32
    %c0_i32_0 = arith.constant 0 : i32
    %c0_i32_1 = arith.constant 0 : i32
    return %c0_i32, %arg0, %c0_i32_0 : i32, i32, i32
  }
}

module attributes {stable_mosaic.version = 11 : i64} {
  func.func @_conv3x3_kernel(%arg0: i32, %arg1: memref<1x18x32x8xbf16, #tpu.memory_space<vmem>>, %arg2: memref<3x3x8x8xbf16, #tpu.memory_space<vmem>>, %arg3: memref<1x8xf32, #tpu.memory_space<vmem>>, %arg4: memref<1x8xf32, #tpu.memory_space<vmem>>, %arg5: memref<1x18x32x8xbf16, #tpu.memory_space<vmem>>) attributes {dimension_semantics = [#tpu.dimension_semantics<parallel>], iteration_bounds = array<i64: 2>, scalar_prefetch = 0 : i64, scratch_operands = 0 : i64, tpu.core_type = #tpu.core_type<tc>, window_params = [{transform_indices = @transform_0, window_bounds = array<i64: 1, 18, 32, 8>}, {pipeline_mode = #tpu.pipeline_mode<synchronous>, transform_indices = @transform_1, window_bounds = array<i64: 3, 3, 8, 8>}, {pipeline_mode = #tpu.pipeline_mode<synchronous>, transform_indices = @transform_2, window_bounds = array<i64: 1, 8>}, {pipeline_mode = #tpu.pipeline_mode<synchronous>, transform_indices = @transform_3, window_bounds = array<i64: 1, 8>}, {transform_indices = @transform_4, window_bounds = array<i64: 1, 18, 32, 8>}]} {
    %cst = arith.constant 0.000000e+00 : bf16
    %0 = vector.broadcast %cst : bf16 to vector<32x8xbf16>
    %c0 = arith.constant 0 : index
    %c0_0 = arith.constant 0 : index
    %c0_1 = arith.constant 0 : index
    %c0_2 = arith.constant 0 : index
    %1 = vector.load %arg5[%c0, %c0_0, %c0_1, %c0_2] : memref<1x18x32x8xbf16, #tpu.memory_space<vmem>>, vector<1x1x32x8xbf16>
    %2 = vector.shape_cast %1 : vector<1x1x32x8xbf16> to vector<32x8xbf16>
    %3 = vector.shape_cast %0 : vector<32x8xbf16> to vector<1x1x32x8xbf16>
    tpu.vector_store %arg5[%c0, %c0_0, %c0_1, %c0_2], %3 {strides = array<i32>} : memref<1x18x32x8xbf16, #tpu.memory_space<vmem>>, vector<1x1x32x8xbf16>,
    %c0_3 = arith.constant 0 : index
    %c17 = arith.constant 17 : index
    %c0_4 = arith.constant 0 : index
    %c0_5 = arith.constant 0 : index
    %4 = vector.load %arg5[%c0_3, %c17, %c0_4, %c0_5] : memref<1x18x32x8xbf16, #tpu.memory_space<vmem>>, vector<1x1x32x8xbf16>
    %5 = vector.shape_cast %4 : vector<1x1x32x8xbf16> to vector<32x8xbf16>
    %6 = vector.shape_cast %0 : vector<32x8xbf16> to vector<1x1x32x8xbf16>
    tpu.vector_store %arg5[%c0_3, %c17, %c0_4, %c0_5], %6 {strides = array<i32>} : memref<1x18x32x8xbf16, #tpu.memory_space<vmem>>, vector<1x1x32x8xbf16>,
    %7 = tpu.iota {dimensions = array<i32: 0>} : vector<512x1xi32>
    %c32_i32 = arith.constant 32 : i32
    %c0_i32 = arith.constant 0 : i32
    %8 = arith.cmpi eq, %c32_i32, %c0_i32 : i32
    %c1_i32 = arith.constant 1 : i32
    %9 = arith.select %8, %c1_i32, %c32_i32 : i32
    %10 = vector.broadcast %9 : i32 to vector<512x1xi32>
    %11 = arith.remsi %7, %10 : vector<512x1xi32>
    %c0_i32_6 = arith.constant 0 : i32
    %12 = vector.broadcast %c0_i32_6 : i32 to vector<512x1xi32>
    %13 = arith.cmpi ne, %11, %12 : vector<512x1xi32>
    %c0_i32_7 = arith.constant 0 : i32
    %14 = vector.broadcast %c0_i32_7 : i32 to vector<512x1xi32>
    %15 = arith.cmpi slt, %11, %14 : vector<512x1xi32>
    %c0_i32_8 = arith.constant 0 : i32
    %16 = arith.cmpi slt, %9, %c0_i32_8 : i32
    %17 = vector.broadcast %16 : i1 to vector<512x1xi1>
    %18 = vector.broadcast %17 : vector<512x1xi1> to vector<512x1xi1>
    %19 = arith.xori %15, %18 : vector<512x1xi1>
    %20 = arith.andi %19, %13 : vector<512x1xi1>
    %21 = vector.broadcast %9 : i32 to vector<512x1xi32>
    %22 = arith.addi %11, %21 : vector<512x1xi32>
    %23 = arith.select %20, %22, %11 : vector<512x1xi1>, vector<512x1xi32>
    %c1_i32_9 = arith.constant 1 : i32
    %24 = vector.broadcast %c1_i32_9 : i32 to vector<512x1xi32>
    %25 = arith.cmpi sge, %23, %24 : vector<512x1xi32>
    %c16_i32 = arith.constant 16 : i32
    %26 = vector.broadcast %c16_i32 : i32 to vector<512x1xi32>
    %27 = arith.cmpi sle, %23, %26 : vector<512x1xi32>
    %28 = arith.andi %25, %27 : vector<512x1xi1>
    %c0_10 = arith.constant 0 : index
    %c0_11 = arith.constant 0 : index
    %29 = vector.load %arg3[%c0_10, %c0_11] : memref<1x8xf32, #tpu.memory_space<vmem>>, vector<1x8xf32>
    %c0_12 = arith.constant 0 : index
    %c0_13 = arith.constant 0 : index
    %30 = vector.load %arg4[%c0_12, %c0_13] : memref<1x8xf32, #tpu.memory_space<vmem>>, vector<1x8xf32>
    %c0_14 = arith.constant 0 : index
    %c0_15 = arith.constant 0 : index
    %c0_16 = arith.constant 0 : index
    %c0_17 = arith.constant 0 : index
    %31 = vector.load %arg1[%c0_14, %c0_15, %c0_16, %c0_17] : memref<1x18x32x8xbf16, #tpu.memory_space<vmem>>, vector<1x16x32x8xbf16>
    %32 = vector.shape_cast %31 : vector<1x16x32x8xbf16> to vector<16x32x8xbf16>
    %cst_18 = arith.constant 0.000000e+00 : bf16
    %33 = vector.broadcast %cst_18 : bf16 to vector<16x1x8xbf16>
    %34 = vector.extract_strided_slice %32 {offsets = [0, 0, 0], sizes = [16, 31, 8], strides = [1, 1, 1]} : vector<16x32x8xbf16> to vector<16x31x8xbf16>
    %35 = tpu.concatenate %33, %34 in 1 : vector<16x1x8xbf16>, vector<16x31x8xbf16> -> vector<16x32x8xbf16>
    %36 = vector.shape_cast %35 : vector<16x32x8xbf16> to vector<512x8xbf16>
    %c0_19 = arith.constant 0 : index
    %c0_20 = arith.constant 0 : index
    %c0_21 = arith.constant 0 : index
    %c0_22 = arith.constant 0 : index
    %37 = vector.load %arg2[%c0_19, %c0_20, %c0_21, %c0_22] : memref<3x3x8x8xbf16, #tpu.memory_space<vmem>>, vector<1x1x8x8xbf16>
    %38 = vector.shape_cast %37 : vector<1x1x8x8xbf16> to vector<8x8xbf16>
    %cst_23 = arith.constant dense<0.000000e+00> : vector<512x8xf32>
    %39 = tpu.matmul %36, %38, %cst_23 {dimension_numbers = #tpu.dot_dimension_numbers<[1], [0], [0], [1], [0, 0, 1, 1], [], []>} : vector<512x8xbf16>, vector<8x8xbf16>, vector<512x8xf32> -> vector<512x8xf32>
    %40 = vector.shape_cast %32 : vector<16x32x8xbf16> to vector<512x8xbf16>
    %c0_24 = arith.constant 0 : index
    %c1 = arith.constant 1 : index
    %c0_25 = arith.constant 0 : index
    %c0_26 = arith.constant 0 : index
    %41 = vector.load %arg2[%c0_24, %c1, %c0_25, %c0_26] : memref<3x3x8x8xbf16, #tpu.memory_space<vmem>>, vector<1x1x8x8xbf16>
    %42 = vector.shape_cast %41 : vector<1x1x8x8xbf16> to vector<8x8xbf16>
    %cst_27 = arith.constant dense<0.000000e+00> : vector<512x8xf32>
    %43 = tpu.matmul %40, %42, %cst_27 {dimension_numbers = #tpu.dot_dimension_numbers<[1], [0], [0], [1], [0, 0, 1, 1], [], []>} : vector<512x8xbf16>, vector<8x8xbf16>, vector<512x8xf32> -> vector<512x8xf32>
    %44 = arith.addf %39, %43 : vector<512x8xf32>
    %cst_28 = arith.constant 0.000000e+00 : bf16
    %45 = vector.broadcast %cst_28 : bf16 to vector<16x1x8xbf16>
    %46 = vector.extract_strided_slice %32 {offsets = [0, 1, 0], sizes = [16, 31, 8], strides = [1, 1, 1]} : vector<16x32x8xbf16> to vector<16x31x8xbf16>
    %47 = tpu.concatenate %46, %45 in 1 : vector<16x31x8xbf16>, vector<16x1x8xbf16> -> vector<16x32x8xbf16>
    %48 = vector.shape_cast %47 : vector<16x32x8xbf16> to vector<512x8xbf16>
    %c0_29 = arith.constant 0 : index
    %c2 = arith.constant 2 : index
    %c0_30 = arith.constant 0 : index
    %c0_31 = arith.constant 0 : index
    %49 = vector.load %arg2[%c0_29, %c2, %c0_30, %c0_31] : memref<3x3x8x8xbf16, #tpu.memory_space<vmem>>, vector<1x1x8x8xbf16>
    %50 = vector.shape_cast %49 : vector<1x1x8x8xbf16> to vector<8x8xbf16>
    %cst_32 = arith.constant dense<0.000000e+00> : vector<512x8xf32>
    %51 = tpu.matmul %48, %50, %cst_32 {dimension_numbers = #tpu.dot_dimension_numbers<[1], [0], [0], [1], [0, 0, 1, 1], [], []>} : vector<512x8xbf16>, vector<8x8xbf16>, vector<512x8xf32> -> vector<512x8xf32>
    %52 = arith.addf %44, %51 : vector<512x8xf32>
    %c0_33 = arith.constant 0 : index
    %c1_34 = arith.constant 1 : index
    %c0_35 = arith.constant 0 : index
    %c0_36 = arith.constant 0 : index
    %53 = vector.load %arg1[%c0_33, %c1_34, %c0_35, %c0_36] : memref<1x18x32x8xbf16, #tpu.memory_space<vmem>>, vector<1x16x32x8xbf16>
    %54 = vector.shape_cast %53 : vector<1x16x32x8xbf16> to vector<16x32x8xbf16>
    %cst_37 = arith.constant 0.000000e+00 : bf16
    %55 = vector.broadcast %cst_37 : bf16 to vector<16x1x8xbf16>
    %56 = vector.extract_strided_slice %54 {offsets = [0, 0, 0], sizes = [16, 31, 8], strides = [1, 1, 1]} : vector<16x32x8xbf16> to vector<16x31x8xbf16>
    %57 = tpu.concatenate %55, %56 in 1 : vector<16x1x8xbf16>, vector<16x31x8xbf16> -> vector<16x32x8xbf16>
    %58 = vector.shape_cast %57 : vector<16x32x8xbf16> to vector<512x8xbf16>
    %c1_38 = arith.constant 1 : index
    %c0_39 = arith.constant 0 : index
    %c0_40 = arith.constant 0 : index
    %c0_41 = arith.constant 0 : index
    %59 = vector.load %arg2[%c1_38, %c0_39, %c0_40, %c0_41] : memref<3x3x8x8xbf16, #tpu.memory_space<vmem>>, vector<1x1x8x8xbf16>
    %60 = vector.shape_cast %59 : vector<1x1x8x8xbf16> to vector<8x8xbf16>
    %cst_42 = arith.constant dense<0.000000e+00> : vector<512x8xf32>
    %61 = tpu.matmul %58, %60, %cst_42 {dimension_numbers = #tpu.dot_dimension_numbers<[1], [0], [0], [1], [0, 0, 1, 1], [], []>} : vector<512x8xbf16>, vector<8x8xbf16>, vector<512x8xf32> -> vector<512x8xf32>
    %62 = arith.addf %52, %61 : vector<512x8xf32>
    %63 = vector.shape_cast %54 : vector<16x32x8xbf16> to vector<512x8xbf16>
    %c1_43 = arith.constant 1 : index
    %c1_44 = arith.constant 1 : index
    %c0_45 = arith.constant 0 : index
    %c0_46 = arith.constant 0 : index
    %64 = vector.load %arg2[%c1_43, %c1_44, %c0_45, %c0_46] : memref<3x3x8x8xbf16, #tpu.memory_space<vmem>>, vector<1x1x8x8xbf16>
    %65 = vector.shape_cast %64 : vector<1x1x8x8xbf16> to vector<8x8xbf16>
    %cst_47 = arith.constant dense<0.000000e+00> : vector<512x8xf32>
    %66 = tpu.matmul %63, %65, %cst_47 {dimension_numbers = #tpu.dot_dimension_numbers<[1], [0], [0], [1], [0, 0, 1, 1], [], []>} : vector<512x8xbf16>, vector<8x8xbf16>, vector<512x8xf32> -> vector<512x8xf32>
    %67 = arith.addf %62, %66 : vector<512x8xf32>
    %cst_48 = arith.constant 0.000000e+00 : bf16
    %68 = vector.broadcast %cst_48 : bf16 to vector<16x1x8xbf16>
    %69 = vector.extract_strided_slice %54 {offsets = [0, 1, 0], sizes = [16, 31, 8], strides = [1, 1, 1]} : vector<16x32x8xbf16> to vector<16x31x8xbf16>
    %70 = tpu.concatenate %69, %68 in 1 : vector<16x31x8xbf16>, vector<16x1x8xbf16> -> vector<16x32x8xbf16>
    %71 = vector.shape_cast %70 : vector<16x32x8xbf16> to vector<512x8xbf16>
    %c1_49 = arith.constant 1 : index
    %c2_50 = arith.constant 2 : index
    %c0_51 = arith.constant 0 : index
    %c0_52 = arith.constant 0 : index
    %72 = vector.load %arg2[%c1_49, %c2_50, %c0_51, %c0_52] : memref<3x3x8x8xbf16, #tpu.memory_space<vmem>>, vector<1x1x8x8xbf16>
    %73 = vector.shape_cast %72 : vector<1x1x8x8xbf16> to vector<8x8xbf16>
    %cst_53 = arith.constant dense<0.000000e+00> : vector<512x8xf32>
    %74 = tpu.matmul %71, %73, %cst_53 {dimension_numbers = #tpu.dot_dimension_numbers<[1], [0], [0], [1], [0, 0, 1, 1], [], []>} : vector<512x8xbf16>, vector<8x8xbf16>, vector<512x8xf32> -> vector<512x8xf32>
    %75 = arith.addf %67, %74 : vector<512x8xf32>
    %c0_54 = arith.constant 0 : index
    %c2_55 = arith.constant 2 : index
    %c0_56 = arith.constant 0 : index
    %c0_57 = arith.constant 0 : index
    %76 = vector.load %arg1[%c0_54, %c2_55, %c0_56, %c0_57] : memref<1x18x32x8xbf16, #tpu.memory_space<vmem>>, vector<1x16x32x8xbf16>
    %77 = vector.shape_cast %76 : vector<1x16x32x8xbf16> to vector<16x32x8xbf16>
    %cst_58 = arith.constant 0.000000e+00 : bf16
    %78 = vector.broadcast %cst_58 : bf16 to vector<16x1x8xbf16>
    %79 = vector.extract_strided_slice %77 {offsets = [0, 0, 0], sizes = [16, 31, 8], strides = [1, 1, 1]} : vector<16x32x8xbf16> to vector<16x31x8xbf16>
    %80 = tpu.concatenate %78, %79 in 1 : vector<16x1x8xbf16>, vector<16x31x8xbf16> -> vector<16x32x8xbf16>
    %81 = vector.shape_cast %80 : vector<16x32x8xbf16> to vector<512x8xbf16>
    %c2_59 = arith.constant 2 : index
    %c0_60 = arith.constant 0 : index
    %c0_61 = arith.constant 0 : index
    %c0_62 = arith.constant 0 : index
    %82 = vector.load %arg2[%c2_59, %c0_60, %c0_61, %c0_62] : memref<3x3x8x8xbf16, #tpu.memory_space<vmem>>, vector<1x1x8x8xbf16>
    %83 = vector.shape_cast %82 : vector<1x1x8x8xbf16> to vector<8x8xbf16>
    %cst_63 = arith.constant dense<0.000000e+00> : vector<512x8xf32>
    %84 = tpu.matmul %81, %83, %cst_63 {dimension_numbers = #tpu.dot_dimension_numbers<[1], [0], [0], [1], [0, 0, 1, 1], [], []>} : vector<512x8xbf16>, vector<8x8xbf16>, vector<512x8xf32> -> vector<512x8xf32>
    %85 = arith.addf %75, %84 : vector<512x8xf32>
    %86 = vector.shape_cast %77 : vector<16x32x8xbf16> to vector<512x8xbf16>
    %c2_64 = arith.constant 2 : index
    %c1_65 = arith.constant 1 : index
    %c0_66 = arith.constant 0 : index
    %c0_67 = arith.constant 0 : index
    %87 = vector.load %arg2[%c2_64, %c1_65, %c0_66, %c0_67] : memref<3x3x8x8xbf16, #tpu.memory_space<vmem>>, vector<1x1x8x8xbf16>
    %88 = vector.shape_cast %87 : vector<1x1x8x8xbf16> to vector<8x8xbf16>
    %cst_68 = arith.constant dense<0.000000e+00> : vector<512x8xf32>
    %89 = tpu.matmul %86, %88, %cst_68 {dimension_numbers = #tpu.dot_dimension_numbers<[1], [0], [0], [1], [0, 0, 1, 1], [], []>} : vector<512x8xbf16>, vector<8x8xbf16>, vector<512x8xf32> -> vector<512x8xf32>
    %90 = arith.addf %85, %89 : vector<512x8xf32>
    %cst_69 = arith.constant 0.000000e+00 : bf16
    %91 = vector.broadcast %cst_69 : bf16 to vector<16x1x8xbf16>
    %92 = vector.extract_strided_slice %77 {offsets = [0, 1, 0], sizes = [16, 31, 8], strides = [1, 1, 1]} : vector<16x32x8xbf16> to vector<16x31x8xbf16>
    %93 = tpu.concatenate %92, %91 in 1 : vector<16x31x8xbf16>, vector<16x1x8xbf16> -> vector<16x32x8xbf16>
    %94 = vector.shape_cast %93 : vector<16x32x8xbf16> to vector<512x8xbf16>
    %c2_70 = arith.constant 2 : index
    %c2_71 = arith.constant 2 : index
    %c0_72 = arith.constant 0 : index
    %c0_73 = arith.constant 0 : index
    %95 = vector.load %arg2[%c2_70, %c2_71, %c0_72, %c0_73] : memref<3x3x8x8xbf16, #tpu.memory_space<vmem>>, vector<1x1x8x8xbf16>
    %96 = vector.shape_cast %95 : vector<1x1x8x8xbf16> to vector<8x8xbf16>
    %cst_74 = arith.constant dense<0.000000e+00> : vector<512x8xf32>
    %97 = tpu.matmul %94, %96, %cst_74 {dimension_numbers = #tpu.dot_dimension_numbers<[1], [0], [0], [1], [0, 0, 1, 1], [], []>} : vector<512x8xbf16>, vector<8x8xbf16>, vector<512x8xf32> -> vector<512x8xf32>
    %98 = arith.addf %90, %97 : vector<512x8xf32>
    %99 = vector.broadcast %29 : vector<1x8xf32> to vector<512x8xf32>
    %100 = arith.mulf %98, %99 : vector<512x8xf32>
    %101 = vector.broadcast %30 : vector<1x8xf32> to vector<512x8xf32>
    %102 = arith.addf %100, %101 : vector<512x8xf32>
    %cst_75 = arith.constant 0.000000e+00 : f32
    %103 = vector.broadcast %cst_75 : f32 to vector<512x8xf32>
    %104 = arith.maximumf %102, %103 : vector<512x8xf32>
    %cst_76 = arith.constant 0.000000e+00 : f32
    %105 = vector.shape_cast %28 : vector<512x1xi1> to vector<512x1xi1>
    %106 = vector.broadcast %105 : vector<512x1xi1> to vector<512x8xi1>
    %107 = vector.broadcast %cst_76 : f32 to vector<512x8xf32>
    %108 = arith.select %106, %104, %107 : vector<512x8xi1>, vector<512x8xf32>
    %109 = vector.shape_cast %108 : vector<512x8xf32> to vector<16x32x8xf32>
    %110 = arith.truncf %109 : vector<16x32x8xf32> to vector<16x32x8xbf16>
    %c0_77 = arith.constant 0 : index
    %c1_78 = arith.constant 1 : index
    %c0_79 = arith.constant 0 : index
    %c0_80 = arith.constant 0 : index
    %111 = vector.load %arg5[%c0_77, %c1_78, %c0_79, %c0_80] : memref<1x18x32x8xbf16, #tpu.memory_space<vmem>>, vector<1x16x32x8xbf16>
    %112 = vector.shape_cast %111 : vector<1x16x32x8xbf16> to vector<16x32x8xbf16>
    %113 = vector.shape_cast %110 : vector<16x32x8xbf16> to vector<1x16x32x8xbf16>
    tpu.vector_store %arg5[%c0_77, %c1_78, %c0_79, %c0_80], %113 {strides = array<i32>} : memref<1x18x32x8xbf16, #tpu.memory_space<vmem>>, vector<1x16x32x8xbf16>,
    return
  }
  func.func @transform_0(%arg0: i32) -> (i32, i32, i32, i32) {
    %c0_i32 = arith.constant 0 : i32
    %c0_i32_0 = arith.constant 0 : i32
    %c0_i32_1 = arith.constant 0 : i32
    %c0_i32_2 = arith.constant 0 : i32
    return %arg0, %c0_i32, %c0_i32_0, %c0_i32_1 : i32, i32, i32, i32
  }
  func.func @transform_1(%arg0: i32) -> (i32, i32, i32, i32) {
    %c0_i32 = arith.constant 0 : i32
    %c0_i32_0 = arith.constant 0 : i32
    %c0_i32_1 = arith.constant 0 : i32
    %c0_i32_2 = arith.constant 0 : i32
    %c0_i32_3 = arith.constant 0 : i32
    return %c0_i32, %c0_i32_0, %c0_i32_1, %c0_i32_2 : i32, i32, i32, i32
  }
  func.func @transform_2(%arg0: i32) -> (i32, i32) {
    %c0_i32 = arith.constant 0 : i32
    %c0_i32_0 = arith.constant 0 : i32
    %c0_i32_1 = arith.constant 0 : i32
    return %c0_i32, %c0_i32_0 : i32, i32
  }
  func.func @transform_3(%arg0: i32) -> (i32, i32) {
    %c0_i32 = arith.constant 0 : i32
    %c0_i32_0 = arith.constant 0 : i32
    %c0_i32_1 = arith.constant 0 : i32
    return %c0_i32, %c0_i32_0 : i32, i32
  }
  func.func @transform_4(%arg0: i32) -> (i32, i32, i32, i32) {
    %c0_i32 = arith.constant 0 : i32
    %c0_i32_0 = arith.constant 0 : i32
    %c0_i32_1 = arith.constant 0 : i32
    %c0_i32_2 = arith.constant 0 : i32
    return %arg0, %c0_i32, %c0_i32_0, %c0_i32_1 : i32, i32, i32, i32
  }
}

</mosaic_0001>

<llo_original>
// kernel: dht_layer_forward.6
$region0: #{dht_layer_forward.6}
  #allocation0 [shape = 'u32[]', space=smem, size = 0x4, offset = 0x4, fixed_abs, tag = 'smem constant byte address 0x4 - core index']
  #allocation1 [shape = 'u32[144,128]{1,0:T(1,128)}', space=vmem, size = 0x12000, scoped, tag = 'internal scratch']
  %s0 = inlined_call_operand.vmem [shape: f32[2,4,256], index: 0, kind: input, shape index: {}]
  %s1 = inlined_call_operand.vmem [shape: bf16[8,4], index: 1, kind: input, shape index: {}]
  %s2 = inlined_call_operand.vmem [shape: f32[8,1], index: 2, kind: input, shape index: {}]
  %s3 = inlined_call_operand.vmem [shape: f32[8,1], index: 3, kind: input, shape index: {}]
  %s4 = inlined_call_operand.vmem [shape: bf16[2,8,256], index: 4, kind: output, shape index: {}]
  %s5 = sld [smem:[#allocation0]]
  $region49: #{dht_layer_forward.6} parent=0
    _
  %s7 = ssub.s32 1, %s5
  %s8 = scalar_select 0, %s7, %s5
  loop: start=0, step=1, limit=4
  $region2: #{dht_layer_forward.6} parent=0 // loop_pre_header
    _
  $region3: #{dht_layer_forward.6} parent=0 // loop_header
    %s10 = sphi 0, %s14
    %p11 = scmp.ge.s32.totalorder %s10, 4
    %s17 = sphi 0, %s29
    %s18 = sphi 0, %s25
    %s19 = sphi 0, %s17
    %s20 = sphi 0, %s18
    %s21 = sphi 0, %s19
    %s22 = sphi 0, %s20
    %s34 = sphi 0, %s36
    %s37 = sphi 0, %s34
    %s38 = sphi 0, %s37
    %s54 = sphi 0, %s38
    %s58 = sphi 0, %s58
    %s60 = sphi 0, %s58
    %s61 = sphi 0, %s60
    %s75 = sphi 0, %s61
    %s79 = sphi 0, %s79
    %s81 = sphi 0, %s79
    %s82 = sphi 0, %s81
    %s96 = sphi 0, %s82
    %s100 = sphi 0, %s100
    %s102 = sphi 0, %s100
    %s103 = sphi 0, %s102
    %s117 = sphi 0, %s103
    %s125 = sphi 0, %s127
    %s128 = sphi 0, %s125
    %s129 = sphi 0, %s128
    %s145 = sphi 0, %s129
  $region4: #{dht_layer_forward.6} parent=0 // loop_header_branch
    %13 = sbr.rel (%p11) target = $region8
  $region5: #{dht_layer_forward.6} parent=0 // loop_body
    %s15 = ssub.s32 %s10, 1
    %s16 = ssub.s32 %s10, 2
    %s23 = sadd.s32 1, %s18
    %p24 = scmp.ge.s32.totalorder %s23, 1
    %s25 = scalar_select %p24, 0, %s23
    %s26 = sadd.s32 1, %s17
    %s27 = scalar_select %p24, %s26, %s17
    %p28 = scmp.ge.s32.totalorder %s27, 2
    %s29 = scalar_select %p28, 0, %s27
    %s30 = ssub.s32 %s17, %s29
    %s31 = ssub.s32 %s18, %s25
    %s32 = sor.u32 %s30, %s31
    %p33 = scmp.eq.s32.totalorder %s32, 0
    %s35 = sadd.s32 %s34, 1
    %s36 = scalar_select %p33, %s34, %s35
    %p39 = pneg %p33
    %p40 = scmp.eq.s32.totalorder %s10, 1
    %p41 = por %p39, %p40
    %p42 = scmp.ne.s32.totalorder %s34, %s37
    %p43 = scmp.eq.s32.totalorder %s10, 0
    %p44 = por %p42, %p43
    %p45 = scmp.ne.s32.totalorder %s34, %s37
    %p46 = scmp.eq.s32.totalorder %s15, 1
    %p47 = por %p45, %p46
    %p48 = scmp.ne.s32.totalorder %s37, %s38
    %p49 = scmp.eq.s32.totalorder %s15, 0
    %p50 = por %p48, %p49
    %p51 = scmp.ne.s32.totalorder %s37, %s38
    %p52 = scmp.eq.s32.totalorder %s16, 1
    %p53 = por %p51, %p52
    %p55 = scmp.ne.s32.totalorder %s38, %s54
    %p56 = scmp.eq.s32.totalorder %s16, 0
    %p57 = por %p55, %p56
    %s59 = sadd.s32 %s58, 1
    %p62 = scmp.eq.s32.totalorder %s10, 1
    %p63 = scmp.ne.s32.totalorder %s58, %s60
    %p64 = scmp.eq.s32.totalorder %s10, 0
    %p65 = por %p63, %p64
    %p66 = scmp.ne.s32.totalorder %s58, %s60
    %p67 = scmp.eq.s32.totalorder %s15, 1
    %p68 = por %p66, %p67
    %p69 = scmp.ne.s32.totalorder %s60, %s61
    %p70 = scmp.eq.s32.totalorder %s15, 0
    %p71 = por %p69, %p70
    %p72 = scmp.ne.s32.totalorder %s60, %s61
    %p73 = scmp.eq.s32.totalorder %s16, 1
    %p74 = por %p72, %p73
    %p76 = scmp.ne.s32.totalorder %s61, %s75
    %p77 = scmp.eq.s32.totalorder %s16, 0
    %p78 = por %p76, %p77
    %s80 = sadd.s32 %s79, 1
    %p83 = scmp.eq.s32.totalorder %s10, 1
    %p84 = scmp.ne.s32.totalorder %s79, %s81
    %p85 = scmp.eq.s32.totalorder %s10, 0
    %p86 = por %p84, %p85
    %p87 = scmp.ne.s32.totalorder %s79, %s81
    %p88 = scmp.eq.s32.totalorder %s15, 1
    %p89 = por %p87, %p88
    %p90 = scmp.ne.s32.totalorder %s81, %s82
    %p91 = scmp.eq.s32.totalorder %s15, 0
    %p92 = por %p90, %p91
    %p93 = scmp.ne.s32.totalorder %s81, %s82
    %p94 = scmp.eq.s32.totalorder %s16, 1
    %p95 = por %p93, %p94
    %p97 = scmp.ne.s32.totalorder %s82, %s96
    %p98 = scmp.eq.s32.totalorder %s16, 0
    %p99 = por %p97, %p98
    %s101 = sadd.s32 %s100, 1
    %p104 = scmp.eq.s32.totalorder %s10, 1
    %p105 = scmp.ne.s32.totalorder %s100, %s102
    %p106 = scmp.eq.s32.totalorder %s10, 0
    %p107 = por %p105, %p106
    %p108 = scmp.ne.s32.totalorder %s100, %s102
    %p109 = scmp.eq.s32.totalorder %s15, 1
    %p110 = por %p108, %p109
    %p111 = scmp.ne.s32.totalorder %s102, %s103
    %p112 = scmp.eq.s32.totalorder %s15, 0
    %p113 = por %p111, %p112
    %p114 = scmp.ne.s32.totalorder %s102, %s103
    %p115 = scmp.eq.s32.totalorder %s16, 1
    %p116 = por %p114, %p115
    %p118 = scmp.ne.s32.totalorder %s103, %s117
    %p119 = scmp.eq.s32.totalorder %s16, 0
    %p120 = por %p118, %p119
    %s121 = ssub.s32 %s17, %s29
    %s122 = ssub.s32 %s18, %s25
    %s123 = sor.u32 %s121, %s122
    %p124 = scmp.eq.s32.totalorder %s123, 0
    %s126 = sadd.s32 %s125, 1
    %s127 = scalar_select %p124, %s125, %s126
    %p130 = pneg %p124
    %p131 = scmp.eq.s32.totalorder %s10, 1
    %p132 = por %p130, %p131
    %p133 = scmp.ne.s32.totalorder %s125, %s128
    %p134 = scmp.eq.s32.totalorder %s10, 0
    %p135 = por %p133, %p134
    %p136 = scmp.ne.s32.totalorder %s125, %s128
    %p137 = scmp.eq.s32.totalorder %s15, 1
    %p138 = por %p136, %p137
    %p139 = scmp.ne.s32.totalorder %s128, %s129
    %p140 = scmp.eq.s32.totalorder %s15, 0
    %p141 = por %p139, %p140
    %p142 = scmp.ne.s32.totalorder %s128, %s129
    %p143 = scmp.eq.s32.totalorder %s16, 1
    %p144 = por %p142, %p143
    %p146 = scmp.ne.s32.totalorder %s129, %s145
    %p147 = scmp.eq.s32.totalorder %s16, 0
    %p148 = por %p146, %p147
    %p149 = scmp.le.s32.totalorder 1, %s10
    %p150 = scmp.lt.s32.totalorder %s10, 3
    %p151 = pnand %p149, %p150
    %p152 = pneg %p151
    // Predicated region
    $region9: #{dht_layer_forward.6} parent=5 // pred_check
      _
    $region10: #{dht_layer_forward.6} parent=5 // pred_check_branch
      %154 = sbr.rel (%p151) target = $region12
    $region11: #{dht_layer_forward.6} parent=5 // pred_region
      %s155 = ssub.s32 %s10, 1
      // Predicated region
      $region13: #{dht_layer_forward.6} parent=11 // pred_check
        %p156 = pneg %p71
      $region14: #{dht_layer_forward.6} parent=11 // pred_check_branch
        %158 = sbr.rel (%p156) target = $region16
      $region15: #{dht_layer_forward.6} parent=11 // pred_region
        _
      $region16: #{dht_layer_forward.6} parent=11 // pred_fallthru
        _
      // Predicated region
      $region17: #{dht_layer_forward.6} parent=11 // pred_check
        %p159 = pneg %p92
      $region18: #{dht_layer_forward.6} parent=11 // pred_check_branch
        %161 = sbr.rel (%p159) target = $region20
      $region19: #{dht_layer_forward.6} parent=11 // pred_region
        _
      $region20: #{dht_layer_forward.6} parent=11 // pred_fallthru
        _
      // Predicated region
      $region21: #{dht_layer_forward.6} parent=11 // pred_check
        %p162 = pneg %p113
      $region22: #{dht_layer_forward.6} parent=11 // pred_check_branch
        %164 = sbr.rel (%p162) target = $region24
      $region23: #{dht_layer_forward.6} parent=11 // pred_region
        _
      $region24: #{dht_layer_forward.6} parent=11 // pred_fallthru
        _
    $region12: #{dht_layer_forward.6} parent=5 // pred_fallthru
      _
    %p165 = scmp.lt.s32.totalorder %s10, 2
    // Predicated region
    $region25: #{dht_layer_forward.6} parent=5 // pred_check
      %p166 = pneg %p165
    $region26: #{dht_layer_forward.6} parent=5 // pred_check_branch
      %168 = sbr.rel (%p166) target = $region28
    $region27: #{dht_layer_forward.6} parent=5 // pred_region
      // Predicated region
      $region29: #{dht_layer_forward.6} parent=27 // pred_check
        %p169 = pneg %p44
      $region30: #{dht_layer_forward.6} parent=27 // pred_check_branch
        %171 = sbr.rel (%p169) target = $region32
      $region31: #{dht_layer_forward.6} parent=27 // pred_region
        %s172 = smul.u32 2, %s18
        %p173 = scmp.lt.s32.totalorder %s17, 1
        %s174 = scalar_select %p173, %s17, 1
        %p175 = scmp.lt.s32.totalorder %s172, 1
        %s176 = scalar_select %p175, %s172, 1
        %s177 = smul.addr %s174, 2
        %s178 = sadd.s32 %s176, %s177
        %s179 = smul.addr %s178, 4
        %s180 = scalar_lea.vmem %s0, %s179
        %s181 = smul.u32 2, %s18
      $region32: #{dht_layer_forward.6} parent=27 // pred_fallthru
        _
    $region28: #{dht_layer_forward.6} parent=5 // pred_fallthru
      _
    %p182 = scmp.le.s32.totalorder 1, %s10
    %p183 = scmp.lt.s32.totalorder %s10, 3
    %p184 = pnand %p182, %p183
    %p185 = pneg %p184
    // Predicated region
    $region33: #{dht_layer_forward.6} parent=5 // pred_check
      _
    $region34: #{dht_layer_forward.6} parent=5 // pred_check_branch
      %187 = sbr.rel (%p184) target = $region36
    $region35: #{dht_layer_forward.6} parent=5 // pred_region
      %s188 = ssub.s32 %s10, 1
      %s189 = smul.u32 2, %s20
      %p190 = scmp.lt.s32.totalorder %s19, 1
      %s191 = scalar_select %p190, %s19, 1
      %p192 = scmp.lt.s32.totalorder %s189, 1
      %s193 = scalar_select %p192, %s189, 1
      %s194 = smul.addr %s191, 2
      %s195 = sadd.s32 %s193, %s194
      %s196 = smul.addr %s195, 4
      %s197 = scalar_lea.vmem %s0, %s196
      %p198 = pneg %p50
      %p199 = pneg %p47
      %p200 = pneg %p71
      %p201 = pneg %p68
      %p202 = pneg %p92
      %p203 = pneg %p89
      %p204 = pneg %p113
      %p205 = pneg %p110
      %p206 = pneg %p141
      %p207 = pneg %p138
      %s208 = smul.u32 2, %s20
      %p209 = scmp.lt.s32.totalorder %s19, 1
      %s210 = scalar_select %p209, %s19, 1
      %p211 = scmp.lt.s32.totalorder %s208, 1
      %s212 = scalar_select %p211, %s208, 1
      %s213 = smul.addr %s210, 2
      %s214 = sadd.s32 %s212, %s213
      %s215 = smul.addr %s214, 4
      %s216 = scalar_lea.vmem %s4, %s215
      %s217 = smul.u32 2, %s20
      %p218 = scmp.lt.s32.totalorder %s19, 1
      %s219 = scalar_select %p218, %s19, 1
      %p220 = scmp.lt.s32.totalorder %s217, 1
      %s221 = scalar_select %p220, %s217, 1
      %s222 = smul.addr %s219, 2
      %s223 = sadd.s32 %s221, %s222
      %s224 = smul.addr %s223, 4
      %s225 = scalar_lea.vmem %s0, %s224
      %s226 = smul.u32 2, %s20
      %s227 = smul.u32 2, %s20
      %p228 = scmp.lt.s32.totalorder %s19, 1
      %s229 = scalar_select %p228, %s19, 1
      %p230 = scmp.lt.s32.totalorder %s227, 1
      %s231 = scalar_select %p230, %s227, 1
      %s232 = smul.addr %s229, 2
      %s233 = sadd.s32 %s231, %s232
      %s234 = smul.addr %s233, 4
      %s235 = scalar_lea.vmem %s4, %s234
      %s236 = smul.u32 2, %s20
      %v238 = vld [vmem:[%s225] sm:$0xff]
      %v240 = vcombine.high %v238, %v238
      %v242 = vpack.c.bf16 %v238, %v238
      %v243 = vpack.c.bf16 %v240, %v240
      %v244 = vld [vmem:[%s1] sm:$0xf]
      %vm245 = vcmask 31744
      %v247 = vsel %vm245, %v244, 0
      %vm249 = vcmask 1041408
      %v251 = vsel %vm249, %v242, 0
      %v254 = vsel %vm249, %v243, 0
      %256 = vmatprep.subr.bf16.mxu0 %v254
      %257 = vmatpush1.bf16.msra.mxu0 %v251
      %258 = vmatprep.subr.bf16.mxu0 0
      %259 = vmatpush1.bf16.msra.mxu0 0
      %260 = vmatprep.subr.bf16.mxu0 0
      %261 = vmatpush1.bf16.msra.mxu0 0
      %262 = vmatprep.subr.bf16.mxu0 0
      %263 = vmatpush1.bf16.msra.mxu0 0
      %264 = vmatprep.subr.bf16.mxu0 0
      %265 = vmatpush1.bf16.msra.mxu0 0
      %266 = vmatprep.subr.bf16.mxu0 0
      %267 = vmatpush1.bf16.msra.mxu0 0
      %268 = vmatprep.subr.bf16.mxu0 0
      %269 = vmatpush1.bf16.msra.mxu0 0
      %270 = vmatprep.subr.bf16.mxu0 0
      %271 = vmatpush1.bf16.msra.mxu0 0
      %272 = vmatprep.subr.bf16.mxu0 0
      %273 = vmatpush1.bf16.msra.mxu0 0
      %274 = vmatprep.subr.bf16.mxu0 0
      %275 = vmatpush1.bf16.msra.mxu0 0
      %276 = vmatprep.subr.bf16.mxu0 0
      %277 = vmatpush1.bf16.msra.mxu0 0
      %278 = vmatprep.subr.bf16.mxu0 0
      %279 = vmatpush1.bf16.msra.mxu0 0
      %280 = vmatprep.subr.bf16.mxu0 0
      %281 = vmatpush1.bf16.msra.mxu0 0
      %282 = vmatprep.subr.bf16.mxu0 0
      %283 = vmatpush1.bf16.msra.mxu0 0
      %284 = vmatprep.subr.bf16.mxu0 0
      %285 = vmatpush1.bf16.msra.mxu0 0
      %286 = vmatprep.subr.bf16.mxu0 0
      %287 = vmatpush1.bf16.msra.mxu0 0
      %288 = vmatprep.mubr.bf16.mxu0 0
      %289 = vmatmul.mubr.bf16.gmra.mrb[0].mxu0 %v247
      %v290 = vpop.f32.mrb[0].mxu0
      %v291 = vadd.f32 0.0, %v290
      %v292 = vpop.f32.mrb[0].mxu0
      %v293 = vadd.f32 0.0, %v292
      %v294 = vpop.f32.mrb[0].mxu0
      %v295 = vpop.f32.mrb[0].mxu0
      %296 = vdwg.mxu0
      %v297 = vld [vmem:[%s2] sm:$0xff]
      %299 = vset.pattern.permute.xlu0 0
      %300 = vperm.xlu0 %299, %v297
      %v301 = vpop.permute.xlu0 %300
      %v303 = vmul.f32 %v291, %v301
      %v304 = vmul.f32 %v293, %v301
      %v305 = vld [vmem:[%s3] sm:$0xff]
      %307 = vset.pattern.permute.xlu0 0
      %308 = vperm.xlu0 %307, %v305
      %v309 = vpop.permute.xlu0 %308
      %v311 = vadd.f32 %v303, %v309
      %v312 = vadd.f32 %v304, %v309
      %v313 = vmax.f32 %v311, 0.0
      %v314 = vmax.f32 %v312, 0.0
      %v315 = vpack.c.bf16 %v313, %v313
      %v316 = vpack.c.bf16 %v314, %v314
      %v319 = vunpack.c.l.b16 %v315
      %v320 = vunpack.c.l.b16 %v316
      %v321 = vpack.c.b16 %v320, %v319
      %323 = vst [vmem:[%s235] sm:$0xff] %v321
      %s324 = smul.u32 2, %s20
      %p325 = scmp.lt.s32.totalorder %s19, 1
      %s326 = scalar_select %p325, %s19, 1
      %p327 = scmp.lt.s32.totalorder %s324, 1
      %s328 = scalar_select %p327, %s324, 1
      %s329 = smul.addr %s326, 2
      %s330 = sadd.s32 %s328, %s329
      %s331 = smul.addr %s330, 4
      %s332 = scalar_lea.vmem %s4, %s331
      // Predicated region
      $region37: #{dht_layer_forward.6} parent=35 // pred_check
        %p333 = pneg %p138
      $region38: #{dht_layer_forward.6} parent=35 // pred_check_branch
        %335 = sbr.rel (%p333) target = $region40
      $region39: #{dht_layer_forward.6} parent=35 // pred_region
        %s336 = smul.u32 2, %s20
      $region40: #{dht_layer_forward.6} parent=35 // pred_fallthru
        _
    $region36: #{dht_layer_forward.6} parent=5 // pred_fallthru
      _
    %p337 = scmp.le.s32.totalorder 2, %s10
    // Predicated region
    $region41: #{dht_layer_forward.6} parent=5 // pred_check
      %p338 = pneg %p337
    $region42: #{dht_layer_forward.6} parent=5 // pred_check_branch
      %340 = sbr.rel (%p338) target = $region44
    $region43: #{dht_layer_forward.6} parent=5 // pred_region
      %s341 = ssub.s32 %s10, 2
      // Predicated region
      $region45: #{dht_layer_forward.6} parent=43 // pred_check
        %p342 = pneg %p144
      $region46: #{dht_layer_forward.6} parent=43 // pred_check_branch
        %344 = sbr.rel (%p342) target = $region48
      $region47: #{dht_layer_forward.6} parent=43 // pred_region
        %s345 = smul.u32 2, %s22
        %p346 = scmp.lt.s32.totalorder %s21, 1
        %s347 = scalar_select %p346, %s21, 1
        %p348 = scmp.lt.s32.totalorder %s345, 1
        %s349 = scalar_select %p348, %s345, 1
        %s350 = smul.addr %s347, 2
        %s351 = sadd.s32 %s349, %s350
        %s352 = smul.addr %s351, 4
        %s353 = scalar_lea.vmem %s4, %s352
      $region48: #{dht_layer_forward.6} parent=43 // pred_fallthru
        _
    $region44: #{dht_layer_forward.6} parent=5 // pred_fallthru
      _
  $region6: #{dht_layer_forward.6} parent=0 // loop_footer
    %s14 = sadd.s32 1, %s10
  $region7: #{dht_layer_forward.6} parent=0 // loop_footer_branch
    %9 = sbr.rel target = $region3
  $region8: #{dht_layer_forward.6} parent=0 // loop_exit
    _

// kernel: dht_layer_forward.7
$region0: #{dht_layer_forward.7}
  #allocation0 [shape = 'u32[]', space=smem, size = 0x4, offset = 0x4, fixed_abs, tag = 'smem constant byte address 0x4 - core index']
  #allocation1 [shape = 'u32[144,128]{1,0:T(1,128)}', space=vmem, size = 0x12000, scoped, tag = 'internal scratch']
  #allocation2 [shape = 'f32[2,256,8]{2,1,0:T(8,128)}', space=vmem, size = 0x40000, scoped, tag = 'scratch operand']
  %s0 = inlined_call_operand.vmem [shape: s8[256,256], index: 0, kind: input, shape index: {}]
  %s1 = inlined_call_operand.vmem [shape: bf16[2,8,256], index: 1, kind: input, shape index: {}]
  %s2 = inlined_call_operand.vmem [shape: bf16[2,256,8], index: 2, kind: output, shape index: {}]
  %s3 = sld [smem:[#allocation0]]
  $region26: #{dht_layer_forward.7} parent=0
    _
  %s5 = ssub.s32 1, %s3
  %s6 = scalar_select 0, %s5, %s3
  // Predicated region
  $region2: #{dht_layer_forward.7} parent=0 // pred_check
    _
  $region3: #{dht_layer_forward.7} parent=0 // pred_check_branch
    %8 = sbr.rel (0) target = $region5
  $region4: #{dht_layer_forward.7} parent=0 // pred_region
    _
  $region5: #{dht_layer_forward.7} parent=0 // pred_fallthru
    _
  // Predicated region
  $region6: #{dht_layer_forward.7} parent=0 // pred_check
    _
  $region7: #{dht_layer_forward.7} parent=0 // pred_check_branch
    %10 = sbr.rel (0) target = $region9
  $region8: #{dht_layer_forward.7} parent=0 // pred_region
    _
  $region9: #{dht_layer_forward.7} parent=0 // pred_fallthru
    _
  %p12 = scmp.eq.s32.totalorder 0, 0
  // Predicated region
  $region10: #{dht_layer_forward.7} parent=0 // pred_check
    %p13 = pneg %p12
  $region11: #{dht_layer_forward.7} parent=0 // pred_check_branch
    %15 = sbr.rel (%p13) target = $region13
  $region12: #{dht_layer_forward.7} parent=0 // pred_region
    %vm16 = vcmask 64512
    %17 = vst.msk [vmem:[#allocation2] sm:$0xff] %vm16, 0.0
    %18 = vst.msk [vmem:[#allocation2 + $0x8] sm:$0xff] %vm16, 0.0
    %19 = vst.msk [vmem:[#allocation2 + $0x10] sm:$0xff] %vm16, 0.0
    %20 = vst.msk [vmem:[#allocation2 + $0x18] sm:$0xff] %vm16, 0.0
    %21 = vst.msk [vmem:[#allocation2 + $0x20] sm:$0xff] %vm16, 0.0
    %22 = vst.msk [vmem:[#allocation2 + $0x28] sm:$0xff] %vm16, 0.0
    %23 = vst.msk [vmem:[#allocation2 + $0x30] sm:$0xff] %vm16, 0.0
    %24 = vst.msk [vmem:[#allocation2 + $0x38] sm:$0xff] %vm16, 0.0
    %25 = vst.msk [vmem:[#allocation2 + $0x40] sm:$0xff] %vm16, 0.0
    %26 = vst.msk [vmem:[#allocation2 + $0x48] sm:$0xff] %vm16, 0.0
    %27 = vst.msk [vmem:[#allocation2 + $0x50] sm:$0xff] %vm16, 0.0
    %28 = vst.msk [vmem:[#allocation2 + $0x58] sm:$0xff] %vm16, 0.0
    %29 = vst.msk [vmem:[#allocation2 + $0x60] sm:$0xff] %vm16, 0.0
    %30 = vst.msk [vmem:[#allocation2 + $0x68] sm:$0xff] %vm16, 0.0
    %31 = vst.msk [vmem:[#allocation2 + $0x70] sm:$0xff] %vm16, 0.0
    %32 = vst.msk [vmem:[#allocation2 + $0x78] sm:$0xff] %vm16, 0.0
    %33 = vst.msk [vmem:[#allocation2 + $0x80] sm:$0xff] %vm16, 0.0
    %34 = vst.msk [vmem:[#allocation2 + $0x88] sm:$0xff] %vm16, 0.0
    %35 = vst.msk [vmem:[#allocation2 + $0x90] sm:$0xff] %vm16, 0.0
    %36 = vst.msk [vmem:[#allocation2 + $0x98] sm:$0xff] %vm16, 0.0
    %37 = vst.msk [vmem:[#allocation2 + $0xa0] sm:$0xff] %vm16, 0.0
    %38 = vst.msk [vmem:[#allocation2 + $0xa8] sm:$0xff] %vm16, 0.0
    %39 = vst.msk [vmem:[#allocation2 + $0xb0] sm:$0xff] %vm16, 0.0
    %40 = vst.msk [vmem:[#allocation2 + $0xb8] sm:$0xff] %vm16, 0.0
    %41 = vst.msk [vmem:[#allocation2 + $0xc0] sm:$0xff] %vm16, 0.0
    %42 = vst.msk [vmem:[#allocation2 + $0xc8] sm:$0xff] %vm16, 0.0
    %43 = vst.msk [vmem:[#allocation2 + $0xd0] sm:$0xff] %vm16, 0.0
    %44 = vst.msk [vmem:[#allocation2 + $0xd8] sm:$0xff] %vm16, 0.0
    %45 = vst.msk [vmem:[#allocation2 + $0xe0] sm:$0xff] %vm16, 0.0
    %46 = vst.msk [vmem:[#allocation2 + $0xe8] sm:$0xff] %vm16, 0.0
    %47 = vst.msk [vmem:[#allocation2 + $0xf0] sm:$0xff] %vm16, 0.0
    %48 = vst.msk [vmem:[#allocation2 + $0xf8] sm:$0xff] %vm16, 0.0
    %49 = vst.msk [vmem:[#allocation2 + $0x100] sm:$0xff] %vm16, 0.0
    %50 = vst.msk [vmem:[#allocation2 + $0x108] sm:$0xff] %vm16, 0.0
    %51 = vst.msk [vmem:[#allocation2 + $0x110] sm:$0xff] %vm16, 0.0
    %52 = vst.msk [vmem:[#allocation2 + $0x118] sm:$0xff] %vm16, 0.0
    %53 = vst.msk [vmem:[#allocation2 + $0x120] sm:$0xff] %vm16, 0.0
    %54 = vst.msk [vmem:[#allocation2 + $0x128] sm:$0xff] %vm16, 0.0
    %55 = vst.msk [vmem:[#allocation2 + $0x130] sm:$0xff] %vm16, 0.0
    %56 = vst.msk [vmem:[#allocation2 + $0x138] sm:$0xff] %vm16, 0.0
    %57 = vst.msk [vmem:[#allocation2 + $0x140] sm:$0xff] %vm16, 0.0
    %58 = vst.msk [vmem:[#allocation2 + $0x148] sm:$0xff] %vm16, 0.0
    %59 = vst.msk [vmem:[#allocation2 + $0x150] sm:$0xff] %vm16, 0.0
    %60 = vst.msk [vmem:[#allocation2 + $0x158] sm:$0xff] %vm16, 0.0
    %61 = vst.msk [vmem:[#allocation2 + $0x160] sm:$0xff] %vm16, 0.0
    %62 = vst.msk [vmem:[#allocation2 + $0x168] sm:$0xff] %vm16, 0.0
    %63 = vst.msk [vmem:[#allocation2 + $0x170] sm:$0xff] %vm16, 0.0
    %64 = vst.msk [vmem:[#allocation2 + $0x178] sm:$0xff] %vm16, 0.0
    %65 = vst.msk [vmem:[#allocation2 + $0x180] sm:$0xff] %vm16, 0.0
    %66 = vst.msk [vmem:[#allocation2 + $0x188] sm:$0xff] %vm16, 0.0
    %67 = vst.msk [vmem:[#allocation2 + $0x190] sm:$0xff] %vm16, 0.0
    %68 = vst.msk [vmem:[#allocation2 + $0x198] sm:$0xff] %vm16, 0.0
    %69 = vst.msk [vmem:[#allocation2 + $0x1a0] sm:$0xff] %vm16, 0.0
    %70 = vst.msk [vmem:[#allocation2 + $0x1a8] sm:$0xff] %vm16, 0.0
    %71 = vst.msk [vmem:[#allocation2 + $0x1b0] sm:$0xff] %vm16, 0.0
    %72 = vst.msk [vmem:[#allocation2 + $0x1b8] sm:$0xff] %vm16, 0.0
    %73 = vst.msk [vmem:[#allocation2 + $0x1c0] sm:$0xff] %vm16, 0.0
    %74 = vst.msk [vmem:[#allocation2 + $0x1c8] sm:$0xff] %vm16, 0.0
    %75 = vst.msk [vmem:[#allocation2 + $0x1d0] sm:$0xff] %vm16, 0.0
    %76 = vst.msk [vmem:[#allocation2 + $0x1d8] sm:$0xff] %vm16, 0.0
    %77 = vst.msk [vmem:[#allocation2 + $0x1e0] sm:$0xff] %vm16, 0.0
    %78 = vst.msk [vmem:[#allocation2 + $0x1e8] sm:$0xff] %vm16, 0.0
    %79 = vst.msk [vmem:[#allocation2 + $0x1f0] sm:$0xff] %vm16, 0.0
    %80 = vst.msk [vmem:[#allocation2 + $0x1f8] sm:$0xff] %vm16, 0.0
  $region13: #{dht_layer_forward.7} parent=0 // pred_fallthru
    _
  %v81 = vld [vmem:[%s0] sm:$0xff]
  %v82 = vld [vmem:[%s0 + $0x8] sm:$0xff]
  %v83 = vld [vmem:[%s0 + $0x10] sm:$0xff]
  %v84 = vld [vmem:[%s0 + $0x18] sm:$0xff]
  %v85 = vld [vmem:[%s0 + $0x20] sm:$0xff]
  %v86 = vld [vmem:[%s0 + $0x28] sm:$0xff]
  %v87 = vld [vmem:[%s0 + $0x30] sm:$0xff]
  %v88 = vld [vmem:[%s0 + $0x38] sm:$0xff]
  %v89 = vld [vmem:[%s0 + $0x40] sm:$0xff]
  %v90 = vld [vmem:[%s0 + $0x48] sm:$0xff]
  %v91 = vld [vmem:[%s0 + $0x50] sm:$0xff]
  %v92 = vld [vmem:[%s0 + $0x58] sm:$0xff]
  %v93 = vld [vmem:[%s0 + $0x60] sm:$0xff]
  %v94 = vld [vmem:[%s0 + $0x68] sm:$0xff]
  %v95 = vld [vmem:[%s0 + $0x70] sm:$0xff]
  %v96 = vld [vmem:[%s0 + $0x78] sm:$0xff]
  %v97 = vunpack.c.l.s8.bf16 %v81
  %v98 = vunpack.c.l.s8.bf16 %v82
  %v99 = vunpack.c.h.s8.bf16 %v81
  %v100 = vunpack.c.h.s8.bf16 %v82
  %v101 = vunpack.c.l.s8.bf16 %v83
  %v102 = vunpack.c.l.s8.bf16 %v84
  %v103 = vunpack.c.h.s8.bf16 %v83
  %v104 = vunpack.c.h.s8.bf16 %v84
  %v105 = vunpack.c.l.s8.bf16 %v85
  %v106 = vunpack.c.l.s8.bf16 %v86
  %v107 = vunpack.c.h.s8.bf16 %v85
  %v108 = vunpack.c.h.s8.bf16 %v86
  %v109 = vunpack.c.l.s8.bf16 %v87
  %v110 = vunpack.c.l.s8.bf16 %v88
  %v111 = vunpack.c.h.s8.bf16 %v87
  %v112 = vunpack.c.h.s8.bf16 %v88
  %v113 = vunpack.c.l.s8.bf16 %v89
  %v114 = vunpack.c.l.s8.bf16 %v90
  %v115 = vunpack.c.h.s8.bf16 %v89
  %v116 = vunpack.c.h.s8.bf16 %v90
  %v117 = vunpack.c.l.s8.bf16 %v91
  %v118 = vunpack.c.l.s8.bf16 %v92
  %v119 = vunpack.c.h.s8.bf16 %v91
  %v120 = vunpack.c.h.s8.bf16 %v92
  %v121 = vunpack.c.l.s8.bf16 %v93
  %v122 = vunpack.c.l.s8.bf16 %v94
  %v123 = vunpack.c.h.s8.bf16 %v93
  %v124 = vunpack.c.h.s8.bf16 %v94
  %v125 = vunpack.c.l.s8.bf16 %v95
  %v126 = vunpack.c.l.s8.bf16 %v96
  %v127 = vunpack.c.h.s8.bf16 %v95
  %v128 = vunpack.c.h.s8.bf16 %v96
  %v129 = vld [vmem:[#allocation2] sm:$0xff]
  %v130 = vld [vmem:[#allocation2 + $0x8] sm:$0xff]
  %v131 = vld [vmem:[#allocation2 + $0x10] sm:$0xff]
  %v132 = vld [vmem:[#allocation2 + $0x18] sm:$0xff]
  %v133 = vld [vmem:[#allocation2 + $0x20] sm:$0xff]
  %v134 = vld [vmem:[#allocation2 + $0x28] sm:$0xff]
  %v135 = vld [vmem:[#allocation2 + $0x30] sm:$0xff]
  %v136 = vld [vmem:[#allocation2 + $0x38] sm:$0xff]
  %v137 = vld [vmem:[#allocation2 + $0x40] sm:$0xff]
  %v138 = vld [vmem:[#allocation2 + $0x48] sm:$0xff]
  %v139 = vld [vmem:[#allocation2 + $0x50] sm:$0xff]
  %v140 = vld [vmem:[#allocation2 + $0x58] sm:$0xff]
  %v141 = vld [vmem:[#allocation2 + $0x60] sm:$0xff]
  %v142 = vld [vmem:[#allocation2 + $0x68] sm:$0xff]
  %v143 = vld [vmem:[#allocation2 + $0x70] sm:$0xff]
  %v144 = vld [vmem:[#allocation2 + $0x78] sm:$0xff]
  %v145 = vld [vmem:[#allocation2 + $0x80] sm:$0xff]
  %v146 = vld [vmem:[#allocation2 + $0x88] sm:$0xff]
  %v147 = vld [vmem:[#allocation2 + $0x90] sm:$0xff]
  %v148 = vld [vmem:[#allocation2 + $0x98] sm:$0xff]
  %v149 = vld [vmem:[#allocation2 + $0xa0] sm:$0xff]
  %v150 = vld [vmem:[#allocation2 + $0xa8] sm:$0xff]
  %v151 = vld [vmem:[#allocation2 + $0xb0] sm:$0xff]
  %v152 = vld [vmem:[#allocation2 + $0xb8] sm:$0xff]
  %v153 = vld [vmem:[#allocation2 + $0xc0] sm:$0xff]
  %v154 = vld [vmem:[#allocation2 + $0xc8] sm:$0xff]
  %v155 = vld [vmem:[#allocation2 + $0xd0] sm:$0xff]
  %v156 = vld [vmem:[#allocation2 + $0xd8] sm:$0xff]
  %v157 = vld [vmem:[#allocation2 + $0xe0] sm:$0xff]
  %v158 = vld [vmem:[#allocation2 + $0xe8] sm:$0xff]
  %v159 = vld [vmem:[#allocation2 + $0xf0] sm:$0xff]
  %v160 = vld [vmem:[#allocation2 + $0xf8] sm:$0xff]
  %v161 = vld [vmem:[%s1] sm:$0xff]
  %v163 = vunpack.c.l.b16 %v161
  %v164 = vunpack.c.h.b16 %v161
  %v165 = vpack.c.b16 %v163, %v163
  %v166 = vpack.c.b16 %v164, %v164
  %169 = vmatprep.subr.bf16.mxu0 %v166
  %170 = vmatpush1.bf16.xpose.msra.mxu0 %v165
  %171 = vmatprep.subr.bf16.mxu0 0
  %172 = vmatpush1.bf16.xpose.msra.mxu0 0
  %173 = vmatprep.subr.bf16.mxu0 0
  %174 = vmatpush1.bf16.xpose.msra.mxu0 0
  %175 = vmatprep.subr.bf16.mxu0 0
  %176 = vmatpush1.bf16.xpose.msra.mxu0 0
  %177 = vmatprep.subr.bf16.mxu0 0
  %178 = vmatpush1.bf16.xpose.msra.mxu0 0
  %179 = vmatprep.subr.bf16.mxu0 0
  %180 = vmatpush1.bf16.xpose.msra.mxu0 0
  %181 = vmatprep.subr.bf16.mxu0 0
  %182 = vmatpush1.bf16.xpose.msra.mxu0 0
  %183 = vmatprep.subr.bf16.mxu0 0
  %184 = vmatpush1.bf16.xpose.msra.mxu0 0
  %185 = vmatprep.subr.bf16.mxu0 0
  %186 = vmatpush1.bf16.xpose.msra.mxu0 0
  %187 = vmatprep.subr.bf16.mxu0 0
  %188 = vmatpush1.bf16.xpose.msra.mxu0 0
  %189 = vmatprep.subr.bf16.mxu0 0
  %190 = vmatpush1.bf16.xpose.msra.mxu0 0
  %191 = vmatprep.subr.bf16.mxu0 0
  %192 = vmatpush1.bf16.xpose.msra.mxu0 0
  %193 = vmatprep.subr.bf16.mxu0 0
  %194 = vmatpush1.bf16.xpose.msra.mxu0 0
  %195 = vmatprep.subr.bf16.mxu0 0
  %196 = vmatpush1.bf16.xpose.msra.mxu0 0
  %197 = vmatprep.subr.bf16.mxu0 0
  %198 = vmatpush1.bf16.xpose.msra.mxu0 0
  %199 = vmatprep.subr.bf16.mxu0 0
  %200 = vmatpush1.bf16.xpose.msra.mxu0 0
  %201 = vmatprep.mubr.bf16.mxu0 %v98
  %202 = vmatmul.mubr.bf16.gmra.mrb[0].mxu0 %v97
  %v203 = vpop.f32.mrb[0].mxu0
  %v204 = vadd.f32 0.0, %v203
  %v205 = vpop.f32.mrb[0].mxu0
  %v206 = vpop.f32.mrb[0].mxu0
  %v207 = vadd.f32 0.0, %v206
  %v208 = vpop.f32.mrb[0].mxu0
  %209 = vmatprep.mubr.bf16.mxu0 %v100
  %210 = vmatmul.mubr.bf16.gmra.mrb[0].mxu0 %v99
  %v211 = vpop.f32.mrb[0].mxu0
  %v212 = vadd.f32 0.0, %v211
  %v213 = vpop.f32.mrb[0].mxu0
  %v214 = vpop.f32.mrb[0].mxu0
  %v215 = vadd.f32 0.0, %v214
  %v216 = vpop.f32.mrb[0].mxu0
  %217 = vmatprep.mubr.bf16.mxu0 %v102
  %218 = vmatmul.mubr.bf16.gmra.mrb[0].mxu0 %v101
  %v219 = vpop.f32.mrb[0].mxu0
  %v220 = vadd.f32 0.0, %v219
  %v221 = vpop.f32.mrb[0].mxu0
  %v222 = vpop.f32.mrb[0].mxu0
  %v223 = vadd.f32 0.0, %v222
  %v224 = vpop.f32.mrb[0].mxu0
  %225 = vmatprep.mubr.bf16.mxu0 %v104
  %226 = vmatmul.mubr.bf16.gmra.mrb[0].mxu0 %v103
  %v227 = vpop.f32.mrb[0].mxu0
  %v228 = vadd.f32 0.0, %v227
  %v229 = vpop.f32.mrb[0].mxu0
  %v230 = vpop.f32.mrb[0].mxu0
  %v231 = vadd.f32 0.0, %v230
  %v232 = vpop.f32.mrb[0].mxu0
  %233 = vmatprep.mubr.bf16.mxu0 %v106
  %234 = vmatmul.mubr.bf16.gmra.mrb[0].mxu0 %v105
  %v235 = vpop.f32.mrb[0].mxu0
  %v236 = vadd.f32 0.0, %v235
  %v237 = vpop.f32.mrb[0].mxu0
  %v238 = vpop.f32.mrb[0].mxu0
  %v239 = vadd.f32 0.0, %v238
  %v240 = vpop.f32.mrb[0].mxu0
  %241 = vmatprep.mubr.bf16.mxu0 %v108
  %242 = vmatmul.mubr.bf16.gmra.mrb[0].mxu0 %v107
  %v243 = vpop.f32.mrb[0].mxu0
  %v244 = vadd.f32 0.0, %v243
  %v245 = vpop.f32.mrb[0].mxu0
  %v246 = vpop.f32.mrb[0].mxu0
  %v247 = vadd.f32 0.0, %v246
  %v248 = vpop.f32.mrb[0].mxu0
  %249 = vmatprep.mubr.bf16.mxu0 %v110
  %250 = vmatmul.mubr.bf16.gmra.mrb[0].mxu0 %v109
  %v251 = vpop.f32.mrb[0].mxu0
  %v252 = vadd.f32 0.0, %v251
  %v253 = vpop.f32.mrb[0].mxu0
  %v254 = vpop.f32.mrb[0].mxu0
  %v255 = vadd.f32 0.0, %v254
  %v256 = vpop.f32.mrb[0].mxu0
  %257 = vmatprep.mubr.bf16.mxu0 %v112
  %258 = vmatmul.mubr.bf16.gmra.mrb[0].mxu0 %v111
  %v259 = vpop.f32.mrb[0].mxu0
  %v260 = vadd.f32 0.0, %v259
  %v261 = vpop.f32.mrb[0].mxu0
  %v262 = vpop.f32.mrb[0].mxu0
  %v263 = vadd.f32 0.0, %v262
  %v264 = vpop.f32.mrb[0].mxu0
  %265 = vmatprep.mubr.bf16.mxu0 %v114
  %266 = vmatmul.mubr.bf16.gmra.mrb[0].mxu0 %v113
  %v267 = vpop.f32.mrb[0].mxu0
  %v268 = vadd.f32 0.0, %v267
  %v269 = vpop.f32.mrb[0].mxu0
  %v270 = vpop.f32.mrb[0].mxu0
  %v271 = vadd.f32 0.0, %v270
  %v272 = vpop.f32.mrb[0].mxu0
  %273 = vmatprep.mubr.bf16.mxu0 %v116
  %274 = vmatmul.mubr.bf16.gmra.mrb[0].mxu0 %v115
  %v275 = vpop.f32.mrb[0].mxu0
  %v276 = vadd.f32 0.0, %v275
  %v277 = vpop.f32.mrb[0].mxu0
  %v278 = vpop.f32.mrb[0].mxu0
  %v279 = vadd.f32 0.0, %v278
  %v280 = vpop.f32.mrb[0].mxu0
  %281 = vmatprep.mubr.bf16.mxu0 %v118
  %282 = vmatmul.mubr.bf16.gmra.mrb[0].mxu0 %v117
  %v283 = vpop.f32.mrb[0].mxu0
  %v284 = vadd.f32 0.0, %v283
  %v285 = vpop.f32.mrb[0].mxu0
  %v286 = vpop.f32.mrb[0].mxu0
  %v287 = vadd.f32 0.0, %v286
  %v288 = vpop.f32.mrb[0].mxu0
  %289 = vmatprep.mubr.bf16.mxu0 %v120
  %290 = vmatmul.mubr.bf16.gmra.mrb[0].mxu0 %v119
  %v291 = vpop.f32.mrb[0].mxu0
  %v292 = vadd.f32 0.0, %v291
  %v293 = vpop.f32.mrb[0].mxu0
  %v294 = vpop.f32.mrb[0].mxu0
  %v295 = vadd.f32 0.0, %v294
  %v296 = vpop.f32.mrb[0].mxu0
  %297 = vmatprep.mubr.bf16.mxu0 %v122
  %298 = vmatmul.mubr.bf16.gmra.mrb[0].mxu0 %v121
  %v299 = vpop.f32.mrb[0].mxu0
  %v300 = vadd.f32 0.0, %v299
  %v301 = vpop.f32.mrb[0].mxu0
  %v302 = vpop.f32.mrb[0].mxu0
  %v303 = vadd.f32 0.0, %v302
  %v304 = vpop.f32.mrb[0].mxu0
  %305 = vmatprep.mubr.bf16.mxu0 %v124
  %306 = vmatmul.mubr.bf16.gmra.mrb[0].mxu0 %v123
  %v307 = vpop.f32.mrb[0].mxu0
  %v308 = vadd.f32 0.0, %v307
  %v309 = vpop.f32.mrb[0].mxu0
  %v310 = vpop.f32.mrb[0].mxu0
  %v311 = vadd.f32 0.0, %v310
  %v312 = vpop.f32.mrb[0].mxu0
  %313 = vmatprep.mubr.bf16.mxu0 %v126
  %314 = vmatmul.mubr.bf16.gmra.mrb[0].mxu0 %v125
  %v315 = vpop.f32.mrb[0].mxu0
  %v316 = vadd.f32 0.0, %v315
  %v317 = vpop.f32.mrb[0].mxu0
  %v318 = vpop.f32.mrb[0].mxu0
  %v319 = vadd.f32 0.0, %v318
  %v320 = vpop.f32.mrb[0].mxu0
  %321 = vmatprep.mubr.bf16.mxu0 %v128
  %322 = vmatmul.mubr.bf16.gmra.mrb[0].mxu0 %v127
  %v323 = vpop.f32.mrb[0].mxu0
  %v324 = vadd.f32 0.0, %v323
  %v325 = vpop.f32.mrb[0].mxu0
  %v326 = vpop.f32.mrb[0].mxu0
  %v327 = vadd.f32 0.0, %v326
  %v328 = vpop.f32.mrb[0].mxu0
  %329 = vdwg.mxu0
  %v330 = vadd.f32 %v129, %v204
  %v331 = vadd.f32 %v130, %v207
  %v332 = vadd.f32 %v131, %v212
  %v333 = vadd.f32 %v132, %v215
  %v334 = vadd.f32 %v133, %v220
  %v335 = vadd.f32 %v134, %v223
  %v336 = vadd.f32 %v135, %v228
  %v337 = vadd.f32 %v136, %v231
  %v338 = vadd.f32 %v137, %v236
  %v339 = vadd.f32 %v138, %v239
  %v340 = vadd.f32 %v139, %v244
  %v341 = vadd.f32 %v140, %v247
  %v342 = vadd.f32 %v141, %v252
  %v343 = vadd.f32 %v142, %v255
  %v344 = vadd.f32 %v143, %v260
  %v345 = vadd.f32 %v144, %v263
  %v346 = vadd.f32 %v145, %v268
  %v347 = vadd.f32 %v146, %v271
  %v348 = vadd.f32 %v147, %v276
  %v349 = vadd.f32 %v148, %v279
  %v350 = vadd.f32 %v149, %v284
  %v351 = vadd.f32 %v150, %v287
  %v352 = vadd.f32 %v151, %v292
  %v353 = vadd.f32 %v152, %v295
  %v354 = vadd.f32 %v153, %v300
  %v355 = vadd.f32 %v154, %v303
  %v356 = vadd.f32 %v155, %v308
  %v357 = vadd.f32 %v156, %v311
  %v358 = vadd.f32 %v157, %v316
  %v359 = vadd.f32 %v158, %v319
  %v360 = vadd.f32 %v159, %v324
  %v361 = vadd.f32 %v160, %v327
  %vm362 = vcmask 64512
  %363 = vst.msk [vmem:[#allocation2] sm:$0xff] %vm362, %v330
  %364 = vst.msk [vmem:[#allocation2 + $0x8] sm:$0xff] %vm362, %v331
  %365 = vst.msk [vmem:[#allocation2 + $0x10] sm:$0xff] %vm362, %v332
  %366 = vst.msk [vmem:[#allocation2 + $0x18] sm:$0xff] %vm362, %v333
  %367 = vst.msk [vmem:[#allocation2 + $0x20] sm:$0xff] %vm362, %v334
  %368 = vst.msk [vmem:[#allocation2 + $0x28] sm:$0xff] %vm362, %v335
  %369 = vst.msk [vmem:[#allocation2 + $0x30] sm:$0xff] %vm362, %v336
  %370 = vst.msk [vmem:[#allocation2 + $0x38] sm:$0xff] %vm362, %v337
  %371 = vst.msk [vmem:[#allocation2 + $0x40] sm:$0xff] %vm362, %v338
  %372 = vst.msk [vmem:[#allocation2 + $0x48] sm:$0xff] %vm362, %v339
  %373 = vst.msk [vmem:[#allocation2 + $0x50] sm:$0xff] %vm362, %v340
  %374 = vst.msk [vmem:[#allocation2 + $0x58] sm:$0xff] %vm362, %v341
  %375 = vst.msk [vmem:[#allocation2 + $0x60] sm:$0xff] %vm362, %v342
  %376 = vst.msk [vmem:[#allocation2 + $0x68] sm:$0xff] %vm362, %v343
  %377 = vst.msk [vmem:[#allocation2 + $0x70] sm:$0xff] %vm362, %v344
  %378 = vst.msk [vmem:[#allocation2 + $0x78] sm:$0xff] %vm362, %v345
  %379 = vst.msk [vmem:[#allocation2 + $0x80] sm:$0xff] %vm362, %v346
  %380 = vst.msk [vmem:[#allocation2 + $0x88] sm:$0xff] %vm362, %v347
  %381 = vst.msk [vmem:[#allocation2 + $0x90] sm:$0xff] %vm362, %v348
  %382 = vst.msk [vmem:[#allocation2 + $0x98] sm:$0xff] %vm362, %v349
  %383 = vst.msk [vmem:[#allocation2 + $0xa0] sm:$0xff] %vm362, %v350
  %384 = vst.msk [vmem:[#allocation2 + $0xa8] sm:$0xff] %vm362, %v351
  %385 = vst.msk [vmem:[#allocation2 + $0xb0] sm:$0xff] %vm362, %v352
  %386 = vst.msk [vmem:[#allocation2 + $0xb8] sm:$0xff] %vm362, %v353
  %387 = vst.msk [vmem:[#allocation2 + $0xc0] sm:$0xff] %vm362, %v354
  %388 = vst.msk [vmem:[#allocation2 + $0xc8] sm:$0xff] %vm362, %v355
  %389 = vst.msk [vmem:[#allocation2 + $0xd0] sm:$0xff] %vm362, %v356
  %390 = vst.msk [vmem:[#allocation2 + $0xd8] sm:$0xff] %vm362, %v357
  %391 = vst.msk [vmem:[#allocation2 + $0xe0] sm:$0xff] %vm362, %v358
  %392 = vst.msk [vmem:[#allocation2 + $0xe8] sm:$0xff] %vm362, %v359
  %393 = vst.msk [vmem:[#allocation2 + $0xf0] sm:$0xff] %vm362, %v360
  %394 = vst.msk [vmem:[#allocation2 + $0xf8] sm:$0xff] %vm362, %v361
  %s395 = scalar_lea.vmem [#allocation2], 256
  %v396 = vld [vmem:[%s395] sm:$0xff]
  %v397 = vld [vmem:[%s395 + $0x8] sm:$0xff]
  %v398 = vld [vmem:[%s395 + $0x10] sm:$0xff]
  %v399 = vld [vmem:[%s395 + $0x18] sm:$0xff]
  %v400 = vld [vmem:[%s395 + $0x20] sm:$0xff]
  %v401 = vld [vmem:[%s395 + $0x28] sm:$0xff]
  %v402 = vld [vmem:[%s395 + $0x30] sm:$0xff]
  %v403 = vld [vmem:[%s395 + $0x38] sm:$0xff]
  %v404 = vld [vmem:[%s395 + $0x40] sm:$0xff]
  %v405 = vld [vmem:[%s395 + $0x48] sm:$0xff]
  %v406 = vld [vmem:[%s395 + $0x50] sm:$0xff]
  %v407 = vld [vmem:[%s395 + $0x58] sm:$0xff]
  %v408 = vld [vmem:[%s395 + $0x60] sm:$0xff]
  %v409 = vld [vmem:[%s395 + $0x68] sm:$0xff]
  %v410 = vld [vmem:[%s395 + $0x70] sm:$0xff]
  %v411 = vld [vmem:[%s395 + $0x78] sm:$0xff]
  %v412 = vld [vmem:[%s395 + $0x80] sm:$0xff]
  %v413 = vld [vmem:[%s395 + $0x88] sm:$0xff]
  %v414 = vld [vmem:[%s395 + $0x90] sm:$0xff]
  %v415 = vld [vmem:[%s395 + $0x98] sm:$0xff]
  %v416 = vld [vmem:[%s395 + $0xa0] sm:$0xff]
  %v417 = vld [vmem:[%s395 + $0xa8] sm:$0xff]
  %v418 = vld [vmem:[%s395 + $0xb0] sm:$0xff]
  %v419 = vld [vmem:[%s395 + $0xb8] sm:$0xff]
  %v420 = vld [vmem:[%s395 + $0xc0] sm:$0xff]
  %v421 = vld [vmem:[%s395 + $0xc8] sm:$0xff]
  %v422 = vld [vmem:[%s395 + $0xd0] sm:$0xff]
  %v423 = vld [vmem:[%s395 + $0xd8] sm:$0xff]
  %v424 = vld [vmem:[%s395 + $0xe0] sm:$0xff]
  %v425 = vld [vmem:[%s395 + $0xe8] sm:$0xff]
  %v426 = vld [vmem:[%s395 + $0xf0] sm:$0xff]
  %v427 = vld [vmem:[%s395 + $0xf8] sm:$0xff]
  %s428 = scalar_lea.vmem %s1, 8
  %v429 = vld [vmem:[%s428] sm:$0xff]
  %v431 = vunpack.c.l.b16 %v429
  %v432 = vunpack.c.h.b16 %v429
  %v433 = vpack.c.b16 %v431, %v431
  %v434 = vpack.c.b16 %v432, %v432
  %437 = vmatprep.subr.bf16.mxu0 %v434
  %438 = vmatpush1.bf16.xpose.msra.mxu0 %v433
  %439 = vmatprep.subr.bf16.mxu0 0
  %440 = vmatpush1.bf16.xpose.msra.mxu0 0
  %441 = vmatprep.subr.bf16.mxu0 0
  %442 = vmatpush1.bf16.xpose.msra.mxu0 0
  %443 = vmatprep.subr.bf16.mxu0 0
  %444 = vmatpush1.bf16.xpose.msra.mxu0 0
  %445 = vmatprep.subr.bf16.mxu0 0
  %446 = vmatpush1.bf16.xpose.msra.mxu0 0
  %447 = vmatprep.subr.bf16.mxu0 0
  %448 = vmatpush1.bf16.xpose.msra.mxu0 0
  %449 = vmatprep.subr.bf16.mxu0 0
  %450 = vmatpush1.bf16.xpose.msra.mxu0 0
  %451 = vmatprep.subr.bf16.mxu0 0
  %452 = vmatpush1.bf16.xpose.msra.mxu0 0
  %453 = vmatprep.subr.bf16.mxu0 0
  %454 = vmatpush1.bf16.xpose.msra.mxu0 0
  %455 = vmatprep.subr.bf16.mxu0 0
  %456 = vmatpush1.bf16.xpose.msra.mxu0 0
  %457 = vmatprep.subr.bf16.mxu0 0
  %458 = vmatpush1.bf16.xpose.msra.mxu0 0
  %459 = vmatprep.subr.bf16.mxu0 0
  %460 = vmatpush1.bf16.xpose.msra.mxu0 0
  %461 = vmatprep.subr.bf16.mxu0 0
  %462 = vmatpush1.bf16.xpose.msra.mxu0 0
  %463 = vmatprep.subr.bf16.mxu0 0
  %464 = vmatpush1.bf16.xpose.msra.mxu0 0
  %465 = vmatprep.subr.bf16.mxu0 0
  %466 = vmatpush1.bf16.xpose.msra.mxu0 0
  %467 = vmatprep.subr.bf16.mxu0 0
  %468 = vmatpush1.bf16.xpose.msra.mxu0 0
  %469 = vmatprep.mubr.bf16.mxu0 %v98
  %470 = vmatmul.mubr.bf16.gmra.mrb[0].mxu0 %v97
  %v471 = vpop.f32.mrb[0].mxu0
  %v472 = vadd.f32 0.0, %v471
  %v473 = vpop.f32.mrb[0].mxu0
  %v474 = vpop.f32.mrb[0].mxu0
  %v475 = vadd.f32 0.0, %v474
  %v476 = vpop.f32.mrb[0].mxu0
  %477 = vmatprep.mubr.bf16.mxu0 %v100
  %478 = vmatmul.mubr.bf16.gmra.mrb[0].mxu0 %v99
  %v479 = vpop.f32.mrb[0].mxu0
  %v480 = vadd.f32 0.0, %v479
  %v481 = vpop.f32.mrb[0].mxu0
  %v482 = vpop.f32.mrb[0].mxu0
  %v483 = vadd.f32 0.0, %v482
  %v484 = vpop.f32.mrb[0].mxu0
  %485 = vmatprep.mubr.bf16.mxu0 %v102
  %486 = vmatmul.mubr.bf16.gmra.mrb[0].mxu0 %v101
  %v487 = vpop.f32.mrb[0].mxu0
  %v488 = vadd.f32 0.0, %v487
  %v489 = vpop.f32.mrb[0].mxu0
  %v490 = vpop.f32.mrb[0].mxu0
  %v491 = vadd.f32 0.0, %v490
  %v492 = vpop.f32.mrb[0].mxu0
  %493 = vmatprep.mubr.bf16.mxu0 %v104
  %494 = vmatmul.mubr.bf16.gmra.mrb[0].mxu0 %v103
  %v495 = vpop.f32.mrb[0].mxu0
  %v496 = vadd.f32 0.0, %v495
  %v497 = vpop.f32.mrb[0].mxu0
  %v498 = vpop.f32.mrb[0].mxu0
  %v499 = vadd.f32 0.0, %v498
  %v500 = vpop.f32.mrb[0].mxu0
  %501 = vmatprep.mubr.bf16.mxu0 %v106
  %502 = vmatmul.mubr.bf16.gmra.mrb[0].mxu0 %v105
  %v503 = vpop.f32.mrb[0].mxu0
  %v504 = vadd.f32 0.0, %v503
  %v505 = vpop.f32.mrb[0].mxu0
  %v506 = vpop.f32.mrb[0].mxu0
  %v507 = vadd.f32 0.0, %v506
  %v508 = vpop.f32.mrb[0].mxu0
  %509 = vmatprep.mubr.bf16.mxu0 %v108
  %510 = vmatmul.mubr.bf16.gmra.mrb[0].mxu0 %v107
  %v511 = vpop.f32.mrb[0].mxu0
  %v512 = vadd.f32 0.0, %v511
  %v513 = vpop.f32.mrb[0].mxu0
  %v514 = vpop.f32.mrb[0].mxu0
  %v515 = vadd.f32 0.0, %v514
  %v516 = vpop.f32.mrb[0].mxu0
  %517 = vmatprep.mubr.bf16.mxu0 %v110
  %518 = vmatmul.mubr.bf16.gmra.mrb[0].mxu0 %v109
  %v519 = vpop.f32.mrb[0].mxu0
  %v520 = vadd.f32 0.0, %v519
  %v521 = vpop.f32.mrb[0].mxu0
  %v522 = vpop.f32.mrb[0].mxu0
  %v523 = vadd.f32 0.0, %v522
  %v524 = vpop.f32.mrb[0].mxu0
  %525 = vmatprep.mubr.bf16.mxu0 %v112
  %526 = vmatmul.mubr.bf16.gmra.mrb[0].mxu0 %v111
  %v527 = vpop.f32.mrb[0].mxu0
  %v528 = vadd.f32 0.0, %v527
  %v529 = vpop.f32.mrb[0].mxu0
  %v530 = vpop.f32.mrb[0].mxu0
  %v531 = vadd.f32 0.0, %v530
  %v532 = vpop.f32.mrb[0].mxu0
  %533 = vmatprep.mubr.bf16.mxu0 %v114
  %534 = vmatmul.mubr.bf16.gmra.mrb[0].mxu0 %v113
  %v535 = vpop.f32.mrb[0].mxu0
  %v536 = vadd.f32 0.0, %v535
  %v537 = vpop.f32.mrb[0].mxu0
  %v538 = vpop.f32.mrb[0].mxu0
  %v539 = vadd.f32 0.0, %v538
  %v540 = vpop.f32.mrb[0].mxu0
  %541 = vmatprep.mubr.bf16.mxu0 %v116
  %542 = vmatmul.mubr.bf16.gmra.mrb[0].mxu0 %v115
  %v543 = vpop.f32.mrb[0].mxu0
  %v544 = vadd.f32 0.0, %v543
  %v545 = vpop.f32.mrb[0].mxu0
  %v546 = vpop.f32.mrb[0].mxu0
  %v547 = vadd.f32 0.0, %v546
  %v548 = vpop.f32.mrb[0].mxu0
  %549 = vmatprep.mubr.bf16.mxu0 %v118
  %550 = vmatmul.mubr.bf16.gmra.mrb[0].mxu0 %v117
  %v551 = vpop.f32.mrb[0].mxu0
  %v552 = vadd.f32 0.0, %v551
  %v553 = vpop.f32.mrb[0].mxu0
  %v554 = vpop.f32.mrb[0].mxu0
  %v555 = vadd.f32 0.0, %v554
  %v556 = vpop.f32.mrb[0].mxu0
  %557 = vmatprep.mubr.bf16.mxu0 %v120
  %558 = vmatmul.mubr.bf16.gmra.mrb[0].mxu0 %v119
  %v559 = vpop.f32.mrb[0].mxu0
  %v560 = vadd.f32 0.0, %v559
  %v561 = vpop.f32.mrb[0].mxu0
  %v562 = vpop.f32.mrb[0].mxu0
  %v563 = vadd.f32 0.0, %v562
  %v564 = vpop.f32.mrb[0].mxu0
  %565 = vmatprep.mubr.bf16.mxu0 %v122
  %566 = vmatmul.mubr.bf16.gmra.mrb[0].mxu0 %v121
  %v567 = vpop.f32.mrb[0].mxu0
  %v568 = vadd.f32 0.0, %v567
  %v569 = vpop.f32.mrb[0].mxu0
  %v570 = vpop.f32.mrb[0].mxu0
  %v571 = vadd.f32 0.0, %v570
  %v572 = vpop.f32.mrb[0].mxu0
  %573 = vmatprep.mubr.bf16.mxu0 %v124
  %574 = vmatmul.mubr.bf16.gmra.mrb[0].mxu0 %v123
  %v575 = vpop.f32.mrb[0].mxu0
  %v576 = vadd.f32 0.0, %v575
  %v577 = vpop.f32.mrb[0].mxu0
  %v578 = vpop.f32.mrb[0].mxu0
  %v579 = vadd.f32 0.0, %v578
  %v580 = vpop.f32.mrb[0].mxu0
  %581 = vmatprep.mubr.bf16.mxu0 %v126
  %582 = vmatmul.mubr.bf16.gmra.mrb[0].mxu0 %v125
  %v583 = vpop.f32.mrb[0].mxu0
  %v584 = vadd.f32 0.0, %v583
  %v585 = vpop.f32.mrb[0].mxu0
  %v586 = vpop.f32.mrb[0].mxu0
  %v587 = vadd.f32 0.0, %v586
  %v588 = vpop.f32.mrb[0].mxu0
  %589 = vmatprep.mubr.bf16.mxu0 %v128
  %590 = vmatmul.mubr.bf16.gmra.mrb[0].mxu0 %v127
  %v591 = vpop.f32.mrb[0].mxu0
  %v592 = vadd.f32 0.0, %v591
  %v593 = vpop.f32.mrb[0].mxu0
  %v594 = vpop.f32.mrb[0].mxu0
  %v595 = vadd.f32 0.0, %v594
  %v596 = vpop.f32.mrb[0].mxu0
  %597 = vdwg.mxu0
  %v598 = vadd.f32 %v396, %v472
  %v599 = vadd.f32 %v397, %v475
  %v600 = vadd.f32 %v398, %v480
  %v601 = vadd.f32 %v399, %v483
  %v602 = vadd.f32 %v400, %v488
  %v603 = vadd.f32 %v401, %v491
  %v604 = vadd.f32 %v402, %v496
  %v605 = vadd.f32 %v403, %v499
  %v606 = vadd.f32 %v404, %v504
  %v607 = vadd.f32 %v405, %v507
  %v608 = vadd.f32 %v406, %v512
  %v609 = vadd.f32 %v407, %v515
  %v610 = vadd.f32 %v408, %v520
  %v611 = vadd.f32 %v409, %v523
  %v612 = vadd.f32 %v410, %v528
  %v613 = vadd.f32 %v411, %v531
  %v614 = vadd.f32 %v412, %v536
  %v615 = vadd.f32 %v413, %v539
  %v616 = vadd.f32 %v414, %v544
  %v617 = vadd.f32 %v415, %v547
  %v618 = vadd.f32 %v416, %v552
  %v619 = vadd.f32 %v417, %v555
  %v620 = vadd.f32 %v418, %v560
  %v621 = vadd.f32 %v419, %v563
  %v622 = vadd.f32 %v420, %v568
  %v623 = vadd.f32 %v421, %v571
  %v624 = vadd.f32 %v422, %v576
  %v625 = vadd.f32 %v423, %v579
  %v626 = vadd.f32 %v424, %v584
  %v627 = vadd.f32 %v425, %v587
  %v628 = vadd.f32 %v426, %v592
  %v629 = vadd.f32 %v427, %v595
  %630 = vst.msk [vmem:[%s395] sm:$0xff] %vm362, %v598
  %631 = vst.msk [vmem:[%s395 + $0x8] sm:$0xff] %vm362, %v599
  %632 = vst.msk [vmem:[%s395 + $0x10] sm:$0xff] %vm362, %v600
  %633 = vst.msk [vmem:[%s395 + $0x18] sm:$0xff] %vm362, %v601
  %634 = vst.msk [vmem:[%s395 + $0x20] sm:$0xff] %vm362, %v602
  %635 = vst.msk [vmem:[%s395 + $0x28] sm:$0xff] %vm362, %v603
  %636 = vst.msk [vmem:[%s395 + $0x30] sm:$0xff] %vm362, %v604
  %637 = vst.msk [vmem:[%s395 + $0x38] sm:$0xff] %vm362, %v605
  %638 = vst.msk [vmem:[%s395 + $0x40] sm:$0xff] %vm362, %v606
  %639 = vst.msk [vmem:[%s395 + $0x48] sm:$0xff] %vm362, %v607
  %640 = vst.msk [vmem:[%s395 + $0x50] sm:$0xff] %vm362, %v608
  %641 = vst.msk [vmem:[%s395 + $0x58] sm:$0xff] %vm362, %v609
  %642 = vst.msk [vmem:[%s395 + $0x60] sm:$0xff] %vm362, %v610
  %643 = vst.msk [vmem:[%s395 + $0x68] sm:$0xff] %vm362, %v611
  %644 = vst.msk [vmem:[%s395 + $0x70] sm:$0xff] %vm362, %v612
  %645 = vst.msk [vmem:[%s395 + $0x78] sm:$0xff] %vm362, %v613
  %646 = vst.msk [vmem:[%s395 + $0x80] sm:$0xff] %vm362, %v614
  %647 = vst.msk [vmem:[%s395 + $0x88] sm:$0xff] %vm362, %v615
  %648 = vst.msk [vmem:[%s395 + $0x90] sm:$0xff] %vm362, %v616
  %649 = vst.msk [vmem:[%s395 + $0x98] sm:$0xff] %vm362, %v617
  %650 = vst.msk [vmem:[%s395 + $0xa0] sm:$0xff] %vm362, %v618
  %651 = vst.msk [vmem:[%s395 + $0xa8] sm:$0xff] %vm362, %v619
  %652 = vst.msk [vmem:[%s395 + $0xb0] sm:$0xff] %vm362, %v620
  %653 = vst.msk [vmem:[%s395 + $0xb8] sm:$0xff] %vm362, %v621
  %654 = vst.msk [vmem:[%s395 + $0xc0] sm:$0xff] %vm362, %v622
  %655 = vst.msk [vmem:[%s395 + $0xc8] sm:$0xff] %vm362, %v623
  %656 = vst.msk [vmem:[%s395 + $0xd0] sm:$0xff] %vm362, %v624
  %657 = vst.msk [vmem:[%s395 + $0xd8] sm:$0xff] %vm362, %v625
  %658 = vst.msk [vmem:[%s395 + $0xe0] sm:$0xff] %vm362, %v626
  %659 = vst.msk [vmem:[%s395 + $0xe8] sm:$0xff] %vm362, %v627
  %660 = vst.msk [vmem:[%s395 + $0xf0] sm:$0xff] %vm362, %v628
  %661 = vst.msk [vmem:[%s395 + $0xf8] sm:$0xff] %vm362, %v629
  // Predicated region
  $region14: #{dht_layer_forward.7} parent=0 // pred_check
    %p662 = pneg %p12
  $region15: #{dht_layer_forward.7} parent=0 // pred_check_branch
    %664 = sbr.rel (%p662) target = $region17
  $region16: #{dht_layer_forward.7} parent=0 // pred_region
    %v665 = vld [vmem:[#allocation2] sm:$0xff]
    %v666 = vld [vmem:[#allocation2 + $0x8] sm:$0xff]
    %v667 = vld [vmem:[#allocation2 + $0x10] sm:$0xff]
    %v668 = vld [vmem:[#allocation2 + $0x18] sm:$0xff]
    %v669 = vld [vmem:[#allocation2 + $0x20] sm:$0xff]
    %v670 = vld [vmem:[#allocation2 + $0x28] sm:$0xff]
    %v671 = vld [vmem:[#allocation2 + $0x30] sm:$0xff]
    %v672 = vld [vmem:[#allocation2 + $0x38] sm:$0xff]
    %v673 = vld [vmem:[#allocation2 + $0x40] sm:$0xff]
    %v674 = vld [vmem:[#allocation2 + $0x48] sm:$0xff]
    %v675 = vld [vmem:[#allocation2 + $0x50] sm:$0xff]
    %v676 = vld [vmem:[#allocation2 + $0x58] sm:$0xff]
    %v677 = vld [vmem:[#allocation2 + $0x60] sm:$0xff]
    %v678 = vld [vmem:[#allocation2 + $0x68] sm:$0xff]
    %v679 = vld [vmem:[#allocation2 + $0x70] sm:$0xff]
    %v680 = vld [vmem:[#allocation2 + $0x78] sm:$0xff]
    %v681 = vld [vmem:[#allocation2 + $0x80] sm:$0xff]
    %v682 = vld [vmem:[#allocation2 + $0x88] sm:$0xff]
    %v683 = vld [vmem:[#allocation2 + $0x90] sm:$0xff]
    %v684 = vld [vmem:[#allocation2 + $0x98] sm:$0xff]
    %v685 = vld [vmem:[#allocation2 + $0xa0] sm:$0xff]
    %v686 = vld [vmem:[#allocation2 + $0xa8] sm:$0xff]
    %v687 = vld [vmem:[#allocation2 + $0xb0] sm:$0xff]
    %v688 = vld [vmem:[#allocation2 + $0xb8] sm:$0xff]
    %v689 = vld [vmem:[#allocation2 + $0xc0] sm:$0xff]
    %v690 = vld [vmem:[#allocation2 + $0xc8] sm:$0xff]
    %v691 = vld [vmem:[#allocation2 + $0xd0] sm:$0xff]
    %v692 = vld [vmem:[#allocation2 + $0xd8] sm:$0xff]
    %v693 = vld [vmem:[#allocation2 + $0xe0] sm:$0xff]
    %v694 = vld [vmem:[#allocation2 + $0xe8] sm:$0xff]
    %v695 = vld [vmem:[#allocation2 + $0xf0] sm:$0xff]
    %v696 = vld [vmem:[#allocation2 + $0xf8] sm:$0xff]
    %v697 = vld [vmem:[#allocation2 + $0x100] sm:$0xff]
    %v698 = vld [vmem:[#allocation2 + $0x108] sm:$0xff]
    %v699 = vld [vmem:[#allocation2 + $0x110] sm:$0xff]
    %v700 = vld [vmem:[#allocation2 + $0x118] sm:$0xff]
    %v701 = vld [vmem:[#allocation2 + $0x120] sm:$0xff]
    %v702 = vld [vmem:[#allocation2 + $0x128] sm:$0xff]
    %v703 = vld [vmem:[#allocation2 + $0x130] sm:$0xff]
    %v704 = vld [vmem:[#allocation2 + $0x138] sm:$0xff]
    %v705 = vld [vmem:[#allocation2 + $0x140] sm:$0xff]
    %v706 = vld [vmem:[#allocation2 + $0x148] sm:$0xff]
    %v707 = vld [vmem:[#allocation2 + $0x150] sm:$0xff]
    %v708 = vld [vmem:[#allocation2 + $0x158] sm:$0xff]
    %v709 = vld [vmem:[#allocation2 + $0x160] sm:$0xff]
    %v710 = vld [vmem:[#allocation2 + $0x168] sm:$0xff]
    %v711 = vld [vmem:[#allocation2 + $0x170] sm:$0xff]
    %v712 = vld [vmem:[#allocation2 + $0x178] sm:$0xff]
    %v713 = vld [vmem:[#allocation2 + $0x180] sm:$0xff]
    %v714 = vld [vmem:[#allocation2 + $0x188] sm:$0xff]
    %v715 = vld [vmem:[#allocation2 + $0x190] sm:$0xff]
    %v716 = vld [vmem:[#allocation2 + $0x198] sm:$0xff]
    %v717 = vld [vmem:[#allocation2 + $0x1a0] sm:$0xff]
    %v718 = vld [vmem:[#allocation2 + $0x1a8] sm:$0xff]
    %v719 = vld [vmem:[#allocation2 + $0x1b0] sm:$0xff]
    %v720 = vld [vmem:[#allocation2 + $0x1b8] sm:$0xff]
    %v721 = vld [vmem:[#allocation2 + $0x1c0] sm:$0xff]
    %v722 = vld [vmem:[#allocation2 + $0x1c8] sm:$0xff]
    %v723 = vld [vmem:[#allocation2 + $0x1d0] sm:$0xff]
    %v724 = vld [vmem:[#allocation2 + $0x1d8] sm:$0xff]
    %v725 = vld [vmem:[#allocation2 + $0x1e0] sm:$0xff]
    %v726 = vld [vmem:[#allocation2 + $0x1e8] sm:$0xff]
    %v727 = vld [vmem:[#allocation2 + $0x1f0] sm:$0xff]
    %v728 = vld [vmem:[#allocation2 + $0x1f8] sm:$0xff]
    %v729 = vpack.c.bf16 %v666, %v665
    %v730 = vpack.c.bf16 %v668, %v667
    %v731 = vpack.c.bf16 %v670, %v669
    %v732 = vpack.c.bf16 %v672, %v671
    %v733 = vpack.c.bf16 %v674, %v673
    %v734 = vpack.c.bf16 %v676, %v675
    %v735 = vpack.c.bf16 %v678, %v677
    %v736 = vpack.c.bf16 %v680, %v679
    %v737 = vpack.c.bf16 %v682, %v681
    %v738 = vpack.c.bf16 %v684, %v683
    %v739 = vpack.c.bf16 %v686, %v685
    %v740 = vpack.c.bf16 %v688, %v687
    %v741 = vpack.c.bf16 %v690, %v689
    %v742 = vpack.c.bf16 %v692, %v691
    %v743 = vpack.c.bf16 %v694, %v693
    %v744 = vpack.c.bf16 %v696, %v695
    %v745 = vpack.c.bf16 %v698, %v697
    %v746 = vpack.c.bf16 %v700, %v699
    %v747 = vpack.c.bf16 %v702, %v701
    %v748 = vpack.c.bf16 %v704, %v703
    %v749 = vpack.c.bf16 %v706, %v705
    %v750 = vpack.c.bf16 %v708, %v707
    %v751 = vpack.c.bf16 %v710, %v709
    %v752 = vpack.c.bf16 %v712, %v711
    %v753 = vpack.c.bf16 %v714, %v713
    %v754 = vpack.c.bf16 %v716, %v715
    %v755 = vpack.c.bf16 %v718, %v717
    %v756 = vpack.c.bf16 %v720, %v719
    %v757 = vpack.c.bf16 %v722, %v721
    %v758 = vpack.c.bf16 %v724, %v723
    %v759 = vpack.c.bf16 %v726, %v725
    %v760 = vpack.c.bf16 %v728, %v727
    %v793 = vunpack.c.l.b16 %v729
    %v794 = vunpack.c.h.b16 %v729
    %v795 = vunpack.c.l.b16 %v730
    %v796 = vunpack.c.h.b16 %v730
    %v797 = vunpack.c.l.b16 %v731
    %v798 = vunpack.c.h.b16 %v731
    %v799 = vunpack.c.l.b16 %v732
    %v800 = vunpack.c.h.b16 %v732
    %v801 = vunpack.c.l.b16 %v733
    %v802 = vunpack.c.h.b16 %v733
    %v803 = vunpack.c.l.b16 %v734
    %v804 = vunpack.c.h.b16 %v734
    %v805 = vunpack.c.l.b16 %v735
    %v806 = vunpack.c.h.b16 %v735
    %v807 = vunpack.c.l.b16 %v736
    %v808 = vunpack.c.h.b16 %v736
    %v809 = vunpack.c.l.b16 %v737
    %v810 = vunpack.c.h.b16 %v737
    %v811 = vunpack.c.l.b16 %v738
    %v812 = vunpack.c.h.b16 %v738
    %v813 = vunpack.c.l.b16 %v739
    %v814 = vunpack.c.h.b16 %v739
    %v815 = vunpack.c.l.b16 %v740
    %v816 = vunpack.c.h.b16 %v740
    %v817 = vunpack.c.l.b16 %v741
    %v818 = vunpack.c.h.b16 %v741
    %v819 = vunpack.c.l.b16 %v742
    %v820 = vunpack.c.h.b16 %v742
    %v821 = vunpack.c.l.b16 %v743
    %v822 = vunpack.c.h.b16 %v743
    %v823 = vunpack.c.l.b16 %v744
    %v824 = vunpack.c.h.b16 %v744
    %v825 = vunpack.c.l.b16 %v745
    %v826 = vunpack.c.h.b16 %v745
    %v827 = vunpack.c.l.b16 %v746
    %v828 = vunpack.c.h.b16 %v746
    %v829 = vunpack.c.l.b16 %v747
    %v830 = vunpack.c.h.b16 %v747
    %v831 = vunpack.c.l.b16 %v748
    %v832 = vunpack.c.h.b16 %v748
    %v833 = vunpack.c.l.b16 %v749
    %v834 = vunpack.c.h.b16 %v749
    %v835 = vunpack.c.l.b16 %v750
    %v836 = vunpack.c.h.b16 %v750
    %v837 = vunpack.c.l.b16 %v751
    %v838 = vunpack.c.h.b16 %v751
    %v839 = vunpack.c.l.b16 %v752
    %v840 = vunpack.c.h.b16 %v752
    %v841 = vunpack.c.l.b16 %v753
    %v842 = vunpack.c.h.b16 %v753
    %v843 = vunpack.c.l.b16 %v754
    %v844 = vunpack.c.h.b16 %v754
    %v845 = vunpack.c.l.b16 %v755
    %v846 = vunpack.c.h.b16 %v755
    %v847 = vunpack.c.l.b16 %v756
    %v848 = vunpack.c.h.b16 %v756
    %v849 = vunpack.c.l.b16 %v757
    %v850 = vunpack.c.h.b16 %v757
    %v851 = vunpack.c.l.b16 %v758
    %v852 = vunpack.c.h.b16 %v758
    %v853 = vunpack.c.l.b16 %v759
    %v854 = vunpack.c.h.b16 %v759
    %v855 = vunpack.c.l.b16 %v760
    %v856 = vunpack.c.h.b16 %v760
    %v857 = vpack.c.b16 %v793, %v793
    %v858 = vpack.c.b16 %v794, %v794
    %v859 = vpack.c.b16 %v795, %v795
    %v860 = vpack.c.b16 %v796, %v796
    %v861 = vpack.c.b16 %v797, %v797
    %v862 = vpack.c.b16 %v798, %v798
    %v863 = vpack.c.b16 %v799, %v799
    %v864 = vpack.c.b16 %v800, %v800
    %v865 = vpack.c.b16 %v801, %v801
    %v866 = vpack.c.b16 %v802, %v802
    %v867 = vpack.c.b16 %v803, %v803
    %v868 = vpack.c.b16 %v804, %v804
    %v869 = vpack.c.b16 %v805, %v805
    %v870 = vpack.c.b16 %v806, %v806
    %v871 = vpack.c.b16 %v807, %v807
    %v872 = vpack.c.b16 %v808, %v808
    %v873 = vpack.c.b16 %v809, %v809
    %v874 = vpack.c.b16 %v810, %v810
    %v875 = vpack.c.b16 %v811, %v811
    %v876 = vpack.c.b16 %v812, %v812
    %v877 = vpack.c.b16 %v813, %v813
    %v878 = vpack.c.b16 %v814, %v814
    %v879 = vpack.c.b16 %v815, %v815
    %v880 = vpack.c.b16 %v816, %v816
    %v881 = vpack.c.b16 %v817, %v817
    %v882 = vpack.c.b16 %v818, %v818
    %v883 = vpack.c.b16 %v819, %v819
    %v884 = vpack.c.b16 %v820, %v820
    %v885 = vpack.c.b16 %v821, %v821
    %v886 = vpack.c.b16 %v822, %v822
    %v887 = vpack.c.b16 %v823, %v823
    %v888 = vpack.c.b16 %v824, %v824
    %v889 = vpack.c.b16 %v825, %v825
    %v890 = vpack.c.b16 %v826, %v826
    %v891 = vpack.c.b16 %v827, %v827
    %v892 = vpack.c.b16 %v828, %v828
    %v893 = vpack.c.b16 %v829, %v829
    %v894 = vpack.c.b16 %v830, %v830
    %v895 = vpack.c.b16 %v831, %v831
    %v896 = vpack.c.b16 %v832, %v832
    %v897 = vpack.c.b16 %v833, %v833
    %v898 = vpack.c.b16 %v834, %v834
    %v899 = vpack.c.b16 %v835, %v835
    %v900 = vpack.c.b16 %v836, %v836
    %v901 = vpack.c.b16 %v837, %v837
    %v902 = vpack.c.b16 %v838, %v838
    %v903 = vpack.c.b16 %v839, %v839
    %v904 = vpack.c.b16 %v840, %v840
    %v905 = vpack.c.b16 %v841, %v841
    %v906 = vpack.c.b16 %v842, %v842
    %v907 = vpack.c.b16 %v843, %v843
    %v908 = vpack.c.b16 %v844, %v844
    %v909 = vpack.c.b16 %v845, %v845
    %v910 = vpack.c.b16 %v846, %v846
    %v911 = vpack.c.b16 %v847, %v847
    %v912 = vpack.c.b16 %v848, %v848
    %v913 = vpack.c.b16 %v849, %v849
    %v914 = vpack.c.b16 %v850, %v850
    %v915 = vpack.c.b16 %v851, %v851
    %v916 = vpack.c.b16 %v852, %v852
    %v917 = vpack.c.b16 %v853, %v853
    %v918 = vpack.c.b16 %v854, %v854
    %v919 = vpack.c.b16 %v855, %v855
    %v920 = vpack.c.b16 %v856, %v856
    %vm985 = vcmask 60416
    %986 = vst.msk [vmem:[%s2] sm:$0xf] %vm985, %v857
    %987 = vst.msk [vmem:[%s2 + $0x4] sm:$0xf] %vm985, %v858
    %988 = vst.msk [vmem:[%s2 + $0x8] sm:$0xf] %vm985, %v859
    %989 = vst.msk [vmem:[%s2 + $0xc] sm:$0xf] %vm985, %v860
    %990 = vst.msk [vmem:[%s2 + $0x10] sm:$0xf] %vm985, %v861
    %991 = vst.msk [vmem:[%s2 + $0x14] sm:$0xf] %vm985, %v862
    %992 = vst.msk [vmem:[%s2 + $0x18] sm:$0xf] %vm985, %v863
    %993 = vst.msk [vmem:[%s2 + $0x1c] sm:$0xf] %vm985, %v864
    %994 = vst.msk [vmem:[%s2 + $0x20] sm:$0xf] %vm985, %v865
    %995 = vst.msk [vmem:[%s2 + $0x24] sm:$0xf] %vm985, %v866
    %996 = vst.msk [vmem:[%s2 + $0x28] sm:$0xf] %vm985, %v867
    %997 = vst.msk [vmem:[%s2 + $0x2c] sm:$0xf] %vm985, %v868
    %998 = vst.msk [vmem:[%s2 + $0x30] sm:$0xf] %vm985, %v869
    %999 = vst.msk [vmem:[%s2 + $0x34] sm:$0xf] %vm985, %v870
    %1000 = vst.msk [vmem:[%s2 + $0x38] sm:$0xf] %vm985, %v871
    %1001 = vst.msk [vmem:[%s2 + $0x3c] sm:$0xf] %vm985, %v872
    %1002 = vst.msk [vmem:[%s2 + $0x40] sm:$0xf] %vm985, %v873
    %1003 = vst.msk [vmem:[%s2 + $0x44] sm:$0xf] %vm985, %v874
    %1004 = vst.msk [vmem:[%s2 + $0x48] sm:$0xf] %vm985, %v875
    %1005 = vst.msk [vmem:[%s2 + $0x4c] sm:$0xf] %vm985, %v876
    %1006 = vst.msk [vmem:[%s2 + $0x50] sm:$0xf] %vm985, %v877
    %1007 = vst.msk [vmem:[%s2 + $0x54] sm:$0xf] %vm985, %v878
    %1008 = vst.msk [vmem:[%s2 + $0x58] sm:$0xf] %vm985, %v879
    %1009 = vst.msk [vmem:[%s2 + $0x5c] sm:$0xf] %vm985, %v880
    %1010 = vst.msk [vmem:[%s2 + $0x60] sm:$0xf] %vm985, %v881
    %1011 = vst.msk [vmem:[%s2 + $0x64] sm:$0xf] %vm985, %v882
    %1012 = vst.msk [vmem:[%s2 + $0x68] sm:$0xf] %vm985, %v883
    %1013 = vst.msk [vmem:[%s2 + $0x6c] sm:$0xf] %vm985, %v884
    %1014 = vst.msk [vmem:[%s2 + $0x70] sm:$0xf] %vm985, %v885
    %1015 = vst.msk [vmem:[%s2 + $0x74] sm:$0xf] %vm985, %v886
    %1016 = vst.msk [vmem:[%s2 + $0x78] sm:$0xf] %vm985, %v887
    %1017 = vst.msk [vmem:[%s2 + $0x7c] sm:$0xf] %vm985, %v888
    %1018 = vst.msk [vmem:[%s2 + $0x80] sm:$0xf] %vm985, %v889
    %1019 = vst.msk [vmem:[%s2 + $0x84] sm:$0xf] %vm985, %v890
    %1020 = vst.msk [vmem:[%s2 + $0x88] sm:$0xf] %vm985, %v891
    %1021 = vst.msk [vmem:[%s2 + $0x8c] sm:$0xf] %vm985, %v892
    %1022 = vst.msk [vmem:[%s2 + $0x90] sm:$0xf] %vm985, %v893
    %1023 = vst.msk [vmem:[%s2 + $0x94] sm:$0xf] %vm985, %v894
    %1024 = vst.msk [vmem:[%s2 + $0x98] sm:$0xf] %vm985, %v895
    %1025 = vst.msk [vmem:[%s2 + $0x9c] sm:$0xf] %vm985, %v896
    %1026 = vst.msk [vmem:[%s2 + $0xa0] sm:$0xf] %vm985, %v897
    %1027 = vst.msk [vmem:[%s2 + $0xa4] sm:$0xf] %vm985, %v898
    %1028 = vst.msk [vmem:[%s2 + $0xa8] sm:$0xf] %vm985, %v899
    %1029 = vst.msk [vmem:[%s2 + $0xac] sm:$0xf] %vm985, %v900
    %1030 = vst.msk [vmem:[%s2 + $0xb0] sm:$0xf] %vm985, %v901
    %1031 = vst.msk [vmem:[%s2 + $0xb4] sm:$0xf] %vm985, %v902
    %1032 = vst.msk [vmem:[%s2 + $0xb8] sm:$0xf] %vm985, %v903
    %1033 = vst.msk [vmem:[%s2 + $0xbc] sm:$0xf] %vm985, %v904
    %1034 = vst.msk [vmem:[%s2 + $0xc0] sm:$0xf] %vm985, %v905
    %1035 = vst.msk [vmem:[%s2 + $0xc4] sm:$0xf] %vm985, %v906
    %1036 = vst.msk [vmem:[%s2 + $0xc8] sm:$0xf] %vm985, %v907
    %1037 = vst.msk [vmem:[%s2 + $0xcc] sm:$0xf] %vm985, %v908
    %1038 = vst.msk [vmem:[%s2 + $0xd0] sm:$0xf] %vm985, %v909
    %1039 = vst.msk [vmem:[%s2 + $0xd4] sm:$0xf] %vm985, %v910
    %1040 = vst.msk [vmem:[%s2 + $0xd8] sm:$0xf] %vm985, %v911
    %1041 = vst.msk [vmem:[%s2 + $0xdc] sm:$0xf] %vm985, %v912
    %1042 = vst.msk [vmem:[%s2 + $0xe0] sm:$0xf] %vm985, %v913
    %1043 = vst.msk [vmem:[%s2 + $0xe4] sm:$0xf] %vm985, %v914
    %1044 = vst.msk [vmem:[%s2 + $0xe8] sm:$0xf] %vm985, %v915
    %1045 = vst.msk [vmem:[%s2 + $0xec] sm:$0xf] %vm985, %v916
    %1046 = vst.msk [vmem:[%s2 + $0xf0] sm:$0xf] %vm985, %v917
    %1047 = vst.msk [vmem:[%s2 + $0xf4] sm:$0xf] %vm985, %v918
    %1048 = vst.msk [vmem:[%s2 + $0xf8] sm:$0xf] %vm985, %v919
    %1049 = vst.msk [vmem:[%s2 + $0xfc] sm:$0xf] %vm985, %v920
  $region17: #{dht_layer_forward.7} parent=0 // pred_fallthru
    _
  // Predicated region
  $region18: #{dht_layer_forward.7} parent=0 // pred_check
    _
  $region19: #{dht_layer_forward.7} parent=0 // pred_check_branch
    %1051 = sbr.rel (0) target = $region21
  $region20: #{dht_layer_forward.7} parent=0 // pred_region
    _
  $region21: #{dht_layer_forward.7} parent=0 // pred_fallthru
    _
  // Predicated region
  $region22: #{dht_layer_forward.7} parent=0 // pred_check
    _
  $region23: #{dht_layer_forward.7} parent=0 // pred_check_branch
    %1053 = sbr.rel (0) target = $region25
  $region24: #{dht_layer_forward.7} parent=0 // pred_region
    _
  $region25: #{dht_layer_forward.7} parent=0 // pred_fallthru
    _

// kernel: dht_layer_forward.8
$region0: #{dht_layer_forward.8}
  #allocation0 [shape = 'u32[]', space=smem, size = 0x4, offset = 0x4, fixed_abs, tag = 'smem constant byte address 0x4 - core index']
  #allocation1 [shape = 'u32[144,128]{1,0:T(1,128)}', space=vmem, size = 0x12000, scoped, tag = 'internal scratch']
  %s0 = inlined_call_operand.vmem [shape: bf16[2,18,32,8], index: 0, kind: input, shape index: {}]
  %s1 = inlined_call_operand.vmem [shape: bf16[3,3,8,8], index: 1, kind: input, shape index: {}]
  %s2 = inlined_call_operand.vmem [shape: f32[1,8], index: 2, kind: input, shape index: {}]
  %s3 = inlined_call_operand.vmem [shape: f32[1,8], index: 3, kind: input, shape index: {}]
  %s4 = inlined_call_operand.vmem [shape: bf16[2,18,32,8], index: 4, kind: output, shape index: {}]
  %s5 = sld [smem:[#allocation0]]
  $region49: #{dht_layer_forward.8} parent=0
    _
  %s7 = ssub.s32 1, %s5
  %s8 = scalar_select 0, %s7, %s5
  loop: start=0, step=1, limit=4
  $region2: #{dht_layer_forward.8} parent=0 // loop_pre_header
    _
  $region3: #{dht_layer_forward.8} parent=0 // loop_header
    %s10 = sphi 0, %s14
    %p11 = scmp.ge.s32.totalorder %s10, 4
    %s20 = sphi 0, %s22
    %s23 = sphi 0, %s20
    %s24 = sphi 0, %s23
    %s40 = sphi 0, %s24
    %s44 = sphi 0, %s44
    %s46 = sphi 0, %s44
    %s47 = sphi 0, %s46
    %s61 = sphi 0, %s47
    %s65 = sphi 0, %s65
    %s67 = sphi 0, %s65
    %s68 = sphi 0, %s67
    %s82 = sphi 0, %s68
    %s86 = sphi 0, %s86
    %s88 = sphi 0, %s86
    %s89 = sphi 0, %s88
    %s103 = sphi 0, %s89
    %s109 = sphi 0, %s111
    %s112 = sphi 0, %s109
    %s113 = sphi 0, %s112
    %s129 = sphi 0, %s113
  $region4: #{dht_layer_forward.8} parent=0 // loop_header_branch
    %13 = sbr.rel (%p11) target = $region8
  $region5: #{dht_layer_forward.8} parent=0 // loop_body
    %s15 = ssub.s32 %s10, 1
    %s16 = ssub.s32 %s10, 2
    %s17 = sadd.s32 %s10, 1
    %s18 = ssub.s32 %s10, %s17
    %p19 = scmp.eq.s32.totalorder %s18, 0
    %s21 = sadd.s32 %s20, 1
    %s22 = scalar_select %p19, %s20, %s21
    %p25 = pneg %p19
    %p26 = scmp.eq.s32.totalorder %s10, 1
    %p27 = por %p25, %p26
    %p28 = scmp.ne.s32.totalorder %s20, %s23
    %p29 = scmp.eq.s32.totalorder %s10, 0
    %p30 = por %p28, %p29
    %p31 = scmp.ne.s32.totalorder %s20, %s23
    %p32 = scmp.eq.s32.totalorder %s15, 1
    %p33 = por %p31, %p32
    %p34 = scmp.ne.s32.totalorder %s23, %s24
    %p35 = scmp.eq.s32.totalorder %s15, 0
    %p36 = por %p34, %p35
    %p37 = scmp.ne.s32.totalorder %s23, %s24
    %p38 = scmp.eq.s32.totalorder %s16, 1
    %p39 = por %p37, %p38
    %p41 = scmp.ne.s32.totalorder %s24, %s40
    %p42 = scmp.eq.s32.totalorder %s16, 0
    %p43 = por %p41, %p42
    %s45 = sadd.s32 %s44, 1
    %p48 = scmp.eq.s32.totalorder %s10, 1
    %p49 = scmp.ne.s32.totalorder %s44, %s46
    %p50 = scmp.eq.s32.totalorder %s10, 0
    %p51 = por %p49, %p50
    %p52 = scmp.ne.s32.totalorder %s44, %s46
    %p53 = scmp.eq.s32.totalorder %s15, 1
    %p54 = por %p52, %p53
    %p55 = scmp.ne.s32.totalorder %s46, %s47
    %p56 = scmp.eq.s32.totalorder %s15, 0
    %p57 = por %p55, %p56
    %p58 = scmp.ne.s32.totalorder %s46, %s47
    %p59 = scmp.eq.s32.totalorder %s16, 1
    %p60 = por %p58, %p59
    %p62 = scmp.ne.s32.totalorder %s47, %s61
    %p63 = scmp.eq.s32.totalorder %s16, 0
    %p64 = por %p62, %p63
    %s66 = sadd.s32 %s65, 1
    %p69 = scmp.eq.s32.totalorder %s10, 1
    %p70 = scmp.ne.s32.totalorder %s65, %s67
    %p71 = scmp.eq.s32.totalorder %s10, 0
    %p72 = por %p70, %p71
    %p73 = scmp.ne.s32.totalorder %s65, %s67
    %p74 = scmp.eq.s32.totalorder %s15, 1
    %p75 = por %p73, %p74
    %p76 = scmp.ne.s32.totalorder %s67, %s68
    %p77 = scmp.eq.s32.totalorder %s15, 0
    %p78 = por %p76, %p77
    %p79 = scmp.ne.s32.totalorder %s67, %s68
    %p80 = scmp.eq.s32.totalorder %s16, 1
    %p81 = por %p79, %p80
    %p83 = scmp.ne.s32.totalorder %s68, %s82
    %p84 = scmp.eq.s32.totalorder %s16, 0
    %p85 = por %p83, %p84
    %s87 = sadd.s32 %s86, 1
    %p90 = scmp.eq.s32.totalorder %s10, 1
    %p91 = scmp.ne.s32.totalorder %s86, %s88
    %p92 = scmp.eq.s32.totalorder %s10, 0
    %p93 = por %p91, %p92
    %p94 = scmp.ne.s32.totalorder %s86, %s88
    %p95 = scmp.eq.s32.totalorder %s15, 1
    %p96 = por %p94, %p95
    %p97 = scmp.ne.s32.totalorder %s88, %s89
    %p98 = scmp.eq.s32.totalorder %s15, 0
    %p99 = por %p97, %p98
    %p100 = scmp.ne.s32.totalorder %s88, %s89
    %p101 = scmp.eq.s32.totalorder %s16, 1
    %p102 = por %p100, %p101
    %p104 = scmp.ne.s32.totalorder %s89, %s103
    %p105 = scmp.eq.s32.totalorder %s16, 0
    %p106 = por %p104, %p105
    %s107 = ssub.s32 %s10, %s17
    %p108 = scmp.eq.s32.totalorder %s107, 0
    %s110 = sadd.s32 %s109, 1
    %s111 = scalar_select %p108, %s109, %s110
    %p114 = pneg %p108
    %p115 = scmp.eq.s32.totalorder %s10, 1
    %p116 = por %p114, %p115
    %p117 = scmp.ne.s32.totalorder %s109, %s112
    %p118 = scmp.eq.s32.totalorder %s10, 0
    %p119 = por %p117, %p118
    %p120 = scmp.ne.s32.totalorder %s109, %s112
    %p121 = scmp.eq.s32.totalorder %s15, 1
    %p122 = por %p120, %p121
    %p123 = scmp.ne.s32.totalorder %s112, %s113
    %p124 = scmp.eq.s32.totalorder %s15, 0
    %p125 = por %p123, %p124
    %p126 = scmp.ne.s32.totalorder %s112, %s113
    %p127 = scmp.eq.s32.totalorder %s16, 1
    %p128 = por %p126, %p127
    %p130 = scmp.ne.s32.totalorder %s113, %s129
    %p131 = scmp.eq.s32.totalorder %s16, 0
    %p132 = por %p130, %p131
    %p133 = scmp.le.s32.totalorder 1, %s10
    %p134 = scmp.lt.s32.totalorder %s10, 3
    %p135 = pnand %p133, %p134
    %p136 = pneg %p135
    // Predicated region
    $region9: #{dht_layer_forward.8} parent=5 // pred_check
      _
    $region10: #{dht_layer_forward.8} parent=5 // pred_check_branch
      %138 = sbr.rel (%p135) target = $region12
    $region11: #{dht_layer_forward.8} parent=5 // pred_region
      %s139 = ssub.s32 %s10, 1
      // Predicated region
      $region13: #{dht_layer_forward.8} parent=11 // pred_check
        %p140 = pneg %p57
      $region14: #{dht_layer_forward.8} parent=11 // pred_check_branch
        %142 = sbr.rel (%p140) target = $region16
      $region15: #{dht_layer_forward.8} parent=11 // pred_region
        _
      $region16: #{dht_layer_forward.8} parent=11 // pred_fallthru
        _
      // Predicated region
      $region17: #{dht_layer_forward.8} parent=11 // pred_check
        %p143 = pneg %p78
      $region18: #{dht_layer_forward.8} parent=11 // pred_check_branch
        %145 = sbr.rel (%p143) target = $region20
      $region19: #{dht_layer_forward.8} parent=11 // pred_region
        _
      $region20: #{dht_layer_forward.8} parent=11 // pred_fallthru
        _
      // Predicated region
      $region21: #{dht_layer_forward.8} parent=11 // pred_check
        %p146 = pneg %p99
      $region22: #{dht_layer_forward.8} parent=11 // pred_check_branch
        %148 = sbr.rel (%p146) target = $region24
      $region23: #{dht_layer_forward.8} parent=11 // pred_region
        _
      $region24: #{dht_layer_forward.8} parent=11 // pred_fallthru
        _
    $region12: #{dht_layer_forward.8} parent=5 // pred_fallthru
      _
    %p149 = scmp.lt.s32.totalorder %s10, 2
    // Predicated region
    $region25: #{dht_layer_forward.8} parent=5 // pred_check
      %p150 = pneg %p149
    $region26: #{dht_layer_forward.8} parent=5 // pred_check_branch
      %152 = sbr.rel (%p150) target = $region28
    $region27: #{dht_layer_forward.8} parent=5 // pred_region
      // Predicated region
      $region29: #{dht_layer_forward.8} parent=27 // pred_check
        %p153 = pneg %p30
      $region30: #{dht_layer_forward.8} parent=27 // pred_check_branch
        %155 = sbr.rel (%p153) target = $region32
      $region31: #{dht_layer_forward.8} parent=27 // pred_region
        %p156 = scmp.lt.s32.totalorder %s10, 1
        %s157 = scalar_select %p156, %s10, 1
        %s158 = smul.addr %s157, 72
        %s159 = smul.addr %s158, 4
        %s160 = scalar_lea.vmem %s0, %s159
      $region32: #{dht_layer_forward.8} parent=27 // pred_fallthru
        _
    $region28: #{dht_layer_forward.8} parent=5 // pred_fallthru
      _
    %p161 = scmp.le.s32.totalorder 1, %s10
    %p162 = scmp.lt.s32.totalorder %s10, 3
    %p163 = pnand %p161, %p162
    %p164 = pneg %p163
    // Predicated region
    $region33: #{dht_layer_forward.8} parent=5 // pred_check
      _
    $region34: #{dht_layer_forward.8} parent=5 // pred_check_branch
      %166 = sbr.rel (%p163) target = $region36
    $region35: #{dht_layer_forward.8} parent=5 // pred_region
      %s167 = ssub.s32 %s10, 1
      %p168 = scmp.lt.s32.totalorder %s15, 1
      %s169 = scalar_select %p168, %s15, 1
      %s170 = smul.addr %s169, 72
      %s171 = smul.addr %s170, 4
      %s172 = scalar_lea.vmem %s0, %s171
      %p173 = pneg %p36
      %p174 = pneg %p33
      %p175 = pneg %p57
      %p176 = pneg %p54
      %p177 = pneg %p78
      %p178 = pneg %p75
      %p179 = pneg %p99
      %p180 = pneg %p96
      %p181 = pneg %p125
      %p182 = pneg %p122
      %p183 = scmp.lt.s32.totalorder %s15, 1
      %s184 = scalar_select %p183, %s15, 1
      %s185 = smul.addr %s184, 72
      %s186 = smul.addr %s185, 4
      %s187 = scalar_lea.vmem %s4, %s186
      %p188 = scmp.lt.s32.totalorder %s15, 1
      %s189 = scalar_select %p188, %s15, 1
      %s190 = smul.addr %s189, 72
      %s191 = smul.addr %s190, 4
      %s192 = scalar_lea.vmem %s0, %s191
      %p193 = scmp.lt.s32.totalorder %s15, 1
      %s194 = scalar_select %p193, %s15, 1
      %s195 = smul.addr %s194, 72
      %s196 = smul.addr %s195, 4
      %s197 = scalar_lea.vmem %s4, %s196
      %vm199 = vcmask 60416
      %200 = vst.msk [vmem:[%s197] sm:$0xf] %vm199, 0
      %201 = vst.msk [vmem:[%s197 + $0x4] sm:$0xf] %vm199, 0
      %202 = vst.msk [vmem:[%s197 + $0x8] sm:$0xf] %vm199, 0
      %203 = vst.msk [vmem:[%s197 + $0xc] sm:$0xf] %vm199, 0
      %s204 = scalar_lea.vmem %s197, 272
      %205 = vst.msk [vmem:[%s204] sm:$0xf] %vm199, 0
      %206 = vst.msk [vmem:[%s204 + $0x4] sm:$0xf] %vm199, 0
      %207 = vst.msk [vmem:[%s204 + $0x8] sm:$0xf] %vm199, 0
      %208 = vst.msk [vmem:[%s204 + $0xc] sm:$0xf] %vm199, 0
      %v209 = vlaneseq
      %v210 = vshrl.u32 %v209, 7
      %v211 = vadd.s32 %v210, 8
      %v212 = vadd.s32 %v210, 16
      %v213 = vadd.s32 %v210, 24
      %v214 = vadd.s32 %v210, 32
      %v215 = vadd.s32 %v210, 40
      %v216 = vadd.s32 %v210, 48
      %v217 = vadd.s32 %v210, 56
      %v218 = vadd.s32 %v210, 64
      %v219 = vadd.s32 %v210, 72
      %v220 = vadd.s32 %v210, 80
      %v221 = vadd.s32 %v210, 88
      %v222 = vadd.s32 %v210, 96
      %v223 = vadd.s32 %v210, 104
      %v224 = vadd.s32 %v210, 112
      %v225 = vadd.s32 %v210, 120
      %v226 = vadd.s32 %v210, 128
      %v227 = vadd.s32 %v210, 136
      %v228 = vadd.s32 %v210, 144
      %v229 = vadd.s32 %v210, 152
      %v230 = vadd.s32 %v210, 160
      %v231 = vadd.s32 %v210, 168
      %v232 = vadd.s32 %v210, 176
      %v233 = vadd.s32 %v210, 184
      %v234 = vadd.s32 %v210, 192
      %v235 = vadd.s32 %v210, 200
      %v236 = vadd.s32 %v210, 208
      %v237 = vadd.s32 %v210, 216
      %v238 = vadd.s32 %v210, 224
      %v239 = vadd.s32 %v210, 232
      %v240 = vadd.s32 %v210, 240
      %v241 = vadd.s32 %v210, 248
      %v242 = vadd.s32 %v210, 256
      %v243 = vadd.s32 %v210, 264
      %v244 = vadd.s32 %v210, 272
      %v245 = vadd.s32 %v210, 280
      %v246 = vadd.s32 %v210, 288
      %v247 = vadd.s32 %v210, 296
      %v248 = vadd.s32 %v210, 304
      %v249 = vadd.s32 %v210, 312
      %v250 = vadd.s32 %v210, 320
      %v251 = vadd.s32 %v210, 328
      %v252 = vadd.s32 %v210, 336
      %v253 = vadd.s32 %v210, 344
      %v254 = vadd.s32 %v210, 352
      %v255 = vadd.s32 %v210, 360
      %v256 = vadd.s32 %v210, 368
      %v257 = vadd.s32 %v210, 376
      %v258 = vadd.s32 %v210, 384
      %v259 = vadd.s32 %v210, 392
      %v260 = vadd.s32 %v210, 400
      %v261 = vadd.s32 %v210, 408
      %v262 = vadd.s32 %v210, 416
      %v263 = vadd.s32 %v210, 424
      %v264 = vadd.s32 %v210, 432
      %v265 = vadd.s32 %v210, 440
      %v266 = vadd.s32 %v210, 448
      %v267 = vadd.s32 %v210, 456
      %v268 = vadd.s32 %v210, 464
      %v269 = vadd.s32 %v210, 472
      %v270 = vadd.s32 %v210, 480
      %v271 = vadd.s32 %v210, 488
      %v272 = vadd.s32 %v210, 496
      %v273 = vadd.s32 %v210, 504
      %vm274 = vcmp.lt.s32.totalorder %v210, 0
      %v275 = vsub.s32 0, %v210
      %v276 = vsel %vm274, %v275, %v210
      %v277 = vshrl.u32 %v276, 5
      %v278 = vand.u32 %v276, 31
      %v279 = vsub.s32 0, %v278
      %v280 = vsel %vm274, %v279, %v278
      %vm281 = vcmp.lt.s32.totalorder %v211, 0
      %v282 = vsub.s32 0, %v211
      %v283 = vsel %vm281, %v282, %v211
      %v284 = vshrl.u32 %v283, 5
      %v285 = vand.u32 %v283, 31
      %v286 = vsub.s32 0, %v285
      %v287 = vsel %vm281, %v286, %v285
      %vm288 = vcmp.lt.s32.totalorder %v212, 0
      %v289 = vsub.s32 0, %v212
      %v290 = vsel %vm288, %v289, %v212
      %v291 = vshrl.u32 %v290, 5
      %v292 = vand.u32 %v290, 31
      %v293 = vsub.s32 0, %v292
      %v294 = vsel %vm288, %v293, %v292
      %vm295 = vcmp.lt.s32.totalorder %v213, 0
      %v296 = vsub.s32 0, %v213
      %v297 = vsel %vm295, %v296, %v213
      %v298 = vshrl.u32 %v297, 5
      %v299 = vand.u32 %v297, 31
      %v300 = vsub.s32 0, %v299
      %v301 = vsel %vm295, %v300, %v299
      %vm302 = vcmp.lt.s32.totalorder %v214, 0
      %v303 = vsub.s32 0, %v214
      %v304 = vsel %vm302, %v303, %v214
      %v305 = vshrl.u32 %v304, 5
      %v306 = vand.u32 %v304, 31
      %v307 = vsub.s32 0, %v306
      %v308 = vsel %vm302, %v307, %v306
      %vm309 = vcmp.lt.s32.totalorder %v215, 0
      %v310 = vsub.s32 0, %v215
      %v311 = vsel %vm309, %v310, %v215
      %v312 = vshrl.u32 %v311, 5
      %v313 = vand.u32 %v311, 31
      %v314 = vsub.s32 0, %v313
      %v315 = vsel %vm309, %v314, %v313
      %vm316 = vcmp.lt.s32.totalorder %v216, 0
      %v317 = vsub.s32 0, %v216
      %v318 = vsel %vm316, %v317, %v216
      %v319 = vshrl.u32 %v318, 5
      %v320 = vand.u32 %v318, 31
      %v321 = vsub.s32 0, %v320
      %v322 = vsel %vm316, %v321, %v320
      %vm323 = vcmp.lt.s32.totalorder %v217, 0
      %v324 = vsub.s32 0, %v217
      %v325 = vsel %vm323, %v324, %v217
      %v326 = vshrl.u32 %v325, 5
      %v327 = vand.u32 %v325, 31
      %v328 = vsub.s32 0, %v327
      %v329 = vsel %vm323, %v328, %v327
      %vm330 = vcmp.lt.s32.totalorder %v218, 0
      %v331 = vsub.s32 0, %v218
      %v332 = vsel %vm330, %v331, %v218
      %v333 = vshrl.u32 %v332, 5
      %v334 = vand.u32 %v332, 31
      %v335 = vsub.s32 0, %v334
      %v336 = vsel %vm330, %v335, %v334
      %vm337 = vcmp.lt.s32.totalorder %v219, 0
      %v338 = vsub.s32 0, %v219
      %v339 = vsel %vm337, %v338, %v219
      %v340 = vshrl.u32 %v339, 5
      %v341 = vand.u32 %v339, 31
      %v342 = vsub.s32 0, %v341
      %v343 = vsel %vm337, %v342, %v341
      %vm344 = vcmp.lt.s32.totalorder %v220, 0
      %v345 = vsub.s32 0, %v220
      %v346 = vsel %vm344, %v345, %v220
      %v347 = vshrl.u32 %v346, 5
      %v348 = vand.u32 %v346, 31
      %v349 = vsub.s32 0, %v348
      %v350 = vsel %vm344, %v349, %v348
      %vm351 = vcmp.lt.s32.totalorder %v221, 0
      %v352 = vsub.s32 0, %v221
      %v353 = vsel %vm351, %v352, %v221
      %v354 = vshrl.u32 %v353, 5
      %v355 = vand.u32 %v353, 31
      %v356 = vsub.s32 0, %v355
      %v357 = vsel %vm351, %v356, %v355
      %vm358 = vcmp.lt.s32.totalorder %v222, 0
      %v359 = vsub.s32 0, %v222
      %v360 = vsel %vm358, %v359, %v222
      %v361 = vshrl.u32 %v360, 5
      %v362 = vand.u32 %v360, 31
      %v363 = vsub.s32 0, %v362
      %v364 = vsel %vm358, %v363, %v362
      %vm365 = vcmp.lt.s32.totalorder %v223, 0
      %v366 = vsub.s32 0, %v223
      %v367 = vsel %vm365, %v366, %v223
      %v368 = vshrl.u32 %v367, 5
      %v369 = vand.u32 %v367, 31
      %v370 = vsub.s32 0, %v369
      %v371 = vsel %vm365, %v370, %v369
      %vm372 = vcmp.lt.s32.totalorder %v224, 0
      %v373 = vsub.s32 0, %v224
      %v374 = vsel %vm372, %v373, %v224
      %v375 = vshrl.u32 %v374, 5
      %v376 = vand.u32 %v374, 31
      %v377 = vsub.s32 0, %v376
      %v378 = vsel %vm372, %v377, %v376
      %vm379 = vcmp.lt.s32.totalorder %v225, 0
      %v380 = vsub.s32 0, %v225
      %v381 = vsel %vm379, %v380, %v225
      %v382 = vshrl.u32 %v381, 5
      %v383 = vand.u32 %v381, 31
      %v384 = vsub.s32 0, %v383
      %v385 = vsel %vm379, %v384, %v383
      %vm386 = vcmp.lt.s32.totalorder %v226, 0
      %v387 = vsub.s32 0, %v226
      %v388 = vsel %vm386, %v387, %v226
      %v389 = vshrl.u32 %v388, 5
      %v390 = vand.u32 %v388, 31
      %v391 = vsub.s32 0, %v390
      %v392 = vsel %vm386, %v391, %v390
      %vm393 = vcmp.lt.s32.totalorder %v227, 0
      %v394 = vsub.s32 0, %v227
      %v395 = vsel %vm393, %v394, %v227
      %v396 = vshrl.u32 %v395, 5
      %v397 = vand.u32 %v395, 31
      %v398 = vsub.s32 0, %v397
      %v399 = vsel %vm393, %v398, %v397
      %vm400 = vcmp.lt.s32.totalorder %v228, 0
      %v401 = vsub.s32 0, %v228
      %v402 = vsel %vm400, %v401, %v228
      %v403 = vshrl.u32 %v402, 5
      %v404 = vand.u32 %v402, 31
      %v405 = vsub.s32 0, %v404
      %v406 = vsel %vm400, %v405, %v404
      %vm407 = vcmp.lt.s32.totalorder %v229, 0
      %v408 = vsub.s32 0, %v229
      %v409 = vsel %vm407, %v408, %v229
      %v410 = vshrl.u32 %v409, 5
      %v411 = vand.u32 %v409, 31
      %v412 = vsub.s32 0, %v411
      %v413 = vsel %vm407, %v412, %v411
      %vm414 = vcmp.lt.s32.totalorder %v230, 0
      %v415 = vsub.s32 0, %v230
      %v416 = vsel %vm414, %v415, %v230
      %v417 = vshrl.u32 %v416, 5
      %v418 = vand.u32 %v416, 31
      %v419 = vsub.s32 0, %v418
      %v420 = vsel %vm414, %v419, %v418
      %vm421 = vcmp.lt.s32.totalorder %v231, 0
      %v422 = vsub.s32 0, %v231
      %v423 = vsel %vm421, %v422, %v231
      %v424 = vshrl.u32 %v423, 5
      %v425 = vand.u32 %v423, 31
      %v426 = vsub.s32 0, %v425
      %v427 = vsel %vm421, %v426, %v425
      %vm428 = vcmp.lt.s32.totalorder %v232, 0
      %v429 = vsub.s32 0, %v232
      %v430 = vsel %vm428, %v429, %v232
      %v431 = vshrl.u32 %v430, 5
      %v432 = vand.u32 %v430, 31
      %v433 = vsub.s32 0, %v432
      %v434 = vsel %vm428, %v433, %v432
      %vm435 = vcmp.lt.s32.totalorder %v233, 0
      %v436 = vsub.s32 0, %v233
      %v437 = vsel %vm435, %v436, %v233
      %v438 = vshrl.u32 %v437, 5
      %v439 = vand.u32 %v437, 31
      %v440 = vsub.s32 0, %v439
      %v441 = vsel %vm435, %v440, %v439
      %vm442 = vcmp.lt.s32.totalorder %v234, 0
      %v443 = vsub.s32 0, %v234
      %v444 = vsel %vm442, %v443, %v234
      %v445 = vshrl.u32 %v444, 5
      %v446 = vand.u32 %v444, 31
      %v447 = vsub.s32 0, %v446
      %v448 = vsel %vm442, %v447, %v446
      %vm449 = vcmp.lt.s32.totalorder %v235, 0
      %v450 = vsub.s32 0, %v235
      %v451 = vsel %vm449, %v450, %v235
      %v452 = vshrl.u32 %v451, 5
      %v453 = vand.u32 %v451, 31
      %v454 = vsub.s32 0, %v453
      %v455 = vsel %vm449, %v454, %v453
      %vm456 = vcmp.lt.s32.totalorder %v236, 0
      %v457 = vsub.s32 0, %v236
      %v458 = vsel %vm456, %v457, %v236
      %v459 = vshrl.u32 %v458, 5
      %v460 = vand.u32 %v458, 31
      %v461 = vsub.s32 0, %v460
      %v462 = vsel %vm456, %v461, %v460
      %vm463 = vcmp.lt.s32.totalorder %v237, 0
      %v464 = vsub.s32 0, %v237
      %v465 = vsel %vm463, %v464, %v237
      %v466 = vshrl.u32 %v465, 5
      %v467 = vand.u32 %v465, 31
      %v468 = vsub.s32 0, %v467
      %v469 = vsel %vm463, %v468, %v467
      %vm470 = vcmp.lt.s32.totalorder %v238, 0
      %v471 = vsub.s32 0, %v238
      %v472 = vsel %vm470, %v471, %v238
      %v473 = vshrl.u32 %v472, 5
      %v474 = vand.u32 %v472, 31
      %v475 = vsub.s32 0, %v474
      %v476 = vsel %vm470, %v475, %v474
      %vm477 = vcmp.lt.s32.totalorder %v239, 0
      %v478 = vsub.s32 0, %v239
      %v479 = vsel %vm477, %v478, %v239
      %v480 = vshrl.u32 %v479, 5
      %v481 = vand.u32 %v479, 31
      %v482 = vsub.s32 0, %v481
      %v483 = vsel %vm477, %v482, %v481
      %vm484 = vcmp.lt.s32.totalorder %v240, 0
      %v485 = vsub.s32 0, %v240
      %v486 = vsel %vm484, %v485, %v240
      %v487 = vshrl.u32 %v486, 5
      %v488 = vand.u32 %v486, 31
      %v489 = vsub.s32 0, %v488
      %v490 = vsel %vm484, %v489, %v488
      %vm491 = vcmp.lt.s32.totalorder %v241, 0
      %v492 = vsub.s32 0, %v241
      %v493 = vsel %vm491, %v492, %v241
      %v494 = vshrl.u32 %v493, 5
      %v495 = vand.u32 %v493, 31
      %v496 = vsub.s32 0, %v495
      %v497 = vsel %vm491, %v496, %v495
      %vm498 = vcmp.lt.s32.totalorder %v242, 0
      %v499 = vsub.s32 0, %v242
      %v500 = vsel %vm498, %v499, %v242
      %v501 = vshrl.u32 %v500, 5
      %v502 = vand.u32 %v500, 31
      %v503 = vsub.s32 0, %v502
      %v504 = vsel %vm498, %v503, %v502
      %vm505 = vcmp.lt.s32.totalorder %v243, 0
      %v506 = vsub.s32 0, %v243
      %v507 = vsel %vm505, %v506, %v243
      %v508 = vshrl.u32 %v507, 5
      %v509 = vand.u32 %v507, 31
      %v510 = vsub.s32 0, %v509
      %v511 = vsel %vm505, %v510, %v509
      %vm512 = vcmp.lt.s32.totalorder %v244, 0
      %v513 = vsub.s32 0, %v244
      %v514 = vsel %vm512, %v513, %v244
      %v515 = vshrl.u32 %v514, 5
      %v516 = vand.u32 %v514, 31
      %v517 = vsub.s32 0, %v516
      %v518 = vsel %vm512, %v517, %v516
      %vm519 = vcmp.lt.s32.totalorder %v245, 0
      %v520 = vsub.s32 0, %v245
      %v521 = vsel %vm519, %v520, %v245
      %v522 = vshrl.u32 %v521, 5
      %v523 = vand.u32 %v521, 31
      %v524 = vsub.s32 0, %v523
      %v525 = vsel %vm519, %v524, %v523
      %vm526 = vcmp.lt.s32.totalorder %v246, 0
      %v527 = vsub.s32 0, %v246
      %v528 = vsel %vm526, %v527, %v246
      %v529 = vshrl.u32 %v528, 5
      %v530 = vand.u32 %v528, 31
      %v531 = vsub.s32 0, %v530
      %v532 = vsel %vm526, %v531, %v530
      %vm533 = vcmp.lt.s32.totalorder %v247, 0
      %v534 = vsub.s32 0, %v247
      %v535 = vsel %vm533, %v534, %v247
      %v536 = vshrl.u32 %v535, 5
      %v537 = vand.u32 %v535, 31
      %v538 = vsub.s32 0, %v537
      %v539 = vsel %vm533, %v538, %v537
      %vm540 = vcmp.lt.s32.totalorder %v248, 0
      %v541 = vsub.s32 0, %v248
      %v542 = vsel %vm540, %v541, %v248
      %v543 = vshrl.u32 %v542, 5
      %v544 = vand.u32 %v542, 31
      %v545 = vsub.s32 0, %v544
      %v546 = vsel %vm540, %v545, %v544
      %vm547 = vcmp.lt.s32.totalorder %v249, 0
      %v548 = vsub.s32 0, %v249
      %v549 = vsel %vm547, %v548, %v249
      %v550 = vshrl.u32 %v549, 5
      %v551 = vand.u32 %v549, 31
      %v552 = vsub.s32 0, %v551
      %v553 = vsel %vm547, %v552, %v551
      %vm554 = vcmp.lt.s32.totalorder %v250, 0
      %v555 = vsub.s32 0, %v250
      %v556 = vsel %vm554, %v555, %v250
      %v557 = vshrl.u32 %v556, 5
      %v558 = vand.u32 %v556, 31
      %v559 = vsub.s32 0, %v558
      %v560 = vsel %vm554, %v559, %v558
      %vm561 = vcmp.lt.s32.totalorder %v251, 0
      %v562 = vsub.s32 0, %v251
      %v563 = vsel %vm561, %v562, %v251
      %v564 = vshrl.u32 %v563, 5
      %v565 = vand.u32 %v563, 31
      %v566 = vsub.s32 0, %v565
      %v567 = vsel %vm561, %v566, %v565
      %vm568 = vcmp.lt.s32.totalorder %v252, 0
      %v569 = vsub.s32 0, %v252
      %v570 = vsel %vm568, %v569, %v252
      %v571 = vshrl.u32 %v570, 5
      %v572 = vand.u32 %v570, 31
      %v573 = vsub.s32 0, %v572
      %v574 = vsel %vm568, %v573, %v572
      %vm575 = vcmp.lt.s32.totalorder %v253, 0
      %v576 = vsub.s32 0, %v253
      %v577 = vsel %vm575, %v576, %v253
      %v578 = vshrl.u32 %v577, 5
      %v579 = vand.u32 %v577, 31
      %v580 = vsub.s32 0, %v579
      %v581 = vsel %vm575, %v580, %v579
      %vm582 = vcmp.lt.s32.totalorder %v254, 0
      %v583 = vsub.s32 0, %v254
      %v584 = vsel %vm582, %v583, %v254
      %v585 = vshrl.u32 %v584, 5
      %v586 = vand.u32 %v584, 31
      %v587 = vsub.s32 0, %v586
      %v588 = vsel %vm582, %v587, %v586
      %vm589 = vcmp.lt.s32.totalorder %v255, 0
      %v590 = vsub.s32 0, %v255
      %v591 = vsel %vm589, %v590, %v255
      %v592 = vshrl.u32 %v591, 5
      %v593 = vand.u32 %v591, 31
      %v594 = vsub.s32 0, %v593
      %v595 = vsel %vm589, %v594, %v593
      %vm596 = vcmp.lt.s32.totalorder %v256, 0
      %v597 = vsub.s32 0, %v256
      %v598 = vsel %vm596, %v597, %v256
      %v599 = vshrl.u32 %v598, 5
      %v600 = vand.u32 %v598, 31
      %v601 = vsub.s32 0, %v600
      %v602 = vsel %vm596, %v601, %v600
      %vm603 = vcmp.lt.s32.totalorder %v257, 0
      %v604 = vsub.s32 0, %v257
      %v605 = vsel %vm603, %v604, %v257
      %v606 = vshrl.u32 %v605, 5
      %v607 = vand.u32 %v605, 31
      %v608 = vsub.s32 0, %v607
      %v609 = vsel %vm603, %v608, %v607
      %vm610 = vcmp.lt.s32.totalorder %v258, 0
      %v611 = vsub.s32 0, %v258
      %v612 = vsel %vm610, %v611, %v258
      %v613 = vshrl.u32 %v612, 5
      %v614 = vand.u32 %v612, 31
      %v615 = vsub.s32 0, %v614
      %v616 = vsel %vm610, %v615, %v614
      %vm617 = vcmp.lt.s32.totalorder %v259, 0
      %v618 = vsub.s32 0, %v259
      %v619 = vsel %vm617, %v618, %v259
      %v620 = vshrl.u32 %v619, 5
      %v621 = vand.u32 %v619, 31
      %v622 = vsub.s32 0, %v621
      %v623 = vsel %vm617, %v622, %v621
      %vm624 = vcmp.lt.s32.totalorder %v260, 0
      %v625 = vsub.s32 0, %v260
      %v626 = vsel %vm624, %v625, %v260
      %v627 = vshrl.u32 %v626, 5
      %v628 = vand.u32 %v626, 31
      %v629 = vsub.s32 0, %v628
      %v630 = vsel %vm624, %v629, %v628
      %vm631 = vcmp.lt.s32.totalorder %v261, 0
      %v632 = vsub.s32 0, %v261
      %v633 = vsel %vm631, %v632, %v261
      %v634 = vshrl.u32 %v633, 5
      %v635 = vand.u32 %v633, 31
      %v636 = vsub.s32 0, %v635
      %v637 = vsel %vm631, %v636, %v635
      %vm638 = vcmp.lt.s32.totalorder %v262, 0
      %v639 = vsub.s32 0, %v262
      %v640 = vsel %vm638, %v639, %v262
      %v641 = vshrl.u32 %v640, 5
      %v642 = vand.u32 %v640, 31
      %v643 = vsub.s32 0, %v642
      %v644 = vsel %vm638, %v643, %v642
      %vm645 = vcmp.lt.s32.totalorder %v263, 0
      %v646 = vsub.s32 0, %v263
      %v647 = vsel %vm645, %v646, %v263
      %v648 = vshrl.u32 %v647, 5
      %v649 = vand.u32 %v647, 31
      %v650 = vsub.s32 0, %v649
      %v651 = vsel %vm645, %v650, %v649
      %vm652 = vcmp.lt.s32.totalorder %v264, 0
      %v653 = vsub.s32 0, %v264
      %v654 = vsel %vm652, %v653, %v264
      %v655 = vshrl.u32 %v654, 5
      %v656 = vand.u32 %v654, 31
      %v657 = vsub.s32 0, %v656
      %v658 = vsel %vm652, %v657, %v656
      %vm659 = vcmp.lt.s32.totalorder %v265, 0
      %v660 = vsub.s32 0, %v265
      %v661 = vsel %vm659, %v660, %v265
      %v662 = vshrl.u32 %v661, 5
      %v663 = vand.u32 %v661, 31
      %v664 = vsub.s32 0, %v663
      %v665 = vsel %vm659, %v664, %v663
      %vm666 = vcmp.lt.s32.totalorder %v266, 0
      %v667 = vsub.s32 0, %v266
      %v668 = vsel %vm666, %v667, %v266
      %v669 = vshrl.u32 %v668, 5
      %v670 = vand.u32 %v668, 31
      %v671 = vsub.s32 0, %v670
      %v672 = vsel %vm666, %v671, %v670
      %vm673 = vcmp.lt.s32.totalorder %v267, 0
      %v674 = vsub.s32 0, %v267
      %v675 = vsel %vm673, %v674, %v267
      %v676 = vshrl.u32 %v675, 5
      %v677 = vand.u32 %v675, 31
      %v678 = vsub.s32 0, %v677
      %v679 = vsel %vm673, %v678, %v677
      %vm680 = vcmp.lt.s32.totalorder %v268, 0
      %v681 = vsub.s32 0, %v268
      %v682 = vsel %vm680, %v681, %v268
      %v683 = vshrl.u32 %v682, 5
      %v684 = vand.u32 %v682, 31
      %v685 = vsub.s32 0, %v684
      %v686 = vsel %vm680, %v685, %v684
      %vm687 = vcmp.lt.s32.totalorder %v269, 0
      %v688 = vsub.s32 0, %v269
      %v689 = vsel %vm687, %v688, %v269
      %v690 = vshrl.u32 %v689, 5
      %v691 = vand.u32 %v689, 31
      %v692 = vsub.s32 0, %v691
      %v693 = vsel %vm687, %v692, %v691
      %vm694 = vcmp.lt.s32.totalorder %v270, 0
      %v695 = vsub.s32 0, %v270
      %v696 = vsel %vm694, %v695, %v270
      %v697 = vshrl.u32 %v696, 5
      %v698 = vand.u32 %v696, 31
      %v699 = vsub.s32 0, %v698
      %v700 = vsel %vm694, %v699, %v698
      %vm701 = vcmp.lt.s32.totalorder %v271, 0
      %v702 = vsub.s32 0, %v271
      %v703 = vsel %vm701, %v702, %v271
      %v704 = vshrl.u32 %v703, 5
      %v705 = vand.u32 %v703, 31
      %v706 = vsub.s32 0, %v705
      %v707 = vsel %vm701, %v706, %v705
      %vm708 = vcmp.lt.s32.totalorder %v272, 0
      %v709 = vsub.s32 0, %v272
      %v710 = vsel %vm708, %v709, %v272
      %v711 = vshrl.u32 %v710, 5
      %v712 = vand.u32 %v710, 31
      %v713 = vsub.s32 0, %v712
      %v714 = vsel %vm708, %v713, %v712
      %vm715 = vcmp.lt.s32.totalorder %v273, 0
      %v716 = vsub.s32 0, %v273
      %v717 = vsel %vm715, %v716, %v273
      %v718 = vshrl.u32 %v717, 5
      %v719 = vand.u32 %v717, 31
      %v720 = vsub.s32 0, %v719
      %v721 = vsel %vm715, %v720, %v719
      %vm722 = vcmp.ne.s32.totalorder %v280, 0
      %vm723 = vcmp.ne.s32.totalorder %v287, 0
      %vm724 = vcmp.ne.s32.totalorder %v294, 0
      %vm725 = vcmp.ne.s32.totalorder %v301, 0
      %vm726 = vcmp.ne.s32.totalorder %v308, 0
      %vm727 = vcmp.ne.s32.totalorder %v315, 0
      %vm728 = vcmp.ne.s32.totalorder %v322, 0
      %vm729 = vcmp.ne.s32.totalorder %v329, 0
      %vm730 = vcmp.ne.s32.totalorder %v336, 0
      %vm731 = vcmp.ne.s32.totalorder %v343, 0
      %vm732 = vcmp.ne.s32.totalorder %v350, 0
      %vm733 = vcmp.ne.s32.totalorder %v357, 0
      %vm734 = vcmp.ne.s32.totalorder %v364, 0
      %vm735 = vcmp.ne.s32.totalorder %v371, 0
      %vm736 = vcmp.ne.s32.totalorder %v378, 0
      %vm737 = vcmp.ne.s32.totalorder %v385, 0
      %vm738 = vcmp.ne.s32.totalorder %v392, 0
      %vm739 = vcmp.ne.s32.totalorder %v399, 0
      %vm740 = vcmp.ne.s32.totalorder %v406, 0
      %vm741 = vcmp.ne.s32.totalorder %v413, 0
      %vm742 = vcmp.ne.s32.totalorder %v420, 0
      %vm743 = vcmp.ne.s32.totalorder %v427, 0
      %vm744 = vcmp.ne.s32.totalorder %v434, 0
      %vm745 = vcmp.ne.s32.totalorder %v441, 0
      %vm746 = vcmp.ne.s32.totalorder %v448, 0
      %vm747 = vcmp.ne.s32.totalorder %v455, 0
      %vm748 = vcmp.ne.s32.totalorder %v462, 0
      %vm749 = vcmp.ne.s32.totalorder %v469, 0
      %vm750 = vcmp.ne.s32.totalorder %v476, 0
      %vm751 = vcmp.ne.s32.totalorder %v483, 0
      %vm752 = vcmp.ne.s32.totalorder %v490, 0
      %vm753 = vcmp.ne.s32.totalorder %v497, 0
      %vm754 = vcmp.ne.s32.totalorder %v504, 0
      %vm755 = vcmp.ne.s32.totalorder %v511, 0
      %vm756 = vcmp.ne.s32.totalorder %v518, 0
      %vm757 = vcmp.ne.s32.totalorder %v525, 0
      %vm758 = vcmp.ne.s32.totalorder %v532, 0
      %vm759 = vcmp.ne.s32.totalorder %v539, 0
      %vm760 = vcmp.ne.s32.totalorder %v546, 0
      %vm761 = vcmp.ne.s32.totalorder %v553, 0
      %vm762 = vcmp.ne.s32.totalorder %v560, 0
      %vm763 = vcmp.ne.s32.totalorder %v567, 0
      %vm764 = vcmp.ne.s32.totalorder %v574, 0
      %vm765 = vcmp.ne.s32.totalorder %v581, 0
      %vm766 = vcmp.ne.s32.totalorder %v588, 0
      %vm767 = vcmp.ne.s32.totalorder %v595, 0
      %vm768 = vcmp.ne.s32.totalorder %v602, 0
      %vm769 = vcmp.ne.s32.totalorder %v609, 0
      %vm770 = vcmp.ne.s32.totalorder %v616, 0
      %vm771 = vcmp.ne.s32.totalorder %v623, 0
      %vm772 = vcmp.ne.s32.totalorder %v630, 0
      %vm773 = vcmp.ne.s32.totalorder %v637, 0
      %vm774 = vcmp.ne.s32.totalorder %v644, 0
      %vm775 = vcmp.ne.s32.totalorder %v651, 0
      %vm776 = vcmp.ne.s32.totalorder %v658, 0
      %vm777 = vcmp.ne.s32.totalorder %v665, 0
      %vm778 = vcmp.ne.s32.totalorder %v672, 0
      %vm779 = vcmp.ne.s32.totalorder %v679, 0
      %vm780 = vcmp.ne.s32.totalorder %v686, 0
      %vm781 = vcmp.ne.s32.totalorder %v693, 0
      %vm782 = vcmp.ne.s32.totalorder %v700, 0
      %vm783 = vcmp.ne.s32.totalorder %v707, 0
      %vm784 = vcmp.ne.s32.totalorder %v714, 0
      %vm785 = vcmp.ne.s32.totalorder %v721, 0
      %vm786 = vcmp.lt.s32.totalorder %v280, 0
      %vm787 = vcmp.lt.s32.totalorder %v287, 0
      %vm788 = vcmp.lt.s32.totalorder %v294, 0
      %vm789 = vcmp.lt.s32.totalorder %v301, 0
      %vm790 = vcmp.lt.s32.totalorder %v308, 0
      %vm791 = vcmp.lt.s32.totalorder %v315, 0
      %vm792 = vcmp.lt.s32.totalorder %v322, 0
      %vm793 = vcmp.lt.s32.totalorder %v329, 0
      %vm794 = vcmp.lt.s32.totalorder %v336, 0
      %vm795 = vcmp.lt.s32.totalorder %v343, 0
      %vm796 = vcmp.lt.s32.totalorder %v350, 0
      %vm797 = vcmp.lt.s32.totalorder %v357, 0
      %vm798 = vcmp.lt.s32.totalorder %v364, 0
      %vm799 = vcmp.lt.s32.totalorder %v371, 0
      %vm800 = vcmp.lt.s32.totalorder %v378, 0
      %vm801 = vcmp.lt.s32.totalorder %v385, 0
      %vm802 = vcmp.lt.s32.totalorder %v392, 0
      %vm803 = vcmp.lt.s32.totalorder %v399, 0
      %vm804 = vcmp.lt.s32.totalorder %v406, 0
      %vm805 = vcmp.lt.s32.totalorder %v413, 0
      %vm806 = vcmp.lt.s32.totalorder %v420, 0
      %vm807 = vcmp.lt.s32.totalorder %v427, 0
      %vm808 = vcmp.lt.s32.totalorder %v434, 0
      %vm809 = vcmp.lt.s32.totalorder %v441, 0
      %vm810 = vcmp.lt.s32.totalorder %v448, 0
      %vm811 = vcmp.lt.s32.totalorder %v455, 0
      %vm812 = vcmp.lt.s32.totalorder %v462, 0
      %vm813 = vcmp.lt.s32.totalorder %v469, 0
      %vm814 = vcmp.lt.s32.totalorder %v476, 0
      %vm815 = vcmp.lt.s32.totalorder %v483, 0
      %vm816 = vcmp.lt.s32.totalorder %v490, 0
      %vm817 = vcmp.lt.s32.totalorder %v497, 0
      %vm818 = vcmp.lt.s32.totalorder %v504, 0
      %vm819 = vcmp.lt.s32.totalorder %v511, 0
      %vm820 = vcmp.lt.s32.totalorder %v518, 0
      %vm821 = vcmp.lt.s32.totalorder %v525, 0
      %vm822 = vcmp.lt.s32.totalorder %v532, 0
      %vm823 = vcmp.lt.s32.totalorder %v539, 0
      %vm824 = vcmp.lt.s32.totalorder %v546, 0
      %vm825 = vcmp.lt.s32.totalorder %v553, 0
      %vm826 = vcmp.lt.s32.totalorder %v560, 0
      %vm827 = vcmp.lt.s32.totalorder %v567, 0
      %vm828 = vcmp.lt.s32.totalorder %v574, 0
      %vm829 = vcmp.lt.s32.totalorder %v581, 0
      %vm830 = vcmp.lt.s32.totalorder %v588, 0
      %vm831 = vcmp.lt.s32.totalorder %v595, 0
      %vm832 = vcmp.lt.s32.totalorder %v602, 0
      %vm833 = vcmp.lt.s32.totalorder %v609, 0
      %vm834 = vcmp.lt.s32.totalorder %v616, 0
      %vm835 = vcmp.lt.s32.totalorder %v623, 0
      %vm836 = vcmp.lt.s32.totalorder %v630, 0
      %vm837 = vcmp.lt.s32.totalorder %v637, 0
      %vm838 = vcmp.lt.s32.totalorder %v644, 0
      %vm839 = vcmp.lt.s32.totalorder %v651, 0
      %vm840 = vcmp.lt.s32.totalorder %v658, 0
      %vm841 = vcmp.lt.s32.totalorder %v665, 0
      %vm842 = vcmp.lt.s32.totalorder %v672, 0
      %vm843 = vcmp.lt.s32.totalorder %v679, 0
      %vm844 = vcmp.lt.s32.totalorder %v686, 0
      %vm845 = vcmp.lt.s32.totalorder %v693, 0
      %vm846 = vcmp.lt.s32.totalorder %v700, 0
      %vm847 = vcmp.lt.s32.totalorder %v707, 0
      %vm848 = vcmp.lt.s32.totalorder %v714, 0
      %vm849 = vcmp.lt.s32.totalorder %v721, 0
      %vm850 = vmand %vm786, %vm722
      %vm851 = vmand %vm787, %vm723
      %vm852 = vmand %vm788, %vm724
      %vm853 = vmand %vm789, %vm725
      %vm854 = vmand %vm790, %vm726
      %vm855 = vmand %vm791, %vm727
      %vm856 = vmand %vm792, %vm728
      %vm857 = vmand %vm793, %vm729
      %vm858 = vmand %vm794, %vm730
      %vm859 = vmand %vm795, %vm731
      %vm860 = vmand %vm796, %vm732
      %vm861 = vmand %vm797, %vm733
      %vm862 = vmand %vm798, %vm734
      %vm863 = vmand %vm799, %vm735
      %vm864 = vmand %vm800, %vm736
      %vm865 = vmand %vm801, %vm737
      %vm866 = vmand %vm802, %vm738
      %vm867 = vmand %vm803, %vm739
      %vm868 = vmand %vm804, %vm740
      %vm869 = vmand %vm805, %vm741
      %vm870 = vmand %vm806, %vm742
      %vm871 = vmand %vm807, %vm743
      %vm872 = vmand %vm808, %vm744
      %vm873 = vmand %vm809, %vm745
      %vm874 = vmand %vm810, %vm746
      %vm875 = vmand %vm811, %vm747
      %vm876 = vmand %vm812, %vm748
      %vm877 = vmand %vm813, %vm749
      %vm878 = vmand %vm814, %vm750
      %vm879 = vmand %vm815, %vm751
      %vm880 = vmand %vm816, %vm752
      %vm881 = vmand %vm817, %vm753
      %vm882 = vmand %vm818, %vm754
      %vm883 = vmand %vm819, %vm755
      %vm884 = vmand %vm820, %vm756
      %vm885 = vmand %vm821, %vm757
      %vm886 = vmand %vm822, %vm758
      %vm887 = vmand %vm823, %vm759
      %vm888 = vmand %vm824, %vm760
      %vm889 = vmand %vm825, %vm761
      %vm890 = vmand %vm826, %vm762
      %vm891 = vmand %vm827, %vm763
      %vm892 = vmand %vm828, %vm764
      %vm893 = vmand %vm829, %vm765
      %vm894 = vmand %vm830, %vm766
      %vm895 = vmand %vm831, %vm767
      %vm896 = vmand %vm832, %vm768
      %vm897 = vmand %vm833, %vm769
      %vm898 = vmand %vm834, %vm770
      %vm899 = vmand %vm835, %vm771
      %vm900 = vmand %vm836, %vm772
      %vm901 = vmand %vm837, %vm773
      %vm902 = vmand %vm838, %vm774
      %vm903 = vmand %vm839, %vm775
      %vm904 = vmand %vm840, %vm776
      %vm905 = vmand %vm841, %vm777
      %vm906 = vmand %vm842, %vm778
      %vm907 = vmand %vm843, %vm779
      %vm908 = vmand %vm844, %vm780
      %vm909 = vmand %vm845, %vm781
      %vm910 = vmand %vm846, %vm782
      %vm911 = vmand %vm847, %vm783
      %vm912 = vmand %vm848, %vm784
      %vm913 = vmand %vm849, %vm785
      %v914 = vadd.s32 %v280, 32
      %v915 = vadd.s32 %v287, 32
      %v916 = vadd.s32 %v294, 32
      %v917 = vadd.s32 %v301, 32
      %v918 = vadd.s32 %v308, 32
      %v919 = vadd.s32 %v315, 32
      %v920 = vadd.s32 %v322, 32
      %v921 = vadd.s32 %v329, 32
      %v922 = vadd.s32 %v336, 32
      %v923 = vadd.s32 %v343, 32
      %v924 = vadd.s32 %v350, 32
      %v925 = vadd.s32 %v357, 32
      %v926 = vadd.s32 %v364, 32
      %v927 = vadd.s32 %v371, 32
      %v928 = vadd.s32 %v378, 32
      %v929 = vadd.s32 %v385, 32
      %v930 = vadd.s32 %v392, 32
      %v931 = vadd.s32 %v399, 32
      %v932 = vadd.s32 %v406, 32
      %v933 = vadd.s32 %v413, 32
      %v934 = vadd.s32 %v420, 32
      %v935 = vadd.s32 %v427, 32
      %v936 = vadd.s32 %v434, 32
      %v937 = vadd.s32 %v441, 32
      %v938 = vadd.s32 %v448, 32
      %v939 = vadd.s32 %v455, 32
      %v940 = vadd.s32 %v462, 32
      %v941 = vadd.s32 %v469, 32
      %v942 = vadd.s32 %v476, 32
      %v943 = vadd.s32 %v483, 32
      %v944 = vadd.s32 %v490, 32
      %v945 = vadd.s32 %v497, 32
      %v946 = vadd.s32 %v504, 32
      %v947 = vadd.s32 %v511, 32
      %v948 = vadd.s32 %v518, 32
      %v949 = vadd.s32 %v525, 32
      %v950 = vadd.s32 %v532, 32
      %v951 = vadd.s32 %v539, 32
      %v952 = vadd.s32 %v546, 32
      %v953 = vadd.s32 %v553, 32
      %v954 = vadd.s32 %v560, 32
      %v955 = vadd.s32 %v567, 32
      %v956 = vadd.s32 %v574, 32
      %v957 = vadd.s32 %v581, 32
      %v958 = vadd.s32 %v588, 32
      %v959 = vadd.s32 %v595, 32
      %v960 = vadd.s32 %v602, 32
      %v961 = vadd.s32 %v609, 32
      %v962 = vadd.s32 %v616, 32
      %v963 = vadd.s32 %v623, 32
      %v964 = vadd.s32 %v630, 32
      %v965 = vadd.s32 %v637, 32
      %v966 = vadd.s32 %v644, 32
      %v967 = vadd.s32 %v651, 32
      %v968 = vadd.s32 %v658, 32
      %v969 = vadd.s32 %v665, 32
      %v970 = vadd.s32 %v672, 32
      %v971 = vadd.s32 %v679, 32
      %v972 = vadd.s32 %v686, 32
      %v973 = vadd.s32 %v693, 32
      %v974 = vadd.s32 %v700, 32
      %v975 = vadd.s32 %v707, 32
      %v976 = vadd.s32 %v714, 32
      %v977 = vadd.s32 %v721, 32
      %v978 = vsel %vm850, %v914, %v280
      %v979 = vsel %vm851, %v915, %v287
      %v980 = vsel %vm852, %v916, %v294
      %v981 = vsel %vm853, %v917, %v301
      %v982 = vsel %vm854, %v918, %v308
      %v983 = vsel %vm855, %v919, %v315
      %v984 = vsel %vm856, %v920, %v322
      %v985 = vsel %vm857, %v921, %v329
      %v986 = vsel %vm858, %v922, %v336
      %v987 = vsel %vm859, %v923, %v343
      %v988 = vsel %vm860, %v924, %v350
      %v989 = vsel %vm861, %v925, %v357
      %v990 = vsel %vm862, %v926, %v364
      %v991 = vsel %vm863, %v927, %v371
      %v992 = vsel %vm864, %v928, %v378
      %v993 = vsel %vm865, %v929, %v385
      %v994 = vsel %vm866, %v930, %v392
      %v995 = vsel %vm867, %v931, %v399
      %v996 = vsel %vm868, %v932, %v406
      %v997 = vsel %vm869, %v933, %v413
      %v998 = vsel %vm870, %v934, %v420
      %v999 = vsel %vm871, %v935, %v427
      %v1000 = vsel %vm872, %v936, %v434
      %v1001 = vsel %vm873, %v937, %v441
      %v1002 = vsel %vm874, %v938, %v448
      %v1003 = vsel %vm875, %v939, %v455
      %v1004 = vsel %vm876, %v940, %v462
      %v1005 = vsel %vm877, %v941, %v469
      %v1006 = vsel %vm878, %v942, %v476
      %v1007 = vsel %vm879, %v943, %v483
      %v1008 = vsel %vm880, %v944, %v490
      %v1009 = vsel %vm881, %v945, %v497
      %v1010 = vsel %vm882, %v946, %v504
      %v1011 = vsel %vm883, %v947, %v511
      %v1012 = vsel %vm884, %v948, %v518
      %v1013 = vsel %vm885, %v949, %v525
      %v1014 = vsel %vm886, %v950, %v532
      %v1015 = vsel %vm887, %v951, %v539
      %v1016 = vsel %vm888, %v952, %v546
      %v1017 = vsel %vm889, %v953, %v553
      %v1018 = vsel %vm890, %v954, %v560
      %v1019 = vsel %vm891, %v955, %v567
      %v1020 = vsel %vm892, %v956, %v574
      %v1021 = vsel %vm893, %v957, %v581
      %v1022 = vsel %vm894, %v958, %v588
      %v1023 = vsel %vm895, %v959, %v595
      %v1024 = vsel %vm896, %v960, %v602
      %v1025 = vsel %vm897, %v961, %v609
      %v1026 = vsel %vm898, %v962, %v616
      %v1027 = vsel %vm899, %v963, %v623
      %v1028 = vsel %vm900, %v964, %v630
      %v1029 = vsel %vm901, %v965, %v637
      %v1030 = vsel %vm902, %v966, %v644
      %v1031 = vsel %vm903, %v967, %v651
      %v1032 = vsel %vm904, %v968, %v658
      %v1033 = vsel %vm905, %v969, %v665
      %v1034 = vsel %vm906, %v970, %v672
      %v1035 = vsel %vm907, %v971, %v679
      %v1036 = vsel %vm908, %v972, %v686
      %v1037 = vsel %vm909, %v973, %v693
      %v1038 = vsel %vm910, %v974, %v700
      %v1039 = vsel %vm911, %v975, %v707
      %v1040 = vsel %vm912, %v976, %v714
      %v1041 = vsel %vm913, %v977, %v721
      %vm1042 = vcmp.ge.s32.totalorder %v978, 1
      %vm1043 = vcmp.ge.s32.totalorder %v979, 1
      %vm1044 = vcmp.ge.s32.totalorder %v980, 1
      %vm1045 = vcmp.ge.s32.totalorder %v981, 1
      %vm1046 = vcmp.ge.s32.totalorder %v982, 1
      %vm1047 = vcmp.ge.s32.totalorder %v983, 1
      %vm1048 = vcmp.ge.s32.totalorder %v984, 1
      %vm1049 = vcmp.ge.s32.totalorder %v985, 1
      %vm1050 = vcmp.ge.s32.totalorder %v986, 1
      %vm1051 = vcmp.ge.s32.totalorder %v987, 1
      %vm1052 = vcmp.ge.s32.totalorder %v988, 1
      %vm1053 = vcmp.ge.s32.totalorder %v989, 1
      %vm1054 = vcmp.ge.s32.totalorder %v990, 1
      %vm1055 = vcmp.ge.s32.totalorder %v991, 1
      %vm1056 = vcmp.ge.s32.totalorder %v992, 1
      %vm1057 = vcmp.ge.s32.totalorder %v993, 1
      %vm1058 = vcmp.ge.s32.totalorder %v994, 1
      %vm1059 = vcmp.ge.s32.totalorder %v995, 1
      %vm1060 = vcmp.ge.s32.totalorder %v996, 1
      %vm1061 = vcmp.ge.s32.totalorder %v997, 1
      %vm1062 = vcmp.ge.s32.totalorder %v998, 1
      %vm1063 = vcmp.ge.s32.totalorder %v999, 1
      %vm1064 = vcmp.ge.s32.totalorder %v1000, 1
      %vm1065 = vcmp.ge.s32.totalorder %v1001, 1
      %vm1066 = vcmp.ge.s32.totalorder %v1002, 1
      %vm1067 = vcmp.ge.s32.totalorder %v1003, 1
      %vm1068 = vcmp.ge.s32.totalorder %v1004, 1
      %vm1069 = vcmp.ge.s32.totalorder %v1005, 1
      %vm1070 = vcmp.ge.s32.totalorder %v1006, 1
      %vm1071 = vcmp.ge.s32.totalorder %v1007, 1
      %vm1072 = vcmp.ge.s32.totalorder %v1008, 1
      %vm1073 = vcmp.ge.s32.totalorder %v1009, 1
      %vm1074 = vcmp.ge.s32.totalorder %v1010, 1
      %vm1075 = vcmp.ge.s32.totalorder %v1011, 1
      %vm1076 = vcmp.ge.s32.totalorder %v1012, 1
      %vm1077 = vcmp.ge.s32.totalorder %v1013, 1
      %vm1078 = vcmp.ge.s32.totalorder %v1014, 1
      %vm1079 = vcmp.ge.s32.totalorder %v1015, 1
      %vm1080 = vcmp.ge.s32.totalorder %v1016, 1
      %vm1081 = vcmp.ge.s32.totalorder %v1017, 1
      %vm1082 = vcmp.ge.s32.totalorder %v1018, 1
      %vm1083 = vcmp.ge.s32.totalorder %v1019, 1
      %vm1084 = vcmp.ge.s32.totalorder %v1020, 1
      %vm1085 = vcmp.ge.s32.totalorder %v1021, 1
      %vm1086 = vcmp.ge.s32.totalorder %v1022, 1
      %vm1087 = vcmp.ge.s32.totalorder %v1023, 1
      %vm1088 = vcmp.ge.s32.totalorder %v1024, 1
      %vm1089 = vcmp.ge.s32.totalorder %v1025, 1
      %vm1090 = vcmp.ge.s32.totalorder %v1026, 1
      %vm1091 = vcmp.ge.s32.totalorder %v1027, 1
      %vm1092 = vcmp.ge.s32.totalorder %v1028, 1
      %vm1093 = vcmp.ge.s32.totalorder %v1029, 1
      %vm1094 = vcmp.ge.s32.totalorder %v1030, 1
      %vm1095 = vcmp.ge.s32.totalorder %v1031, 1
      %vm1096 = vcmp.ge.s32.totalorder %v1032, 1
      %vm1097 = vcmp.ge.s32.totalorder %v1033, 1
      %vm1098 = vcmp.ge.s32.totalorder %v1034, 1
      %vm1099 = vcmp.ge.s32.totalorder %v1035, 1
      %vm1100 = vcmp.ge.s32.totalorder %v1036, 1
      %vm1101 = vcmp.ge.s32.totalorder %v1037, 1
      %vm1102 = vcmp.ge.s32.totalorder %v1038, 1
      %vm1103 = vcmp.ge.s32.totalorder %v1039, 1
      %vm1104 = vcmp.ge.s32.totalorder %v1040, 1
      %vm1105 = vcmp.ge.s32.totalorder %v1041, 1
      %vm1106 = vcmp.le.s32.totalorder %v978, 16
      %vm1107 = vcmp.le.s32.totalorder %v979, 16
      %vm1108 = vcmp.le.s32.totalorder %v980, 16
      %vm1109 = vcmp.le.s32.totalorder %v981, 16
      %vm1110 = vcmp.le.s32.totalorder %v982, 16
      %vm1111 = vcmp.le.s32.totalorder %v983, 16
      %vm1112 = vcmp.le.s32.totalorder %v984, 16
      %vm1113 = vcmp.le.s32.totalorder %v985, 16
      %vm1114 = vcmp.le.s32.totalorder %v986, 16
      %vm1115 = vcmp.le.s32.totalorder %v987, 16
      %vm1116 = vcmp.le.s32.totalorder %v988, 16
      %vm1117 = vcmp.le.s32.totalorder %v989, 16
      %vm1118 = vcmp.le.s32.totalorder %v990, 16
      %vm1119 = vcmp.le.s32.totalorder %v991, 16
      %vm1120 = vcmp.le.s32.totalorder %v992, 16
      %vm1121 = vcmp.le.s32.totalorder %v993, 16
      %vm1122 = vcmp.le.s32.totalorder %v994, 16
      %vm1123 = vcmp.le.s32.totalorder %v995, 16
      %vm1124 = vcmp.le.s32.totalorder %v996, 16
      %vm1125 = vcmp.le.s32.totalorder %v997, 16
      %vm1126 = vcmp.le.s32.totalorder %v998, 16
      %vm1127 = vcmp.le.s32.totalorder %v999, 16
      %vm1128 = vcmp.le.s32.totalorder %v1000, 16
      %vm1129 = vcmp.le.s32.totalorder %v1001, 16
      %vm1130 = vcmp.le.s32.totalorder %v1002, 16
      %vm1131 = vcmp.le.s32.totalorder %v1003, 16
      %vm1132 = vcmp.le.s32.totalorder %v1004, 16
      %vm1133 = vcmp.le.s32.totalorder %v1005, 16
      %vm1134 = vcmp.le.s32.totalorder %v1006, 16
      %vm1135 = vcmp.le.s32.totalorder %v1007, 16
      %vm1136 = vcmp.le.s32.totalorder %v1008, 16
      %vm1137 = vcmp.le.s32.totalorder %v1009, 16
      %vm1138 = vcmp.le.s32.totalorder %v1010, 16
      %vm1139 = vcmp.le.s32.totalorder %v1011, 16
      %vm1140 = vcmp.le.s32.totalorder %v1012, 16
      %vm1141 = vcmp.le.s32.totalorder %v1013, 16
      %vm1142 = vcmp.le.s32.totalorder %v1014, 16
      %vm1143 = vcmp.le.s32.totalorder %v1015, 16
      %vm1144 = vcmp.le.s32.totalorder %v1016, 16
      %vm1145 = vcmp.le.s32.totalorder %v1017, 16
      %vm1146 = vcmp.le.s32.totalorder %v1018, 16
      %vm1147 = vcmp.le.s32.totalorder %v1019, 16
      %vm1148 = vcmp.le.s32.totalorder %v1020, 16
      %vm1149 = vcmp.le.s32.totalorder %v1021, 16
      %vm1150 = vcmp.le.s32.totalorder %v1022, 16
      %vm1151 = vcmp.le.s32.totalorder %v1023, 16
      %vm1152 = vcmp.le.s32.totalorder %v1024, 16
      %vm1153 = vcmp.le.s32.totalorder %v1025, 16
      %vm1154 = vcmp.le.s32.totalorder %v1026, 16
      %vm1155 = vcmp.le.s32.totalorder %v1027, 16
      %vm1156 = vcmp.le.s32.totalorder %v1028, 16
      %vm1157 = vcmp.le.s32.totalorder %v1029, 16
      %vm1158 = vcmp.le.s32.totalorder %v1030, 16
      %vm1159 = vcmp.le.s32.totalorder %v1031, 16
      %vm1160 = vcmp.le.s32.totalorder %v1032, 16
      %vm1161 = vcmp.le.s32.totalorder %v1033, 16
      %vm1162 = vcmp.le.s32.totalorder %v1034, 16
      %vm1163 = vcmp.le.s32.totalorder %v1035, 16
      %vm1164 = vcmp.le.s32.totalorder %v1036, 16
      %vm1165 = vcmp.le.s32.totalorder %v1037, 16
      %vm1166 = vcmp.le.s32.totalorder %v1038, 16
      %vm1167 = vcmp.le.s32.totalorder %v1039, 16
      %vm1168 = vcmp.le.s32.totalorder %v1040, 16
      %vm1169 = vcmp.le.s32.totalorder %v1041, 16
      %vm1170 = vmand %vm1042, %vm1106
      %vm1171 = vmand %vm1043, %vm1107
      %vm1172 = vmand %vm1044, %vm1108
      %vm1173 = vmand %vm1045, %vm1109
      %vm1174 = vmand %vm1046, %vm1110
      %vm1175 = vmand %vm1047, %vm1111
      %vm1176 = vmand %vm1048, %vm1112
      %vm1177 = vmand %vm1049, %vm1113
      %vm1178 = vmand %vm1050, %vm1114
      %vm1179 = vmand %vm1051, %vm1115
      %vm1180 = vmand %vm1052, %vm1116
      %vm1181 = vmand %vm1053, %vm1117
      %vm1182 = vmand %vm1054, %vm1118
      %vm1183 = vmand %vm1055, %vm1119
      %vm1184 = vmand %vm1056, %vm1120
      %vm1185 = vmand %vm1057, %vm1121
      %vm1186 = vmand %vm1058, %vm1122
      %vm1187 = vmand %vm1059, %vm1123
      %vm1188 = vmand %vm1060, %vm1124
      %vm1189 = vmand %vm1061, %vm1125
      %vm1190 = vmand %vm1062, %vm1126
      %vm1191 = vmand %vm1063, %vm1127
      %vm1192 = vmand %vm1064, %vm1128
      %vm1193 = vmand %vm1065, %vm1129
      %vm1194 = vmand %vm1066, %vm1130
      %vm1195 = vmand %vm1067, %vm1131
      %vm1196 = vmand %vm1068, %vm1132
      %vm1197 = vmand %vm1069, %vm1133
      %vm1198 = vmand %vm1070, %vm1134
      %vm1199 = vmand %vm1071, %vm1135
      %vm1200 = vmand %vm1072, %vm1136
      %vm1201 = vmand %vm1073, %vm1137
      %vm1202 = vmand %vm1074, %vm1138
      %vm1203 = vmand %vm1075, %vm1139
      %vm1204 = vmand %vm1076, %vm1140
      %vm1205 = vmand %vm1077, %vm1141
      %vm1206 = vmand %vm1078, %vm1142
      %vm1207 = vmand %vm1079, %vm1143
      %vm1208 = vmand %vm1080, %vm1144
      %vm1209 = vmand %vm1081, %vm1145
      %vm1210 = vmand %vm1082, %vm1146
      %vm1211 = vmand %vm1083, %vm1147
      %vm1212 = vmand %vm1084, %vm1148
      %vm1213 = vmand %vm1085, %vm1149
      %vm1214 = vmand %vm1086, %vm1150
      %vm1215 = vmand %vm1087, %vm1151
      %vm1216 = vmand %vm1088, %vm1152
      %vm1217 = vmand %vm1089, %vm1153
      %vm1218 = vmand %vm1090, %vm1154
      %vm1219 = vmand %vm1091, %vm1155
      %vm1220 = vmand %vm1092, %vm1156
      %vm1221 = vmand %vm1093, %vm1157
      %vm1222 = vmand %vm1094, %vm1158
      %vm1223 = vmand %vm1095, %vm1159
      %vm1224 = vmand %vm1096, %vm1160
      %vm1225 = vmand %vm1097, %vm1161
      %vm1226 = vmand %vm1098, %vm1162
      %vm1227 = vmand %vm1099, %vm1163
      %vm1228 = vmand %vm1100, %vm1164
      %vm1229 = vmand %vm1101, %vm1165
      %vm1230 = vmand %vm1102, %vm1166
      %vm1231 = vmand %vm1103, %vm1167
      %vm1232 = vmand %vm1104, %vm1168
      %vm1233 = vmand %vm1105, %vm1169
      %v1234 = vld [vmem:[%s2] sm:$0x1]
      %v1235 = vld [vmem:[%s3] sm:$0x1]
      %v1236 = vld [vmem:[%s192] sm:$0xf]
      %v1237 = vld [vmem:[%s192 + $0x4] sm:$0xf]
      %v1238 = vld [vmem:[%s192 + $0x8] sm:$0xf]
      %v1239 = vld [vmem:[%s192 + $0xc] sm:$0xf]
      %v1240 = vld [vmem:[%s192 + $0x10] sm:$0xf]
      %v1241 = vld [vmem:[%s192 + $0x14] sm:$0xf]
      %v1242 = vld [vmem:[%s192 + $0x18] sm:$0xf]
      %v1243 = vld [vmem:[%s192 + $0x1c] sm:$0xf]
      %v1244 = vld [vmem:[%s192 + $0x20] sm:$0xf]
      %v1245 = vld [vmem:[%s192 + $0x24] sm:$0xf]
      %v1246 = vld [vmem:[%s192 + $0x28] sm:$0xf]
      %v1247 = vld [vmem:[%s192 + $0x2c] sm:$0xf]
      %v1248 = vld [vmem:[%s192 + $0x30] sm:$0xf]
      %v1249 = vld [vmem:[%s192 + $0x34] sm:$0xf]
      %v1250 = vld [vmem:[%s192 + $0x38] sm:$0xf]
      %v1251 = vld [vmem:[%s192 + $0x3c] sm:$0xf]
      %v1252 = vld [vmem:[%s192 + $0x40] sm:$0xf]
      %v1253 = vld [vmem:[%s192 + $0x44] sm:$0xf]
      %v1254 = vld [vmem:[%s192 + $0x48] sm:$0xf]
      %v1255 = vld [vmem:[%s192 + $0x4c] sm:$0xf]
      %v1256 = vld [vmem:[%s192 + $0x50] sm:$0xf]
      %v1257 = vld [vmem:[%s192 + $0x54] sm:$0xf]
      %v1258 = vld [vmem:[%s192 + $0x58] sm:$0xf]
      %v1259 = vld [vmem:[%s192 + $0x5c] sm:$0xf]
      %v1260 = vld [vmem:[%s192 + $0x60] sm:$0xf]
      %v1261 = vld [vmem:[%s192 + $0x64] sm:$0xf]
      %v1262 = vld [vmem:[%s192 + $0x68] sm:$0xf]
      %v1263 = vld [vmem:[%s192 + $0x6c] sm:$0xf]
      %v1264 = vld [vmem:[%s192 + $0x70] sm:$0xf]
      %v1265 = vld [vmem:[%s192 + $0x74] sm:$0xf]
      %v1266 = vld [vmem:[%s192 + $0x78] sm:$0xf]
      %v1267 = vld [vmem:[%s192 + $0x7c] sm:$0xf]
      %v1268 = vld [vmem:[%s192 + $0x80] sm:$0xf]
      %v1269 = vld [vmem:[%s192 + $0x84] sm:$0xf]
      %v1270 = vld [vmem:[%s192 + $0x88] sm:$0xf]
      %v1271 = vld [vmem:[%s192 + $0x8c] sm:$0xf]
      %v1272 = vld [vmem:[%s192 + $0x90] sm:$0xf]
      %v1273 = vld [vmem:[%s192 + $0x94] sm:$0xf]
      %v1274 = vld [vmem:[%s192 + $0x98] sm:$0xf]
      %v1275 = vld [vmem:[%s192 + $0x9c] sm:$0xf]
      %v1276 = vld [vmem:[%s192 + $0xa0] sm:$0xf]
      %v1277 = vld [vmem:[%s192 + $0xa4] sm:$0xf]
      %v1278 = vld [vmem:[%s192 + $0xa8] sm:$0xf]
      %v1279 = vld [vmem:[%s192 + $0xac] sm:$0xf]
      %v1280 = vld [vmem:[%s192 + $0xb0] sm:$0xf]
      %v1281 = vld [vmem:[%s192 + $0xb4] sm:$0xf]
      %v1282 = vld [vmem:[%s192 + $0xb8] sm:$0xf]
      %v1283 = vld [vmem:[%s192 + $0xbc] sm:$0xf]
      %v1284 = vld [vmem:[%s192 + $0xc0] sm:$0xf]
      %v1285 = vld [vmem:[%s192 + $0xc4] sm:$0xf]
      %v1286 = vld [vmem:[%s192 + $0xc8] sm:$0xf]
      %v1287 = vld [vmem:[%s192 + $0xcc] sm:$0xf]
      %v1288 = vld [vmem:[%s192 + $0xd0] sm:$0xf]
      %v1289 = vld [vmem:[%s192 + $0xd4] sm:$0xf]
      %v1290 = vld [vmem:[%s192 + $0xd8] sm:$0xf]
      %v1291 = vld [vmem:[%s192 + $0xdc] sm:$0xf]
      %v1292 = vld [vmem:[%s192 + $0xe0] sm:$0xf]
      %v1293 = vld [vmem:[%s192 + $0xe4] sm:$0xf]
      %v1294 = vld [vmem:[%s192 + $0xe8] sm:$0xf]
      %v1295 = vld [vmem:[%s192 + $0xec] sm:$0xf]
      %v1296 = vld [vmem:[%s192 + $0xf0] sm:$0xf]
      %v1297 = vld [vmem:[%s192 + $0xf4] sm:$0xf]
      %v1298 = vld [vmem:[%s192 + $0xf8] sm:$0xf]
      %v1299 = vld [vmem:[%s192 + $0xfc] sm:$0xf]
      %v1364 = vunpack.c.l.b16 %v1236
      %v1365 = vunpack.c.l.b16 %v1237
      %v1366 = vunpack.c.l.b16 %v1238
      %v1367 = vunpack.c.l.b16 %v1239
      %v1368 = vunpack.c.l.b16 %v1240
      %v1369 = vunpack.c.l.b16 %v1241
      %v1370 = vunpack.c.l.b16 %v1242
      %v1371 = vunpack.c.l.b16 %v1243
      %v1372 = vunpack.c.l.b16 %v1244
      %v1373 = vunpack.c.l.b16 %v1245
      %v1374 = vunpack.c.l.b16 %v1246
      %v1375 = vunpack.c.l.b16 %v1247
      %v1376 = vunpack.c.l.b16 %v1248
      %v1377 = vunpack.c.l.b16 %v1249
      %v1378 = vunpack.c.l.b16 %v1250
      %v1379 = vunpack.c.l.b16 %v1251
      %v1380 = vunpack.c.l.b16 %v1252
      %v1381 = vunpack.c.l.b16 %v1253
      %v1382 = vunpack.c.l.b16 %v1254
      %v1383 = vunpack.c.l.b16 %v1255
      %v1384 = vunpack.c.l.b16 %v1256
      %v1385 = vunpack.c.l.b16 %v1257
      %v1386 = vunpack.c.l.b16 %v1258
      %v1387 = vunpack.c.l.b16 %v1259
      %v1388 = vunpack.c.l.b16 %v1260
      %v1389 = vunpack.c.l.b16 %v1261
      %v1390 = vunpack.c.l.b16 %v1262
      %v1391 = vunpack.c.l.b16 %v1263
      %v1392 = vunpack.c.l.b16 %v1264
      %v1393 = vunpack.c.l.b16 %v1265
      %v1394 = vunpack.c.l.b16 %v1266
      %v1395 = vunpack.c.l.b16 %v1267
      %v1396 = vunpack.c.l.b16 %v1268
      %v1397 = vunpack.c.l.b16 %v1269
      %v1398 = vunpack.c.l.b16 %v1270
      %v1399 = vunpack.c.l.b16 %v1271
      %v1400 = vunpack.c.l.b16 %v1272
      %v1401 = vunpack.c.l.b16 %v1273
      %v1402 = vunpack.c.l.b16 %v1274
      %v1403 = vunpack.c.l.b16 %v1275
      %v1404 = vunpack.c.l.b16 %v1276
      %v1405 = vunpack.c.l.b16 %v1277
      %v1406 = vunpack.c.l.b16 %v1278
      %v1407 = vunpack.c.l.b16 %v1279
      %v1408 = vunpack.c.l.b16 %v1280
      %v1409 = vunpack.c.l.b16 %v1281
      %v1410 = vunpack.c.l.b16 %v1282
      %v1411 = vunpack.c.l.b16 %v1283
      %v1412 = vunpack.c.l.b16 %v1284
      %v1413 = vunpack.c.l.b16 %v1285
      %v1414 = vunpack.c.l.b16 %v1286
      %v1415 = vunpack.c.l.b16 %v1287
      %v1416 = vunpack.c.l.b16 %v1288
      %v1417 = vunpack.c.l.b16 %v1289
      %v1418 = vunpack.c.l.b16 %v1290
      %v1419 = vunpack.c.l.b16 %v1291
      %v1420 = vunpack.c.l.b16 %v1292
      %v1421 = vunpack.c.l.b16 %v1293
      %v1422 = vunpack.c.l.b16 %v1294
      %v1423 = vunpack.c.l.b16 %v1295
      %v1424 = vunpack.c.l.b16 %v1296
      %v1425 = vunpack.c.l.b16 %v1297
      %v1426 = vunpack.c.l.b16 %v1298
      %v1427 = vunpack.c.l.b16 %v1299
      %v1428 = vpack.c.b16 %v1365, %v1364
      %v1429 = vpack.c.b16 %v1367, %v1366
      %v1430 = vpack.c.b16 %v1369, %v1368
      %v1431 = vpack.c.b16 %v1371, %v1370
      %v1432 = vpack.c.b16 %v1373, %v1372
      %v1433 = vpack.c.b16 %v1375, %v1374
      %v1434 = vpack.c.b16 %v1377, %v1376
      %v1435 = vpack.c.b16 %v1379, %v1378
      %v1436 = vpack.c.b16 %v1381, %v1380
      %v1437 = vpack.c.b16 %v1383, %v1382
      %v1438 = vpack.c.b16 %v1385, %v1384
      %v1439 = vpack.c.b16 %v1387, %v1386
      %v1440 = vpack.c.b16 %v1389, %v1388
      %v1441 = vpack.c.b16 %v1391, %v1390
      %v1442 = vpack.c.b16 %v1393, %v1392
      %v1443 = vpack.c.b16 %v1395, %v1394
      %v1444 = vpack.c.b16 %v1397, %v1396
      %v1445 = vpack.c.b16 %v1399, %v1398
      %v1446 = vpack.c.b16 %v1401, %v1400
      %v1447 = vpack.c.b16 %v1403, %v1402
      %v1448 = vpack.c.b16 %v1405, %v1404
      %v1449 = vpack.c.b16 %v1407, %v1406
      %v1450 = vpack.c.b16 %v1409, %v1408
      %v1451 = vpack.c.b16 %v1411, %v1410
      %v1452 = vpack.c.b16 %v1413, %v1412
      %v1453 = vpack.c.b16 %v1415, %v1414
      %v1454 = vpack.c.b16 %v1417, %v1416
      %v1455 = vpack.c.b16 %v1419, %v1418
      %v1456 = vpack.c.b16 %v1421, %v1420
      %v1457 = vpack.c.b16 %v1423, %v1422
      %v1458 = vpack.c.b16 %v1425, %v1424
      %v1459 = vpack.c.b16 %v1427, %v1426
      %vm1460 = vsmask.f32 256
      %v1462 = vshrl.u32 %v1428, 16
      %v1464 = vrot.slane %v1462, 7
      %v1465 = vshll.u32 %v1428, 16
      %v1467 = vor.u32 %v1464, %v1465
      %v1469 = vshrl.u32 %v1429, 16
      %v1471 = vrot.slane %v1469, 7
      %v1472 = vshll.u32 %v1429, 16
      %v1474 = vor.u32 %v1471, %v1472
      %v1475 = vsel %vm1460, %v1464, %v1474
      %v1477 = vshrl.u32 %v1430, 16
      %v1479 = vrot.slane %v1477, 7
      %v1480 = vshll.u32 %v1430, 16
      %v1482 = vor.u32 %v1479, %v1480
      %v1484 = vshrl.u32 %v1431, 16
      %v1486 = vrot.slane %v1484, 7
      %v1487 = vshll.u32 %v1431, 16
      %v1489 = vor.u32 %v1486, %v1487
      %v1490 = vsel %vm1460, %v1479, %v1489
      %v1492 = vshrl.u32 %v1432, 16
      %v1494 = vrot.slane %v1492, 7
      %v1495 = vshll.u32 %v1432, 16
      %v1497 = vor.u32 %v1494, %v1495
      %v1499 = vshrl.u32 %v1433, 16
      %v1501 = vrot.slane %v1499, 7
      %v1502 = vshll.u32 %v1433, 16
      %v1504 = vor.u32 %v1501, %v1502
      %v1505 = vsel %vm1460, %v1494, %v1504
      %v1507 = vshrl.u32 %v1434, 16
      %v1509 = vrot.slane %v1507, 7
      %v1510 = vshll.u32 %v1434, 16
      %v1512 = vor.u32 %v1509, %v1510
      %v1514 = vshrl.u32 %v1435, 16
      %v1516 = vrot.slane %v1514, 7
      %v1517 = vshll.u32 %v1435, 16
      %v1519 = vor.u32 %v1516, %v1517
      %v1520 = vsel %vm1460, %v1509, %v1519
      %v1522 = vshrl.u32 %v1436, 16
      %v1524 = vrot.slane %v1522, 7
      %v1525 = vshll.u32 %v1436, 16
      %v1527 = vor.u32 %v1524, %v1525
      %v1529 = vshrl.u32 %v1437, 16
      %v1531 = vrot.slane %v1529, 7
      %v1532 = vshll.u32 %v1437, 16
      %v1534 = vor.u32 %v1531, %v1532
      %v1535 = vsel %vm1460, %v1524, %v1534
      %v1537 = vshrl.u32 %v1438, 16
      %v1539 = vrot.slane %v1537, 7
      %v1540 = vshll.u32 %v1438, 16
      %v1542 = vor.u32 %v1539, %v1540
      %v1544 = vshrl.u32 %v1439, 16
      %v1546 = vrot.slane %v1544, 7
      %v1547 = vshll.u32 %v1439, 16
      %v1549 = vor.u32 %v1546, %v1547
      %v1550 = vsel %vm1460, %v1539, %v1549
      %v1552 = vshrl.u32 %v1440, 16
      %v1554 = vrot.slane %v1552, 7
      %v1555 = vshll.u32 %v1440, 16
      %v1557 = vor.u32 %v1554, %v1555
      %v1559 = vshrl.u32 %v1441, 16
      %v1561 = vrot.slane %v1559, 7
      %v1562 = vshll.u32 %v1441, 16
      %v1564 = vor.u32 %v1561, %v1562
      %v1565 = vsel %vm1460, %v1554, %v1564
      %v1567 = vshrl.u32 %v1442, 16
      %v1569 = vrot.slane %v1567, 7
      %v1570 = vshll.u32 %v1442, 16
      %v1572 = vor.u32 %v1569, %v1570
      %v1574 = vshrl.u32 %v1443, 16
      %v1576 = vrot.slane %v1574, 7
      %v1577 = vshll.u32 %v1443, 16
      %v1579 = vor.u32 %v1576, %v1577
      %v1580 = vsel %vm1460, %v1569, %v1579
      %v1582 = vshrl.u32 %v1444, 16
      %v1584 = vrot.slane %v1582, 7
      %v1585 = vshll.u32 %v1444, 16
      %v1587 = vor.u32 %v1584, %v1585
      %v1589 = vshrl.u32 %v1445, 16
      %v1591 = vrot.slane %v1589, 7
      %v1592 = vshll.u32 %v1445, 16
      %v1594 = vor.u32 %v1591, %v1592
      %v1595 = vsel %vm1460, %v1584, %v1594
      %v1597 = vshrl.u32 %v1446, 16
      %v1599 = vrot.slane %v1597, 7
      %v1600 = vshll.u32 %v1446, 16
      %v1602 = vor.u32 %v1599, %v1600
      %v1604 = vshrl.u32 %v1447, 16
      %v1606 = vrot.slane %v1604, 7
      %v1607 = vshll.u32 %v1447, 16
      %v1609 = vor.u32 %v1606, %v1607
      %v1610 = vsel %vm1460, %v1599, %v1609
      %v1612 = vshrl.u32 %v1448, 16
      %v1614 = vrot.slane %v1612, 7
      %v1615 = vshll.u32 %v1448, 16
      %v1617 = vor.u32 %v1614, %v1615
      %v1619 = vshrl.u32 %v1449, 16
      %v1621 = vrot.slane %v1619, 7
      %v1622 = vshll.u32 %v1449, 16
      %v1624 = vor.u32 %v1621, %v1622
      %v1625 = vsel %vm1460, %v1614, %v1624
      %v1627 = vshrl.u32 %v1450, 16
      %v1629 = vrot.slane %v1627, 7
      %v1630 = vshll.u32 %v1450, 16
      %v1632 = vor.u32 %v1629, %v1630
      %v1634 = vshrl.u32 %v1451, 16
      %v1636 = vrot.slane %v1634, 7
      %v1637 = vshll.u32 %v1451, 16
      %v1639 = vor.u32 %v1636, %v1637
      %v1640 = vsel %vm1460, %v1629, %v1639
      %v1642 = vshrl.u32 %v1452, 16
      %v1644 = vrot.slane %v1642, 7
      %v1645 = vshll.u32 %v1452, 16
      %v1647 = vor.u32 %v1644, %v1645
      %v1649 = vshrl.u32 %v1453, 16
      %v1651 = vrot.slane %v1649, 7
      %v1652 = vshll.u32 %v1453, 16
      %v1654 = vor.u32 %v1651, %v1652
      %v1655 = vsel %vm1460, %v1644, %v1654
      %v1657 = vshrl.u32 %v1454, 16
      %v1659 = vrot.slane %v1657, 7
      %v1660 = vshll.u32 %v1454, 16
      %v1662 = vor.u32 %v1659, %v1660
      %v1664 = vshrl.u32 %v1455, 16
      %v1666 = vrot.slane %v1664, 7
      %v1667 = vshll.u32 %v1455, 16
      %v1669 = vor.u32 %v1666, %v1667
      %v1670 = vsel %vm1460, %v1659, %v1669
      %v1672 = vshrl.u32 %v1456, 16
      %v1674 = vrot.slane %v1672, 7
      %v1675 = vshll.u32 %v1456, 16
      %v1677 = vor.u32 %v1674, %v1675
      %v1679 = vshrl.u32 %v1457, 16
      %v1681 = vrot.slane %v1679, 7
      %v1682 = vshll.u32 %v1457, 16
      %v1684 = vor.u32 %v1681, %v1682
      %v1685 = vsel %vm1460, %v1674, %v1684
      %v1687 = vshrl.u32 %v1458, 16
      %v1689 = vrot.slane %v1687, 7
      %v1690 = vshll.u32 %v1458, 16
      %v1692 = vor.u32 %v1689, %v1690
      %v1694 = vshrl.u32 %v1459, 16
      %v1696 = vrot.slane %v1694, 7
      %v1697 = vshll.u32 %v1459, 16
      %v1699 = vor.u32 %v1696, %v1697
      %v1700 = vsel %vm1460, %v1689, %v1699
      %vm1717 = vcmask 1040384
      %vm1718 = vmand %vm1717, %vm1460
      %v1719 = vsel %vm1718, 0, %v1467
      %v1720 = vsel %vm1718, 0, %v1482
      %v1721 = vsel %vm1718, 0, %v1497
      %v1722 = vsel %vm1718, 0, %v1512
      %v1723 = vsel %vm1718, 0, %v1527
      %v1724 = vsel %vm1718, 0, %v1542
      %v1725 = vsel %vm1718, 0, %v1557
      %v1726 = vsel %vm1718, 0, %v1572
      %v1727 = vsel %vm1718, 0, %v1587
      %v1728 = vsel %vm1718, 0, %v1602
      %v1729 = vsel %vm1718, 0, %v1617
      %v1730 = vsel %vm1718, 0, %v1632
      %v1731 = vsel %vm1718, 0, %v1647
      %v1732 = vsel %vm1718, 0, %v1662
      %v1733 = vsel %vm1718, 0, %v1677
      %v1734 = vsel %vm1718, 0, %v1692
      %v1735 = vld [vmem:[%s1] sm:$0xf]
      %s1736 = scalar_lea.vmem %s1, 4
      %v1737 = vld [vmem:[%s1736] sm:$0xf]
      %vm1738 = vcmask 64512
      %v1739 = vsel %vm1738, %v1428, 0
      %v1741 = vsel %vm1738, %v1429, 0
      %v1743 = vsel %vm1738, %v1430, 0
      %v1745 = vsel %vm1738, %v1431, 0
      %v1747 = vsel %vm1738, %v1432, 0
      %v1749 = vsel %vm1738, %v1433, 0
      %v1751 = vsel %vm1738, %v1434, 0
      %v1753 = vsel %vm1738, %v1435, 0
      %v1755 = vsel %vm1738, %v1436, 0
      %v1757 = vsel %vm1738, %v1437, 0
      %v1759 = vsel %vm1738, %v1438, 0
      %v1761 = vsel %vm1738, %v1439, 0
      %v1763 = vsel %vm1738, %v1440, 0
      %v1765 = vsel %vm1738, %v1441, 0
      %v1767 = vsel %vm1738, %v1442, 0
      %v1769 = vsel %vm1738, %v1443, 0
      %v1771 = vsel %vm1738, %v1444, 0
      %v1773 = vsel %vm1738, %v1445, 0
      %v1775 = vsel %vm1738, %v1446, 0
      %v1777 = vsel %vm1738, %v1447, 0
      %v1779 = vsel %vm1738, %v1448, 0
      %v1781 = vsel %vm1738, %v1449, 0
      %v1783 = vsel %vm1738, %v1450, 0
      %v1785 = vsel %vm1738, %v1451, 0
      %v1787 = vsel %vm1738, %v1452, 0
      %v1789 = vsel %vm1738, %v1453, 0
      %v1791 = vsel %vm1738, %v1454, 0
      %v1793 = vsel %vm1738, %v1455, 0
      %v1795 = vsel %vm1738, %v1456, 0
      %v1797 = vsel %vm1738, %v1457, 0
      %v1799 = vsel %vm1738, %v1458, 0
      %v1801 = vsel %vm1738, %v1459, 0
      %vm1803 = vcmask 1043456
      %v1805 = vsel %vm1803, %v1737, 0
      %1807 = vmatprep.subr.bf16.mxu0 0
      %1808 = vmatpush1.bf16.msra.mxu0 %v1805
      %1809 = vmatprep.subr.bf16.mxu0 0
      %1810 = vmatpush1.bf16.msra.mxu0 0
      %1811 = vmatprep.subr.bf16.mxu0 0
      %1812 = vmatpush1.bf16.msra.mxu0 0
      %1813 = vmatprep.subr.bf16.mxu0 0
      %1814 = vmatpush1.bf16.msra.mxu0 0
      %1815 = vmatprep.subr.bf16.mxu0 0
      %1816 = vmatpush1.bf16.msra.mxu0 0
      %1817 = vmatprep.subr.bf16.mxu0 0
      %1818 = vmatpush1.bf16.msra.mxu0 0
      %1819 = vmatprep.subr.bf16.mxu0 0
      %1820 = vmatpush1.bf16.msra.mxu0 0
      %1821 = vmatprep.subr.bf16.mxu0 0
      %1822 = vmatpush1.bf16.msra.mxu0 0
      %1823 = vmatprep.subr.bf16.mxu0 0
      %1824 = vmatpush1.bf16.msra.mxu0 0
      %1825 = vmatprep.subr.bf16.mxu0 0
      %1826 = vmatpush1.bf16.msra.mxu0 0
      %1827 = vmatprep.subr.bf16.mxu0 0
      %1828 = vmatpush1.bf16.msra.mxu0 0
      %1829 = vmatprep.subr.bf16.mxu0 0
      %1830 = vmatpush1.bf16.msra.mxu0 0
      %1831 = vmatprep.subr.bf16.mxu0 0
      %1832 = vmatpush1.bf16.msra.mxu0 0
      %1833 = vmatprep.subr.bf16.mxu0 0
      %1834 = vmatpush1.bf16.msra.mxu0 0
      %1835 = vmatprep.subr.bf16.mxu0 0
      %1836 = vmatpush1.bf16.msra.mxu0 0
      %1837 = vmatprep.subr.bf16.mxu0 0
      %1838 = vmatpush1.bf16.msra.mxu0 0
      %1839 = vmatprep.mubr.bf16.mxu0 0
      %1840 = vmatmul.mubr.bf16.gmra.mrb[0].mxu0 %v1739
      %v1841 = vpop.f32.mrb[0].mxu0
      %v1842 = vadd.f32 0.0, %v1841
      %v1843 = vpop.f32.mrb[0].mxu0
      %v1844 = vpop.f32.mrb[0].mxu0
      %v1845 = vadd.f32 0.0, %v1844
      %v1846 = vpop.f32.mrb[0].mxu0
      %1847 = vmatprep.mubr.bf16.mxu0 0
      %1848 = vmatmul.mubr.bf16.gmra.mrb[0].mxu0 %v1741
      %v1849 = vpop.f32.mrb[0].mxu0
      %v1850 = vadd.f32 0.0, %v1849
      %v1851 = vpop.f32.mrb[0].mxu0
      %v1852 = vpop.f32.mrb[0].mxu0
      %v1853 = vadd.f32 0.0, %v1852
      %v1854 = vpop.f32.mrb[0].mxu0
      %1855 = vmatprep.mubr.bf16.mxu0 0
      %1856 = vmatmul.mubr.bf16.gmra.mrb[0].mxu0 %v1743
      %v1857 = vpop.f32.mrb[0].mxu0
      %v1858 = vadd.f32 0.0, %v1857
      %v1859 = vpop.f32.mrb[0].mxu0
      %v1860 = vpop.f32.mrb[0].mxu0
      %v1861 = vadd.f32 0.0, %v1860
      %v1862 = vpop.f32.mrb[0].mxu0
      %1863 = vmatprep.mubr.bf16.mxu0 0
      %1864 = vmatmul.mubr.bf16.gmra.mrb[0].mxu0 %v1745
      %v1865 = vpop.f32.mrb[0].mxu0
      %v1866 = vadd.f32 0.0, %v1865
      %v1867 = vpop.f32.mrb[0].mxu0
      %v1868 = vpop.f32.mrb[0].mxu0
      %v1869 = vadd.f32 0.0, %v1868
      %v1870 = vpop.f32.mrb[0].mxu0
      %1871 = vmatprep.mubr.bf16.mxu0 0
      %1872 = vmatmul.mubr.bf16.gmra.mrb[0].mxu0 %v1747
      %v1873 = vpop.f32.mrb[0].mxu0
      %v1874 = vadd.f32 0.0, %v1873
      %v1875 = vpop.f32.mrb[0].mxu0
      %v1876 = vpop.f32.mrb[0].mxu0
      %v1877 = vadd.f32 0.0, %v1876
      %v1878 = vpop.f32.mrb[0].mxu0
      %1879 = vmatprep.mubr.bf16.mxu0 0
      %1880 = vmatmul.mubr.bf16.gmra.mrb[0].mxu0 %v1749
      %v1881 = vpop.f32.mrb[0].mxu0
      %v1882 = vadd.f32 0.0, %v1881
      %v1883 = vpop.f32.mrb[0].mxu0
      %v1884 = vpop.f32.mrb[0].mxu0
      %v1885 = vadd.f32 0.0, %v1884
      %v1886 = vpop.f32.mrb[0].mxu0
      %1887 = vmatprep.mubr.bf16.mxu0 0
      %1888 = vmatmul.mubr.bf16.gmra.mrb[0].mxu0 %v1751
      %v1889 = vpop.f32.mrb[0].mxu0
      %v1890 = vadd.f32 0.0, %v1889
      %v1891 = vpop.f32.mrb[0].mxu0
      %v1892 = vpop.f32.mrb[0].mxu0
      %v1893 = vadd.f32 0.0, %v1892
      %v1894 = vpop.f32.mrb[0].mxu0
      %1895 = vmatprep.mubr.bf16.mxu0 0
      %1896 = vmatmul.mubr.bf16.gmra.mrb[0].mxu0 %v1753
      %v1897 = vpop.f32.mrb[0].mxu0
      %v1898 = vadd.f32 0.0, %v1897
      %v1899 = vpop.f32.mrb[0].mxu0
      %v1900 = vpop.f32.mrb[0].mxu0
      %v1901 = vadd.f32 0.0, %v1900
      %v1902 = vpop.f32.mrb[0].mxu0
      %1903 = vmatprep.mubr.bf16.mxu0 0
      %1904 = vmatmul.mubr.bf16.gmra.mrb[0].mxu0 %v1755
      %v1905 = vpop.f32.mrb[0].mxu0
      %v1906 = vadd.f32 0.0, %v1905
      %v1907 = vpop.f32.mrb[0].mxu0
      %v1908 = vpop.f32.mrb[0].mxu0
      %v1909 = vadd.f32 0.0, %v1908
      %v1910 = vpop.f32.mrb[0].mxu0
      %1911 = vmatprep.mubr.bf16.mxu0 0
      %1912 = vmatmul.mubr.bf16.gmra.mrb[0].mxu0 %v1757
      %v1913 = vpop.f32.mrb[0].mxu0
      %v1914 = vadd.f32 0.0, %v1913
      %v1915 = vpop.f32.mrb[0].mxu0
      %v1916 = vpop.f32.mrb[0].mxu0
      %v1917 = vadd.f32 0.0, %v1916
      %v1918 = vpop.f32.mrb[0].mxu0
      %1919 = vmatprep.mubr.bf16.mxu0 0
      %1920 = vmatmul.mubr.bf16.gmra.mrb[0].mxu0 %v1759
      %v1921 = vpop.f32.mrb[0].mxu0
      %v1922 = vadd.f32 0.0, %v1921
      %v1923 = vpop.f32.mrb[0].mxu0
      %v1924 = vpop.f32.mrb[0].mxu0
      %v1925 = vadd.f32 0.0, %v1924
      %v1926 = vpop.f32.mrb[0].mxu0
      %1927 = vmatprep.mubr.bf16.mxu0 0
      %1928 = vmatmul.mubr.bf16.gmra.mrb[0].mxu0 %v1761
      %v1929 = vpop.f32.mrb[0].mxu0
      %v1930 = vadd.f32 0.0, %v1929
      %v1931 = vpop.f32.mrb[0].mxu0
      %v1932 = vpop.f32.mrb[0].mxu0
      %v1933 = vadd.f32 0.0, %v1932
      %v1934 = vpop.f32.mrb[0].mxu0
      %1935 = vmatprep.mubr.bf16.mxu0 0
      %1936 = vmatmul.mubr.bf16.gmra.mrb[0].mxu0 %v1763
      %v1937 = vpop.f32.mrb[0].mxu0
      %v1938 = vadd.f32 0.0, %v1937
      %v1939 = vpop.f32.mrb[0].mxu0
      %v1940 = vpop.f32.mrb[0].mxu0
      %v1941 = vadd.f32 0.0, %v1940
      %v1942 = vpop.f32.mrb[0].mxu0
      %1943 = vmatprep.mubr.bf16.mxu0 0
      %1944 = vmatmul.mubr.bf16.gmra.mrb[0].mxu0 %v1765
      %v1945 = vpop.f32.mrb[0].mxu0
      %v1946 = vadd.f32 0.0, %v1945
      %v1947 = vpop.f32.mrb[0].mxu0
      %v1948 = vpop.f32.mrb[0].mxu0
      %v1949 = vadd.f32 0.0, %v1948
      %v1950 = vpop.f32.mrb[0].mxu0
      %1951 = vmatprep.mubr.bf16.mxu0 0
      %1952 = vmatmul.mubr.bf16.gmra.mrb[0].mxu0 %v1767
      %v1953 = vpop.f32.mrb[0].mxu0
      %v1954 = vadd.f32 0.0, %v1953
      %v1955 = vpop.f32.mrb[0].mxu0
      %v1956 = vpop.f32.mrb[0].mxu0
      %v1957 = vadd.f32 0.0, %v1956
      %v1958 = vpop.f32.mrb[0].mxu0
      %1959 = vmatprep.mubr.bf16.mxu0 0
      %1960 = vmatmul.mubr.bf16.gmra.mrb[0].mxu0 %v1769
      %v1961 = vpop.f32.mrb[0].mxu0
      %v1962 = vadd.f32 0.0, %v1961
      %v1963 = vpop.f32.mrb[0].mxu0
      %v1964 = vpop.f32.mrb[0].mxu0
      %v1965 = vadd.f32 0.0, %v1964
      %v1966 = vpop.f32.mrb[0].mxu0
      %1967 = vmatprep.mubr.bf16.mxu0 0
      %1968 = vmatmul.mubr.bf16.gmra.mrb[0].mxu0 %v1771
      %v1969 = vpop.f32.mrb[0].mxu0
      %v1970 = vadd.f32 0.0, %v1969
      %v1971 = vpop.f32.mrb[0].mxu0
      %v1972 = vpop.f32.mrb[0].mxu0
      %v1973 = vadd.f32 0.0, %v1972
      %v1974 = vpop.f32.mrb[0].mxu0
      %1975 = vmatprep.mubr.bf16.mxu0 0
      %1976 = vmatmul.mubr.bf16.gmra.mrb[0].mxu0 %v1773
      %v1977 = vpop.f32.mrb[0].mxu0
      %v1978 = vadd.f32 0.0, %v1977
      %v1979 = vpop.f32.mrb[0].mxu0
      %v1980 = vpop.f32.mrb[0].mxu0
      %v1981 = vadd.f32 0.0, %v1980
      %v1982 = vpop.f32.mrb[0].mxu0
      %1983 = vmatprep.mubr.bf16.mxu0 0
      %1984 = vmatmul.mubr.bf16.gmra.mrb[0].mxu0 %v1775
      %v1985 = vpop.f32.mrb[0].mxu0
      %v1986 = vadd.f32 0.0, %v1985
      %v1987 = vpop.f32.mrb[0].mxu0
      %v1988 = vpop.f32.mrb[0].mxu0
      %v1989 = vadd.f32 0.0, %v1988
      %v1990 = vpop.f32.mrb[0].mxu0
      %1991 = vmatprep.mubr.bf16.mxu0 0
      %1992 = vmatmul.mubr.bf16.gmra.mrb[0].mxu0 %v1777
      %v1993 = vpop.f32.mrb[0].mxu0
      %v1994 = vadd.f32 0.0, %v1993
      %v1995 = vpop.f32.mrb[0].mxu0
      %v1996 = vpop.f32.mrb[0].mxu0
      %v1997 = vadd.f32 0.0, %v1996
      %v1998 = vpop.f32.mrb[0].mxu0
      %1999 = vmatprep.mubr.bf16.mxu0 0
      %2000 = vmatmul.mubr.bf16.gmra.mrb[0].mxu0 %v1779
      %v2001 = vpop.f32.mrb[0].mxu0
      %v2002 = vadd.f32 0.0, %v2001
      %v2003 = vpop.f32.mrb[0].mxu0
      %v2004 = vpop.f32.mrb[0].mxu0
      %v2005 = vadd.f32 0.0, %v2004
      %v2006 = vpop.f32.mrb[0].mxu0
      %2007 = vmatprep.mubr.bf16.mxu0 0
      %2008 = vmatmul.mubr.bf16.gmra.mrb[0].mxu0 %v1781
      %v2009 = vpop.f32.mrb[0].mxu0
      %v2010 = vadd.f32 0.0, %v2009
      %v2011 = vpop.f32.mrb[0].mxu0
      %v2012 = vpop.f32.mrb[0].mxu0
      %v2013 = vadd.f32 0.0, %v2012
      %v2014 = vpop.f32.mrb[0].mxu0
      %2015 = vmatprep.mubr.bf16.mxu0 0
      %2016 = vmatmul.mubr.bf16.gmra.mrb[0].mxu0 %v1783
      %v2017 = vpop.f32.mrb[0].mxu0
      %v2018 = vadd.f32 0.0, %v2017
      %v2019 = vpop.f32.mrb[0].mxu0
      %v2020 = vpop.f32.mrb[0].mxu0
      %v2021 = vadd.f32 0.0, %v2020
      %v2022 = vpop.f32.mrb[0].mxu0
      %2023 = vmatprep.mubr.bf16.mxu0 0
      %2024 = vmatmul.mubr.bf16.gmra.mrb[0].mxu0 %v1785
      %v2025 = vpop.f32.mrb[0].mxu0
      %v2026 = vadd.f32 0.0, %v2025
      %v2027 = vpop.f32.mrb[0].mxu0
      %v2028 = vpop.f32.mrb[0].mxu0
      %v2029 = vadd.f32 0.0, %v2028
      %v2030 = vpop.f32.mrb[0].mxu0
      %2031 = vmatprep.mubr.bf16.mxu0 0
      %2032 = vmatmul.mubr.bf16.gmra.mrb[0].mxu0 %v1787
      %v2033 = vpop.f32.mrb[0].mxu0
      %v2034 = vadd.f32 0.0, %v2033
      %v2035 = vpop.f32.mrb[0].mxu0
      %v2036 = vpop.f32.mrb[0].mxu0
      %v2037 = vadd.f32 0.0, %v2036
      %v2038 = vpop.f32.mrb[0].mxu0
      %2039 = vmatprep.mubr.bf16.mxu0 0
      %2040 = vmatmul.mubr.bf16.gmra.mrb[0].mxu0 %v1789
      %v2041 = vpop.f32.mrb[0].mxu0
      %v2042 = vadd.f32 0.0, %v2041
      %v2043 = vpop.f32.mrb[0].mxu0
      %v2044 = vpop.f32.mrb[0].mxu0
      %v2045 = vadd.f32 0.0, %v2044
      %v2046 = vpop.f32.mrb[0].mxu0
      %2047 = vmatprep.mubr.bf16.mxu0 0
      %2048 = vmatmul.mubr.bf16.gmra.mrb[0].mxu0 %v1791
      %v2049 = vpop.f32.mrb[0].mxu0
      %v2050 = vadd.f32 0.0, %v2049
      %v2051 = vpop.f32.mrb[0].mxu0
      %v2052 = vpop.f32.mrb[0].mxu0
      %v2053 = vadd.f32 0.0, %v2052
      %v2054 = vpop.f32.mrb[0].mxu0
      %2055 = vmatprep.mubr.bf16.mxu0 0
      %2056 = vmatmul.mubr.bf16.gmra.mrb[0].mxu0 %v1793
      %v2057 = vpop.f32.mrb[0].mxu0
      %v2058 = vadd.f32 0.0, %v2057
      %v2059 = vpop.f32.mrb[0].mxu0
      %v2060 = vpop.f32.mrb[0].mxu0
      %v2061 = vadd.f32 0.0, %v2060
      %v2062 = vpop.f32.mrb[0].mxu0
      %2063 = vmatprep.mubr.bf16.mxu0 0
      %2064 = vmatmul.mubr.bf16.gmra.mrb[0].mxu0 %v1795
      %v2065 = vpop.f32.mrb[0].mxu0
      %v2066 = vadd.f32 0.0, %v2065
      %v2067 = vpop.f32.mrb[0].mxu0
      %v2068 = vpop.f32.mrb[0].mxu0
      %v2069 = vadd.f32 0.0, %v2068
      %v2070 = vpop.f32.mrb[0].mxu0
      %2071 = vmatprep.mubr.bf16.mxu0 0
      %2072 = vmatmul.mubr.bf16.gmra.mrb[0].mxu0 %v1797
      %v2073 = vpop.f32.mrb[0].mxu0
      %v2074 = vadd.f32 0.0, %v2073
      %v2075 = vpop.f32.mrb[0].mxu0
      %v2076 = vpop.f32.mrb[0].mxu0
      %v2077 = vadd.f32 0.0, %v2076
      %v2078 = vpop.f32.mrb[0].mxu0
      %2079 = vmatprep.mubr.bf16.mxu0 0
      %2080 = vmatmul.mubr.bf16.gmra.mrb[0].mxu0 %v1799
      %v2081 = vpop.f32.mrb[0].mxu0
      %v2082 = vadd.f32 0.0, %v2081
      %v2083 = vpop.f32.mrb[0].mxu0
      %v2084 = vpop.f32.mrb[0].mxu0
      %v2085 = vadd.f32 0.0, %v2084
      %v2086 = vpop.f32.mrb[0].mxu0
      %2087 = vmatprep.mubr.bf16.mxu0 0
      %2088 = vmatmul.mubr.bf16.gmra.mrb[0].mxu0 %v1801
      %v2089 = vpop.f32.mrb[0].mxu0
      %v2090 = vadd.f32 0.0, %v2089
      %v2091 = vpop.f32.mrb[0].mxu0
      %v2092 = vpop.f32.mrb[0].mxu0
      %v2093 = vadd.f32 0.0, %v2092
      %v2094 = vpop.f32.mrb[0].mxu0
      %2095 = vdwg.mxu0
      %v2097 = vsel %vm1738, %v1719, 0
      %v2100 = vsel %vm1738, %v1475, 0
      %v2103 = vsel %vm1738, %v1720, 0
      %v2106 = vsel %vm1738, %v1490, 0
      %v2109 = vsel %vm1738, %v1721, 0
      %v2112 = vsel %vm1738, %v1505, 0
      %v2115 = vsel %vm1738, %v1722, 0
      %v2118 = vsel %vm1738, %v1520, 0
      %v2121 = vsel %vm1738, %v1723, 0
      %v2124 = vsel %vm1738, %v1535, 0
      %v2127 = vsel %vm1738, %v1724, 0
      %v2130 = vsel %vm1738, %v1550, 0
      %v2133 = vsel %vm1738, %v1725, 0
      %v2136 = vsel %vm1738, %v1565, 0
      %v2139 = vsel %vm1738, %v1726, 0
      %v2142 = vsel %vm1738, %v1580, 0
      %v2145 = vsel %vm1738, %v1727, 0
      %v2148 = vsel %vm1738, %v1595, 0
      %v2151 = vsel %vm1738, %v1728, 0
      %v2154 = vsel %vm1738, %v1610, 0
      %v2157 = vsel %vm1738, %v1729, 0
      %v2160 = vsel %vm1738, %v1625, 0
      %v2163 = vsel %vm1738, %v1730, 0
      %v2166 = vsel %vm1738, %v1640, 0
      %v2169 = vsel %vm1738, %v1731, 0
      %v2172 = vsel %vm1738, %v1655, 0
      %v2175 = vsel %vm1738, %v1732, 0
      %v2178 = vsel %vm1738, %v1670, 0
      %v2181 = vsel %vm1738, %v1733, 0
      %v2184 = vsel %vm1738, %v1685, 0
      %v2187 = vsel %vm1738, %v1734, 0
      %v2190 = vsel %vm1738, %v1700, 0
      %v2193 = vsel %vm1803, %v1735, 0
      %2195 = vmatprep.subr.bf16.mxu0 0
      %2196 = vmatpush1.bf16.msra.mxu0 %v2193
      %2197 = vmatprep.subr.bf16.mxu0 0
      %2198 = vmatpush1.bf16.msra.mxu0 0
      %2199 = vmatprep.subr.bf16.mxu0 0
      %2200 = vmatpush1.bf16.msra.mxu0 0
      %2201 = vmatprep.subr.bf16.mxu0 0
      %2202 = vmatpush1.bf16.msra.mxu0 0
      %2203 = vmatprep.subr.bf16.mxu0 0
      %2204 = vmatpush1.bf16.msra.mxu0 0
      %2205 = vmatprep.subr.bf16.mxu0 0
      %2206 = vmatpush1.bf16.msra.mxu0 0
      %2207 = vmatprep.subr.bf16.mxu0 0
      %2208 = vmatpush1.bf16.msra.mxu0 0
      %2209 = vmatprep.subr.bf16.mxu0 0
      %2210 = vmatpush1.bf16.msra.mxu0 0
      %2211 = vmatprep.subr.bf16.mxu0 0
      %2212 = vmatpush1.bf16.msra.mxu0 0
      %2213 = vmatprep.subr.bf16.mxu0 0
      %2214 = vmatpush1.bf16.msra.mxu0 0
      %2215 = vmatprep.subr.bf16.mxu0 0
      %2216 = vmatpush1.bf16.msra.mxu0 0
      %2217 = vmatprep.subr.bf16.mxu0 0
      %2218 = vmatpush1.bf16.msra.mxu0 0
      %2219 = vmatprep.subr.bf16.mxu0 0
      %2220 = vmatpush1.bf16.msra.mxu0 0
      %2221 = vmatprep.subr.bf16.mxu0 0
      %2222 = vmatpush1.bf16.msra.mxu0 0
      %2223 = vmatprep.subr.bf16.mxu0 0
      %2224 = vmatpush1.bf16.msra.mxu0 0
      %2225 = vmatprep.subr.bf16.mxu0 0
      %2226 = vmatpush1.bf16.msra.mxu0 0
      %2227 = vmatprep.mubr.bf16.mxu0 0
      %2228 = vmatmul.mubr.bf16.gmra.mrb[0].mxu0 %v2097
      %v2229 = vpop.f32.mrb[0].mxu0
      %v2230 = vadd.f32 %v1842, %v2229
      %v2231 = vpop.f32.mrb[0].mxu0
      %v2232 = vpop.f32.mrb[0].mxu0
      %v2233 = vadd.f32 %v1845, %v2232
      %v2234 = vpop.f32.mrb[0].mxu0
      %2235 = vmatprep.mubr.bf16.mxu0 0
      %2236 = vmatmul.mubr.bf16.gmra.mrb[0].mxu0 %v2100
      %v2237 = vpop.f32.mrb[0].mxu0
      %v2238 = vadd.f32 %v1850, %v2237
      %v2239 = vpop.f32.mrb[0].mxu0
      %v2240 = vpop.f32.mrb[0].mxu0
      %v2241 = vadd.f32 %v1853, %v2240
      %v2242 = vpop.f32.mrb[0].mxu0
      %2243 = vmatprep.mubr.bf16.mxu0 0
      %2244 = vmatmul.mubr.bf16.gmra.mrb[0].mxu0 %v2103
      %v2245 = vpop.f32.mrb[0].mxu0
      %v2246 = vadd.f32 %v1858, %v2245
      %v2247 = vpop.f32.mrb[0].mxu0
      %v2248 = vpop.f32.mrb[0].mxu0
      %v2249 = vadd.f32 %v1861, %v2248
      %v2250 = vpop.f32.mrb[0].mxu0
      %2251 = vmatprep.mubr.bf16.mxu0 0
      %2252 = vmatmul.mubr.bf16.gmra.mrb[0].mxu0 %v2106
      %v2253 = vpop.f32.mrb[0].mxu0
      %v2254 = vadd.f32 %v1866, %v2253
      %v2255 = vpop.f32.mrb[0].mxu0
      %v2256 = vpop.f32.mrb[0].mxu0
      %v2257 = vadd.f32 %v1869, %v2256
      %v2258 = vpop.f32.mrb[0].mxu0
      %2259 = vmatprep.mubr.bf16.mxu0 0
      %2260 = vmatmul.mubr.bf16.gmra.mrb[0].mxu0 %v2109
      %v2261 = vpop.f32.mrb[0].mxu0
      %v2262 = vadd.f32 %v1874, %v2261
      %v2263 = vpop.f32.mrb[0].mxu0
      %v2264 = vpop.f32.mrb[0].mxu0
      %v2265 = vadd.f32 %v1877, %v2264
      %v2266 = vpop.f32.mrb[0].mxu0
      %2267 = vmatprep.mubr.bf16.mxu0 0
      %2268 = vmatmul.mubr.bf16.gmra.mrb[0].mxu0 %v2112
      %v2269 = vpop.f32.mrb[0].mxu0
      %v2270 = vadd.f32 %v1882, %v2269
      %v2271 = vpop.f32.mrb[0].mxu0
      %v2272 = vpop.f32.mrb[0].mxu0
      %v2273 = vadd.f32 %v1885, %v2272
      %v2274 = vpop.f32.mrb[0].mxu0
      %2275 = vmatprep.mubr.bf16.mxu0 0
      %2276 = vmatmul.mubr.bf16.gmra.mrb[0].mxu0 %v2115
      %v2277 = vpop.f32.mrb[0].mxu0
      %v2278 = vadd.f32 %v1890, %v2277
      %v2279 = vpop.f32.mrb[0].mxu0
      %v2280 = vpop.f32.mrb[0].mxu0
      %v2281 = vadd.f32 %v1893, %v2280
      %v2282 = vpop.f32.mrb[0].mxu0
      %2283 = vmatprep.mubr.bf16.mxu0 0
      %2284 = vmatmul.mubr.bf16.gmra.mrb[0].mxu0 %v2118
      %v2285 = vpop.f32.mrb[0].mxu0
      %v2286 = vadd.f32 %v1898, %v2285
      %v2287 = vpop.f32.mrb[0].mxu0
      %v2288 = vpop.f32.mrb[0].mxu0
      %v2289 = vadd.f32 %v1901, %v2288
      %v2290 = vpop.f32.mrb[0].mxu0
      %2291 = vmatprep.mubr.bf16.mxu0 0
      %2292 = vmatmul.mubr.bf16.gmra.mrb[0].mxu0 %v2121
      %v2293 = vpop.f32.mrb[0].mxu0
      %v2294 = vadd.f32 %v1906, %v2293
      %v2295 = vpop.f32.mrb[0].mxu0
      %v2296 = vpop.f32.mrb[0].mxu0
      %v2297 = vadd.f32 %v1909, %v2296
      %v2298 = vpop.f32.mrb[0].mxu0
      %2299 = vmatprep.mubr.bf16.mxu0 0
      %2300 = vmatmul.mubr.bf16.gmra.mrb[0].mxu0 %v2124
      %v2301 = vpop.f32.mrb[0].mxu0
      %v2302 = vadd.f32 %v1914, %v2301
      %v2303 = vpop.f32.mrb[0].mxu0
      %v2304 = vpop.f32.mrb[0].mxu0
      %v2305 = vadd.f32 %v1917, %v2304
      %v2306 = vpop.f32.mrb[0].mxu0
      %2307 = vmatprep.mubr.bf16.mxu0 0
      %2308 = vmatmul.mubr.bf16.gmra.mrb[0].mxu0 %v2127
      %v2309 = vpop.f32.mrb[0].mxu0
      %v2310 = vadd.f32 %v1922, %v2309
      %v2311 = vpop.f32.mrb[0].mxu0
      %v2312 = vpop.f32.mrb[0].mxu0
      %v2313 = vadd.f32 %v1925, %v2312
      %v2314 = vpop.f32.mrb[0].mxu0
      %2315 = vmatprep.mubr.bf16.mxu0 0
      %2316 = vmatmul.mubr.bf16.gmra.mrb[0].mxu0 %v2130
      %v2317 = vpop.f32.mrb[0].mxu0
      %v2318 = vadd.f32 %v1930, %v2317
      %v2319 = vpop.f32.mrb[0].mxu0
      %v2320 = vpop.f32.mrb[0].mxu0
      %v2321 = vadd.f32 %v1933, %v2320
      %v2322 = vpop.f32.mrb[0].mxu0
      %2323 = vmatprep.mubr.bf16.mxu0 0
      %2324 = vmatmul.mubr.bf16.gmra.mrb[0].mxu0 %v2133
      %v2325 = vpop.f32.mrb[0].mxu0
      %v2326 = vadd.f32 %v1938, %v2325
      %v2327 = vpop.f32.mrb[0].mxu0
      %v2328 = vpop.f32.mrb[0].mxu0
      %v2329 = vadd.f32 %v1941, %v2328
      %v2330 = vpop.f32.mrb[0].mxu0
      %2331 = vmatprep.mubr.bf16.mxu0 0
      %2332 = vmatmul.mubr.bf16.gmra.mrb[0].mxu0 %v2136
      %v2333 = vpop.f32.mrb[0].mxu0
      %v2334 = vadd.f32 %v1946, %v2333
      %v2335 = vpop.f32.mrb[0].mxu0
      %v2336 = vpop.f32.mrb[0].mxu0
      %v2337 = vadd.f32 %v1949, %v2336
      %v2338 = vpop.f32.mrb[0].mxu0
      %2339 = vmatprep.mubr.bf16.mxu0 0
      %2340 = vmatmul.mubr.bf16.gmra.mrb[0].mxu0 %v2139
      %v2341 = vpop.f32.mrb[0].mxu0
      %v2342 = vadd.f32 %v1954, %v2341
      %v2343 = vpop.f32.mrb[0].mxu0
      %v2344 = vpop.f32.mrb[0].mxu0
      %v2345 = vadd.f32 %v1957, %v2344
      %v2346 = vpop.f32.mrb[0].mxu0
      %2347 = vmatprep.mubr.bf16.mxu0 0
      %2348 = vmatmul.mubr.bf16.gmra.mrb[0].mxu0 %v2142
      %v2349 = vpop.f32.mrb[0].mxu0
      %v2350 = vadd.f32 %v1962, %v2349
      %v2351 = vpop.f32.mrb[0].mxu0
      %v2352 = vpop.f32.mrb[0].mxu0
      %v2353 = vadd.f32 %v1965, %v2352
      %v2354 = vpop.f32.mrb[0].mxu0
      %2355 = vmatprep.mubr.bf16.mxu0 0
      %2356 = vmatmul.mubr.bf16.gmra.mrb[0].mxu0 %v2145
      %v2357 = vpop.f32.mrb[0].mxu0
      %v2358 = vadd.f32 %v1970, %v2357
      %v2359 = vpop.f32.mrb[0].mxu0
      %v2360 = vpop.f32.mrb[0].mxu0
      %v2361 = vadd.f32 %v1973, %v2360
      %v2362 = vpop.f32.mrb[0].mxu0
      %2363 = vmatprep.mubr.bf16.mxu0 0
      %2364 = vmatmul.mubr.bf16.gmra.mrb[0].mxu0 %v2148
      %v2365 = vpop.f32.mrb[0].mxu0
      %v2366 = vadd.f32 %v1978, %v2365
      %v2367 = vpop.f32.mrb[0].mxu0
      %v2368 = vpop.f32.mrb[0].mxu0
      %v2369 = vadd.f32 %v1981, %v2368
      %v2370 = vpop.f32.mrb[0].mxu0
      %2371 = vmatprep.mubr.bf16.mxu0 0
      %2372 = vmatmul.mubr.bf16.gmra.mrb[0].mxu0 %v2151
      %v2373 = vpop.f32.mrb[0].mxu0
      %v2374 = vadd.f32 %v1986, %v2373
      %v2375 = vpop.f32.mrb[0].mxu0
      %v2376 = vpop.f32.mrb[0].mxu0
      %v2377 = vadd.f32 %v1989, %v2376
      %v2378 = vpop.f32.mrb[0].mxu0
      %2379 = vmatprep.mubr.bf16.mxu0 0
      %2380 = vmatmul.mubr.bf16.gmra.mrb[0].mxu0 %v2154
      %v2381 = vpop.f32.mrb[0].mxu0
      %v2382 = vadd.f32 %v1994, %v2381
      %v2383 = vpop.f32.mrb[0].mxu0
      %v2384 = vpop.f32.mrb[0].mxu0
      %v2385 = vadd.f32 %v1997, %v2384
      %v2386 = vpop.f32.mrb[0].mxu0
      %2387 = vmatprep.mubr.bf16.mxu0 0
      %2388 = vmatmul.mubr.bf16.gmra.mrb[0].mxu0 %v2157
      %v2389 = vpop.f32.mrb[0].mxu0
      %v2390 = vadd.f32 %v2002, %v2389
      %v2391 = vpop.f32.mrb[0].mxu0
      %v2392 = vpop.f32.mrb[0].mxu0
      %v2393 = vadd.f32 %v2005, %v2392
      %v2394 = vpop.f32.mrb[0].mxu0
      %2395 = vmatprep.mubr.bf16.mxu0 0
      %2396 = vmatmul.mubr.bf16.gmra.mrb[0].mxu0 %v2160
      %v2397 = vpop.f32.mrb[0].mxu0
      %v2398 = vadd.f32 %v2010, %v2397
      %v2399 = vpop.f32.mrb[0].mxu0
      %v2400 = vpop.f32.mrb[0].mxu0
      %v2401 = vadd.f32 %v2013, %v2400
      %v2402 = vpop.f32.mrb[0].mxu0
      %2403 = vmatprep.mubr.bf16.mxu0 0
      %2404 = vmatmul.mubr.bf16.gmra.mrb[0].mxu0 %v2163
      %v2405 = vpop.f32.mrb[0].mxu0
      %v2406 = vadd.f32 %v2018, %v2405
      %v2407 = vpop.f32.mrb[0].mxu0
      %v2408 = vpop.f32.mrb[0].mxu0
      %v2409 = vadd.f32 %v2021, %v2408
      %v2410 = vpop.f32.mrb[0].mxu0
      %2411 = vmatprep.mubr.bf16.mxu0 0
      %2412 = vmatmul.mubr.bf16.gmra.mrb[0].mxu0 %v2166
      %v2413 = vpop.f32.mrb[0].mxu0
      %v2414 = vadd.f32 %v2026, %v2413
      %v2415 = vpop.f32.mrb[0].mxu0
      %v2416 = vpop.f32.mrb[0].mxu0
      %v2417 = vadd.f32 %v2029, %v2416
      %v2418 = vpop.f32.mrb[0].mxu0
      %2419 = vmatprep.mubr.bf16.mxu0 0
      %2420 = vmatmul.mubr.bf16.gmra.mrb[0].mxu0 %v2169
      %v2421 = vpop.f32.mrb[0].mxu0
      %v2422 = vadd.f32 %v2034, %v2421
      %v2423 = vpop.f32.mrb[0].mxu0
      %v2424 = vpop.f32.mrb[0].mxu0
      %v2425 = vadd.f32 %v2037, %v2424
      %v2426 = vpop.f32.mrb[0].mxu0
      %2427 = vmatprep.mubr.bf16.mxu0 0
      %2428 = vmatmul.mubr.bf16.gmra.mrb[0].mxu0 %v2172
      %v2429 = vpop.f32.mrb[0].mxu0
      %v2430 = vadd.f32 %v2042, %v2429
      %v2431 = vpop.f32.mrb[0].mxu0
      %v2432 = vpop.f32.mrb[0].mxu0
      %v2433 = vadd.f32 %v2045, %v2432
      %v2434 = vpop.f32.mrb[0].mxu0
      %2435 = vmatprep.mubr.bf16.mxu0 0
      %2436 = vmatmul.mubr.bf16.gmra.mrb[0].mxu0 %v2175
      %v2437 = vpop.f32.mrb[0].mxu0
      %v2438 = vadd.f32 %v2050, %v2437
      %v2439 = vpop.f32.mrb[0].mxu0
      %v2440 = vpop.f32.mrb[0].mxu0
      %v2441 = vadd.f32 %v2053, %v2440
      %v2442 = vpop.f32.mrb[0].mxu0
      %2443 = vmatprep.mubr.bf16.mxu0 0
      %2444 = vmatmul.mubr.bf16.gmra.mrb[0].mxu0 %v2178
      %v2445 = vpop.f32.mrb[0].mxu0
      %v2446 = vadd.f32 %v2058, %v2445
      %v2447 = vpop.f32.mrb[0].mxu0
      %v2448 = vpop.f32.mrb[0].mxu0
      %v2449 = vadd.f32 %v2061, %v2448
      %v2450 = vpop.f32.mrb[0].mxu0
      %2451 = vmatprep.mubr.bf16.mxu0 0
      %2452 = vmatmul.mubr.bf16.gmra.mrb[0].mxu0 %v2181
      %v2453 = vpop.f32.mrb[0].mxu0
      %v2454 = vadd.f32 %v2066, %v2453
      %v2455 = vpop.f32.mrb[0].mxu0
      %v2456 = vpop.f32.mrb[0].mxu0
      %v2457 = vadd.f32 %v2069, %v2456
      %v2458 = vpop.f32.mrb[0].mxu0
      %2459 = vmatprep.mubr.bf16.mxu0 0
      %2460 = vmatmul.mubr.bf16.gmra.mrb[0].mxu0 %v2184
      %v2461 = vpop.f32.mrb[0].mxu0
      %v2462 = vadd.f32 %v2074, %v2461
      %v2463 = vpop.f32.mrb[0].mxu0
      %v2464 = vpop.f32.mrb[0].mxu0
      %v2465 = vadd.f32 %v2077, %v2464
      %v2466 = vpop.f32.mrb[0].mxu0
      %2467 = vmatprep.mubr.bf16.mxu0 0
      %2468 = vmatmul.mubr.bf16.gmra.mrb[0].mxu0 %v2187
      %v2469 = vpop.f32.mrb[0].mxu0
      %v2470 = vadd.f32 %v2082, %v2469
      %v2471 = vpop.f32.mrb[0].mxu0
      %v2472 = vpop.f32.mrb[0].mxu0
      %v2473 = vadd.f32 %v2085, %v2472
      %v2474 = vpop.f32.mrb[0].mxu0
      %2475 = vmatprep.mubr.bf16.mxu0 0
      %2476 = vmatmul.mubr.bf16.gmra.mrb[0].mxu0 %v2190
      %v2477 = vpop.f32.mrb[0].mxu0
      %v2478 = vadd.f32 %v2090, %v2477
      %v2479 = vpop.f32.mrb[0].mxu0
      %v2480 = vpop.f32.mrb[0].mxu0
      %v2481 = vadd.f32 %v2093, %v2480
      %v2482 = vpop.f32.mrb[0].mxu0
      %2483 = vdwg.mxu0
      %vm2484 = vsmask.f32 7424
      %v2485 = vrot.slane %v1465, 1
      %v2486 = vor.u32 %v1462, %v2485
      %v2487 = vrot.slane %v1472, 1
      %v2488 = vsel %vm2484, %v2486, %v2487
      %v2489 = vor.u32 %v1469, %v2487
      %v2490 = vrot.slane %v1480, 1
      %v2491 = vor.u32 %v1477, %v2490
      %v2492 = vrot.slane %v1487, 1
      %v2493 = vsel %vm2484, %v2491, %v2492
      %v2494 = vor.u32 %v1484, %v2492
      %v2495 = vrot.slane %v1495, 1
      %v2496 = vor.u32 %v1492, %v2495
      %v2497 = vrot.slane %v1502, 1
      %v2498 = vsel %vm2484, %v2496, %v2497
      %v2499 = vor.u32 %v1499, %v2497
      %v2500 = vrot.slane %v1510, 1
      %v2501 = vor.u32 %v1507, %v2500
      %v2502 = vrot.slane %v1517, 1
      %v2503 = vsel %vm2484, %v2501, %v2502
      %v2504 = vor.u32 %v1514, %v2502
      %v2505 = vrot.slane %v1525, 1
      %v2506 = vor.u32 %v1522, %v2505
      %v2507 = vrot.slane %v1532, 1
      %v2508 = vsel %vm2484, %v2506, %v2507
      %v2509 = vor.u32 %v1529, %v2507
      %v2510 = vrot.slane %v1540, 1
      %v2511 = vor.u32 %v1537, %v2510
      %v2512 = vrot.slane %v1547, 1
      %v2513 = vsel %vm2484, %v2511, %v2512
      %v2514 = vor.u32 %v1544, %v2512
      %v2515 = vrot.slane %v1555, 1
      %v2516 = vor.u32 %v1552, %v2515
      %v2517 = vrot.slane %v1562, 1
      %v2518 = vsel %vm2484, %v2516, %v2517
      %v2519 = vor.u32 %v1559, %v2517
      %v2520 = vrot.slane %v1570, 1
      %v2521 = vor.u32 %v1567, %v2520
      %v2522 = vrot.slane %v1577, 1
      %v2523 = vsel %vm2484, %v2521, %v2522
      %v2524 = vor.u32 %v1574, %v2522
      %v2525 = vrot.slane %v1585, 1
      %v2526 = vor.u32 %v1582, %v2525
      %v2527 = vrot.slane %v1592, 1
      %v2528 = vsel %vm2484, %v2526, %v2527
      %v2529 = vor.u32 %v1589, %v2527
      %v2530 = vrot.slane %v1600, 1
      %v2531 = vor.u32 %v1597, %v2530
      %v2532 = vrot.slane %v1607, 1
      %v2533 = vsel %vm2484, %v2531, %v2532
      %v2534 = vor.u32 %v1604, %v2532
      %v2535 = vrot.slane %v1615, 1
      %v2536 = vor.u32 %v1612, %v2535
      %v2537 = vrot.slane %v1622, 1
      %v2538 = vsel %vm2484, %v2536, %v2537
      %v2539 = vor.u32 %v1619, %v2537
      %v2540 = vrot.slane %v1630, 1
      %v2541 = vor.u32 %v1627, %v2540
      %v2542 = vrot.slane %v1637, 1
      %v2543 = vsel %vm2484, %v2541, %v2542
      %v2544 = vor.u32 %v1634, %v2542
      %v2545 = vrot.slane %v1645, 1
      %v2546 = vor.u32 %v1642, %v2545
      %v2547 = vrot.slane %v1652, 1
      %v2548 = vsel %vm2484, %v2546, %v2547
      %v2549 = vor.u32 %v1649, %v2547
      %v2550 = vrot.slane %v1660, 1
      %v2551 = vor.u32 %v1657, %v2550
      %v2552 = vrot.slane %v1667, 1
      %v2553 = vsel %vm2484, %v2551, %v2552
      %v2554 = vor.u32 %v1664, %v2552
      %v2555 = vrot.slane %v1675, 1
      %v2556 = vor.u32 %v1672, %v2555
      %v2557 = vrot.slane %v1682, 1
      %v2558 = vsel %vm2484, %v2556, %v2557
      %v2559 = vor.u32 %v1679, %v2557
      %v2560 = vrot.slane %v1690, 1
      %v2561 = vor.u32 %v1687, %v2560
      %v2562 = vrot.slane %v1697, 1
      %v2563 = vsel %vm2484, %v2561, %v2562
      %v2564 = vor.u32 %v1694, %v2562
      %vm2581 = vcmask 1047552
      %vm2582 = vmand %vm2581, %vm2484
      %v2583 = vsel %vm2582, %v2489, 0
      %v2584 = vsel %vm2582, %v2494, 0
      %v2585 = vsel %vm2582, %v2499, 0
      %v2586 = vsel %vm2582, %v2504, 0
      %v2587 = vsel %vm2582, %v2509, 0
      %v2588 = vsel %vm2582, %v2514, 0
      %v2589 = vsel %vm2582, %v2519, 0
      %v2590 = vsel %vm2582, %v2524, 0
      %v2591 = vsel %vm2582, %v2529, 0
      %v2592 = vsel %vm2582, %v2534, 0
      %v2593 = vsel %vm2582, %v2539, 0
      %v2594 = vsel %vm2582, %v2544, 0
      %v2595 = vsel %vm2582, %v2549, 0
      %v2596 = vsel %vm2582, %v2554, 0
      %v2597 = vsel %vm2582, %v2559, 0
      %v2598 = vsel %vm2582, %v2564, 0
      %s2599 = scalar_lea.vmem %s1, 8
      %v2600 = vld [vmem:[%s2599] sm:$0xf]
      %v2602 = vsel %vm1738, %v2488, 0
      %v2605 = vsel %vm1738, %v2583, 0
      %v2608 = vsel %vm1738, %v2493, 0
      %v2611 = vsel %vm1738, %v2584, 0
      %v2614 = vsel %vm1738, %v2498, 0
      %v2617 = vsel %vm1738, %v2585, 0
      %v2620 = vsel %vm1738, %v2503, 0
      %v2623 = vsel %vm1738, %v2586, 0
      %v2626 = vsel %vm1738, %v2508, 0
      %v2629 = vsel %vm1738, %v2587, 0
      %v2632 = vsel %vm1738, %v2513, 0
      %v2635 = vsel %vm1738, %v2588, 0
      %v2638 = vsel %vm1738, %v2518, 0
      %v2641 = vsel %vm1738, %v2589, 0
      %v2644 = vsel %vm1738, %v2523, 0
      %v2647 = vsel %vm1738, %v2590, 0
      %v2650 = vsel %vm1738, %v2528, 0
      %v2653 = vsel %vm1738, %v2591, 0
      %v2656 = vsel %vm1738, %v2533, 0
      %v2659 = vsel %vm1738, %v2592, 0
      %v2662 = vsel %vm1738, %v2538, 0
      %v2665 = vsel %vm1738, %v2593, 0
      %v2668 = vsel %vm1738, %v2543, 0
      %v2671 = vsel %vm1738, %v2594, 0
      %v2674 = vsel %vm1738, %v2548, 0
      %v2677 = vsel %vm1738, %v2595, 0
      %v2680 = vsel %vm1738, %v2553, 0
      %v2683 = vsel %vm1738, %v2596, 0
      %v2686 = vsel %vm1738, %v2558, 0
      %v2689 = vsel %vm1738, %v2597, 0
      %v2692 = vsel %vm1738, %v2563, 0
      %v2695 = vsel %vm1738, %v2598, 0
      %v2698 = vsel %vm1803, %v2600, 0
      %2700 = vmatprep.subr.bf16.mxu0 0
      %2701 = vmatpush1.bf16.msra.mxu0 %v2698
      %2702 = vmatprep.subr.bf16.mxu0 0
      %2703 = vmatpush1.bf16.msra.mxu0 0
      %2704 = vmatprep.subr.bf16.mxu0 0
      %2705 = vmatpush1.bf16.msra.mxu0 0
      %2706 = vmatprep.subr.bf16.mxu0 0
      %2707 = vmatpush1.bf16.msra.mxu0 0
      %2708 = vmatprep.subr.bf16.mxu0 0
      %2709 = vmatpush1.bf16.msra.mxu0 0
      %2710 = vmatprep.subr.bf16.mxu0 0
      %2711 = vmatpush1.bf16.msra.mxu0 0
      %2712 = vmatprep.subr.bf16.mxu0 0
      %2713 = vmatpush1.bf16.msra.mxu0 0
      %2714 = vmatprep.subr.bf16.mxu0 0
      %2715 = vmatpush1.bf16.msra.mxu0 0
      %2716 = vmatprep.subr.bf16.mxu0 0
      %2717 = vmatpush1.bf16.msra.mxu0 0
      %2718 = vmatprep.subr.bf16.mxu0 0
      %2719 = vmatpush1.bf16.msra.mxu0 0
      %2720 = vmatprep.subr.bf16.mxu0 0
      %2721 = vmatpush1.bf16.msra.mxu0 0
      %2722 = vmatprep.subr.bf16.mxu0 0
      %2723 = vmatpush1.bf16.msra.mxu0 0
      %2724 = vmatprep.subr.bf16.mxu0 0
      %2725 = vmatpush1.bf16.msra.mxu0 0
      %2726 = vmatprep.subr.bf16.mxu0 0
      %2727 = vmatpush1.bf16.msra.mxu0 0
      %2728 = vmatprep.subr.bf16.mxu0 0
      %2729 = vmatpush1.bf16.msra.mxu0 0
      %2730 = vmatprep.subr.bf16.mxu0 0
      %2731 = vmatpush1.bf16.msra.mxu0 0
      %2732 = vmatprep.mubr.bf16.mxu0 0
      %2733 = vmatmul.mubr.bf16.gmra.mrb[0].mxu0 %v2602
      %v2734 = vpop.f32.mrb[0].mxu0
      %v2735 = vadd.f32 0.0, %v2734
      %v2736 = vpop.f32.mrb[0].mxu0
      %v2737 = vpop.f32.mrb[0].mxu0
      %v2738 = vadd.f32 0.0, %v2737
      %v2739 = vpop.f32.mrb[0].mxu0
      %2740 = vmatprep.mubr.bf16.mxu0 0
      %2741 = vmatmul.mubr.bf16.gmra.mrb[0].mxu0 %v2605
      %v2742 = vpop.f32.mrb[0].mxu0
      %v2743 = vadd.f32 0.0, %v2742
      %v2744 = vpop.f32.mrb[0].mxu0
      %v2745 = vpop.f32.mrb[0].mxu0
      %v2746 = vadd.f32 0.0, %v2745
      %v2747 = vpop.f32.mrb[0].mxu0
      %2748 = vmatprep.mubr.bf16.mxu0 0
      %2749 = vmatmul.mubr.bf16.gmra.mrb[0].mxu0 %v2608
      %v2750 = vpop.f32.mrb[0].mxu0
      %v2751 = vadd.f32 0.0, %v2750
      %v2752 = vpop.f32.mrb[0].mxu0
      %v2753 = vpop.f32.mrb[0].mxu0
      %v2754 = vadd.f32 0.0, %v2753
      %v2755 = vpop.f32.mrb[0].mxu0
      %2756 = vmatprep.mubr.bf16.mxu0 0
      %2757 = vmatmul.mubr.bf16.gmra.mrb[0].mxu0 %v2611
      %v2758 = vpop.f32.mrb[0].mxu0
      %v2759 = vadd.f32 0.0, %v2758
      %v2760 = vpop.f32.mrb[0].mxu0
      %v2761 = vpop.f32.mrb[0].mxu0
      %v2762 = vadd.f32 0.0, %v2761
      %v2763 = vpop.f32.mrb[0].mxu0
      %2764 = vmatprep.mubr.bf16.mxu0 0
      %2765 = vmatmul.mubr.bf16.gmra.mrb[0].mxu0 %v2614
      %v2766 = vpop.f32.mrb[0].mxu0
      %v2767 = vadd.f32 0.0, %v2766
      %v2768 = vpop.f32.mrb[0].mxu0
      %v2769 = vpop.f32.mrb[0].mxu0
      %v2770 = vadd.f32 0.0, %v2769
      %v2771 = vpop.f32.mrb[0].mxu0
      %2772 = vmatprep.mubr.bf16.mxu0 0
      %2773 = vmatmul.mubr.bf16.gmra.mrb[0].mxu0 %v2617
      %v2774 = vpop.f32.mrb[0].mxu0
      %v2775 = vadd.f32 0.0, %v2774
      %v2776 = vpop.f32.mrb[0].mxu0
      %v2777 = vpop.f32.mrb[0].mxu0
      %v2778 = vadd.f32 0.0, %v2777
      %v2779 = vpop.f32.mrb[0].mxu0
      %2780 = vmatprep.mubr.bf16.mxu0 0
      %2781 = vmatmul.mubr.bf16.gmra.mrb[0].mxu0 %v2620
      %v2782 = vpop.f32.mrb[0].mxu0
      %v2783 = vadd.f32 0.0, %v2782
      %v2784 = vpop.f32.mrb[0].mxu0
      %v2785 = vpop.f32.mrb[0].mxu0
      %v2786 = vadd.f32 0.0, %v2785
      %v2787 = vpop.f32.mrb[0].mxu0
      %2788 = vmatprep.mubr.bf16.mxu0 0
      %2789 = vmatmul.mubr.bf16.gmra.mrb[0].mxu0 %v2623
      %v2790 = vpop.f32.mrb[0].mxu0
      %v2791 = vadd.f32 0.0, %v2790
      %v2792 = vpop.f32.mrb[0].mxu0
      %v2793 = vpop.f32.mrb[0].mxu0
      %v2794 = vadd.f32 0.0, %v2793
      %v2795 = vpop.f32.mrb[0].mxu0
      %2796 = vmatprep.mubr.bf16.mxu0 0
      %2797 = vmatmul.mubr.bf16.gmra.mrb[0].mxu0 %v2626
      %v2798 = vpop.f32.mrb[0].mxu0
      %v2799 = vadd.f32 0.0, %v2798
      %v2800 = vpop.f32.mrb[0].mxu0
      %v2801 = vpop.f32.mrb[0].mxu0
      %v2802 = vadd.f32 0.0, %v2801
      %v2803 = vpop.f32.mrb[0].mxu0
      %2804 = vmatprep.mubr.bf16.mxu0 0
      %2805 = vmatmul.mubr.bf16.gmra.mrb[0].mxu0 %v2629
      %v2806 = vpop.f32.mrb[0].mxu0
      %v2807 = vadd.f32 0.0, %v2806
      %v2808 = vpop.f32.mrb[0].mxu0
      %v2809 = vpop.f32.mrb[0].mxu0
      %v2810 = vadd.f32 0.0, %v2809
      %v2811 = vpop.f32.mrb[0].mxu0
      %2812 = vmatprep.mubr.bf16.mxu0 0
      %2813 = vmatmul.mubr.bf16.gmra.mrb[0].mxu0 %v2632
      %v2814 = vpop.f32.mrb[0].mxu0
      %v2815 = vadd.f32 0.0, %v2814
      %v2816 = vpop.f32.mrb[0].mxu0
      %v2817 = vpop.f32.mrb[0].mxu0
      %v2818 = vadd.f32 0.0, %v2817
      %v2819 = vpop.f32.mrb[0].mxu0
      %2820 = vmatprep.mubr.bf16.mxu0 0
      %2821 = vmatmul.mubr.bf16.gmra.mrb[0].mxu0 %v2635
      %v2822 = vpop.f32.mrb[0].mxu0
      %v2823 = vadd.f32 0.0, %v2822
      %v2824 = vpop.f32.mrb[0].mxu0
      %v2825 = vpop.f32.mrb[0].mxu0
      %v2826 = vadd.f32 0.0, %v2825
      %v2827 = vpop.f32.mrb[0].mxu0
      %2828 = vmatprep.mubr.bf16.mxu0 0
      %2829 = vmatmul.mubr.bf16.gmra.mrb[0].mxu0 %v2638
      %v2830 = vpop.f32.mrb[0].mxu0
      %v2831 = vadd.f32 0.0, %v2830
      %v2832 = vpop.f32.mrb[0].mxu0
      %v2833 = vpop.f32.mrb[0].mxu0
      %v2834 = vadd.f32 0.0, %v2833
      %v2835 = vpop.f32.mrb[0].mxu0
      %2836 = vmatprep.mubr.bf16.mxu0 0
      %2837 = vmatmul.mubr.bf16.gmra.mrb[0].mxu0 %v2641
      %v2838 = vpop.f32.mrb[0].mxu0
      %v2839 = vadd.f32 0.0, %v2838
      %v2840 = vpop.f32.mrb[0].mxu0
      %v2841 = vpop.f32.mrb[0].mxu0
      %v2842 = vadd.f32 0.0, %v2841
      %v2843 = vpop.f32.mrb[0].mxu0
      %2844 = vmatprep.mubr.bf16.mxu0 0
      %2845 = vmatmul.mubr.bf16.gmra.mrb[0].mxu0 %v2644
      %v2846 = vpop.f32.mrb[0].mxu0
      %v2847 = vadd.f32 0.0, %v2846
      %v2848 = vpop.f32.mrb[0].mxu0
      %v2849 = vpop.f32.mrb[0].mxu0
      %v2850 = vadd.f32 0.0, %v2849
      %v2851 = vpop.f32.mrb[0].mxu0
      %2852 = vmatprep.mubr.bf16.mxu0 0
      %2853 = vmatmul.mubr.bf16.gmra.mrb[0].mxu0 %v2647
      %v2854 = vpop.f32.mrb[0].mxu0
      %v2855 = vadd.f32 0.0, %v2854
      %v2856 = vpop.f32.mrb[0].mxu0
      %v2857 = vpop.f32.mrb[0].mxu0
      %v2858 = vadd.f32 0.0, %v2857
      %v2859 = vpop.f32.mrb[0].mxu0
      %2860 = vmatprep.mubr.bf16.mxu0 0
      %2861 = vmatmul.mubr.bf16.gmra.mrb[0].mxu0 %v2650
      %v2862 = vpop.f32.mrb[0].mxu0
      %v2863 = vadd.f32 0.0, %v2862
      %v2864 = vpop.f32.mrb[0].mxu0
      %v2865 = vpop.f32.mrb[0].mxu0
      %v2866 = vadd.f32 0.0, %v2865
      %v2867 = vpop.f32.mrb[0].mxu0
      %2868 = vmatprep.mubr.bf16.mxu0 0
      %2869 = vmatmul.mubr.bf16.gmra.mrb[0].mxu0 %v2653
      %v2870 = vpop.f32.mrb[0].mxu0
      %v2871 = vadd.f32 0.0, %v2870
      %v2872 = vpop.f32.mrb[0].mxu0
      %v2873 = vpop.f32.mrb[0].mxu0
      %v2874 = vadd.f32 0.0, %v2873
      %v2875 = vpop.f32.mrb[0].mxu0
      %2876 = vmatprep.mubr.bf16.mxu0 0
      %2877 = vmatmul.mubr.bf16.gmra.mrb[0].mxu0 %v2656
      %v2878 = vpop.f32.mrb[0].mxu0
      %v2879 = vadd.f32 0.0, %v2878
      %v2880 = vpop.f32.mrb[0].mxu0
      %v2881 = vpop.f32.mrb[0].mxu0
      %v2882 = vadd.f32 0.0, %v2881
      %v2883 = vpop.f32.mrb[0].mxu0
      %2884 = vmatprep.mubr.bf16.mxu0 0
      %2885 = vmatmul.mubr.bf16.gmra.mrb[0].mxu0 %v2659
      %v2886 = vpop.f32.mrb[0].mxu0
      %v2887 = vadd.f32 0.0, %v2886
      %v2888 = vpop.f32.mrb[0].mxu0
      %v2889 = vpop.f32.mrb[0].mxu0
      %v2890 = vadd.f32 0.0, %v2889
      %v2891 = vpop.f32.mrb[0].mxu0
      %2892 = vmatprep.mubr.bf16.mxu0 0
      %2893 = vmatmul.mubr.bf16.gmra.mrb[0].mxu0 %v2662
      %v2894 = vpop.f32.mrb[0].mxu0
      %v2895 = vadd.f32 0.0, %v2894
      %v2896 = vpop.f32.mrb[0].mxu0
      %v2897 = vpop.f32.mrb[0].mxu0
      %v2898 = vadd.f32 0.0, %v2897
      %v2899 = vpop.f32.mrb[0].mxu0
      %2900 = vmatprep.mubr.bf16.mxu0 0
      %2901 = vmatmul.mubr.bf16.gmra.mrb[0].mxu0 %v2665
      %v2902 = vpop.f32.mrb[0].mxu0
      %v2903 = vadd.f32 0.0, %v2902
      %v2904 = vpop.f32.mrb[0].mxu0
      %v2905 = vpop.f32.mrb[0].mxu0
      %v2906 = vadd.f32 0.0, %v2905
      %v2907 = vpop.f32.mrb[0].mxu0
      %2908 = vmatprep.mubr.bf16.mxu0 0
      %2909 = vmatmul.mubr.bf16.gmra.mrb[0].mxu0 %v2668
      %v2910 = vpop.f32.mrb[0].mxu0
      %v2911 = vadd.f32 0.0, %v2910
      %v2912 = vpop.f32.mrb[0].mxu0
      %v2913 = vpop.f32.mrb[0].mxu0
      %v2914 = vadd.f32 0.0, %v2913
      %v2915 = vpop.f32.mrb[0].mxu0
      %2916 = vmatprep.mubr.bf16.mxu0 0
      %2917 = vmatmul.mubr.bf16.gmra.mrb[0].mxu0 %v2671
      %v2918 = vpop.f32.mrb[0].mxu0
      %v2919 = vadd.f32 0.0, %v2918
      %v2920 = vpop.f32.mrb[0].mxu0
      %v2921 = vpop.f32.mrb[0].mxu0
      %v2922 = vadd.f32 0.0, %v2921
      %v2923 = vpop.f32.mrb[0].mxu0
      %2924 = vmatprep.mubr.bf16.mxu0 0
      %2925 = vmatmul.mubr.bf16.gmra.mrb[0].mxu0 %v2674
      %v2926 = vpop.f32.mrb[0].mxu0
      %v2927 = vadd.f32 0.0, %v2926
      %v2928 = vpop.f32.mrb[0].mxu0
      %v2929 = vpop.f32.mrb[0].mxu0
      %v2930 = vadd.f32 0.0, %v2929
      %v2931 = vpop.f32.mrb[0].mxu0
      %2932 = vmatprep.mubr.bf16.mxu0 0
      %2933 = vmatmul.mubr.bf16.gmra.mrb[0].mxu0 %v2677
      %v2934 = vpop.f32.mrb[0].mxu0
      %v2935 = vadd.f32 0.0, %v2934
      %v2936 = vpop.f32.mrb[0].mxu0
      %v2937 = vpop.f32.mrb[0].mxu0
      %v2938 = vadd.f32 0.0, %v2937
      %v2939 = vpop.f32.mrb[0].mxu0
      %2940 = vmatprep.mubr.bf16.mxu0 0
      %2941 = vmatmul.mubr.bf16.gmra.mrb[0].mxu0 %v2680
      %v2942 = vpop.f32.mrb[0].mxu0
      %v2943 = vadd.f32 0.0, %v2942
      %v2944 = vpop.f32.mrb[0].mxu0
      %v2945 = vpop.f32.mrb[0].mxu0
      %v2946 = vadd.f32 0.0, %v2945
      %v2947 = vpop.f32.mrb[0].mxu0
      %2948 = vmatprep.mubr.bf16.mxu0 0
      %2949 = vmatmul.mubr.bf16.gmra.mrb[0].mxu0 %v2683
      %v2950 = vpop.f32.mrb[0].mxu0
      %v2951 = vadd.f32 0.0, %v2950
      %v2952 = vpop.f32.mrb[0].mxu0
      %v2953 = vpop.f32.mrb[0].mxu0
      %v2954 = vadd.f32 0.0, %v2953
      %v2955 = vpop.f32.mrb[0].mxu0
      %2956 = vmatprep.mubr.bf16.mxu0 0
      %2957 = vmatmul.mubr.bf16.gmra.mrb[0].mxu0 %v2686
      %v2958 = vpop.f32.mrb[0].mxu0
      %v2959 = vadd.f32 0.0, %v2958
      %v2960 = vpop.f32.mrb[0].mxu0
      %v2961 = vpop.f32.mrb[0].mxu0
      %v2962 = vadd.f32 0.0, %v2961
      %v2963 = vpop.f32.mrb[0].mxu0
      %2964 = vmatprep.mubr.bf16.mxu0 0
      %2965 = vmatmul.mubr.bf16.gmra.mrb[0].mxu0 %v2689
      %v2966 = vpop.f32.mrb[0].mxu0
      %v2967 = vadd.f32 0.0, %v2966
      %v2968 = vpop.f32.mrb[0].mxu0
      %v2969 = vpop.f32.mrb[0].mxu0
      %v2970 = vadd.f32 0.0, %v2969
      %v2971 = vpop.f32.mrb[0].mxu0
      %2972 = vmatprep.mubr.bf16.mxu0 0
      %2973 = vmatmul.mubr.bf16.gmra.mrb[0].mxu0 %v2692
      %v2974 = vpop.f32.mrb[0].mxu0
      %v2975 = vadd.f32 0.0, %v2974
      %v2976 = vpop.f32.mrb[0].mxu0
      %v2977 = vpop.f32.mrb[0].mxu0
      %v2978 = vadd.f32 0.0, %v2977
      %v2979 = vpop.f32.mrb[0].mxu0
      %2980 = vmatprep.mubr.bf16.mxu0 0
      %2981 = vmatmul.mubr.bf16.gmra.mrb[0].mxu0 %v2695
      %v2982 = vpop.f32.mrb[0].mxu0
      %v2983 = vadd.f32 0.0, %v2982
      %v2984 = vpop.f32.mrb[0].mxu0
      %v2985 = vpop.f32.mrb[0].mxu0
      %v2986 = vadd.f32 0.0, %v2985
      %v2987 = vpop.f32.mrb[0].mxu0
      %2988 = vdwg.mxu0
      %v2989 = vadd.f32 %v2230, %v2735
      %v2990 = vadd.f32 %v2233, %v2738
      %v2991 = vadd.f32 %v2238, %v2743
      %v2992 = vadd.f32 %v2241, %v2746
      %v2993 = vadd.f32 %v2246, %v2751
      %v2994 = vadd.f32 %v2249, %v2754
      %v2995 = vadd.f32 %v2254, %v2759
      %v2996 = vadd.f32 %v2257, %v2762
      %v2997 = vadd.f32 %v2262, %v2767
      %v2998 = vadd.f32 %v2265, %v2770
      %v2999 = vadd.f32 %v2270, %v2775
      %v3000 = vadd.f32 %v2273, %v2778
      %v3001 = vadd.f32 %v2278, %v2783
      %v3002 = vadd.f32 %v2281, %v2786
      %v3003 = vadd.f32 %v2286, %v2791
      %v3004 = vadd.f32 %v2289, %v2794
      %v3005 = vadd.f32 %v2294, %v2799
      %v3006 = vadd.f32 %v2297, %v2802
      %v3007 = vadd.f32 %v2302, %v2807
      %v3008 = vadd.f32 %v2305, %v2810
      %v3009 = vadd.f32 %v2310, %v2815
      %v3010 = vadd.f32 %v2313, %v2818
      %v3011 = vadd.f32 %v2318, %v2823
      %v3012 = vadd.f32 %v2321, %v2826
      %v3013 = vadd.f32 %v2326, %v2831
      %v3014 = vadd.f32 %v2329, %v2834
      %v3015 = vadd.f32 %v2334, %v2839
      %v3016 = vadd.f32 %v2337, %v2842
      %v3017 = vadd.f32 %v2342, %v2847
      %v3018 = vadd.f32 %v2345, %v2850
      %v3019 = vadd.f32 %v2350, %v2855
      %v3020 = vadd.f32 %v2353, %v2858
      %v3021 = vadd.f32 %v2358, %v2863
      %v3022 = vadd.f32 %v2361, %v2866
      %v3023 = vadd.f32 %v2366, %v2871
      %v3024 = vadd.f32 %v2369, %v2874
      %v3025 = vadd.f32 %v2374, %v2879
      %v3026 = vadd.f32 %v2377, %v2882
      %v3027 = vadd.f32 %v2382, %v2887
      %v3028 = vadd.f32 %v2385, %v2890
      %v3029 = vadd.f32 %v2390, %v2895
      %v3030 = vadd.f32 %v2393, %v2898
      %v3031 = vadd.f32 %v2398, %v2903
      %v3032 = vadd.f32 %v2401, %v2906
      %v3033 = vadd.f32 %v2406, %v2911
      %v3034 = vadd.f32 %v2409, %v2914
      %v3035 = vadd.f32 %v2414, %v2919
      %v3036 = vadd.f32 %v2417, %v2922
      %v3037 = vadd.f32 %v2422, %v2927
      %v3038 = vadd.f32 %v2425, %v2930
      %v3039 = vadd.f32 %v2430, %v2935
      %v3040 = vadd.f32 %v2433, %v2938
      %v3041 = vadd.f32 %v2438, %v2943
      %v3042 = vadd.f32 %v2441, %v2946
      %v3043 = vadd.f32 %v2446, %v2951
      %v3044 = vadd.f32 %v2449, %v2954
      %v3045 = vadd.f32 %v2454, %v2959
      %v3046 = vadd.f32 %v2457, %v2962
      %v3047 = vadd.f32 %v2462, %v2967
      %v3048 = vadd.f32 %v2465, %v2970
      %v3049 = vadd.f32 %v2470, %v2975
      %v3050 = vadd.f32 %v2473, %v2978
      %v3051 = vadd.f32 %v2478, %v2983
      %v3052 = vadd.f32 %v2481, %v2986
      %s3053 = scalar_lea.vmem %s192, 16
      %v3054 = vld [vmem:[%s3053] sm:$0xf]
      %v3055 = vld [vmem:[%s3053 + $0x4] sm:$0xf]
      %v3056 = vld [vmem:[%s3053 + $0x8] sm:$0xf]
      %v3057 = vld [vmem:[%s3053 + $0xc] sm:$0xf]
      %v3058 = vld [vmem:[%s3053 + $0x10] sm:$0xf]
      %v3059 = vld [vmem:[%s3053 + $0x14] sm:$0xf]
      %v3060 = vld [vmem:[%s3053 + $0x18] sm:$0xf]
      %v3061 = vld [vmem:[%s3053 + $0x1c] sm:$0xf]
      %v3062 = vld [vmem:[%s3053 + $0x20] sm:$0xf]
      %v3063 = vld [vmem:[%s3053 + $0x24] sm:$0xf]
      %v3064 = vld [vmem:[%s3053 + $0x28] sm:$0xf]
      %v3065 = vld [vmem:[%s3053 + $0x2c] sm:$0xf]
      %v3066 = vld [vmem:[%s3053 + $0x30] sm:$0xf]
      %v3067 = vld [vmem:[%s3053 + $0x34] sm:$0xf]
      %v3068 = vld [vmem:[%s3053 + $0x38] sm:$0xf]
      %v3069 = vld [vmem:[%s3053 + $0x3c] sm:$0xf]
      %v3070 = vld [vmem:[%s3053 + $0x40] sm:$0xf]
      %v3071 = vld [vmem:[%s3053 + $0x44] sm:$0xf]
      %v3072 = vld [vmem:[%s3053 + $0x48] sm:$0xf]
      %v3073 = vld [vmem:[%s3053 + $0x4c] sm:$0xf]
      %v3074 = vld [vmem:[%s3053 + $0x50] sm:$0xf]
      %v3075 = vld [vmem:[%s3053 + $0x54] sm:$0xf]
      %v3076 = vld [vmem:[%s3053 + $0x58] sm:$0xf]
      %v3077 = vld [vmem:[%s3053 + $0x5c] sm:$0xf]
      %v3078 = vld [vmem:[%s3053 + $0x60] sm:$0xf]
      %v3079 = vld [vmem:[%s3053 + $0x64] sm:$0xf]
      %v3080 = vld [vmem:[%s3053 + $0x68] sm:$0xf]
      %v3081 = vld [vmem:[%s3053 + $0x6c] sm:$0xf]
      %v3082 = vld [vmem:[%s3053 + $0x70] sm:$0xf]
      %v3083 = vld [vmem:[%s3053 + $0x74] sm:$0xf]
      %v3084 = vld [vmem:[%s3053 + $0x78] sm:$0xf]
      %v3085 = vld [vmem:[%s3053 + $0x7c] sm:$0xf]
      %v3086 = vld [vmem:[%s3053 + $0x80] sm:$0xf]
      %v3087 = vld [vmem:[%s3053 + $0x84] sm:$0xf]
      %v3088 = vld [vmem:[%s3053 + $0x88] sm:$0xf]
      %v3089 = vld [vmem:[%s3053 + $0x8c] sm:$0xf]
      %v3090 = vld [vmem:[%s3053 + $0x90] sm:$0xf]
      %v3091 = vld [vmem:[%s3053 + $0x94] sm:$0xf]
      %v3092 = vld [vmem:[%s3053 + $0x98] sm:$0xf]
      %v3093 = vld [vmem:[%s3053 + $0x9c] sm:$0xf]
      %v3094 = vld [vmem:[%s3053 + $0xa0] sm:$0xf]
      %v3095 = vld [vmem:[%s3053 + $0xa4] sm:$0xf]
      %v3096 = vld [vmem:[%s3053 + $0xa8] sm:$0xf]
      %v3097 = vld [vmem:[%s3053 + $0xac] sm:$0xf]
      %v3098 = vld [vmem:[%s3053 + $0xb0] sm:$0xf]
      %v3099 = vld [vmem:[%s3053 + $0xb4] sm:$0xf]
      %v3100 = vld [vmem:[%s3053 + $0xb8] sm:$0xf]
      %v3101 = vld [vmem:[%s3053 + $0xbc] sm:$0xf]
      %v3102 = vld [vmem:[%s3053 + $0xc0] sm:$0xf]
      %v3103 = vld [vmem:[%s3053 + $0xc4] sm:$0xf]
      %v3104 = vld [vmem:[%s3053 + $0xc8] sm:$0xf]
      %v3105 = vld [vmem:[%s3053 + $0xcc] sm:$0xf]
      %v3106 = vld [vmem:[%s3053 + $0xd0] sm:$0xf]
      %v3107 = vld [vmem:[%s3053 + $0xd4] sm:$0xf]
      %v3108 = vld [vmem:[%s3053 + $0xd8] sm:$0xf]
      %v3109 = vld [vmem:[%s3053 + $0xdc] sm:$0xf]
      %v3110 = vld [vmem:[%s3053 + $0xe0] sm:$0xf]
      %v3111 = vld [vmem:[%s3053 + $0xe4] sm:$0xf]
      %v3112 = vld [vmem:[%s3053 + $0xe8] sm:$0xf]
      %v3113 = vld [vmem:[%s3053 + $0xec] sm:$0xf]
      %v3114 = vld [vmem:[%s3053 + $0xf0] sm:$0xf]
      %v3115 = vld [vmem:[%s3053 + $0xf4] sm:$0xf]
      %v3116 = vld [vmem:[%s3053 + $0xf8] sm:$0xf]
      %v3117 = vld [vmem:[%s3053 + $0xfc] sm:$0xf]
      %v3182 = vunpack.c.l.b16 %v3054
      %v3183 = vunpack.c.l.b16 %v3055
      %v3184 = vunpack.c.l.b16 %v3056
      %v3185 = vunpack.c.l.b16 %v3057
      %v3186 = vunpack.c.l.b16 %v3058
      %v3187 = vunpack.c.l.b16 %v3059
      %v3188 = vunpack.c.l.b16 %v3060
      %v3189 = vunpack.c.l.b16 %v3061
      %v3190 = vunpack.c.l.b16 %v3062
      %v3191 = vunpack.c.l.b16 %v3063
      %v3192 = vunpack.c.l.b16 %v3064
      %v3193 = vunpack.c.l.b16 %v3065
      %v3194 = vunpack.c.l.b16 %v3066
      %v3195 = vunpack.c.l.b16 %v3067
      %v3196 = vunpack.c.l.b16 %v3068
      %v3197 = vunpack.c.l.b16 %v3069
      %v3198 = vunpack.c.l.b16 %v3070
      %v3199 = vunpack.c.l.b16 %v3071
      %v3200 = vunpack.c.l.b16 %v3072
      %v3201 = vunpack.c.l.b16 %v3073
      %v3202 = vunpack.c.l.b16 %v3074
      %v3203 = vunpack.c.l.b16 %v3075
      %v3204 = vunpack.c.l.b16 %v3076
      %v3205 = vunpack.c.l.b16 %v3077
      %v3206 = vunpack.c.l.b16 %v3078
      %v3207 = vunpack.c.l.b16 %v3079
      %v3208 = vunpack.c.l.b16 %v3080
      %v3209 = vunpack.c.l.b16 %v3081
      %v3210 = vunpack.c.l.b16 %v3082
      %v3211 = vunpack.c.l.b16 %v3083
      %v3212 = vunpack.c.l.b16 %v3084
      %v3213 = vunpack.c.l.b16 %v3085
      %v3214 = vunpack.c.l.b16 %v3086
      %v3215 = vunpack.c.l.b16 %v3087
      %v3216 = vunpack.c.l.b16 %v3088
      %v3217 = vunpack.c.l.b16 %v3089
      %v3218 = vunpack.c.l.b16 %v3090
      %v3219 = vunpack.c.l.b16 %v3091
      %v3220 = vunpack.c.l.b16 %v3092
      %v3221 = vunpack.c.l.b16 %v3093
      %v3222 = vunpack.c.l.b16 %v3094
      %v3223 = vunpack.c.l.b16 %v3095
      %v3224 = vunpack.c.l.b16 %v3096
      %v3225 = vunpack.c.l.b16 %v3097
      %v3226 = vunpack.c.l.b16 %v3098
      %v3227 = vunpack.c.l.b16 %v3099
      %v3228 = vunpack.c.l.b16 %v3100
      %v3229 = vunpack.c.l.b16 %v3101
      %v3230 = vunpack.c.l.b16 %v3102
      %v3231 = vunpack.c.l.b16 %v3103
      %v3232 = vunpack.c.l.b16 %v3104
      %v3233 = vunpack.c.l.b16 %v3105
      %v3234 = vunpack.c.l.b16 %v3106
      %v3235 = vunpack.c.l.b16 %v3107
      %v3236 = vunpack.c.l.b16 %v3108
      %v3237 = vunpack.c.l.b16 %v3109
      %v3238 = vunpack.c.l.b16 %v3110
      %v3239 = vunpack.c.l.b16 %v3111
      %v3240 = vunpack.c.l.b16 %v3112
      %v3241 = vunpack.c.l.b16 %v3113
      %v3242 = vunpack.c.l.b16 %v3114
      %v3243 = vunpack.c.l.b16 %v3115
      %v3244 = vunpack.c.l.b16 %v3116
      %v3245 = vunpack.c.l.b16 %v3117
      %v3246 = vpack.c.b16 %v3183, %v3182
      %v3247 = vpack.c.b16 %v3185, %v3184
      %v3248 = vpack.c.b16 %v3187, %v3186
      %v3249 = vpack.c.b16 %v3189, %v3188
      %v3250 = vpack.c.b16 %v3191, %v3190
      %v3251 = vpack.c.b16 %v3193, %v3192
      %v3252 = vpack.c.b16 %v3195, %v3194
      %v3253 = vpack.c.b16 %v3197, %v3196
      %v3254 = vpack.c.b16 %v3199, %v3198
      %v3255 = vpack.c.b16 %v3201, %v3200
      %v3256 = vpack.c.b16 %v3203, %v3202
      %v3257 = vpack.c.b16 %v3205, %v3204
      %v3258 = vpack.c.b16 %v3207, %v3206
      %v3259 = vpack.c.b16 %v3209, %v3208
      %v3260 = vpack.c.b16 %v3211, %v3210
      %v3261 = vpack.c.b16 %v3213, %v3212
      %v3262 = vpack.c.b16 %v3215, %v3214
      %v3263 = vpack.c.b16 %v3217, %v3216
      %v3264 = vpack.c.b16 %v3219, %v3218
      %v3265 = vpack.c.b16 %v3221, %v3220
      %v3266 = vpack.c.b16 %v3223, %v3222
      %v3267 = vpack.c.b16 %v3225, %v3224
      %v3268 = vpack.c.b16 %v3227, %v3226
      %v3269 = vpack.c.b16 %v3229, %v3228
      %v3270 = vpack.c.b16 %v3231, %v3230
      %v3271 = vpack.c.b16 %v3233, %v3232
      %v3272 = vpack.c.b16 %v3235, %v3234
      %v3273 = vpack.c.b16 %v3237, %v3236
      %v3274 = vpack.c.b16 %v3239, %v3238
      %v3275 = vpack.c.b16 %v3241, %v3240
      %v3276 = vpack.c.b16 %v3243, %v3242
      %v3277 = vpack.c.b16 %v3245, %v3244
      %v3279 = vshrl.u32 %v3246, 16
      %v3281 = vrot.slane %v3279, 7
      %v3282 = vshll.u32 %v3246, 16
      %v3284 = vor.u32 %v3281, %v3282
      %v3286 = vshrl.u32 %v3247, 16
      %v3288 = vrot.slane %v3286, 7
      %v3289 = vshll.u32 %v3247, 16
      %v3291 = vor.u32 %v3288, %v3289
      %v3292 = vsel %vm1460, %v3281, %v3291
      %v3294 = vshrl.u32 %v3248, 16
      %v3296 = vrot.slane %v3294, 7
      %v3297 = vshll.u32 %v3248, 16
      %v3299 = vor.u32 %v3296, %v3297
      %v3301 = vshrl.u32 %v3249, 16
      %v3303 = vrot.slane %v3301, 7
      %v3304 = vshll.u32 %v3249, 16
      %v3306 = vor.u32 %v3303, %v3304
      %v3307 = vsel %vm1460, %v3296, %v3306
      %v3309 = vshrl.u32 %v3250, 16
      %v3311 = vrot.slane %v3309, 7
      %v3312 = vshll.u32 %v3250, 16
      %v3314 = vor.u32 %v3311, %v3312
      %v3316 = vshrl.u32 %v3251, 16
      %v3318 = vrot.slane %v3316, 7
      %v3319 = vshll.u32 %v3251, 16
      %v3321 = vor.u32 %v3318, %v3319
      %v3322 = vsel %vm1460, %v3311, %v3321
      %v3324 = vshrl.u32 %v3252, 16
      %v3326 = vrot.slane %v3324, 7
      %v3327 = vshll.u32 %v3252, 16
      %v3329 = vor.u32 %v3326, %v3327
      %v3331 = vshrl.u32 %v3253, 16
      %v3333 = vrot.slane %v3331, 7
      %v3334 = vshll.u32 %v3253, 16
      %v3336 = vor.u32 %v3333, %v3334
      %v3337 = vsel %vm1460, %v3326, %v3336
      %v3339 = vshrl.u32 %v3254, 16
      %v3341 = vrot.slane %v3339, 7
      %v3342 = vshll.u32 %v3254, 16
      %v3344 = vor.u32 %v3341, %v3342
      %v3346 = vshrl.u32 %v3255, 16
      %v3348 = vrot.slane %v3346, 7
      %v3349 = vshll.u32 %v3255, 16
      %v3351 = vor.u32 %v3348, %v3349
      %v3352 = vsel %vm1460, %v3341, %v3351
      %v3354 = vshrl.u32 %v3256, 16
      %v3356 = vrot.slane %v3354, 7
      %v3357 = vshll.u32 %v3256, 16
      %v3359 = vor.u32 %v3356, %v3357
      %v3361 = vshrl.u32 %v3257, 16
      %v3363 = vrot.slane %v3361, 7
      %v3364 = vshll.u32 %v3257, 16
      %v3366 = vor.u32 %v3363, %v3364
      %v3367 = vsel %vm1460, %v3356, %v3366
      %v3369 = vshrl.u32 %v3258, 16
      %v3371 = vrot.slane %v3369, 7
      %v3372 = vshll.u32 %v3258, 16
      %v3374 = vor.u32 %v3371, %v3372
      %v3376 = vshrl.u32 %v3259, 16
      %v3378 = vrot.slane %v3376, 7
      %v3379 = vshll.u32 %v3259, 16
      %v3381 = vor.u32 %v3378, %v3379
      %v3382 = vsel %vm1460, %v3371, %v3381
      %v3384 = vshrl.u32 %v3260, 16
      %v3386 = vrot.slane %v3384, 7
      %v3387 = vshll.u32 %v3260, 16
      %v3389 = vor.u32 %v3386, %v3387
      %v3391 = vshrl.u32 %v3261, 16
      %v3393 = vrot.slane %v3391, 7
      %v3394 = vshll.u32 %v3261, 16
      %v3396 = vor.u32 %v3393, %v3394
      %v3397 = vsel %vm1460, %v3386, %v3396
      %v3399 = vshrl.u32 %v3262, 16
      %v3401 = vrot.slane %v3399, 7
      %v3402 = vshll.u32 %v3262, 16
      %v3404 = vor.u32 %v3401, %v3402
      %v3406 = vshrl.u32 %v3263, 16
      %v3408 = vrot.slane %v3406, 7
      %v3409 = vshll.u32 %v3263, 16
      %v3411 = vor.u32 %v3408, %v3409
      %v3412 = vsel %vm1460, %v3401, %v3411
      %v3414 = vshrl.u32 %v3264, 16
      %v3416 = vrot.slane %v3414, 7
      %v3417 = vshll.u32 %v3264, 16
      %v3419 = vor.u32 %v3416, %v3417
      %v3421 = vshrl.u32 %v3265, 16
      %v3423 = vrot.slane %v3421, 7
      %v3424 = vshll.u32 %v3265, 16
      %v3426 = vor.u32 %v3423, %v3424
      %v3427 = vsel %vm1460, %v3416, %v3426
      %v3429 = vshrl.u32 %v3266, 16
      %v3431 = vrot.slane %v3429, 7
      %v3432 = vshll.u32 %v3266, 16
      %v3434 = vor.u32 %v3431, %v3432
      %v3436 = vshrl.u32 %v3267, 16
      %v3438 = vrot.slane %v3436, 7
      %v3439 = vshll.u32 %v3267, 16
      %v3441 = vor.u32 %v3438, %v3439
      %v3442 = vsel %vm1460, %v3431, %v3441
      %v3444 = vshrl.u32 %v3268, 16
      %v3446 = vrot.slane %v3444, 7
      %v3447 = vshll.u32 %v3268, 16
      %v3449 = vor.u32 %v3446, %v3447
      %v3451 = vshrl.u32 %v3269, 16
      %v3453 = vrot.slane %v3451, 7
      %v3454 = vshll.u32 %v3269, 16
      %v3456 = vor.u32 %v3453, %v3454
      %v3457 = vsel %vm1460, %v3446, %v3456
      %v3459 = vshrl.u32 %v3270, 16
      %v3461 = vrot.slane %v3459, 7
      %v3462 = vshll.u32 %v3270, 16
      %v3464 = vor.u32 %v3461, %v3462
      %v3466 = vshrl.u32 %v3271, 16
      %v3468 = vrot.slane %v3466, 7
      %v3469 = vshll.u32 %v3271, 16
      %v3471 = vor.u32 %v3468, %v3469
      %v3472 = vsel %vm1460, %v3461, %v3471
      %v3474 = vshrl.u32 %v3272, 16
      %v3476 = vrot.slane %v3474, 7
      %v3477 = vshll.u32 %v3272, 16
      %v3479 = vor.u32 %v3476, %v3477
      %v3481 = vshrl.u32 %v3273, 16
      %v3483 = vrot.slane %v3481, 7
      %v3484 = vshll.u32 %v3273, 16
      %v3486 = vor.u32 %v3483, %v3484
      %v3487 = vsel %vm1460, %v3476, %v3486
      %v3489 = vshrl.u32 %v3274, 16
      %v3491 = vrot.slane %v3489, 7
      %v3492 = vshll.u32 %v3274, 16
      %v3494 = vor.u32 %v3491, %v3492
      %v3496 = vshrl.u32 %v3275, 16
      %v3498 = vrot.slane %v3496, 7
      %v3499 = vshll.u32 %v3275, 16
      %v3501 = vor.u32 %v3498, %v3499
      %v3502 = vsel %vm1460, %v3491, %v3501
      %v3504 = vshrl.u32 %v3276, 16
      %v3506 = vrot.slane %v3504, 7
      %v3507 = vshll.u32 %v3276, 16
      %v3509 = vor.u32 %v3506, %v3507
      %v3511 = vshrl.u32 %v3277, 16
      %v3513 = vrot.slane %v3511, 7
      %v3514 = vshll.u32 %v3277, 16
      %v3516 = vor.u32 %v3513, %v3514
      %v3517 = vsel %vm1460, %v3506, %v3516
      %v3534 = vsel %vm1718, 0, %v3284
      %v3535 = vsel %vm1718, 0, %v3299
      %v3536 = vsel %vm1718, 0, %v3314
      %v3537 = vsel %vm1718, 0, %v3329
      %v3538 = vsel %vm1718, 0, %v3344
      %v3539 = vsel %vm1718, 0, %v3359
      %v3540 = vsel %vm1718, 0, %v3374
      %v3541 = vsel %vm1718, 0, %v3389
      %v3542 = vsel %vm1718, 0, %v3404
      %v3543 = vsel %vm1718, 0, %v3419
      %v3544 = vsel %vm1718, 0, %v3434
      %v3545 = vsel %vm1718, 0, %v3449
      %v3546 = vsel %vm1718, 0, %v3464
      %v3547 = vsel %vm1718, 0, %v3479
      %v3548 = vsel %vm1718, 0, %v3494
      %v3549 = vsel %vm1718, 0, %v3509
      %s3550 = scalar_lea.vmem %s1, 12
      %v3551 = vld [vmem:[%s3550] sm:$0xf]
      %v3553 = vsel %vm1738, %v3534, 0
      %v3556 = vsel %vm1738, %v3292, 0
      %v3559 = vsel %vm1738, %v3535, 0
      %v3562 = vsel %vm1738, %v3307, 0
      %v3565 = vsel %vm1738, %v3536, 0
      %v3568 = vsel %vm1738, %v3322, 0
      %v3571 = vsel %vm1738, %v3537, 0
      %v3574 = vsel %vm1738, %v3337, 0
      %v3577 = vsel %vm1738, %v3538, 0
      %v3580 = vsel %vm1738, %v3352, 0
      %v3583 = vsel %vm1738, %v3539, 0
      %v3586 = vsel %vm1738, %v3367, 0
      %v3589 = vsel %vm1738, %v3540, 0
      %v3592 = vsel %vm1738, %v3382, 0
      %v3595 = vsel %vm1738, %v3541, 0
      %v3598 = vsel %vm1738, %v3397, 0
      %v3601 = vsel %vm1738, %v3542, 0
      %v3604 = vsel %vm1738, %v3412, 0
      %v3607 = vsel %vm1738, %v3543, 0
      %v3610 = vsel %vm1738, %v3427, 0
      %v3613 = vsel %vm1738, %v3544, 0
      %v3616 = vsel %vm1738, %v3442, 0
      %v3619 = vsel %vm1738, %v3545, 0
      %v3622 = vsel %vm1738, %v3457, 0
      %v3625 = vsel %vm1738, %v3546, 0
      %v3628 = vsel %vm1738, %v3472, 0
      %v3631 = vsel %vm1738, %v3547, 0
      %v3634 = vsel %vm1738, %v3487, 0
      %v3637 = vsel %vm1738, %v3548, 0
      %v3640 = vsel %vm1738, %v3502, 0
      %v3643 = vsel %vm1738, %v3549, 0
      %v3646 = vsel %vm1738, %v3517, 0
      %v3649 = vsel %vm1803, %v3551, 0
      %3651 = vmatprep.subr.bf16.mxu0 0
      %3652 = vmatpush1.bf16.msra.mxu0 %v3649
      %3653 = vmatprep.subr.bf16.mxu0 0
      %3654 = vmatpush1.bf16.msra.mxu0 0
      %3655 = vmatprep.subr.bf16.mxu0 0
      %3656 = vmatpush1.bf16.msra.mxu0 0
      %3657 = vmatprep.subr.bf16.mxu0 0
      %3658 = vmatpush1.bf16.msra.mxu0 0
      %3659 = vmatprep.subr.bf16.mxu0 0
      %3660 = vmatpush1.bf16.msra.mxu0 0
      %3661 = vmatprep.subr.bf16.mxu0 0
      %3662 = vmatpush1.bf16.msra.mxu0 0
      %3663 = vmatprep.subr.bf16.mxu0 0
      %3664 = vmatpush1.bf16.msra.mxu0 0
      %3665 = vmatprep.subr.bf16.mxu0 0
      %3666 = vmatpush1.bf16.msra.mxu0 0
      %3667 = vmatprep.subr.bf16.mxu0 0
      %3668 = vmatpush1.bf16.msra.mxu0 0
      %3669 = vmatprep.subr.bf16.mxu0 0
      %3670 = vmatpush1.bf16.msra.mxu0 0
      %3671 = vmatprep.subr.bf16.mxu0 0
      %3672 = vmatpush1.bf16.msra.mxu0 0
      %3673 = vmatprep.subr.bf16.mxu0 0
      %3674 = vmatpush1.bf16.msra.mxu0 0
      %3675 = vmatprep.subr.bf16.mxu0 0
      %3676 = vmatpush1.bf16.msra.mxu0 0
      %3677 = vmatprep.subr.bf16.mxu0 0
      %3678 = vmatpush1.bf16.msra.mxu0 0
      %3679 = vmatprep.subr.bf16.mxu0 0
      %3680 = vmatpush1.bf16.msra.mxu0 0
      %3681 = vmatprep.subr.bf16.mxu0 0
      %3682 = vmatpush1.bf16.msra.mxu0 0
      %3683 = vmatprep.mubr.bf16.mxu0 0
      %3684 = vmatmul.mubr.bf16.gmra.mrb[0].mxu0 %v3553
      %v3685 = vpop.f32.mrb[0].mxu0
      %v3686 = vadd.f32 0.0, %v3685
      %v3687 = vpop.f32.mrb[0].mxu0
      %v3688 = vpop.f32.mrb[0].mxu0
      %v3689 = vadd.f32 0.0, %v3688
      %v3690 = vpop.f32.mrb[0].mxu0
      %3691 = vmatprep.mubr.bf16.mxu0 0
      %3692 = vmatmul.mubr.bf16.gmra.mrb[0].mxu0 %v3556
      %v3693 = vpop.f32.mrb[0].mxu0
      %v3694 = vadd.f32 0.0, %v3693
      %v3695 = vpop.f32.mrb[0].mxu0
      %v3696 = vpop.f32.mrb[0].mxu0
      %v3697 = vadd.f32 0.0, %v3696
      %v3698 = vpop.f32.mrb[0].mxu0
      %3699 = vmatprep.mubr.bf16.mxu0 0
      %3700 = vmatmul.mubr.bf16.gmra.mrb[0].mxu0 %v3559
      %v3701 = vpop.f32.mrb[0].mxu0
      %v3702 = vadd.f32 0.0, %v3701
      %v3703 = vpop.f32.mrb[0].mxu0
      %v3704 = vpop.f32.mrb[0].mxu0
      %v3705 = vadd.f32 0.0, %v3704
      %v3706 = vpop.f32.mrb[0].mxu0
      %3707 = vmatprep.mubr.bf16.mxu0 0
      %3708 = vmatmul.mubr.bf16.gmra.mrb[0].mxu0 %v3562
      %v3709 = vpop.f32.mrb[0].mxu0
      %v3710 = vadd.f32 0.0, %v3709
      %v3711 = vpop.f32.mrb[0].mxu0
      %v3712 = vpop.f32.mrb[0].mxu0
      %v3713 = vadd.f32 0.0, %v3712
      %v3714 = vpop.f32.mrb[0].mxu0
      %3715 = vmatprep.mubr.bf16.mxu0 0
      %3716 = vmatmul.mubr.bf16.gmra.mrb[0].mxu0 %v3565
      %v3717 = vpop.f32.mrb[0].mxu0
      %v3718 = vadd.f32 0.0, %v3717
      %v3719 = vpop.f32.mrb[0].mxu0
      %v3720 = vpop.f32.mrb[0].mxu0
      %v3721 = vadd.f32 0.0, %v3720
      %v3722 = vpop.f32.mrb[0].mxu0
      %3723 = vmatprep.mubr.bf16.mxu0 0
      %3724 = vmatmul.mubr.bf16.gmra.mrb[0].mxu0 %v3568
      %v3725 = vpop.f32.mrb[0].mxu0
      %v3726 = vadd.f32 0.0, %v3725
      %v3727 = vpop.f32.mrb[0].mxu0
      %v3728 = vpop.f32.mrb[0].mxu0
      %v3729 = vadd.f32 0.0, %v3728
      %v3730 = vpop.f32.mrb[0].mxu0
      %3731 = vmatprep.mubr.bf16.mxu0 0
      %3732 = vmatmul.mubr.bf16.gmra.mrb[0].mxu0 %v3571
      %v3733 = vpop.f32.mrb[0].mxu0
      %v3734 = vadd.f32 0.0, %v3733
      %v3735 = vpop.f32.mrb[0].mxu0
      %v3736 = vpop.f32.mrb[0].mxu0
      %v3737 = vadd.f32 0.0, %v3736
      %v3738 = vpop.f32.mrb[0].mxu0
      %3739 = vmatprep.mubr.bf16.mxu0 0
      %3740 = vmatmul.mubr.bf16.gmra.mrb[0].mxu0 %v3574
      %v3741 = vpop.f32.mrb[0].mxu0
      %v3742 = vadd.f32 0.0, %v3741
      %v3743 = vpop.f32.mrb[0].mxu0
      %v3744 = vpop.f32.mrb[0].mxu0
      %v3745 = vadd.f32 0.0, %v3744
      %v3746 = vpop.f32.mrb[0].mxu0
      %3747 = vmatprep.mubr.bf16.mxu0 0
      %3748 = vmatmul.mubr.bf16.gmra.mrb[0].mxu0 %v3577
      %v3749 = vpop.f32.mrb[0].mxu0
      %v3750 = vadd.f32 0.0, %v3749
      %v3751 = vpop.f32.mrb[0].mxu0
      %v3752 = vpop.f32.mrb[0].mxu0
      %v3753 = vadd.f32 0.0, %v3752
      %v3754 = vpop.f32.mrb[0].mxu0
      %3755 = vmatprep.mubr.bf16.mxu0 0
      %3756 = vmatmul.mubr.bf16.gmra.mrb[0].mxu0 %v3580
      %v3757 = vpop.f32.mrb[0].mxu0
      %v3758 = vadd.f32 0.0, %v3757
      %v3759 = vpop.f32.mrb[0].mxu0
      %v3760 = vpop.f32.mrb[0].mxu0
      %v3761 = vadd.f32 0.0, %v3760
      %v3762 = vpop.f32.mrb[0].mxu0
      %3763 = vmatprep.mubr.bf16.mxu0 0
      %3764 = vmatmul.mubr.bf16.gmra.mrb[0].mxu0 %v3583
      %v3765 = vpop.f32.mrb[0].mxu0
      %v3766 = vadd.f32 0.0, %v3765
      %v3767 = vpop.f32.mrb[0].mxu0
      %v3768 = vpop.f32.mrb[0].mxu0
      %v3769 = vadd.f32 0.0, %v3768
      %v3770 = vpop.f32.mrb[0].mxu0
      %3771 = vmatprep.mubr.bf16.mxu0 0
      %3772 = vmatmul.mubr.bf16.gmra.mrb[0].mxu0 %v3586
      %v3773 = vpop.f32.mrb[0].mxu0
      %v3774 = vadd.f32 0.0, %v3773
      %v3775 = vpop.f32.mrb[0].mxu0
      %v3776 = vpop.f32.mrb[0].mxu0
      %v3777 = vadd.f32 0.0, %v3776
      %v3778 = vpop.f32.mrb[0].mxu0
      %3779 = vmatprep.mubr.bf16.mxu0 0
      %3780 = vmatmul.mubr.bf16.gmra.mrb[0].mxu0 %v3589
      %v3781 = vpop.f32.mrb[0].mxu0
      %v3782 = vadd.f32 0.0, %v3781
      %v3783 = vpop.f32.mrb[0].mxu0
      %v3784 = vpop.f32.mrb[0].mxu0
      %v3785 = vadd.f32 0.0, %v3784
      %v3786 = vpop.f32.mrb[0].mxu0
      %3787 = vmatprep.mubr.bf16.mxu0 0
      %3788 = vmatmul.mubr.bf16.gmra.mrb[0].mxu0 %v3592
      %v3789 = vpop.f32.mrb[0].mxu0
      %v3790 = vadd.f32 0.0, %v3789
      %v3791 = vpop.f32.mrb[0].mxu0
      %v3792 = vpop.f32.mrb[0].mxu0
      %v3793 = vadd.f32 0.0, %v3792
      %v3794 = vpop.f32.mrb[0].mxu0
      %3795 = vmatprep.mubr.bf16.mxu0 0
      %3796 = vmatmul.mubr.bf16.gmra.mrb[0].mxu0 %v3595
      %v3797 = vpop.f32.mrb[0].mxu0
      %v3798 = vadd.f32 0.0, %v3797
      %v3799 = vpop.f32.mrb[0].mxu0
      %v3800 = vpop.f32.mrb[0].mxu0
      %v3801 = vadd.f32 0.0, %v3800
      %v3802 = vpop.f32.mrb[0].mxu0
      %3803 = vmatprep.mubr.bf16.mxu0 0
      %3804 = vmatmul.mubr.bf16.gmra.mrb[0].mxu0 %v3598
      %v3805 = vpop.f32.mrb[0].mxu0
      %v3806 = vadd.f32 0.0, %v3805
      %v3807 = vpop.f32.mrb[0].mxu0
      %v3808 = vpop.f32.mrb[0].mxu0
      %v3809 = vadd.f32 0.0, %v3808
      %v3810 = vpop.f32.mrb[0].mxu0
      %3811 = vmatprep.mubr.bf16.mxu0 0
      %3812 = vmatmul.mubr.bf16.gmra.mrb[0].mxu0 %v3601
      %v3813 = vpop.f32.mrb[0].mxu0
      %v3814 = vadd.f32 0.0, %v3813
      %v3815 = vpop.f32.mrb[0].mxu0
      %v3816 = vpop.f32.mrb[0].mxu0
      %v3817 = vadd.f32 0.0, %v3816
      %v3818 = vpop.f32.mrb[0].mxu0
      %3819 = vmatprep.mubr.bf16.mxu0 0
      %3820 = vmatmul.mubr.bf16.gmra.mrb[0].mxu0 %v3604
      %v3821 = vpop.f32.mrb[0].mxu0
      %v3822 = vadd.f32 0.0, %v3821
      %v3823 = vpop.f32.mrb[0].mxu0
      %v3824 = vpop.f32.mrb[0].mxu0
      %v3825 = vadd.f32 0.0, %v3824
      %v3826 = vpop.f32.mrb[0].mxu0
      %3827 = vmatprep.mubr.bf16.mxu0 0
      %3828 = vmatmul.mubr.bf16.gmra.mrb[0].mxu0 %v3607
      %v3829 = vpop.f32.mrb[0].mxu0
      %v3830 = vadd.f32 0.0, %v3829
      %v3831 = vpop.f32.mrb[0].mxu0
      %v3832 = vpop.f32.mrb[0].mxu0
      %v3833 = vadd.f32 0.0, %v3832
      %v3834 = vpop.f32.mrb[0].mxu0
      %3835 = vmatprep.mubr.bf16.mxu0 0
      %3836 = vmatmul.mubr.bf16.gmra.mrb[0].mxu0 %v3610
      %v3837 = vpop.f32.mrb[0].mxu0
      %v3838 = vadd.f32 0.0, %v3837
      %v3839 = vpop.f32.mrb[0].mxu0
      %v3840 = vpop.f32.mrb[0].mxu0
      %v3841 = vadd.f32 0.0, %v3840
      %v3842 = vpop.f32.mrb[0].mxu0
      %3843 = vmatprep.mubr.bf16.mxu0 0
      %3844 = vmatmul.mubr.bf16.gmra.mrb[0].mxu0 %v3613
      %v3845 = vpop.f32.mrb[0].mxu0
      %v3846 = vadd.f32 0.0, %v3845
      %v3847 = vpop.f32.mrb[0].mxu0
      %v3848 = vpop.f32.mrb[0].mxu0
      %v3849 = vadd.f32 0.0, %v3848
      %v3850 = vpop.f32.mrb[0].mxu0
      %3851 = vmatprep.mubr.bf16.mxu0 0
      %3852 = vmatmul.mubr.bf16.gmra.mrb[0].mxu0 %v3616
      %v3853 = vpop.f32.mrb[0].mxu0
      %v3854 = vadd.f32 0.0, %v3853
      %v3855 = vpop.f32.mrb[0].mxu0
      %v3856 = vpop.f32.mrb[0].mxu0
      %v3857 = vadd.f32 0.0, %v3856
      %v3858 = vpop.f32.mrb[0].mxu0
      %3859 = vmatprep.mubr.bf16.mxu0 0
      %3860 = vmatmul.mubr.bf16.gmra.mrb[0].mxu0 %v3619
      %v3861 = vpop.f32.mrb[0].mxu0
      %v3862 = vadd.f32 0.0, %v3861
      %v3863 = vpop.f32.mrb[0].mxu0
      %v3864 = vpop.f32.mrb[0].mxu0
      %v3865 = vadd.f32 0.0, %v3864
      %v3866 = vpop.f32.mrb[0].mxu0
      %3867 = vmatprep.mubr.bf16.mxu0 0
      %3868 = vmatmul.mubr.bf16.gmra.mrb[0].mxu0 %v3622
      %v3869 = vpop.f32.mrb[0].mxu0
      %v3870 = vadd.f32 0.0, %v3869
      %v3871 = vpop.f32.mrb[0].mxu0
      %v3872 = vpop.f32.mrb[0].mxu0
      %v3873 = vadd.f32 0.0, %v3872
      %v3874 = vpop.f32.mrb[0].mxu0
      %3875 = vmatprep.mubr.bf16.mxu0 0
      %3876 = vmatmul.mubr.bf16.gmra.mrb[0].mxu0 %v3625
      %v3877 = vpop.f32.mrb[0].mxu0
      %v3878 = vadd.f32 0.0, %v3877
      %v3879 = vpop.f32.mrb[0].mxu0
      %v3880 = vpop.f32.mrb[0].mxu0
      %v3881 = vadd.f32 0.0, %v3880
      %v3882 = vpop.f32.mrb[0].mxu0
      %3883 = vmatprep.mubr.bf16.mxu0 0
      %3884 = vmatmul.mubr.bf16.gmra.mrb[0].mxu0 %v3628
      %v3885 = vpop.f32.mrb[0].mxu0
      %v3886 = vadd.f32 0.0, %v3885
      %v3887 = vpop.f32.mrb[0].mxu0
      %v3888 = vpop.f32.mrb[0].mxu0
      %v3889 = vadd.f32 0.0, %v3888
      %v3890 = vpop.f32.mrb[0].mxu0
      %3891 = vmatprep.mubr.bf16.mxu0 0
      %3892 = vmatmul.mubr.bf16.gmra.mrb[0].mxu0 %v3631
      %v3893 = vpop.f32.mrb[0].mxu0
      %v3894 = vadd.f32 0.0, %v3893
      %v3895 = vpop.f32.mrb[0].mxu0
      %v3896 = vpop.f32.mrb[0].mxu0
      %v3897 = vadd.f32 0.0, %v3896
      %v3898 = vpop.f32.mrb[0].mxu0
      %3899 = vmatprep.mubr.bf16.mxu0 0
      %3900 = vmatmul.mubr.bf16.gmra.mrb[0].mxu0 %v3634
      %v3901 = vpop.f32.mrb[0].mxu0
      %v3902 = vadd.f32 0.0, %v3901
      %v3903 = vpop.f32.mrb[0].mxu0
      %v3904 = vpop.f32.mrb[0].mxu0
      %v3905 = vadd.f32 0.0, %v3904
      %v3906 = vpop.f32.mrb[0].mxu0
      %3907 = vmatprep.mubr.bf16.mxu0 0
      %3908 = vmatmul.mubr.bf16.gmra.mrb[0].mxu0 %v3637
      %v3909 = vpop.f32.mrb[0].mxu0
      %v3910 = vadd.f32 0.0, %v3909
      %v3911 = vpop.f32.mrb[0].mxu0
      %v3912 = vpop.f32.mrb[0].mxu0
      %v3913 = vadd.f32 0.0, %v3912
      %v3914 = vpop.f32.mrb[0].mxu0
      %3915 = vmatprep.mubr.bf16.mxu0 0
      %3916 = vmatmul.mubr.bf16.gmra.mrb[0].mxu0 %v3640
      %v3917 = vpop.f32.mrb[0].mxu0
      %v3918 = vadd.f32 0.0, %v3917
      %v3919 = vpop.f32.mrb[0].mxu0
      %v3920 = vpop.f32.mrb[0].mxu0
      %v3921 = vadd.f32 0.0, %v3920
      %v3922 = vpop.f32.mrb[0].mxu0
      %3923 = vmatprep.mubr.bf16.mxu0 0
      %3924 = vmatmul.mubr.bf16.gmra.mrb[0].mxu0 %v3643
      %v3925 = vpop.f32.mrb[0].mxu0
      %v3926 = vadd.f32 0.0, %v3925
      %v3927 = vpop.f32.mrb[0].mxu0
      %v3928 = vpop.f32.mrb[0].mxu0
      %v3929 = vadd.f32 0.0, %v3928
      %v3930 = vpop.f32.mrb[0].mxu0
      %3931 = vmatprep.mubr.bf16.mxu0 0
      %3932 = vmatmul.mubr.bf16.gmra.mrb[0].mxu0 %v3646
      %v3933 = vpop.f32.mrb[0].mxu0
      %v3934 = vadd.f32 0.0, %v3933
      %v3935 = vpop.f32.mrb[0].mxu0
      %v3936 = vpop.f32.mrb[0].mxu0
      %v3937 = vadd.f32 0.0, %v3936
      %v3938 = vpop.f32.mrb[0].mxu0
      %3939 = vdwg.mxu0
      %v3940 = vadd.f32 %v2989, %v3686
      %v3941 = vadd.f32 %v2990, %v3689
      %v3942 = vadd.f32 %v2991, %v3694
      %v3943 = vadd.f32 %v2992, %v3697
      %v3944 = vadd.f32 %v2993, %v3702
      %v3945 = vadd.f32 %v2994, %v3705
      %v3946 = vadd.f32 %v2995, %v3710
      %v3947 = vadd.f32 %v2996, %v3713
      %v3948 = vadd.f32 %v2997, %v3718
      %v3949 = vadd.f32 %v2998, %v3721
      %v3950 = vadd.f32 %v2999, %v3726
      %v3951 = vadd.f32 %v3000, %v3729
      %v3952 = vadd.f32 %v3001, %v3734
      %v3953 = vadd.f32 %v3002, %v3737
      %v3954 = vadd.f32 %v3003, %v3742
      %v3955 = vadd.f32 %v3004, %v3745
      %v3956 = vadd.f32 %v3005, %v3750
      %v3957 = vadd.f32 %v3006, %v3753
      %v3958 = vadd.f32 %v3007, %v3758
      %v3959 = vadd.f32 %v3008, %v3761
      %v3960 = vadd.f32 %v3009, %v3766
      %v3961 = vadd.f32 %v3010, %v3769
      %v3962 = vadd.f32 %v3011, %v3774
      %v3963 = vadd.f32 %v3012, %v3777
      %v3964 = vadd.f32 %v3013, %v3782
      %v3965 = vadd.f32 %v3014, %v3785
      %v3966 = vadd.f32 %v3015, %v3790
      %v3967 = vadd.f32 %v3016, %v3793
      %v3968 = vadd.f32 %v3017, %v3798
      %v3969 = vadd.f32 %v3018, %v3801
      %v3970 = vadd.f32 %v3019, %v3806
      %v3971 = vadd.f32 %v3020, %v3809
      %v3972 = vadd.f32 %v3021, %v3814
      %v3973 = vadd.f32 %v3022, %v3817
      %v3974 = vadd.f32 %v3023, %v3822
      %v3975 = vadd.f32 %v3024, %v3825
      %v3976 = vadd.f32 %v3025, %v3830
      %v3977 = vadd.f32 %v3026, %v3833
      %v3978 = vadd.f32 %v3027, %v3838
      %v3979 = vadd.f32 %v3028, %v3841
      %v3980 = vadd.f32 %v3029, %v3846
      %v3981 = vadd.f32 %v3030, %v3849
      %v3982 = vadd.f32 %v3031, %v3854
      %v3983 = vadd.f32 %v3032, %v3857
      %v3984 = vadd.f32 %v3033, %v3862
      %v3985 = vadd.f32 %v3034, %v3865
      %v3986 = vadd.f32 %v3035, %v3870
      %v3987 = vadd.f32 %v3036, %v3873
      %v3988 = vadd.f32 %v3037, %v3878
      %v3989 = vadd.f32 %v3038, %v3881
      %v3990 = vadd.f32 %v3039, %v3886
      %v3991 = vadd.f32 %v3040, %v3889
      %v3992 = vadd.f32 %v3041, %v3894
      %v3993 = vadd.f32 %v3042, %v3897
      %v3994 = vadd.f32 %v3043, %v3902
      %v3995 = vadd.f32 %v3044, %v3905
      %v3996 = vadd.f32 %v3045, %v3910
      %v3997 = vadd.f32 %v3046, %v3913
      %v3998 = vadd.f32 %v3047, %v3918
      %v3999 = vadd.f32 %v3048, %v3921
      %v4000 = vadd.f32 %v3049, %v3926
      %v4001 = vadd.f32 %v3050, %v3929
      %v4002 = vadd.f32 %v3051, %v3934
      %v4003 = vadd.f32 %v3052, %v3937
      %s4004 = scalar_lea.vmem %s1, 16
      %v4005 = vld [vmem:[%s4004] sm:$0xf]
      %v4006 = vsel %vm1738, %v3246, 0
      %v4008 = vsel %vm1738, %v3247, 0
      %v4010 = vsel %vm1738, %v3248, 0
      %v4012 = vsel %vm1738, %v3249, 0
      %v4014 = vsel %vm1738, %v3250, 0
      %v4016 = vsel %vm1738, %v3251, 0
      %v4018 = vsel %vm1738, %v3252, 0
      %v4020 = vsel %vm1738, %v3253, 0
      %v4022 = vsel %vm1738, %v3254, 0
      %v4024 = vsel %vm1738, %v3255, 0
      %v4026 = vsel %vm1738, %v3256, 0
      %v4028 = vsel %vm1738, %v3257, 0
      %v4030 = vsel %vm1738, %v3258, 0
      %v4032 = vsel %vm1738, %v3259, 0
      %v4034 = vsel %vm1738, %v3260, 0
      %v4036 = vsel %vm1738, %v3261, 0
      %v4038 = vsel %vm1738, %v3262, 0
      %v4040 = vsel %vm1738, %v3263, 0
      %v4042 = vsel %vm1738, %v3264, 0
      %v4044 = vsel %vm1738, %v3265, 0
      %v4046 = vsel %vm1738, %v3266, 0
      %v4048 = vsel %vm1738, %v3267, 0
      %v4050 = vsel %vm1738, %v3268, 0
      %v4052 = vsel %vm1738, %v3269, 0
      %v4054 = vsel %vm1738, %v3270, 0
      %v4056 = vsel %vm1738, %v3271, 0
      %v4058 = vsel %vm1738, %v3272, 0
      %v4060 = vsel %vm1738, %v3273, 0
      %v4062 = vsel %vm1738, %v3274, 0
      %v4064 = vsel %vm1738, %v3275, 0
      %v4066 = vsel %vm1738, %v3276, 0
      %v4068 = vsel %vm1738, %v3277, 0
      %v4071 = vsel %vm1803, %v4005, 0
      %4073 = vmatprep.subr.bf16.mxu0 0
      %4074 = vmatpush1.bf16.msra.mxu0 %v4071
      %4075 = vmatprep.subr.bf16.mxu0 0
      %4076 = vmatpush1.bf16.msra.mxu0 0
      %4077 = vmatprep.subr.bf16.mxu0 0
      %4078 = vmatpush1.bf16.msra.mxu0 0
      %4079 = vmatprep.subr.bf16.mxu0 0
      %4080 = vmatpush1.bf16.msra.mxu0 0
      %4081 = vmatprep.subr.bf16.mxu0 0
      %4082 = vmatpush1.bf16.msra.mxu0 0
      %4083 = vmatprep.subr.bf16.mxu0 0
      %4084 = vmatpush1.bf16.msra.mxu0 0
      %4085 = vmatprep.subr.bf16.mxu0 0
      %4086 = vmatpush1.bf16.msra.mxu0 0
      %4087 = vmatprep.subr.bf16.mxu0 0
      %4088 = vmatpush1.bf16.msra.mxu0 0
      %4089 = vmatprep.subr.bf16.mxu0 0
      %4090 = vmatpush1.bf16.msra.mxu0 0
      %4091 = vmatprep.subr.bf16.mxu0 0
      %4092 = vmatpush1.bf16.msra.mxu0 0
      %4093 = vmatprep.subr.bf16.mxu0 0
      %4094 = vmatpush1.bf16.msra.mxu0 0
      %4095 = vmatprep.subr.bf16.mxu0 0
      %4096 = vmatpush1.bf16.msra.mxu0 0
      %4097 = vmatprep.subr.bf16.mxu0 0
      %4098 = vmatpush1.bf16.msra.mxu0 0
      %4099 = vmatprep.subr.bf16.mxu0 0
      %4100 = vmatpush1.bf16.msra.mxu0 0
      %4101 = vmatprep.subr.bf16.mxu0 0
      %4102 = vmatpush1.bf16.msra.mxu0 0
      %4103 = vmatprep.subr.bf16.mxu0 0
      %4104 = vmatpush1.bf16.msra.mxu0 0
      %4105 = vmatprep.mubr.bf16.mxu0 0
      %4106 = vmatmul.mubr.bf16.gmra.mrb[0].mxu0 %v4006
      %v4107 = vpop.f32.mrb[0].mxu0
      %v4108 = vadd.f32 0.0, %v4107
      %v4109 = vpop.f32.mrb[0].mxu0
      %v4110 = vpop.f32.mrb[0].mxu0
      %v4111 = vadd.f32 0.0, %v4110
      %v4112 = vpop.f32.mrb[0].mxu0
      %4113 = vmatprep.mubr.bf16.mxu0 0
      %4114 = vmatmul.mubr.bf16.gmra.mrb[0].mxu0 %v4008
      %v4115 = vpop.f32.mrb[0].mxu0
      %v4116 = vadd.f32 0.0, %v4115
      %v4117 = vpop.f32.mrb[0].mxu0
      %v4118 = vpop.f32.mrb[0].mxu0
      %v4119 = vadd.f32 0.0, %v4118
      %v4120 = vpop.f32.mrb[0].mxu0
      %4121 = vmatprep.mubr.bf16.mxu0 0
      %4122 = vmatmul.mubr.bf16.gmra.mrb[0].mxu0 %v4010
      %v4123 = vpop.f32.mrb[0].mxu0
      %v4124 = vadd.f32 0.0, %v4123
      %v4125 = vpop.f32.mrb[0].mxu0
      %v4126 = vpop.f32.mrb[0].mxu0
      %v4127 = vadd.f32 0.0, %v4126
      %v4128 = vpop.f32.mrb[0].mxu0
      %4129 = vmatprep.mubr.bf16.mxu0 0
      %4130 = vmatmul.mubr.bf16.gmra.mrb[0].mxu0 %v4012
      %v4131 = vpop.f32.mrb[0].mxu0
      %v4132 = vadd.f32 0.0, %v4131
      %v4133 = vpop.f32.mrb[0].mxu0
      %v4134 = vpop.f32.mrb[0].mxu0
      %v4135 = vadd.f32 0.0, %v4134
      %v4136 = vpop.f32.mrb[0].mxu0
      %4137 = vmatprep.mubr.bf16.mxu0 0
      %4138 = vmatmul.mubr.bf16.gmra.mrb[0].mxu0 %v4014
      %v4139 = vpop.f32.mrb[0].mxu0
      %v4140 = vadd.f32 0.0, %v4139
      %v4141 = vpop.f32.mrb[0].mxu0
      %v4142 = vpop.f32.mrb[0].mxu0
      %v4143 = vadd.f32 0.0, %v4142
      %v4144 = vpop.f32.mrb[0].mxu0
      %4145 = vmatprep.mubr.bf16.mxu0 0
      %4146 = vmatmul.mubr.bf16.gmra.mrb[0].mxu0 %v4016
      %v4147 = vpop.f32.mrb[0].mxu0
      %v4148 = vadd.f32 0.0, %v4147
      %v4149 = vpop.f32.mrb[0].mxu0
      %v4150 = vpop.f32.mrb[0].mxu0
      %v4151 = vadd.f32 0.0, %v4150
      %v4152 = vpop.f32.mrb[0].mxu0
      %4153 = vmatprep.mubr.bf16.mxu0 0
      %4154 = vmatmul.mubr.bf16.gmra.mrb[0].mxu0 %v4018
      %v4155 = vpop.f32.mrb[0].mxu0
      %v4156 = vadd.f32 0.0, %v4155
      %v4157 = vpop.f32.mrb[0].mxu0
      %v4158 = vpop.f32.mrb[0].mxu0
      %v4159 = vadd.f32 0.0, %v4158
      %v4160 = vpop.f32.mrb[0].mxu0
      %4161 = vmatprep.mubr.bf16.mxu0 0
      %4162 = vmatmul.mubr.bf16.gmra.mrb[0].mxu0 %v4020
      %v4163 = vpop.f32.mrb[0].mxu0
      %v4164 = vadd.f32 0.0, %v4163
      %v4165 = vpop.f32.mrb[0].mxu0
      %v4166 = vpop.f32.mrb[0].mxu0
      %v4167 = vadd.f32 0.0, %v4166
      %v4168 = vpop.f32.mrb[0].mxu0
      %4169 = vmatprep.mubr.bf16.mxu0 0
      %4170 = vmatmul.mubr.bf16.gmra.mrb[0].mxu0 %v4022
      %v4171 = vpop.f32.mrb[0].mxu0
      %v4172 = vadd.f32 0.0, %v4171
      %v4173 = vpop.f32.mrb[0].mxu0
      %v4174 = vpop.f32.mrb[0].mxu0
      %v4175 = vadd.f32 0.0, %v4174
      %v4176 = vpop.f32.mrb[0].mxu0
      %4177 = vmatprep.mubr.bf16.mxu0 0
      %4178 = vmatmul.mubr.bf16.gmra.mrb[0].mxu0 %v4024
      %v4179 = vpop.f32.mrb[0].mxu0
      %v4180 = vadd.f32 0.0, %v4179
      %v4181 = vpop.f32.mrb[0].mxu0
      %v4182 = vpop.f32.mrb[0].mxu0
      %v4183 = vadd.f32 0.0, %v4182
      %v4184 = vpop.f32.mrb[0].mxu0
      %4185 = vmatprep.mubr.bf16.mxu0 0
      %4186 = vmatmul.mubr.bf16.gmra.mrb[0].mxu0 %v4026
      %v4187 = vpop.f32.mrb[0].mxu0
      %v4188 = vadd.f32 0.0, %v4187
      %v4189 = vpop.f32.mrb[0].mxu0
      %v4190 = vpop.f32.mrb[0].mxu0
      %v4191 = vadd.f32 0.0, %v4190
      %v4192 = vpop.f32.mrb[0].mxu0
      %4193 = vmatprep.mubr.bf16.mxu0 0
      %4194 = vmatmul.mubr.bf16.gmra.mrb[0].mxu0 %v4028
      %v4195 = vpop.f32.mrb[0].mxu0
      %v4196 = vadd.f32 0.0, %v4195
      %v4197 = vpop.f32.mrb[0].mxu0
      %v4198 = vpop.f32.mrb[0].mxu0
      %v4199 = vadd.f32 0.0, %v4198
      %v4200 = vpop.f32.mrb[0].mxu0
      %4201 = vmatprep.mubr.bf16.mxu0 0
      %4202 = vmatmul.mubr.bf16.gmra.mrb[0].mxu0 %v4030
      %v4203 = vpop.f32.mrb[0].mxu0
      %v4204 = vadd.f32 0.0, %v4203
      %v4205 = vpop.f32.mrb[0].mxu0
      %v4206 = vpop.f32.mrb[0].mxu0
      %v4207 = vadd.f32 0.0, %v4206
      %v4208 = vpop.f32.mrb[0].mxu0
      %4209 = vmatprep.mubr.bf16.mxu0 0
      %4210 = vmatmul.mubr.bf16.gmra.mrb[0].mxu0 %v4032
      %v4211 = vpop.f32.mrb[0].mxu0
      %v4212 = vadd.f32 0.0, %v4211
      %v4213 = vpop.f32.mrb[0].mxu0
      %v4214 = vpop.f32.mrb[0].mxu0
      %v4215 = vadd.f32 0.0, %v4214
      %v4216 = vpop.f32.mrb[0].mxu0
      %4217 = vmatprep.mubr.bf16.mxu0 0
      %4218 = vmatmul.mubr.bf16.gmra.mrb[0].mxu0 %v4034
      %v4219 = vpop.f32.mrb[0].mxu0
      %v4220 = vadd.f32 0.0, %v4219
      %v4221 = vpop.f32.mrb[0].mxu0
      %v4222 = vpop.f32.mrb[0].mxu0
      %v4223 = vadd.f32 0.0, %v4222
      %v4224 = vpop.f32.mrb[0].mxu0
      %4225 = vmatprep.mubr.bf16.mxu0 0
      %4226 = vmatmul.mubr.bf16.gmra.mrb[0].mxu0 %v4036
      %v4227 = vpop.f32.mrb[0].mxu0
      %v4228 = vadd.f32 0.0, %v4227
      %v4229 = vpop.f32.mrb[0].mxu0
      %v4230 = vpop.f32.mrb[0].mxu0
      %v4231 = vadd.f32 0.0, %v4230
      %v4232 = vpop.f32.mrb[0].mxu0
      %4233 = vmatprep.mubr.bf16.mxu0 0
      %4234 = vmatmul.mubr.bf16.gmra.mrb[0].mxu0 %v4038
      %v4235 = vpop.f32.mrb[0].mxu0
      %v4236 = vadd.f32 0.0, %v4235
      %v4237 = vpop.f32.mrb[0].mxu0
      %v4238 = vpop.f32.mrb[0].mxu0
      %v4239 = vadd.f32 0.0, %v4238
      %v4240 = vpop.f32.mrb[0].mxu0
      %4241 = vmatprep.mubr.bf16.mxu0 0
      %4242 = vmatmul.mubr.bf16.gmra.mrb[0].mxu0 %v4040
      %v4243 = vpop.f32.mrb[0].mxu0
      %v4244 = vadd.f32 0.0, %v4243
      %v4245 = vpop.f32.mrb[0].mxu0
      %v4246 = vpop.f32.mrb[0].mxu0
      %v4247 = vadd.f32 0.0, %v4246
      %v4248 = vpop.f32.mrb[0].mxu0
      %4249 = vmatprep.mubr.bf16.mxu0 0
      %4250 = vmatmul.mubr.bf16.gmra.mrb[0].mxu0 %v4042
      %v4251 = vpop.f32.mrb[0].mxu0
      %v4252 = vadd.f32 0.0, %v4251
      %v4253 = vpop.f32.mrb[0].mxu0
      %v4254 = vpop.f32.mrb[0].mxu0
      %v4255 = vadd.f32 0.0, %v4254
      %v4256 = vpop.f32.mrb[0].mxu0
      %4257 = vmatprep.mubr.bf16.mxu0 0
      %4258 = vmatmul.mubr.bf16.gmra.mrb[0].mxu0 %v4044
      %v4259 = vpop.f32.mrb[0].mxu0
      %v4260 = vadd.f32 0.0, %v4259
      %v4261 = vpop.f32.mrb[0].mxu0
      %v4262 = vpop.f32.mrb[0].mxu0
      %v4263 = vadd.f32 0.0, %v4262
      %v4264 = vpop.f32.mrb[0].mxu0
      %4265 = vmatprep.mubr.bf16.mxu0 0
      %4266 = vmatmul.mubr.bf16.gmra.mrb[0].mxu0 %v4046
      %v4267 = vpop.f32.mrb[0].mxu0
      %v4268 = vadd.f32 0.0, %v4267
      %v4269 = vpop.f32.mrb[0].mxu0
      %v4270 = vpop.f32.mrb[0].mxu0
      %v4271 = vadd.f32 0.0, %v4270
      %v4272 = vpop.f32.mrb[0].mxu0
      %4273 = vmatprep.mubr.bf16.mxu0 0
      %4274 = vmatmul.mubr.bf16.gmra.mrb[0].mxu0 %v4048
      %v4275 = vpop.f32.mrb[0].mxu0
      %v4276 = vadd.f32 0.0, %v4275
      %v4277 = vpop.f32.mrb[0].mxu0
      %v4278 = vpop.f32.mrb[0].mxu0
      %v4279 = vadd.f32 0.0, %v4278
      %v4280 = vpop.f32.mrb[0].mxu0
      %4281 = vmatprep.mubr.bf16.mxu0 0
      %4282 = vmatmul.mubr.bf16.gmra.mrb[0].mxu0 %v4050
      %v4283 = vpop.f32.mrb[0].mxu0
      %v4284 = vadd.f32 0.0, %v4283
      %v4285 = vpop.f32.mrb[0].mxu0
      %v4286 = vpop.f32.mrb[0].mxu0
      %v4287 = vadd.f32 0.0, %v4286
      %v4288 = vpop.f32.mrb[0].mxu0
      %4289 = vmatprep.mubr.bf16.mxu0 0
      %4290 = vmatmul.mubr.bf16.gmra.mrb[0].mxu0 %v4052
      %v4291 = vpop.f32.mrb[0].mxu0
      %v4292 = vadd.f32 0.0, %v4291
      %v4293 = vpop.f32.mrb[0].mxu0
      %v4294 = vpop.f32.mrb[0].mxu0
      %v4295 = vadd.f32 0.0, %v4294
      %v4296 = vpop.f32.mrb[0].mxu0
      %4297 = vmatprep.mubr.bf16.mxu0 0
      %4298 = vmatmul.mubr.bf16.gmra.mrb[0].mxu0 %v4054
      %v4299 = vpop.f32.mrb[0].mxu0
      %v4300 = vadd.f32 0.0, %v4299
      %v4301 = vpop.f32.mrb[0].mxu0
      %v4302 = vpop.f32.mrb[0].mxu0
      %v4303 = vadd.f32 0.0, %v4302
      %v4304 = vpop.f32.mrb[0].mxu0
      %4305 = vmatprep.mubr.bf16.mxu0 0
      %4306 = vmatmul.mubr.bf16.gmra.mrb[0].mxu0 %v4056
      %v4307 = vpop.f32.mrb[0].mxu0
      %v4308 = vadd.f32 0.0, %v4307
      %v4309 = vpop.f32.mrb[0].mxu0
      %v4310 = vpop.f32.mrb[0].mxu0
      %v4311 = vadd.f32 0.0, %v4310
      %v4312 = vpop.f32.mrb[0].mxu0
      %4313 = vmatprep.mubr.bf16.mxu0 0
      %4314 = vmatmul.mubr.bf16.gmra.mrb[0].mxu0 %v4058
      %v4315 = vpop.f32.mrb[0].mxu0
      %v4316 = vadd.f32 0.0, %v4315
      %v4317 = vpop.f32.mrb[0].mxu0
      %v4318 = vpop.f32.mrb[0].mxu0
      %v4319 = vadd.f32 0.0, %v4318
      %v4320 = vpop.f32.mrb[0].mxu0
      %4321 = vmatprep.mubr.bf16.mxu0 0
      %4322 = vmatmul.mubr.bf16.gmra.mrb[0].mxu0 %v4060
      %v4323 = vpop.f32.mrb[0].mxu0
      %v4324 = vadd.f32 0.0, %v4323
      %v4325 = vpop.f32.mrb[0].mxu0
      %v4326 = vpop.f32.mrb[0].mxu0
      %v4327 = vadd.f32 0.0, %v4326
      %v4328 = vpop.f32.mrb[0].mxu0
      %4329 = vmatprep.mubr.bf16.mxu0 0
      %4330 = vmatmul.mubr.bf16.gmra.mrb[0].mxu0 %v4062
      %v4331 = vpop.f32.mrb[0].mxu0
      %v4332 = vadd.f32 0.0, %v4331
      %v4333 = vpop.f32.mrb[0].mxu0
      %v4334 = vpop.f32.mrb[0].mxu0
      %v4335 = vadd.f32 0.0, %v4334
      %v4336 = vpop.f32.mrb[0].mxu0
      %4337 = vmatprep.mubr.bf16.mxu0 0
      %4338 = vmatmul.mubr.bf16.gmra.mrb[0].mxu0 %v4064
      %v4339 = vpop.f32.mrb[0].mxu0
      %v4340 = vadd.f32 0.0, %v4339
      %v4341 = vpop.f32.mrb[0].mxu0
      %v4342 = vpop.f32.mrb[0].mxu0
      %v4343 = vadd.f32 0.0, %v4342
      %v4344 = vpop.f32.mrb[0].mxu0
      %4345 = vmatprep.mubr.bf16.mxu0 0
      %4346 = vmatmul.mubr.bf16.gmra.mrb[0].mxu0 %v4066
      %v4347 = vpop.f32.mrb[0].mxu0
      %v4348 = vadd.f32 0.0, %v4347
      %v4349 = vpop.f32.mrb[0].mxu0
      %v4350 = vpop.f32.mrb[0].mxu0
      %v4351 = vadd.f32 0.0, %v4350
      %v4352 = vpop.f32.mrb[0].mxu0
      %4353 = vmatprep.mubr.bf16.mxu0 0
      %4354 = vmatmul.mubr.bf16.gmra.mrb[0].mxu0 %v4068
      %v4355 = vpop.f32.mrb[0].mxu0
      %v4356 = vadd.f32 0.0, %v4355
      %v4357 = vpop.f32.mrb[0].mxu0
      %v4358 = vpop.f32.mrb[0].mxu0
      %v4359 = vadd.f32 0.0, %v4358
      %v4360 = vpop.f32.mrb[0].mxu0
      %4361 = vdwg.mxu0
      %v4362 = vadd.f32 %v3940, %v4108
      %v4363 = vadd.f32 %v3941, %v4111
      %v4364 = vadd.f32 %v3942, %v4116
      %v4365 = vadd.f32 %v3943, %v4119
      %v4366 = vadd.f32 %v3944, %v4124
      %v4367 = vadd.f32 %v3945, %v4127
      %v4368 = vadd.f32 %v3946, %v4132
      %v4369 = vadd.f32 %v3947, %v4135
      %v4370 = vadd.f32 %v3948, %v4140
      %v4371 = vadd.f32 %v3949, %v4143
      %v4372 = vadd.f32 %v3950, %v4148
      %v4373 = vadd.f32 %v3951, %v4151
      %v4374 = vadd.f32 %v3952, %v4156
      %v4375 = vadd.f32 %v3953, %v4159
      %v4376 = vadd.f32 %v3954, %v4164
      %v4377 = vadd.f32 %v3955, %v4167
      %v4378 = vadd.f32 %v3956, %v4172
      %v4379 = vadd.f32 %v3957, %v4175
      %v4380 = vadd.f32 %v3958, %v4180
      %v4381 = vadd.f32 %v3959, %v4183
      %v4382 = vadd.f32 %v3960, %v4188
      %v4383 = vadd.f32 %v3961, %v4191
      %v4384 = vadd.f32 %v3962, %v4196
      %v4385 = vadd.f32 %v3963, %v4199
      %v4386 = vadd.f32 %v3964, %v4204
      %v4387 = vadd.f32 %v3965, %v4207
      %v4388 = vadd.f32 %v3966, %v4212
      %v4389 = vadd.f32 %v3967, %v4215
      %v4390 = vadd.f32 %v3968, %v4220
      %v4391 = vadd.f32 %v3969, %v4223
      %v4392 = vadd.f32 %v3970, %v4228
      %v4393 = vadd.f32 %v3971, %v4231
      %v4394 = vadd.f32 %v3972, %v4236
      %v4395 = vadd.f32 %v3973, %v4239
      %v4396 = vadd.f32 %v3974, %v4244
      %v4397 = vadd.f32 %v3975, %v4247
      %v4398 = vadd.f32 %v3976, %v4252
      %v4399 = vadd.f32 %v3977, %v4255
      %v4400 = vadd.f32 %v3978, %v4260
      %v4401 = vadd.f32 %v3979, %v4263
      %v4402 = vadd.f32 %v3980, %v4268
      %v4403 = vadd.f32 %v3981, %v4271
      %v4404 = vadd.f32 %v3982, %v4276
      %v4405 = vadd.f32 %v3983, %v4279
      %v4406 = vadd.f32 %v3984, %v4284
      %v4407 = vadd.f32 %v3985, %v4287
      %v4408 = vadd.f32 %v3986, %v4292
      %v4409 = vadd.f32 %v3987, %v4295
      %v4410 = vadd.f32 %v3988, %v4300
      %v4411 = vadd.f32 %v3989, %v4303
      %v4412 = vadd.f32 %v3990, %v4308
      %v4413 = vadd.f32 %v3991, %v4311
      %v4414 = vadd.f32 %v3992, %v4316
      %v4415 = vadd.f32 %v3993, %v4319
      %v4416 = vadd.f32 %v3994, %v4324
      %v4417 = vadd.f32 %v3995, %v4327
      %v4418 = vadd.f32 %v3996, %v4332
      %v4419 = vadd.f32 %v3997, %v4335
      %v4420 = vadd.f32 %v3998, %v4340
      %v4421 = vadd.f32 %v3999, %v4343
      %v4422 = vadd.f32 %v4000, %v4348
      %v4423 = vadd.f32 %v4001, %v4351
      %v4424 = vadd.f32 %v4002, %v4356
      %v4425 = vadd.f32 %v4003, %v4359
      %v4426 = vrot.slane %v3282, 1
      %v4427 = vor.u32 %v3279, %v4426
      %v4428 = vrot.slane %v3289, 1
      %v4429 = vsel %vm2484, %v4427, %v4428
      %v4430 = vor.u32 %v3286, %v4428
      %v4431 = vrot.slane %v3297, 1
      %v4432 = vor.u32 %v3294, %v4431
      %v4433 = vrot.slane %v3304, 1
      %v4434 = vsel %vm2484, %v4432, %v4433
      %v4435 = vor.u32 %v3301, %v4433
      %v4436 = vrot.slane %v3312, 1
      %v4437 = vor.u32 %v3309, %v4436
      %v4438 = vrot.slane %v3319, 1
      %v4439 = vsel %vm2484, %v4437, %v4438
      %v4440 = vor.u32 %v3316, %v4438
      %v4441 = vrot.slane %v3327, 1
      %v4442 = vor.u32 %v3324, %v4441
      %v4443 = vrot.slane %v3334, 1
      %v4444 = vsel %vm2484, %v4442, %v4443
      %v4445 = vor.u32 %v3331, %v4443
      %v4446 = vrot.slane %v3342, 1
      %v4447 = vor.u32 %v3339, %v4446
      %v4448 = vrot.slane %v3349, 1
      %v4449 = vsel %vm2484, %v4447, %v4448
      %v4450 = vor.u32 %v3346, %v4448
      %v4451 = vrot.slane %v3357, 1
      %v4452 = vor.u32 %v3354, %v4451
      %v4453 = vrot.slane %v3364, 1
      %v4454 = vsel %vm2484, %v4452, %v4453
      %v4455 = vor.u32 %v3361, %v4453
      %v4456 = vrot.slane %v3372, 1
      %v4457 = vor.u32 %v3369, %v4456
      %v4458 = vrot.slane %v3379, 1
      %v4459 = vsel %vm2484, %v4457, %v4458
      %v4460 = vor.u32 %v3376, %v4458
      %v4461 = vrot.slane %v3387, 1
      %v4462 = vor.u32 %v3384, %v4461
      %v4463 = vrot.slane %v3394, 1
      %v4464 = vsel %vm2484, %v4462, %v4463
      %v4465 = vor.u32 %v3391, %v4463
      %v4466 = vrot.slane %v3402, 1
      %v4467 = vor.u32 %v3399, %v4466
      %v4468 = vrot.slane %v3409, 1
      %v4469 = vsel %vm2484, %v4467, %v4468
      %v4470 = vor.u32 %v3406, %v4468
      %v4471 = vrot.slane %v3417, 1
      %v4472 = vor.u32 %v3414, %v4471
      %v4473 = vrot.slane %v3424, 1
      %v4474 = vsel %vm2484, %v4472, %v4473
      %v4475 = vor.u32 %v3421, %v4473
      %v4476 = vrot.slane %v3432, 1
      %v4477 = vor.u32 %v3429, %v4476
      %v4478 = vrot.slane %v3439, 1
      %v4479 = vsel %vm2484, %v4477, %v4478
      %v4480 = vor.u32 %v3436, %v4478
      %v4481 = vrot.slane %v3447, 1
      %v4482 = vor.u32 %v3444, %v4481
      %v4483 = vrot.slane %v3454, 1
      %v4484 = vsel %vm2484, %v4482, %v4483
      %v4485 = vor.u32 %v3451, %v4483
      %v4486 = vrot.slane %v3462, 1
      %v4487 = vor.u32 %v3459, %v4486
      %v4488 = vrot.slane %v3469, 1
      %v4489 = vsel %vm2484, %v4487, %v4488
      %v4490 = vor.u32 %v3466, %v4488
      %v4491 = vrot.slane %v3477, 1
      %v4492 = vor.u32 %v3474, %v4491
      %v4493 = vrot.slane %v3484, 1
      %v4494 = vsel %vm2484, %v4492, %v4493
      %v4495 = vor.u32 %v3481, %v4493
      %v4496 = vrot.slane %v3492, 1
      %v4497 = vor.u32 %v3489, %v4496
      %v4498 = vrot.slane %v3499, 1
      %v4499 = vsel %vm2484, %v4497, %v4498
      %v4500 = vor.u32 %v3496, %v4498
      %v4501 = vrot.slane %v3507, 1
      %v4502 = vor.u32 %v3504, %v4501
      %v4503 = vrot.slane %v3514, 1
      %v4504 = vsel %vm2484, %v4502, %v4503
      %v4505 = vor.u32 %v3511, %v4503
      %v4522 = vsel %vm2582, %v4430, 0
      %v4523 = vsel %vm2582, %v4435, 0
      %v4524 = vsel %vm2582, %v4440, 0
      %v4525 = vsel %vm2582, %v4445, 0
      %v4526 = vsel %vm2582, %v4450, 0
      %v4527 = vsel %vm2582, %v4455, 0
      %v4528 = vsel %vm2582, %v4460, 0
      %v4529 = vsel %vm2582, %v4465, 0
      %v4530 = vsel %vm2582, %v4470, 0
      %v4531 = vsel %vm2582, %v4475, 0
      %v4532 = vsel %vm2582, %v4480, 0
      %v4533 = vsel %vm2582, %v4485, 0
      %v4534 = vsel %vm2582, %v4490, 0
      %v4535 = vsel %vm2582, %v4495, 0
      %v4536 = vsel %vm2582, %v4500, 0
      %v4537 = vsel %vm2582, %v4505, 0
      %s4538 = scalar_lea.vmem %s1, 20
      %v4539 = vld [vmem:[%s4538] sm:$0xf]
      %v4541 = vsel %vm1738, %v4429, 0
      %v4544 = vsel %vm1738, %v4522, 0
      %v4547 = vsel %vm1738, %v4434, 0
      %v4550 = vsel %vm1738, %v4523, 0
      %v4553 = vsel %vm1738, %v4439, 0
      %v4556 = vsel %vm1738, %v4524, 0
      %v4559 = vsel %vm1738, %v4444, 0
      %v4562 = vsel %vm1738, %v4525, 0
      %v4565 = vsel %vm1738, %v4449, 0
      %v4568 = vsel %vm1738, %v4526, 0
      %v4571 = vsel %vm1738, %v4454, 0
      %v4574 = vsel %vm1738, %v4527, 0
      %v4577 = vsel %vm1738, %v4459, 0
      %v4580 = vsel %vm1738, %v4528, 0
      %v4583 = vsel %vm1738, %v4464, 0
      %v4586 = vsel %vm1738, %v4529, 0
      %v4589 = vsel %vm1738, %v4469, 0
      %v4592 = vsel %vm1738, %v4530, 0
      %v4595 = vsel %vm1738, %v4474, 0
      %v4598 = vsel %vm1738, %v4531, 0
      %v4601 = vsel %vm1738, %v4479, 0
      %v4604 = vsel %vm1738, %v4532, 0
      %v4607 = vsel %vm1738, %v4484, 0
      %v4610 = vsel %vm1738, %v4533, 0
      %v4613 = vsel %vm1738, %v4489, 0
      %v4616 = vsel %vm1738, %v4534, 0
      %v4619 = vsel %vm1738, %v4494, 0
      %v4622 = vsel %vm1738, %v4535, 0
      %v4625 = vsel %vm1738, %v4499, 0
      %v4628 = vsel %vm1738, %v4536, 0
      %v4631 = vsel %vm1738, %v4504, 0
      %v4634 = vsel %vm1738, %v4537, 0
      %v4637 = vsel %vm1803, %v4539, 0
      %4639 = vmatprep.subr.bf16.mxu0 0
      %4640 = vmatpush1.bf16.msra.mxu0 %v4637
      %4641 = vmatprep.subr.bf16.mxu0 0
      %4642 = vmatpush1.bf16.msra.mxu0 0
      %4643 = vmatprep.subr.bf16.mxu0 0
      %4644 = vmatpush1.bf16.msra.mxu0 0
      %4645 = vmatprep.subr.bf16.mxu0 0
      %4646 = vmatpush1.bf16.msra.mxu0 0
      %4647 = vmatprep.subr.bf16.mxu0 0
      %4648 = vmatpush1.bf16.msra.mxu0 0
      %4649 = vmatprep.subr.bf16.mxu0 0
      %4650 = vmatpush1.bf16.msra.mxu0 0
      %4651 = vmatprep.subr.bf16.mxu0 0
      %4652 = vmatpush1.bf16.msra.mxu0 0
      %4653 = vmatprep.subr.bf16.mxu0 0
      %4654 = vmatpush1.bf16.msra.mxu0 0
      %4655 = vmatprep.subr.bf16.mxu0 0
      %4656 = vmatpush1.bf16.msra.mxu0 0
      %4657 = vmatprep.subr.bf16.mxu0 0
      %4658 = vmatpush1.bf16.msra.mxu0 0
      %4659 = vmatprep.subr.bf16.mxu0 0
      %4660 = vmatpush1.bf16.msra.mxu0 0
      %4661 = vmatprep.subr.bf16.mxu0 0
      %4662 = vmatpush1.bf16.msra.mxu0 0
      %4663 = vmatprep.subr.bf16.mxu0 0
      %4664 = vmatpush1.bf16.msra.mxu0 0
      %4665 = vmatprep.subr.bf16.mxu0 0
      %4666 = vmatpush1.bf16.msra.mxu0 0
      %4667 = vmatprep.subr.bf16.mxu0 0
      %4668 = vmatpush1.bf16.msra.mxu0 0
      %4669 = vmatprep.subr.bf16.mxu0 0
      %4670 = vmatpush1.bf16.msra.mxu0 0
      %4671 = vmatprep.mubr.bf16.mxu0 0
      %4672 = vmatmul.mubr.bf16.gmra.mrb[0].mxu0 %v4541
      %v4673 = vpop.f32.mrb[0].mxu0
      %v4674 = vadd.f32 0.0, %v4673
      %v4675 = vpop.f32.mrb[0].mxu0
      %v4676 = vpop.f32.mrb[0].mxu0
      %v4677 = vadd.f32 0.0, %v4676
      %v4678 = vpop.f32.mrb[0].mxu0
      %4679 = vmatprep.mubr.bf16.mxu0 0
      %4680 = vmatmul.mubr.bf16.gmra.mrb[0].mxu0 %v4544
      %v4681 = vpop.f32.mrb[0].mxu0
      %v4682 = vadd.f32 0.0, %v4681
      %v4683 = vpop.f32.mrb[0].mxu0
      %v4684 = vpop.f32.mrb[0].mxu0
      %v4685 = vadd.f32 0.0, %v4684
      %v4686 = vpop.f32.mrb[0].mxu0
      %4687 = vmatprep.mubr.bf16.mxu0 0
      %4688 = vmatmul.mubr.bf16.gmra.mrb[0].mxu0 %v4547
      %v4689 = vpop.f32.mrb[0].mxu0
      %v4690 = vadd.f32 0.0, %v4689
      %v4691 = vpop.f32.mrb[0].mxu0
      %v4692 = vpop.f32.mrb[0].mxu0
      %v4693 = vadd.f32 0.0, %v4692
      %v4694 = vpop.f32.mrb[0].mxu0
      %4695 = vmatprep.mubr.bf16.mxu0 0
      %4696 = vmatmul.mubr.bf16.gmra.mrb[0].mxu0 %v4550
      %v4697 = vpop.f32.mrb[0].mxu0
      %v4698 = vadd.f32 0.0, %v4697
      %v4699 = vpop.f32.mrb[0].mxu0
      %v4700 = vpop.f32.mrb[0].mxu0
      %v4701 = vadd.f32 0.0, %v4700
      %v4702 = vpop.f32.mrb[0].mxu0
      %4703 = vmatprep.mubr.bf16.mxu0 0
      %4704 = vmatmul.mubr.bf16.gmra.mrb[0].mxu0 %v4553
      %v4705 = vpop.f32.mrb[0].mxu0
      %v4706 = vadd.f32 0.0, %v4705
      %v4707 = vpop.f32.mrb[0].mxu0
      %v4708 = vpop.f32.mrb[0].mxu0
      %v4709 = vadd.f32 0.0, %v4708
      %v4710 = vpop.f32.mrb[0].mxu0
      %4711 = vmatprep.mubr.bf16.mxu0 0
      %4712 = vmatmul.mubr.bf16.gmra.mrb[0].mxu0 %v4556
      %v4713 = vpop.f32.mrb[0].mxu0
      %v4714 = vadd.f32 0.0, %v4713
      %v4715 = vpop.f32.mrb[0].mxu0
      %v4716 = vpop.f32.mrb[0].mxu0
      %v4717 = vadd.f32 0.0, %v4716
      %v4718 = vpop.f32.mrb[0].mxu0
      %4719 = vmatprep.mubr.bf16.mxu0 0
      %4720 = vmatmul.mubr.bf16.gmra.mrb[0].mxu0 %v4559
      %v4721 = vpop.f32.mrb[0].mxu0
      %v4722 = vadd.f32 0.0, %v4721
      %v4723 = vpop.f32.mrb[0].mxu0
      %v4724 = vpop.f32.mrb[0].mxu0
      %v4725 = vadd.f32 0.0, %v4724
      %v4726 = vpop.f32.mrb[0].mxu0
      %4727 = vmatprep.mubr.bf16.mxu0 0
      %4728 = vmatmul.mubr.bf16.gmra.mrb[0].mxu0 %v4562
      %v4729 = vpop.f32.mrb[0].mxu0
      %v4730 = vadd.f32 0.0, %v4729
      %v4731 = vpop.f32.mrb[0].mxu0
      %v4732 = vpop.f32.mrb[0].mxu0
      %v4733 = vadd.f32 0.0, %v4732
      %v4734 = vpop.f32.mrb[0].mxu0
      %4735 = vmatprep.mubr.bf16.mxu0 0
      %4736 = vmatmul.mubr.bf16.gmra.mrb[0].mxu0 %v4565
      %v4737 = vpop.f32.mrb[0].mxu0
      %v4738 = vadd.f32 0.0, %v4737
      %v4739 = vpop.f32.mrb[0].mxu0
      %v4740 = vpop.f32.mrb[0].mxu0
      %v4741 = vadd.f32 0.0, %v4740
      %v4742 = vpop.f32.mrb[0].mxu0
      %4743 = vmatprep.mubr.bf16.mxu0 0
      %4744 = vmatmul.mubr.bf16.gmra.mrb[0].mxu0 %v4568
      %v4745 = vpop.f32.mrb[0].mxu0
      %v4746 = vadd.f32 0.0, %v4745
      %v4747 = vpop.f32.mrb[0].mxu0
      %v4748 = vpop.f32.mrb[0].mxu0
      %v4749 = vadd.f32 0.0, %v4748
      %v4750 = vpop.f32.mrb[0].mxu0
      %4751 = vmatprep.mubr.bf16.mxu0 0
      %4752 = vmatmul.mubr.bf16.gmra.mrb[0].mxu0 %v4571
      %v4753 = vpop.f32.mrb[0].mxu0
      %v4754 = vadd.f32 0.0, %v4753
      %v4755 = vpop.f32.mrb[0].mxu0
      %v4756 = vpop.f32.mrb[0].mxu0
      %v4757 = vadd.f32 0.0, %v4756
      %v4758 = vpop.f32.mrb[0].mxu0
      %4759 = vmatprep.mubr.bf16.mxu0 0
      %4760 = vmatmul.mubr.bf16.gmra.mrb[0].mxu0 %v4574
      %v4761 = vpop.f32.mrb[0].mxu0
      %v4762 = vadd.f32 0.0, %v4761
      %v4763 = vpop.f32.mrb[0].mxu0
      %v4764 = vpop.f32.mrb[0].mxu0
      %v4765 = vadd.f32 0.0, %v4764
      %v4766 = vpop.f32.mrb[0].mxu0
      %4767 = vmatprep.mubr.bf16.mxu0 0
      %4768 = vmatmul.mubr.bf16.gmra.mrb[0].mxu0 %v4577
      %v4769 = vpop.f32.mrb[0].mxu0
      %v4770 = vadd.f32 0.0, %v4769
      %v4771 = vpop.f32.mrb[0].mxu0
      %v4772 = vpop.f32.mrb[0].mxu0
      %v4773 = vadd.f32 0.0, %v4772
      %v4774 = vpop.f32.mrb[0].mxu0
      %4775 = vmatprep.mubr.bf16.mxu0 0
      %4776 = vmatmul.mubr.bf16.gmra.mrb[0].mxu0 %v4580
      %v4777 = vpop.f32.mrb[0].mxu0
      %v4778 = vadd.f32 0.0, %v4777
      %v4779 = vpop.f32.mrb[0].mxu0
      %v4780 = vpop.f32.mrb[0].mxu0
      %v4781 = vadd.f32 0.0, %v4780
      %v4782 = vpop.f32.mrb[0].mxu0
      %4783 = vmatprep.mubr.bf16.mxu0 0
      %4784 = vmatmul.mubr.bf16.gmra.mrb[0].mxu0 %v4583
      %v4785 = vpop.f32.mrb[0].mxu0
      %v4786 = vadd.f32 0.0, %v4785
      %v4787 = vpop.f32.mrb[0].mxu0
      %v4788 = vpop.f32.mrb[0].mxu0
      %v4789 = vadd.f32 0.0, %v4788
      %v4790 = vpop.f32.mrb[0].mxu0
      %4791 = vmatprep.mubr.bf16.mxu0 0
      %4792 = vmatmul.mubr.bf16.gmra.mrb[0].mxu0 %v4586
      %v4793 = vpop.f32.mrb[0].mxu0
      %v4794 = vadd.f32 0.0, %v4793
      %v4795 = vpop.f32.mrb[0].mxu0
      %v4796 = vpop.f32.mrb[0].mxu0
      %v4797 = vadd.f32 0.0, %v4796
      %v4798 = vpop.f32.mrb[0].mxu0
      %4799 = vmatprep.mubr.bf16.mxu0 0
      %4800 = vmatmul.mubr.bf16.gmra.mrb[0].mxu0 %v4589
      %v4801 = vpop.f32.mrb[0].mxu0
      %v4802 = vadd.f32 0.0, %v4801
      %v4803 = vpop.f32.mrb[0].mxu0
      %v4804 = vpop.f32.mrb[0].mxu0
      %v4805 = vadd.f32 0.0, %v4804
      %v4806 = vpop.f32.mrb[0].mxu0
      %4807 = vmatprep.mubr.bf16.mxu0 0
      %4808 = vmatmul.mubr.bf16.gmra.mrb[0].mxu0 %v4592
      %v4809 = vpop.f32.mrb[0].mxu0
      %v4810 = vadd.f32 0.0, %v4809
      %v4811 = vpop.f32.mrb[0].mxu0
      %v4812 = vpop.f32.mrb[0].mxu0
      %v4813 = vadd.f32 0.0, %v4812
      %v4814 = vpop.f32.mrb[0].mxu0
      %4815 = vmatprep.mubr.bf16.mxu0 0
      %4816 = vmatmul.mubr.bf16.gmra.mrb[0].mxu0 %v4595
      %v4817 = vpop.f32.mrb[0].mxu0
      %v4818 = vadd.f32 0.0, %v4817
      %v4819 = vpop.f32.mrb[0].mxu0
      %v4820 = vpop.f32.mrb[0].mxu0
      %v4821 = vadd.f32 0.0, %v4820
      %v4822 = vpop.f32.mrb[0].mxu0
      %4823 = vmatprep.mubr.bf16.mxu0 0
      %4824 = vmatmul.mubr.bf16.gmra.mrb[0].mxu0 %v4598
      %v4825 = vpop.f32.mrb[0].mxu0
      %v4826 = vadd.f32 0.0, %v4825
      %v4827 = vpop.f32.mrb[0].mxu0
      %v4828 = vpop.f32.mrb[0].mxu0
      %v4829 = vadd.f32 0.0, %v4828
      %v4830 = vpop.f32.mrb[0].mxu0
      %4831 = vmatprep.mubr.bf16.mxu0 0
      %4832 = vmatmul.mubr.bf16.gmra.mrb[0].mxu0 %v4601
      %v4833 = vpop.f32.mrb[0].mxu0
      %v4834 = vadd.f32 0.0, %v4833
      %v4835 = vpop.f32.mrb[0].mxu0
      %v4836 = vpop.f32.mrb[0].mxu0
      %v4837 = vadd.f32 0.0, %v4836
      %v4838 = vpop.f32.mrb[0].mxu0
      %4839 = vmatprep.mubr.bf16.mxu0 0
      %4840 = vmatmul.mubr.bf16.gmra.mrb[0].mxu0 %v4604
      %v4841 = vpop.f32.mrb[0].mxu0
      %v4842 = vadd.f32 0.0, %v4841
      %v4843 = vpop.f32.mrb[0].mxu0
      %v4844 = vpop.f32.mrb[0].mxu0
      %v4845 = vadd.f32 0.0, %v4844
      %v4846 = vpop.f32.mrb[0].mxu0
      %4847 = vmatprep.mubr.bf16.mxu0 0
      %4848 = vmatmul.mubr.bf16.gmra.mrb[0].mxu0 %v4607
      %v4849 = vpop.f32.mrb[0].mxu0
      %v4850 = vadd.f32 0.0, %v4849
      %v4851 = vpop.f32.mrb[0].mxu0
      %v4852 = vpop.f32.mrb[0].mxu0
      %v4853 = vadd.f32 0.0, %v4852
      %v4854 = vpop.f32.mrb[0].mxu0
      %4855 = vmatprep.mubr.bf16.mxu0 0
      %4856 = vmatmul.mubr.bf16.gmra.mrb[0].mxu0 %v4610
      %v4857 = vpop.f32.mrb[0].mxu0
      %v4858 = vadd.f32 0.0, %v4857
      %v4859 = vpop.f32.mrb[0].mxu0
      %v4860 = vpop.f32.mrb[0].mxu0
      %v4861 = vadd.f32 0.0, %v4860
      %v4862 = vpop.f32.mrb[0].mxu0
      %4863 = vmatprep.mubr.bf16.mxu0 0
      %4864 = vmatmul.mubr.bf16.gmra.mrb[0].mxu0 %v4613
      %v4865 = vpop.f32.mrb[0].mxu0
      %v4866 = vadd.f32 0.0, %v4865
      %v4867 = vpop.f32.mrb[0].mxu0
      %v4868 = vpop.f32.mrb[0].mxu0
      %v4869 = vadd.f32 0.0, %v4868
      %v4870 = vpop.f32.mrb[0].mxu0
      %4871 = vmatprep.mubr.bf16.mxu0 0
      %4872 = vmatmul.mubr.bf16.gmra.mrb[0].mxu0 %v4616
      %v4873 = vpop.f32.mrb[0].mxu0
      %v4874 = vadd.f32 0.0, %v4873
      %v4875 = vpop.f32.mrb[0].mxu0
      %v4876 = vpop.f32.mrb[0].mxu0
      %v4877 = vadd.f32 0.0, %v4876
      %v4878 = vpop.f32.mrb[0].mxu0
      %4879 = vmatprep.mubr.bf16.mxu0 0
      %4880 = vmatmul.mubr.bf16.gmra.mrb[0].mxu0 %v4619
      %v4881 = vpop.f32.mrb[0].mxu0
      %v4882 = vadd.f32 0.0, %v4881
      %v4883 = vpop.f32.mrb[0].mxu0
      %v4884 = vpop.f32.mrb[0].mxu0
      %v4885 = vadd.f32 0.0, %v4884
      %v4886 = vpop.f32.mrb[0].mxu0
      %4887 = vmatprep.mubr.bf16.mxu0 0
      %4888 = vmatmul.mubr.bf16.gmra.mrb[0].mxu0 %v4622
      %v4889 = vpop.f32.mrb[0].mxu0
      %v4890 = vadd.f32 0.0, %v4889
      %v4891 = vpop.f32.mrb[0].mxu0
      %v4892 = vpop.f32.mrb[0].mxu0
      %v4893 = vadd.f32 0.0, %v4892
      %v4894 = vpop.f32.mrb[0].mxu0
      %4895 = vmatprep.mubr.bf16.mxu0 0
      %4896 = vmatmul.mubr.bf16.gmra.mrb[0].mxu0 %v4625
      %v4897 = vpop.f32.mrb[0].mxu0
      %v4898 = vadd.f32 0.0, %v4897
      %v4899 = vpop.f32.mrb[0].mxu0
      %v4900 = vpop.f32.mrb[0].mxu0
      %v4901 = vadd.f32 0.0, %v4900
      %v4902 = vpop.f32.mrb[0].mxu0
      %4903 = vmatprep.mubr.bf16.mxu0 0
      %4904 = vmatmul.mubr.bf16.gmra.mrb[0].mxu0 %v4628
      %v4905 = vpop.f32.mrb[0].mxu0
      %v4906 = vadd.f32 0.0, %v4905
      %v4907 = vpop.f32.mrb[0].mxu0
      %v4908 = vpop.f32.mrb[0].mxu0
      %v4909 = vadd.f32 0.0, %v4908
      %v4910 = vpop.f32.mrb[0].mxu0
      %4911 = vmatprep.mubr.bf16.mxu0 0
      %4912 = vmatmul.mubr.bf16.gmra.mrb[0].mxu0 %v4631
      %v4913 = vpop.f32.mrb[0].mxu0
      %v4914 = vadd.f32 0.0, %v4913
      %v4915 = vpop.f32.mrb[0].mxu0
      %v4916 = vpop.f32.mrb[0].mxu0
      %v4917 = vadd.f32 0.0, %v4916
      %v4918 = vpop.f32.mrb[0].mxu0
      %4919 = vmatprep.mubr.bf16.mxu0 0
      %4920 = vmatmul.mubr.bf16.gmra.mrb[0].mxu0 %v4634
      %v4921 = vpop.f32.mrb[0].mxu0
      %v4922 = vadd.f32 0.0, %v4921
      %v4923 = vpop.f32.mrb[0].mxu0
      %v4924 = vpop.f32.mrb[0].mxu0
      %v4925 = vadd.f32 0.0, %v4924
      %v4926 = vpop.f32.mrb[0].mxu0
      %4927 = vdwg.mxu0
      %v4928 = vadd.f32 %v4362, %v4674
      %v4929 = vadd.f32 %v4363, %v4677
      %v4930 = vadd.f32 %v4364, %v4682
      %v4931 = vadd.f32 %v4365, %v4685
      %v4932 = vadd.f32 %v4366, %v4690
      %v4933 = vadd.f32 %v4367, %v4693
      %v4934 = vadd.f32 %v4368, %v4698
      %v4935 = vadd.f32 %v4369, %v4701
      %v4936 = vadd.f32 %v4370, %v4706
      %v4937 = vadd.f32 %v4371, %v4709
      %v4938 = vadd.f32 %v4372, %v4714
      %v4939 = vadd.f32 %v4373, %v4717
      %v4940 = vadd.f32 %v4374, %v4722
      %v4941 = vadd.f32 %v4375, %v4725
      %v4942 = vadd.f32 %v4376, %v4730
      %v4943 = vadd.f32 %v4377, %v4733
      %v4944 = vadd.f32 %v4378, %v4738
      %v4945 = vadd.f32 %v4379, %v4741
      %v4946 = vadd.f32 %v4380, %v4746
      %v4947 = vadd.f32 %v4381, %v4749
      %v4948 = vadd.f32 %v4382, %v4754
      %v4949 = vadd.f32 %v4383, %v4757
      %v4950 = vadd.f32 %v4384, %v4762
      %v4951 = vadd.f32 %v4385, %v4765
      %v4952 = vadd.f32 %v4386, %v4770
      %v4953 = vadd.f32 %v4387, %v4773
      %v4954 = vadd.f32 %v4388, %v4778
      %v4955 = vadd.f32 %v4389, %v4781
      %v4956 = vadd.f32 %v4390, %v4786
      %v4957 = vadd.f32 %v4391, %v4789
      %v4958 = vadd.f32 %v4392, %v4794
      %v4959 = vadd.f32 %v4393, %v4797
      %v4960 = vadd.f32 %v4394, %v4802
      %v4961 = vadd.f32 %v4395, %v4805
      %v4962 = vadd.f32 %v4396, %v4810
      %v4963 = vadd.f32 %v4397, %v4813
      %v4964 = vadd.f32 %v4398, %v4818
      %v4965 = vadd.f32 %v4399, %v4821
      %v4966 = vadd.f32 %v4400, %v4826
      %v4967 = vadd.f32 %v4401, %v4829
      %v4968 = vadd.f32 %v4402, %v4834
      %v4969 = vadd.f32 %v4403, %v4837
      %v4970 = vadd.f32 %v4404, %v4842
      %v4971 = vadd.f32 %v4405, %v4845
      %v4972 = vadd.f32 %v4406, %v4850
      %v4973 = vadd.f32 %v4407, %v4853
      %v4974 = vadd.f32 %v4408, %v4858
      %v4975 = vadd.f32 %v4409, %v4861
      %v4976 = vadd.f32 %v4410, %v4866
      %v4977 = vadd.f32 %v4411, %v4869
      %v4978 = vadd.f32 %v4412, %v4874
      %v4979 = vadd.f32 %v4413, %v4877
      %v4980 = vadd.f32 %v4414, %v4882
      %v4981 = vadd.f32 %v4415, %v4885
      %v4982 = vadd.f32 %v4416, %v4890
      %v4983 = vadd.f32 %v4417, %v4893
      %v4984 = vadd.f32 %v4418, %v4898
      %v4985 = vadd.f32 %v4419, %v4901
      %v4986 = vadd.f32 %v4420, %v4906
      %v4987 = vadd.f32 %v4421, %v4909
      %v4988 = vadd.f32 %v4422, %v4914
      %v4989 = vadd.f32 %v4423, %v4917
      %v4990 = vadd.f32 %v4424, %v4922
      %v4991 = vadd.f32 %v4425, %v4925
      %s4992 = scalar_lea.vmem %s192, 32
      %v4993 = vld [vmem:[%s4992] sm:$0xf]
      %v4994 = vld [vmem:[%s4992 + $0x4] sm:$0xf]
      %v4995 = vld [vmem:[%s4992 + $0x8] sm:$0xf]
      %v4996 = vld [vmem:[%s4992 + $0xc] sm:$0xf]
      %v4997 = vld [vmem:[%s4992 + $0x10] sm:$0xf]
      %v4998 = vld [vmem:[%s4992 + $0x14] sm:$0xf]
      %v4999 = vld [vmem:[%s4992 + $0x18] sm:$0xf]
      %v5000 = vld [vmem:[%s4992 + $0x1c] sm:$0xf]
      %v5001 = vld [vmem:[%s4992 + $0x20] sm:$0xf]
      %v5002 = vld [vmem:[%s4992 + $0x24] sm:$0xf]
      %v5003 = vld [vmem:[%s4992 + $0x28] sm:$0xf]
      %v5004 = vld [vmem:[%s4992 + $0x2c] sm:$0xf]
      %v5005 = vld [vmem:[%s4992 + $0x30] sm:$0xf]
      %v5006 = vld [vmem:[%s4992 + $0x34] sm:$0xf]
      %v5007 = vld [vmem:[%s4992 + $0x38] sm:$0xf]
      %v5008 = vld [vmem:[%s4992 + $0x3c] sm:$0xf]
      %v5009 = vld [vmem:[%s4992 + $0x40] sm:$0xf]
      %v5010 = vld [vmem:[%s4992 + $0x44] sm:$0xf]
      %v5011 = vld [vmem:[%s4992 + $0x48] sm:$0xf]
      %v5012 = vld [vmem:[%s4992 + $0x4c] sm:$0xf]
      %v5013 = vld [vmem:[%s4992 + $0x50] sm:$0xf]
      %v5014 = vld [vmem:[%s4992 + $0x54] sm:$0xf]
      %v5015 = vld [vmem:[%s4992 + $0x58] sm:$0xf]
      %v5016 = vld [vmem:[%s4992 + $0x5c] sm:$0xf]
      %v5017 = vld [vmem:[%s4992 + $0x60] sm:$0xf]
      %v5018 = vld [vmem:[%s4992 + $0x64] sm:$0xf]
      %v5019 = vld [vmem:[%s4992 + $0x68] sm:$0xf]
      %v5020 = vld [vmem:[%s4992 + $0x6c] sm:$0xf]
      %v5021 = vld [vmem:[%s4992 + $0x70] sm:$0xf]
      %v5022 = vld [vmem:[%s4992 + $0x74] sm:$0xf]
      %v5023 = vld [vmem:[%s4992 + $0x78] sm:$0xf]
      %v5024 = vld [vmem:[%s4992 + $0x7c] sm:$0xf]
      %v5025 = vld [vmem:[%s4992 + $0x80] sm:$0xf]
      %v5026 = vld [vmem:[%s4992 + $0x84] sm:$0xf]
      %v5027 = vld [vmem:[%s4992 + $0x88] sm:$0xf]
      %v5028 = vld [vmem:[%s4992 + $0x8c] sm:$0xf]
      %v5029 = vld [vmem:[%s4992 + $0x90] sm:$0xf]
      %v5030 = vld [vmem:[%s4992 + $0x94] sm:$0xf]
      %v5031 = vld [vmem:[%s4992 + $0x98] sm:$0xf]
      %v5032 = vld [vmem:[%s4992 + $0x9c] sm:$0xf]
      %v5033 = vld [vmem:[%s4992 + $0xa0] sm:$0xf]
      %v5034 = vld [vmem:[%s4992 + $0xa4] sm:$0xf]
      %v5035 = vld [vmem:[%s4992 + $0xa8] sm:$0xf]
      %v5036 = vld [vmem:[%s4992 + $0xac] sm:$0xf]
      %v5037 = vld [vmem:[%s4992 + $0xb0] sm:$0xf]
      %v5038 = vld [vmem:[%s4992 + $0xb4] sm:$0xf]
      %v5039 = vld [vmem:[%s4992 + $0xb8] sm:$0xf]
      %v5040 = vld [vmem:[%s4992 + $0xbc] sm:$0xf]
      %v5041 = vld [vmem:[%s4992 + $0xc0] sm:$0xf]
      %v5042 = vld [vmem:[%s4992 + $0xc4] sm:$0xf]
      %v5043 = vld [vmem:[%s4992 + $0xc8] sm:$0xf]
      %v5044 = vld [vmem:[%s4992 + $0xcc] sm:$0xf]
      %v5045 = vld [vmem:[%s4992 + $0xd0] sm:$0xf]
      %v5046 = vld [vmem:[%s4992 + $0xd4] sm:$0xf]
      %v5047 = vld [vmem:[%s4992 + $0xd8] sm:$0xf]
      %v5048 = vld [vmem:[%s4992 + $0xdc] sm:$0xf]
      %v5049 = vld [vmem:[%s4992 + $0xe0] sm:$0xf]
      %v5050 = vld [vmem:[%s4992 + $0xe4] sm:$0xf]
      %v5051 = vld [vmem:[%s4992 + $0xe8] sm:$0xf]
      %v5052 = vld [vmem:[%s4992 + $0xec] sm:$0xf]
      %v5053 = vld [vmem:[%s4992 + $0xf0] sm:$0xf]
      %v5054 = vld [vmem:[%s4992 + $0xf4] sm:$0xf]
      %v5055 = vld [vmem:[%s4992 + $0xf8] sm:$0xf]
      %v5056 = vld [vmem:[%s4992 + $0xfc] sm:$0xf]
      %v5121 = vunpack.c.l.b16 %v4993
      %v5122 = vunpack.c.l.b16 %v4994
      %v5123 = vunpack.c.l.b16 %v4995
      %v5124 = vunpack.c.l.b16 %v4996
      %v5125 = vunpack.c.l.b16 %v4997
      %v5126 = vunpack.c.l.b16 %v4998
      %v5127 = vunpack.c.l.b16 %v4999
      %v5128 = vunpack.c.l.b16 %v5000
      %v5129 = vunpack.c.l.b16 %v5001
      %v5130 = vunpack.c.l.b16 %v5002
      %v5131 = vunpack.c.l.b16 %v5003
      %v5132 = vunpack.c.l.b16 %v5004
      %v5133 = vunpack.c.l.b16 %v5005
      %v5134 = vunpack.c.l.b16 %v5006
      %v5135 = vunpack.c.l.b16 %v5007
      %v5136 = vunpack.c.l.b16 %v5008
      %v5137 = vunpack.c.l.b16 %v5009
      %v5138 = vunpack.c.l.b16 %v5010
      %v5139 = vunpack.c.l.b16 %v5011
      %v5140 = vunpack.c.l.b16 %v5012
      %v5141 = vunpack.c.l.b16 %v5013
      %v5142 = vunpack.c.l.b16 %v5014
      %v5143 = vunpack.c.l.b16 %v5015
      %v5144 = vunpack.c.l.b16 %v5016
      %v5145 = vunpack.c.l.b16 %v5017
      %v5146 = vunpack.c.l.b16 %v5018
      %v5147 = vunpack.c.l.b16 %v5019
      %v5148 = vunpack.c.l.b16 %v5020
      %v5149 = vunpack.c.l.b16 %v5021
      %v5150 = vunpack.c.l.b16 %v5022
      %v5151 = vunpack.c.l.b16 %v5023
      %v5152 = vunpack.c.l.b16 %v5024
      %v5153 = vunpack.c.l.b16 %v5025
      %v5154 = vunpack.c.l.b16 %v5026
      %v5155 = vunpack.c.l.b16 %v5027
      %v5156 = vunpack.c.l.b16 %v5028
      %v5157 = vunpack.c.l.b16 %v5029
      %v5158 = vunpack.c.l.b16 %v5030
      %v5159 = vunpack.c.l.b16 %v5031
      %v5160 = vunpack.c.l.b16 %v5032
      %v5161 = vunpack.c.l.b16 %v5033
      %v5162 = vunpack.c.l.b16 %v5034
      %v5163 = vunpack.c.l.b16 %v5035
      %v5164 = vunpack.c.l.b16 %v5036
      %v5165 = vunpack.c.l.b16 %v5037
      %v5166 = vunpack.c.l.b16 %v5038
      %v5167 = vunpack.c.l.b16 %v5039
      %v5168 = vunpack.c.l.b16 %v5040
      %v5169 = vunpack.c.l.b16 %v5041
      %v5170 = vunpack.c.l.b16 %v5042
      %v5171 = vunpack.c.l.b16 %v5043
      %v5172 = vunpack.c.l.b16 %v5044
      %v5173 = vunpack.c.l.b16 %v5045
      %v5174 = vunpack.c.l.b16 %v5046
      %v5175 = vunpack.c.l.b16 %v5047
      %v5176 = vunpack.c.l.b16 %v5048
      %v5177 = vunpack.c.l.b16 %v5049
      %v5178 = vunpack.c.l.b16 %v5050
      %v5179 = vunpack.c.l.b16 %v5051
      %v5180 = vunpack.c.l.b16 %v5052
      %v5181 = vunpack.c.l.b16 %v5053
      %v5182 = vunpack.c.l.b16 %v5054
      %v5183 = vunpack.c.l.b16 %v5055
      %v5184 = vunpack.c.l.b16 %v5056
      %v5185 = vpack.c.b16 %v5122, %v5121
      %v5186 = vpack.c.b16 %v5124, %v5123
      %v5187 = vpack.c.b16 %v5126, %v5125
      %v5188 = vpack.c.b16 %v5128, %v5127
      %v5189 = vpack.c.b16 %v5130, %v5129
      %v5190 = vpack.c.b16 %v5132, %v5131
      %v5191 = vpack.c.b16 %v5134, %v5133
      %v5192 = vpack.c.b16 %v5136, %v5135
      %v5193 = vpack.c.b16 %v5138, %v5137
      %v5194 = vpack.c.b16 %v5140, %v5139
      %v5195 = vpack.c.b16 %v5142, %v5141
      %v5196 = vpack.c.b16 %v5144, %v5143
      %v5197 = vpack.c.b16 %v5146, %v5145
      %v5198 = vpack.c.b16 %v5148, %v5147
      %v5199 = vpack.c.b16 %v5150, %v5149
      %v5200 = vpack.c.b16 %v5152, %v5151
      %v5201 = vpack.c.b16 %v5154, %v5153
      %v5202 = vpack.c.b16 %v5156, %v5155
      %v5203 = vpack.c.b16 %v5158, %v5157
      %v5204 = vpack.c.b16 %v5160, %v5159
      %v5205 = vpack.c.b16 %v5162, %v5161
      %v5206 = vpack.c.b16 %v5164, %v5163
      %v5207 = vpack.c.b16 %v5166, %v5165
      %v5208 = vpack.c.b16 %v5168, %v5167
      %v5209 = vpack.c.b16 %v5170, %v5169
      %v5210 = vpack.c.b16 %v5172, %v5171
      %v5211 = vpack.c.b16 %v5174, %v5173
      %v5212 = vpack.c.b16 %v5176, %v5175
      %v5213 = vpack.c.b16 %v5178, %v5177
      %v5214 = vpack.c.b16 %v5180, %v5179
      %v5215 = vpack.c.b16 %v5182, %v5181
      %v5216 = vpack.c.b16 %v5184, %v5183
      %v5218 = vshrl.u32 %v5185, 16
      %v5220 = vrot.slane %v5218, 7
      %v5221 = vshll.u32 %v5185, 16
      %v5223 = vor.u32 %v5220, %v5221
      %v5225 = vshrl.u32 %v5186, 16
      %v5227 = vrot.slane %v5225, 7
      %v5228 = vshll.u32 %v5186, 16
      %v5230 = vor.u32 %v5227, %v5228
      %v5231 = vsel %vm1460, %v5220, %v5230
      %v5233 = vshrl.u32 %v5187, 16
      %v5235 = vrot.slane %v5233, 7
      %v5236 = vshll.u32 %v5187, 16
      %v5238 = vor.u32 %v5235, %v5236
      %v5240 = vshrl.u32 %v5188, 16
      %v5242 = vrot.slane %v5240, 7
      %v5243 = vshll.u32 %v5188, 16
      %v5245 = vor.u32 %v5242, %v5243
      %v5246 = vsel %vm1460, %v5235, %v5245
      %v5248 = vshrl.u32 %v5189, 16
      %v5250 = vrot.slane %v5248, 7
      %v5251 = vshll.u32 %v5189, 16
      %v5253 = vor.u32 %v5250, %v5251
      %v5255 = vshrl.u32 %v5190, 16
      %v5257 = vrot.slane %v5255, 7
      %v5258 = vshll.u32 %v5190, 16
      %v5260 = vor.u32 %v5257, %v5258
      %v5261 = vsel %vm1460, %v5250, %v5260
      %v5263 = vshrl.u32 %v5191, 16
      %v5265 = vrot.slane %v5263, 7
      %v5266 = vshll.u32 %v5191, 16
      %v5268 = vor.u32 %v5265, %v5266
      %v5270 = vshrl.u32 %v5192, 16
      %v5272 = vrot.slane %v5270, 7
      %v5273 = vshll.u32 %v5192, 16
      %v5275 = vor.u32 %v5272, %v5273
      %v5276 = vsel %vm1460, %v5265, %v5275
      %v5278 = vshrl.u32 %v5193, 16
      %v5280 = vrot.slane %v5278, 7
      %v5281 = vshll.u32 %v5193, 16
      %v5283 = vor.u32 %v5280, %v5281
      %v5285 = vshrl.u32 %v5194, 16
      %v5287 = vrot.slane %v5285, 7
      %v5288 = vshll.u32 %v5194, 16
      %v5290 = vor.u32 %v5287, %v5288
      %v5291 = vsel %vm1460, %v5280, %v5290
      %v5293 = vshrl.u32 %v5195, 16
      %v5295 = vrot.slane %v5293, 7
      %v5296 = vshll.u32 %v5195, 16
      %v5298 = vor.u32 %v5295, %v5296
      %v5300 = vshrl.u32 %v5196, 16
      %v5302 = vrot.slane %v5300, 7
      %v5303 = vshll.u32 %v5196, 16
      %v5305 = vor.u32 %v5302, %v5303
      %v5306 = vsel %vm1460, %v5295, %v5305
      %v5308 = vshrl.u32 %v5197, 16
      %v5310 = vrot.slane %v5308, 7
      %v5311 = vshll.u32 %v5197, 16
      %v5313 = vor.u32 %v5310, %v5311
      %v5315 = vshrl.u32 %v5198, 16
      %v5317 = vrot.slane %v5315, 7
      %v5318 = vshll.u32 %v5198, 16
      %v5320 = vor.u32 %v5317, %v5318
      %v5321 = vsel %vm1460, %v5310, %v5320
      %v5323 = vshrl.u32 %v5199, 16
      %v5325 = vrot.slane %v5323, 7
      %v5326 = vshll.u32 %v5199, 16
      %v5328 = vor.u32 %v5325, %v5326
      %v5330 = vshrl.u32 %v5200, 16
      %v5332 = vrot.slane %v5330, 7
      %v5333 = vshll.u32 %v5200, 16
      %v5335 = vor.u32 %v5332, %v5333
      %v5336 = vsel %vm1460, %v5325, %v5335
      %v5338 = vshrl.u32 %v5201, 16
      %v5340 = vrot.slane %v5338, 7
      %v5341 = vshll.u32 %v5201, 16
      %v5343 = vor.u32 %v5340, %v5341
      %v5345 = vshrl.u32 %v5202, 16
      %v5347 = vrot.slane %v5345, 7
      %v5348 = vshll.u32 %v5202, 16
      %v5350 = vor.u32 %v5347, %v5348
      %v5351 = vsel %vm1460, %v5340, %v5350
      %v5353 = vshrl.u32 %v5203, 16
      %v5355 = vrot.slane %v5353, 7
      %v5356 = vshll.u32 %v5203, 16
      %v5358 = vor.u32 %v5355, %v5356
      %v5360 = vshrl.u32 %v5204, 16
      %v5362 = vrot.slane %v5360, 7
      %v5363 = vshll.u32 %v5204, 16
      %v5365 = vor.u32 %v5362, %v5363
      %v5366 = vsel %vm1460, %v5355, %v5365
      %v5368 = vshrl.u32 %v5205, 16
      %v5370 = vrot.slane %v5368, 7
      %v5371 = vshll.u32 %v5205, 16
      %v5373 = vor.u32 %v5370, %v5371
      %v5375 = vshrl.u32 %v5206, 16
      %v5377 = vrot.slane %v5375, 7
      %v5378 = vshll.u32 %v5206, 16
      %v5380 = vor.u32 %v5377, %v5378
      %v5381 = vsel %vm1460, %v5370, %v5380
      %v5383 = vshrl.u32 %v5207, 16
      %v5385 = vrot.slane %v5383, 7
      %v5386 = vshll.u32 %v5207, 16
      %v5388 = vor.u32 %v5385, %v5386
      %v5390 = vshrl.u32 %v5208, 16
      %v5392 = vrot.slane %v5390, 7
      %v5393 = vshll.u32 %v5208, 16
      %v5395 = vor.u32 %v5392, %v5393
      %v5396 = vsel %vm1460, %v5385, %v5395
      %v5398 = vshrl.u32 %v5209, 16
      %v5400 = vrot.slane %v5398, 7
      %v5401 = vshll.u32 %v5209, 16
      %v5403 = vor.u32 %v5400, %v5401
      %v5405 = vshrl.u32 %v5210, 16
      %v5407 = vrot.slane %v5405, 7
      %v5408 = vshll.u32 %v5210, 16
      %v5410 = vor.u32 %v5407, %v5408
      %v5411 = vsel %vm1460, %v5400, %v5410
      %v5413 = vshrl.u32 %v5211, 16
      %v5415 = vrot.slane %v5413, 7
      %v5416 = vshll.u32 %v5211, 16
      %v5418 = vor.u32 %v5415, %v5416
      %v5420 = vshrl.u32 %v5212, 16
      %v5422 = vrot.slane %v5420, 7
      %v5423 = vshll.u32 %v5212, 16
      %v5425 = vor.u32 %v5422, %v5423
      %v5426 = vsel %vm1460, %v5415, %v5425
      %v5428 = vshrl.u32 %v5213, 16
      %v5430 = vrot.slane %v5428, 7
      %v5431 = vshll.u32 %v5213, 16
      %v5433 = vor.u32 %v5430, %v5431
      %v5435 = vshrl.u32 %v5214, 16
      %v5437 = vrot.slane %v5435, 7
      %v5438 = vshll.u32 %v5214, 16
      %v5440 = vor.u32 %v5437, %v5438
      %v5441 = vsel %vm1460, %v5430, %v5440
      %v5443 = vshrl.u32 %v5215, 16
      %v5445 = vrot.slane %v5443, 7
      %v5446 = vshll.u32 %v5215, 16
      %v5448 = vor.u32 %v5445, %v5446
      %v5450 = vshrl.u32 %v5216, 16
      %v5452 = vrot.slane %v5450, 7
      %v5453 = vshll.u32 %v5216, 16
      %v5455 = vor.u32 %v5452, %v5453
      %v5456 = vsel %vm1460, %v5445, %v5455
      %v5473 = vsel %vm1718, 0, %v5223
      %v5474 = vsel %vm1718, 0, %v5238
      %v5475 = vsel %vm1718, 0, %v5253
      %v5476 = vsel %vm1718, 0, %v5268
      %v5477 = vsel %vm1718, 0, %v5283
      %v5478 = vsel %vm1718, 0, %v5298
      %v5479 = vsel %vm1718, 0, %v5313
      %v5480 = vsel %vm1718, 0, %v5328
      %v5481 = vsel %vm1718, 0, %v5343
      %v5482 = vsel %vm1718, 0, %v5358
      %v5483 = vsel %vm1718, 0, %v5373
      %v5484 = vsel %vm1718, 0, %v5388
      %v5485 = vsel %vm1718, 0, %v5403
      %v5486 = vsel %vm1718, 0, %v5418
      %v5487 = vsel %vm1718, 0, %v5433
      %v5488 = vsel %vm1718, 0, %v5448
      %s5489 = scalar_lea.vmem %s1, 24
      %v5490 = vld [vmem:[%s5489] sm:$0xf]
      %v5492 = vsel %vm1738, %v5473, 0
      %v5495 = vsel %vm1738, %v5231, 0
      %v5498 = vsel %vm1738, %v5474, 0
      %v5501 = vsel %vm1738, %v5246, 0
      %v5504 = vsel %vm1738, %v5475, 0
      %v5507 = vsel %vm1738, %v5261, 0
      %v5510 = vsel %vm1738, %v5476, 0
      %v5513 = vsel %vm1738, %v5276, 0
      %v5516 = vsel %vm1738, %v5477, 0
      %v5519 = vsel %vm1738, %v5291, 0
      %v5522 = vsel %vm1738, %v5478, 0
      %v5525 = vsel %vm1738, %v5306, 0
      %v5528 = vsel %vm1738, %v5479, 0
      %v5531 = vsel %vm1738, %v5321, 0
      %v5534 = vsel %vm1738, %v5480, 0
      %v5537 = vsel %vm1738, %v5336, 0
      %v5540 = vsel %vm1738, %v5481, 0
      %v5543 = vsel %vm1738, %v5351, 0
      %v5546 = vsel %vm1738, %v5482, 0
      %v5549 = vsel %vm1738, %v5366, 0
      %v5552 = vsel %vm1738, %v5483, 0
      %v5555 = vsel %vm1738, %v5381, 0
      %v5558 = vsel %vm1738, %v5484, 0
      %v5561 = vsel %vm1738, %v5396, 0
      %v5564 = vsel %vm1738, %v5485, 0
      %v5567 = vsel %vm1738, %v5411, 0
      %v5570 = vsel %vm1738, %v5486, 0
      %v5573 = vsel %vm1738, %v5426, 0
      %v5576 = vsel %vm1738, %v5487, 0
      %v5579 = vsel %vm1738, %v5441, 0
      %v5582 = vsel %vm1738, %v5488, 0
      %v5585 = vsel %vm1738, %v5456, 0
      %v5588 = vsel %vm1803, %v5490, 0
      %5590 = vmatprep.subr.bf16.mxu0 0
      %5591 = vmatpush1.bf16.msra.mxu0 %v5588
      %5592 = vmatprep.subr.bf16.mxu0 0
      %5593 = vmatpush1.bf16.msra.mxu0 0
      %5594 = vmatprep.subr.bf16.mxu0 0
      %5595 = vmatpush1.bf16.msra.mxu0 0
      %5596 = vmatprep.subr.bf16.mxu0 0
      %5597 = vmatpush1.bf16.msra.mxu0 0
      %5598 = vmatprep.subr.bf16.mxu0 0
      %5599 = vmatpush1.bf16.msra.mxu0 0
      %5600 = vmatprep.subr.bf16.mxu0 0
      %5601 = vmatpush1.bf16.msra.mxu0 0
      %5602 = vmatprep.subr.bf16.mxu0 0
      %5603 = vmatpush1.bf16.msra.mxu0 0
      %5604 = vmatprep.subr.bf16.mxu0 0
      %5605 = vmatpush1.bf16.msra.mxu0 0
      %5606 = vmatprep.subr.bf16.mxu0 0
      %5607 = vmatpush1.bf16.msra.mxu0 0
      %5608 = vmatprep.subr.bf16.mxu0 0
      %5609 = vmatpush1.bf16.msra.mxu0 0
      %5610 = vmatprep.subr.bf16.mxu0 0
      %5611 = vmatpush1.bf16.msra.mxu0 0
      %5612 = vmatprep.subr.bf16.mxu0 0
      %5613 = vmatpush1.bf16.msra.mxu0 0
      %5614 = vmatprep.subr.bf16.mxu0 0
      %5615 = vmatpush1.bf16.msra.mxu0 0
      %5616 = vmatprep.subr.bf16.mxu0 0
      %5617 = vmatpush1.bf16.msra.mxu0 0
      %5618 = vmatprep.subr.bf16.mxu0 0
      %5619 = vmatpush1.bf16.msra.mxu0 0
      %5620 = vmatprep.subr.bf16.mxu0 0
      %5621 = vmatpush1.bf16.msra.mxu0 0
      %5622 = vmatprep.mubr.bf16.mxu0 0
      %5623 = vmatmul.mubr.bf16.gmra.mrb[0].mxu0 %v5492
      %v5624 = vpop.f32.mrb[0].mxu0
      %v5625 = vadd.f32 0.0, %v5624
      %v5626 = vpop.f32.mrb[0].mxu0
      %v5627 = vpop.f32.mrb[0].mxu0
      %v5628 = vadd.f32 0.0, %v5627
      %v5629 = vpop.f32.mrb[0].mxu0
      %5630 = vmatprep.mubr.bf16.mxu0 0
      %5631 = vmatmul.mubr.bf16.gmra.mrb[0].mxu0 %v5495
      %v5632 = vpop.f32.mrb[0].mxu0
      %v5633 = vadd.f32 0.0, %v5632
      %v5634 = vpop.f32.mrb[0].mxu0
      %v5635 = vpop.f32.mrb[0].mxu0
      %v5636 = vadd.f32 0.0, %v5635
      %v5637 = vpop.f32.mrb[0].mxu0
      %5638 = vmatprep.mubr.bf16.mxu0 0
      %5639 = vmatmul.mubr.bf16.gmra.mrb[0].mxu0 %v5498
      %v5640 = vpop.f32.mrb[0].mxu0
      %v5641 = vadd.f32 0.0, %v5640
      %v5642 = vpop.f32.mrb[0].mxu0
      %v5643 = vpop.f32.mrb[0].mxu0
      %v5644 = vadd.f32 0.0, %v5643
      %v5645 = vpop.f32.mrb[0].mxu0
      %5646 = vmatprep.mubr.bf16.mxu0 0
      %5647 = vmatmul.mubr.bf16.gmra.mrb[0].mxu0 %v5501
      %v5648 = vpop.f32.mrb[0].mxu0
      %v5649 = vadd.f32 0.0, %v5648
      %v5650 = vpop.f32.mrb[0].mxu0
      %v5651 = vpop.f32.mrb[0].mxu0
      %v5652 = vadd.f32 0.0, %v5651
      %v5653 = vpop.f32.mrb[0].mxu0
      %5654 = vmatprep.mubr.bf16.mxu0 0
      %5655 = vmatmul.mubr.bf16.gmra.mrb[0].mxu0 %v5504
      %v5656 = vpop.f32.mrb[0].mxu0
      %v5657 = vadd.f32 0.0, %v5656
      %v5658 = vpop.f32.mrb[0].mxu0
      %v5659 = vpop.f32.mrb[0].mxu0
      %v5660 = vadd.f32 0.0, %v5659
      %v5661 = vpop.f32.mrb[0].mxu0
      %5662 = vmatprep.mubr.bf16.mxu0 0
      %5663 = vmatmul.mubr.bf16.gmra.mrb[0].mxu0 %v5507
      %v5664 = vpop.f32.mrb[0].mxu0
      %v5665 = vadd.f32 0.0, %v5664
      %v5666 = vpop.f32.mrb[0].mxu0
      %v5667 = vpop.f32.mrb[0].mxu0
      %v5668 = vadd.f32 0.0, %v5667
      %v5669 = vpop.f32.mrb[0].mxu0
      %5670 = vmatprep.mubr.bf16.mxu0 0
      %5671 = vmatmul.mubr.bf16.gmra.mrb[0].mxu0 %v5510
      %v5672 = vpop.f32.mrb[0].mxu0
      %v5673 = vadd.f32 0.0, %v5672
      %v5674 = vpop.f32.mrb[0].mxu0
      %v5675 = vpop.f32.mrb[0].mxu0
      %v5676 = vadd.f32 0.0, %v5675
      %v5677 = vpop.f32.mrb[0].mxu0
      %5678 = vmatprep.mubr.bf16.mxu0 0
      %5679 = vmatmul.mubr.bf16.gmra.mrb[0].mxu0 %v5513
      %v5680 = vpop.f32.mrb[0].mxu0
      %v5681 = vadd.f32 0.0, %v5680
      %v5682 = vpop.f32.mrb[0].mxu0
      %v5683 = vpop.f32.mrb[0].mxu0
      %v5684 = vadd.f32 0.0, %v5683
      %v5685 = vpop.f32.mrb[0].mxu0
      %5686 = vmatprep.mubr.bf16.mxu0 0
      %5687 = vmatmul.mubr.bf16.gmra.mrb[0].mxu0 %v5516
      %v5688 = vpop.f32.mrb[0].mxu0
      %v5689 = vadd.f32 0.0, %v5688
      %v5690 = vpop.f32.mrb[0].mxu0
      %v5691 = vpop.f32.mrb[0].mxu0
      %v5692 = vadd.f32 0.0, %v5691
      %v5693 = vpop.f32.mrb[0].mxu0
      %5694 = vmatprep.mubr.bf16.mxu0 0
      %5695 = vmatmul.mubr.bf16.gmra.mrb[0].mxu0 %v5519
      %v5696 = vpop.f32.mrb[0].mxu0
      %v5697 = vadd.f32 0.0, %v5696
      %v5698 = vpop.f32.mrb[0].mxu0
      %v5699 = vpop.f32.mrb[0].mxu0
      %v5700 = vadd.f32 0.0, %v5699
      %v5701 = vpop.f32.mrb[0].mxu0
      %5702 = vmatprep.mubr.bf16.mxu0 0
      %5703 = vmatmul.mubr.bf16.gmra.mrb[0].mxu0 %v5522
      %v5704 = vpop.f32.mrb[0].mxu0
      %v5705 = vadd.f32 0.0, %v5704
      %v5706 = vpop.f32.mrb[0].mxu0
      %v5707 = vpop.f32.mrb[0].mxu0
      %v5708 = vadd.f32 0.0, %v5707
      %v5709 = vpop.f32.mrb[0].mxu0
      %5710 = vmatprep.mubr.bf16.mxu0 0
      %5711 = vmatmul.mubr.bf16.gmra.mrb[0].mxu0 %v5525
      %v5712 = vpop.f32.mrb[0].mxu0
      %v5713 = vadd.f32 0.0, %v5712
      %v5714 = vpop.f32.mrb[0].mxu0
      %v5715 = vpop.f32.mrb[0].mxu0
      %v5716 = vadd.f32 0.0, %v5715
      %v5717 = vpop.f32.mrb[0].mxu0
      %5718 = vmatprep.mubr.bf16.mxu0 0
      %5719 = vmatmul.mubr.bf16.gmra.mrb[0].mxu0 %v5528
      %v5720 = vpop.f32.mrb[0].mxu0
      %v5721 = vadd.f32 0.0, %v5720
      %v5722 = vpop.f32.mrb[0].mxu0
      %v5723 = vpop.f32.mrb[0].mxu0
      %v5724 = vadd.f32 0.0, %v5723
      %v5725 = vpop.f32.mrb[0].mxu0
      %5726 = vmatprep.mubr.bf16.mxu0 0
      %5727 = vmatmul.mubr.bf16.gmra.mrb[0].mxu0 %v5531
      %v5728 = vpop.f32.mrb[0].mxu0
      %v5729 = vadd.f32 0.0, %v5728
      %v5730 = vpop.f32.mrb[0].mxu0
      %v5731 = vpop.f32.mrb[0].mxu0
      %v5732 = vadd.f32 0.0, %v5731
      %v5733 = vpop.f32.mrb[0].mxu0
      %5734 = vmatprep.mubr.bf16.mxu0 0
      %5735 = vmatmul.mubr.bf16.gmra.mrb[0].mxu0 %v5534
      %v5736 = vpop.f32.mrb[0].mxu0
      %v5737 = vadd.f32 0.0, %v5736
      %v5738 = vpop.f32.mrb[0].mxu0
      %v5739 = vpop.f32.mrb[0].mxu0
      %v5740 = vadd.f32 0.0, %v5739
      %v5741 = vpop.f32.mrb[0].mxu0
      %5742 = vmatprep.mubr.bf16.mxu0 0
      %5743 = vmatmul.mubr.bf16.gmra.mrb[0].mxu0 %v5537
      %v5744 = vpop.f32.mrb[0].mxu0
      %v5745 = vadd.f32 0.0, %v5744
      %v5746 = vpop.f32.mrb[0].mxu0
      %v5747 = vpop.f32.mrb[0].mxu0
      %v5748 = vadd.f32 0.0, %v5747
      %v5749 = vpop.f32.mrb[0].mxu0
      %5750 = vmatprep.mubr.bf16.mxu0 0
      %5751 = vmatmul.mubr.bf16.gmra.mrb[0].mxu0 %v5540
      %v5752 = vpop.f32.mrb[0].mxu0
      %v5753 = vadd.f32 0.0, %v5752
      %v5754 = vpop.f32.mrb[0].mxu0
      %v5755 = vpop.f32.mrb[0].mxu0
      %v5756 = vadd.f32 0.0, %v5755
      %v5757 = vpop.f32.mrb[0].mxu0
      %5758 = vmatprep.mubr.bf16.mxu0 0
      %5759 = vmatmul.mubr.bf16.gmra.mrb[0].mxu0 %v5543
      %v5760 = vpop.f32.mrb[0].mxu0
      %v5761 = vadd.f32 0.0, %v5760
      %v5762 = vpop.f32.mrb[0].mxu0
      %v5763 = vpop.f32.mrb[0].mxu0
      %v5764 = vadd.f32 0.0, %v5763
      %v5765 = vpop.f32.mrb[0].mxu0
      %5766 = vmatprep.mubr.bf16.mxu0 0
      %5767 = vmatmul.mubr.bf16.gmra.mrb[0].mxu0 %v5546
      %v5768 = vpop.f32.mrb[0].mxu0
      %v5769 = vadd.f32 0.0, %v5768
      %v5770 = vpop.f32.mrb[0].mxu0
      %v5771 = vpop.f32.mrb[0].mxu0
      %v5772 = vadd.f32 0.0, %v5771
      %v5773 = vpop.f32.mrb[0].mxu0
      %5774 = vmatprep.mubr.bf16.mxu0 0
      %5775 = vmatmul.mubr.bf16.gmra.mrb[0].mxu0 %v5549
      %v5776 = vpop.f32.mrb[0].mxu0
      %v5777 = vadd.f32 0.0, %v5776
      %v5778 = vpop.f32.mrb[0].mxu0
      %v5779 = vpop.f32.mrb[0].mxu0
      %v5780 = vadd.f32 0.0, %v5779
      %v5781 = vpop.f32.mrb[0].mxu0
      %5782 = vmatprep.mubr.bf16.mxu0 0
      %5783 = vmatmul.mubr.bf16.gmra.mrb[0].mxu0 %v5552
      %v5784 = vpop.f32.mrb[0].mxu0
      %v5785 = vadd.f32 0.0, %v5784
      %v5786 = vpop.f32.mrb[0].mxu0
      %v5787 = vpop.f32.mrb[0].mxu0
      %v5788 = vadd.f32 0.0, %v5787
      %v5789 = vpop.f32.mrb[0].mxu0
      %5790 = vmatprep.mubr.bf16.mxu0 0
      %5791 = vmatmul.mubr.bf16.gmra.mrb[0].mxu0 %v5555
      %v5792 = vpop.f32.mrb[0].mxu0
      %v5793 = vadd.f32 0.0, %v5792
      %v5794 = vpop.f32.mrb[0].mxu0
      %v5795 = vpop.f32.mrb[0].mxu0
      %v5796 = vadd.f32 0.0, %v5795
      %v5797 = vpop.f32.mrb[0].mxu0
      %5798 = vmatprep.mubr.bf16.mxu0 0
      %5799 = vmatmul.mubr.bf16.gmra.mrb[0].mxu0 %v5558
      %v5800 = vpop.f32.mrb[0].mxu0
      %v5801 = vadd.f32 0.0, %v5800
      %v5802 = vpop.f32.mrb[0].mxu0
      %v5803 = vpop.f32.mrb[0].mxu0
      %v5804 = vadd.f32 0.0, %v5803
      %v5805 = vpop.f32.mrb[0].mxu0
      %5806 = vmatprep.mubr.bf16.mxu0 0
      %5807 = vmatmul.mubr.bf16.gmra.mrb[0].mxu0 %v5561
      %v5808 = vpop.f32.mrb[0].mxu0
      %v5809 = vadd.f32 0.0, %v5808
      %v5810 = vpop.f32.mrb[0].mxu0
      %v5811 = vpop.f32.mrb[0].mxu0
      %v5812 = vadd.f32 0.0, %v5811
      %v5813 = vpop.f32.mrb[0].mxu0
      %5814 = vmatprep.mubr.bf16.mxu0 0
      %5815 = vmatmul.mubr.bf16.gmra.mrb[0].mxu0 %v5564
      %v5816 = vpop.f32.mrb[0].mxu0
      %v5817 = vadd.f32 0.0, %v5816
      %v5818 = vpop.f32.mrb[0].mxu0
      %v5819 = vpop.f32.mrb[0].mxu0
      %v5820 = vadd.f32 0.0, %v5819
      %v5821 = vpop.f32.mrb[0].mxu0
      %5822 = vmatprep.mubr.bf16.mxu0 0
      %5823 = vmatmul.mubr.bf16.gmra.mrb[0].mxu0 %v5567
      %v5824 = vpop.f32.mrb[0].mxu0
      %v5825 = vadd.f32 0.0, %v5824
      %v5826 = vpop.f32.mrb[0].mxu0
      %v5827 = vpop.f32.mrb[0].mxu0
      %v5828 = vadd.f32 0.0, %v5827
      %v5829 = vpop.f32.mrb[0].mxu0
      %5830 = vmatprep.mubr.bf16.mxu0 0
      %5831 = vmatmul.mubr.bf16.gmra.mrb[0].mxu0 %v5570
      %v5832 = vpop.f32.mrb[0].mxu0
      %v5833 = vadd.f32 0.0, %v5832
      %v5834 = vpop.f32.mrb[0].mxu0
      %v5835 = vpop.f32.mrb[0].mxu0
      %v5836 = vadd.f32 0.0, %v5835
      %v5837 = vpop.f32.mrb[0].mxu0
      %5838 = vmatprep.mubr.bf16.mxu0 0
      %5839 = vmatmul.mubr.bf16.gmra.mrb[0].mxu0 %v5573
      %v5840 = vpop.f32.mrb[0].mxu0
      %v5841 = vadd.f32 0.0, %v5840
      %v5842 = vpop.f32.mrb[0].mxu0
      %v5843 = vpop.f32.mrb[0].mxu0
      %v5844 = vadd.f32 0.0, %v5843
      %v5845 = vpop.f32.mrb[0].mxu0
      %5846 = vmatprep.mubr.bf16.mxu0 0
      %5847 = vmatmul.mubr.bf16.gmra.mrb[0].mxu0 %v5576
      %v5848 = vpop.f32.mrb[0].mxu0
      %v5849 = vadd.f32 0.0, %v5848
      %v5850 = vpop.f32.mrb[0].mxu0
      %v5851 = vpop.f32.mrb[0].mxu0
      %v5852 = vadd.f32 0.0, %v5851
      %v5853 = vpop.f32.mrb[0].mxu0
      %5854 = vmatprep.mubr.bf16.mxu0 0
      %5855 = vmatmul.mubr.bf16.gmra.mrb[0].mxu0 %v5579
      %v5856 = vpop.f32.mrb[0].mxu0
      %v5857 = vadd.f32 0.0, %v5856
      %v5858 = vpop.f32.mrb[0].mxu0
      %v5859 = vpop.f32.mrb[0].mxu0
      %v5860 = vadd.f32 0.0, %v5859
      %v5861 = vpop.f32.mrb[0].mxu0
      %5862 = vmatprep.mubr.bf16.mxu0 0
      %5863 = vmatmul.mubr.bf16.gmra.mrb[0].mxu0 %v5582
      %v5864 = vpop.f32.mrb[0].mxu0
      %v5865 = vadd.f32 0.0, %v5864
      %v5866 = vpop.f32.mrb[0].mxu0
      %v5867 = vpop.f32.mrb[0].mxu0
      %v5868 = vadd.f32 0.0, %v5867
      %v5869 = vpop.f32.mrb[0].mxu0
      %5870 = vmatprep.mubr.bf16.mxu0 0
      %5871 = vmatmul.mubr.bf16.gmra.mrb[0].mxu0 %v5585
      %v5872 = vpop.f32.mrb[0].mxu0
      %v5873 = vadd.f32 0.0, %v5872
      %v5874 = vpop.f32.mrb[0].mxu0
      %v5875 = vpop.f32.mrb[0].mxu0
      %v5876 = vadd.f32 0.0, %v5875
      %v5877 = vpop.f32.mrb[0].mxu0
      %5878 = vdwg.mxu0
      %v5879 = vadd.f32 %v4928, %v5625
      %v5880 = vadd.f32 %v4929, %v5628
      %v5881 = vadd.f32 %v4930, %v5633
      %v5882 = vadd.f32 %v4931, %v5636
      %v5883 = vadd.f32 %v4932, %v5641
      %v5884 = vadd.f32 %v4933, %v5644
      %v5885 = vadd.f32 %v4934, %v5649
      %v5886 = vadd.f32 %v4935, %v5652
      %v5887 = vadd.f32 %v4936, %v5657
      %v5888 = vadd.f32 %v4937, %v5660
      %v5889 = vadd.f32 %v4938, %v5665
      %v5890 = vadd.f32 %v4939, %v5668
      %v5891 = vadd.f32 %v4940, %v5673
      %v5892 = vadd.f32 %v4941, %v5676
      %v5893 = vadd.f32 %v4942, %v5681
      %v5894 = vadd.f32 %v4943, %v5684
      %v5895 = vadd.f32 %v4944, %v5689
      %v5896 = vadd.f32 %v4945, %v5692
      %v5897 = vadd.f32 %v4946, %v5697
      %v5898 = vadd.f32 %v4947, %v5700
      %v5899 = vadd.f32 %v4948, %v5705
      %v5900 = vadd.f32 %v4949, %v5708
      %v5901 = vadd.f32 %v4950, %v5713
      %v5902 = vadd.f32 %v4951, %v5716
      %v5903 = vadd.f32 %v4952, %v5721
      %v5904 = vadd.f32 %v4953, %v5724
      %v5905 = vadd.f32 %v4954, %v5729
      %v5906 = vadd.f32 %v4955, %v5732
      %v5907 = vadd.f32 %v4956, %v5737
      %v5908 = vadd.f32 %v4957, %v5740
      %v5909 = vadd.f32 %v4958, %v5745
      %v5910 = vadd.f32 %v4959, %v5748
      %v5911 = vadd.f32 %v4960, %v5753
      %v5912 = vadd.f32 %v4961, %v5756
      %v5913 = vadd.f32 %v4962, %v5761
      %v5914 = vadd.f32 %v4963, %v5764
      %v5915 = vadd.f32 %v4964, %v5769
      %v5916 = vadd.f32 %v4965, %v5772
      %v5917 = vadd.f32 %v4966, %v5777
      %v5918 = vadd.f32 %v4967, %v5780
      %v5919 = vadd.f32 %v4968, %v5785
      %v5920 = vadd.f32 %v4969, %v5788
      %v5921 = vadd.f32 %v4970, %v5793
      %v5922 = vadd.f32 %v4971, %v5796
      %v5923 = vadd.f32 %v4972, %v5801
      %v5924 = vadd.f32 %v4973, %v5804
      %v5925 = vadd.f32 %v4974, %v5809
      %v5926 = vadd.f32 %v4975, %v5812
      %v5927 = vadd.f32 %v4976, %v5817
      %v5928 = vadd.f32 %v4977, %v5820
      %v5929 = vadd.f32 %v4978, %v5825
      %v5930 = vadd.f32 %v4979, %v5828
      %v5931 = vadd.f32 %v4980, %v5833
      %v5932 = vadd.f32 %v4981, %v5836
      %v5933 = vadd.f32 %v4982, %v5841
      %v5934 = vadd.f32 %v4983, %v5844
      %v5935 = vadd.f32 %v4984, %v5849
      %v5936 = vadd.f32 %v4985, %v5852
      %v5937 = vadd.f32 %v4986, %v5857
      %v5938 = vadd.f32 %v4987, %v5860
      %v5939 = vadd.f32 %v4988, %v5865
      %v5940 = vadd.f32 %v4989, %v5868
      %v5941 = vadd.f32 %v4990, %v5873
      %v5942 = vadd.f32 %v4991, %v5876
      %s5943 = scalar_lea.vmem %s1, 28
      %v5944 = vld [vmem:[%s5943] sm:$0xf]
      %v5945 = vsel %vm1738, %v5185, 0
      %v5947 = vsel %vm1738, %v5186, 0
      %v5949 = vsel %vm1738, %v5187, 0
      %v5951 = vsel %vm1738, %v5188, 0
      %v5953 = vsel %vm1738, %v5189, 0
      %v5955 = vsel %vm1738, %v5190, 0
      %v5957 = vsel %vm1738, %v5191, 0
      %v5959 = vsel %vm1738, %v5192, 0
      %v5961 = vsel %vm1738, %v5193, 0
      %v5963 = vsel %vm1738, %v5194, 0
      %v5965 = vsel %vm1738, %v5195, 0
      %v5967 = vsel %vm1738, %v5196, 0
      %v5969 = vsel %vm1738, %v5197, 0
      %v5971 = vsel %vm1738, %v5198, 0
      %v5973 = vsel %vm1738, %v5199, 0
      %v5975 = vsel %vm1738, %v5200, 0
      %v5977 = vsel %vm1738, %v5201, 0
      %v5979 = vsel %vm1738, %v5202, 0
      %v5981 = vsel %vm1738, %v5203, 0
      %v5983 = vsel %vm1738, %v5204, 0
      %v5985 = vsel %vm1738, %v5205, 0
      %v5987 = vsel %vm1738, %v5206, 0
      %v5989 = vsel %vm1738, %v5207, 0
      %v5991 = vsel %vm1738, %v5208, 0
      %v5993 = vsel %vm1738, %v5209, 0
      %v5995 = vsel %vm1738, %v5210, 0
      %v5997 = vsel %vm1738, %v5211, 0
      %v5999 = vsel %vm1738, %v5212, 0
      %v6001 = vsel %vm1738, %v5213, 0
      %v6003 = vsel %vm1738, %v5214, 0
      %v6005 = vsel %vm1738, %v5215, 0
      %v6007 = vsel %vm1738, %v5216, 0
      %v6010 = vsel %vm1803, %v5944, 0
      %6012 = vmatprep.subr.bf16.mxu0 0
      %6013 = vmatpush1.bf16.msra.mxu0 %v6010
      %6014 = vmatprep.subr.bf16.mxu0 0
      %6015 = vmatpush1.bf16.msra.mxu0 0
      %6016 = vmatprep.subr.bf16.mxu0 0
      %6017 = vmatpush1.bf16.msra.mxu0 0
      %6018 = vmatprep.subr.bf16.mxu0 0
      %6019 = vmatpush1.bf16.msra.mxu0 0
      %6020 = vmatprep.subr.bf16.mxu0 0
      %6021 = vmatpush1.bf16.msra.mxu0 0
      %6022 = vmatprep.subr.bf16.mxu0 0
      %6023 = vmatpush1.bf16.msra.mxu0 0
      %6024 = vmatprep.subr.bf16.mxu0 0
      %6025 = vmatpush1.bf16.msra.mxu0 0
      %6026 = vmatprep.subr.bf16.mxu0 0
      %6027 = vmatpush1.bf16.msra.mxu0 0
      %6028 = vmatprep.subr.bf16.mxu0 0
      %6029 = vmatpush1.bf16.msra.mxu0 0
      %6030 = vmatprep.subr.bf16.mxu0 0
      %6031 = vmatpush1.bf16.msra.mxu0 0
      %6032 = vmatprep.subr.bf16.mxu0 0
      %6033 = vmatpush1.bf16.msra.mxu0 0
      %6034 = vmatprep.subr.bf16.mxu0 0
      %6035 = vmatpush1.bf16.msra.mxu0 0
      %6036 = vmatprep.subr.bf16.mxu0 0
      %6037 = vmatpush1.bf16.msra.mxu0 0
      %6038 = vmatprep.subr.bf16.mxu0 0
      %6039 = vmatpush1.bf16.msra.mxu0 0
      %6040 = vmatprep.subr.bf16.mxu0 0
      %6041 = vmatpush1.bf16.msra.mxu0 0
      %6042 = vmatprep.subr.bf16.mxu0 0
      %6043 = vmatpush1.bf16.msra.mxu0 0
      %6044 = vmatprep.mubr.bf16.mxu0 0
      %6045 = vmatmul.mubr.bf16.gmra.mrb[0].mxu0 %v5945
      %v6046 = vpop.f32.mrb[0].mxu0
      %v6047 = vadd.f32 0.0, %v6046
      %v6048 = vpop.f32.mrb[0].mxu0
      %v6049 = vpop.f32.mrb[0].mxu0
      %v6050 = vadd.f32 0.0, %v6049
      %v6051 = vpop.f32.mrb[0].mxu0
      %6052 = vmatprep.mubr.bf16.mxu0 0
      %6053 = vmatmul.mubr.bf16.gmra.mrb[0].mxu0 %v5947
      %v6054 = vpop.f32.mrb[0].mxu0
      %v6055 = vadd.f32 0.0, %v6054
      %v6056 = vpop.f32.mrb[0].mxu0
      %v6057 = vpop.f32.mrb[0].mxu0
      %v6058 = vadd.f32 0.0, %v6057
      %v6059 = vpop.f32.mrb[0].mxu0
      %6060 = vmatprep.mubr.bf16.mxu0 0
      %6061 = vmatmul.mubr.bf16.gmra.mrb[0].mxu0 %v5949
      %v6062 = vpop.f32.mrb[0].mxu0
      %v6063 = vadd.f32 0.0, %v6062
      %v6064 = vpop.f32.mrb[0].mxu0
      %v6065 = vpop.f32.mrb[0].mxu0
      %v6066 = vadd.f32 0.0, %v6065
      %v6067 = vpop.f32.mrb[0].mxu0
      %6068 = vmatprep.mubr.bf16.mxu0 0
      %6069 = vmatmul.mubr.bf16.gmra.mrb[0].mxu0 %v5951
      %v6070 = vpop.f32.mrb[0].mxu0
      %v6071 = vadd.f32 0.0, %v6070
      %v6072 = vpop.f32.mrb[0].mxu0
      %v6073 = vpop.f32.mrb[0].mxu0
      %v6074 = vadd.f32 0.0, %v6073
      %v6075 = vpop.f32.mrb[0].mxu0
      %6076 = vmatprep.mubr.bf16.mxu0 0
      %6077 = vmatmul.mubr.bf16.gmra.mrb[0].mxu0 %v5953
      %v6078 = vpop.f32.mrb[0].mxu0
      %v6079 = vadd.f32 0.0, %v6078
      %v6080 = vpop.f32.mrb[0].mxu0
      %v6081 = vpop.f32.mrb[0].mxu0
      %v6082 = vadd.f32 0.0, %v6081
      %v6083 = vpop.f32.mrb[0].mxu0
      %6084 = vmatprep.mubr.bf16.mxu0 0
      %6085 = vmatmul.mubr.bf16.gmra.mrb[0].mxu0 %v5955
      %v6086 = vpop.f32.mrb[0].mxu0
      %v6087 = vadd.f32 0.0, %v6086
      %v6088 = vpop.f32.mrb[0].mxu0
      %v6089 = vpop.f32.mrb[0].mxu0
      %v6090 = vadd.f32 0.0, %v6089
      %v6091 = vpop.f32.mrb[0].mxu0
      %6092 = vmatprep.mubr.bf16.mxu0 0
      %6093 = vmatmul.mubr.bf16.gmra.mrb[0].mxu0 %v5957
      %v6094 = vpop.f32.mrb[0].mxu0
      %v6095 = vadd.f32 0.0, %v6094
      %v6096 = vpop.f32.mrb[0].mxu0
      %v6097 = vpop.f32.mrb[0].mxu0
      %v6098 = vadd.f32 0.0, %v6097
      %v6099 = vpop.f32.mrb[0].mxu0
      %6100 = vmatprep.mubr.bf16.mxu0 0
      %6101 = vmatmul.mubr.bf16.gmra.mrb[0].mxu0 %v5959
      %v6102 = vpop.f32.mrb[0].mxu0
      %v6103 = vadd.f32 0.0, %v6102
      %v6104 = vpop.f32.mrb[0].mxu0
      %v6105 = vpop.f32.mrb[0].mxu0
      %v6106 = vadd.f32 0.0, %v6105
      %v6107 = vpop.f32.mrb[0].mxu0
      %6108 = vmatprep.mubr.bf16.mxu0 0
      %6109 = vmatmul.mubr.bf16.gmra.mrb[0].mxu0 %v5961
      %v6110 = vpop.f32.mrb[0].mxu0
      %v6111 = vadd.f32 0.0, %v6110
      %v6112 = vpop.f32.mrb[0].mxu0
      %v6113 = vpop.f32.mrb[0].mxu0
      %v6114 = vadd.f32 0.0, %v6113
      %v6115 = vpop.f32.mrb[0].mxu0
      %6116 = vmatprep.mubr.bf16.mxu0 0
      %6117 = vmatmul.mubr.bf16.gmra.mrb[0].mxu0 %v5963
      %v6118 = vpop.f32.mrb[0].mxu0
      %v6119 = vadd.f32 0.0, %v6118
      %v6120 = vpop.f32.mrb[0].mxu0
      %v6121 = vpop.f32.mrb[0].mxu0
      %v6122 = vadd.f32 0.0, %v6121
      %v6123 = vpop.f32.mrb[0].mxu0
      %6124 = vmatprep.mubr.bf16.mxu0 0
      %6125 = vmatmul.mubr.bf16.gmra.mrb[0].mxu0 %v5965
      %v6126 = vpop.f32.mrb[0].mxu0
      %v6127 = vadd.f32 0.0, %v6126
      %v6128 = vpop.f32.mrb[0].mxu0
      %v6129 = vpop.f32.mrb[0].mxu0
      %v6130 = vadd.f32 0.0, %v6129
      %v6131 = vpop.f32.mrb[0].mxu0
      %6132 = vmatprep.mubr.bf16.mxu0 0
      %6133 = vmatmul.mubr.bf16.gmra.mrb[0].mxu0 %v5967
      %v6134 = vpop.f32.mrb[0].mxu0
      %v6135 = vadd.f32 0.0, %v6134
      %v6136 = vpop.f32.mrb[0].mxu0
      %v6137 = vpop.f32.mrb[0].mxu0
      %v6138 = vadd.f32 0.0, %v6137
      %v6139 = vpop.f32.mrb[0].mxu0
      %6140 = vmatprep.mubr.bf16.mxu0 0
      %6141 = vmatmul.mubr.bf16.gmra.mrb[0].mxu0 %v5969
      %v6142 = vpop.f32.mrb[0].mxu0
      %v6143 = vadd.f32 0.0, %v6142
      %v6144 = vpop.f32.mrb[0].mxu0
      %v6145 = vpop.f32.mrb[0].mxu0
      %v6146 = vadd.f32 0.0, %v6145
      %v6147 = vpop.f32.mrb[0].mxu0
      %6148 = vmatprep.mubr.bf16.mxu0 0
      %6149 = vmatmul.mubr.bf16.gmra.mrb[0].mxu0 %v5971
      %v6150 = vpop.f32.mrb[0].mxu0
      %v6151 = vadd.f32 0.0, %v6150
      %v6152 = vpop.f32.mrb[0].mxu0
      %v6153 = vpop.f32.mrb[0].mxu0
      %v6154 = vadd.f32 0.0, %v6153
      %v6155 = vpop.f32.mrb[0].mxu0
      %6156 = vmatprep.mubr.bf16.mxu0 0
      %6157 = vmatmul.mubr.bf16.gmra.mrb[0].mxu0 %v5973
      %v6158 = vpop.f32.mrb[0].mxu0
      %v6159 = vadd.f32 0.0, %v6158
      %v6160 = vpop.f32.mrb[0].mxu0
      %v6161 = vpop.f32.mrb[0].mxu0
      %v6162 = vadd.f32 0.0, %v6161
      %v6163 = vpop.f32.mrb[0].mxu0
      %6164 = vmatprep.mubr.bf16.mxu0 0
      %6165 = vmatmul.mubr.bf16.gmra.mrb[0].mxu0 %v5975
      %v6166 = vpop.f32.mrb[0].mxu0
      %v6167 = vadd.f32 0.0, %v6166
      %v6168 = vpop.f32.mrb[0].mxu0
      %v6169 = vpop.f32.mrb[0].mxu0
      %v6170 = vadd.f32 0.0, %v6169
      %v6171 = vpop.f32.mrb[0].mxu0
      %6172 = vmatprep.mubr.bf16.mxu0 0
      %6173 = vmatmul.mubr.bf16.gmra.mrb[0].mxu0 %v5977
      %v6174 = vpop.f32.mrb[0].mxu0
      %v6175 = vadd.f32 0.0, %v6174
      %v6176 = vpop.f32.mrb[0].mxu0
      %v6177 = vpop.f32.mrb[0].mxu0
      %v6178 = vadd.f32 0.0, %v6177
      %v6179 = vpop.f32.mrb[0].mxu0
      %6180 = vmatprep.mubr.bf16.mxu0 0
      %6181 = vmatmul.mubr.bf16.gmra.mrb[0].mxu0 %v5979
      %v6182 = vpop.f32.mrb[0].mxu0
      %v6183 = vadd.f32 0.0, %v6182
      %v6184 = vpop.f32.mrb[0].mxu0
      %v6185 = vpop.f32.mrb[0].mxu0
      %v6186 = vadd.f32 0.0, %v6185
      %v6187 = vpop.f32.mrb[0].mxu0
      %6188 = vmatprep.mubr.bf16.mxu0 0
      %6189 = vmatmul.mubr.bf16.gmra.mrb[0].mxu0 %v5981
      %v6190 = vpop.f32.mrb[0].mxu0
      %v6191 = vadd.f32 0.0, %v6190
      %v6192 = vpop.f32.mrb[0].mxu0
      %v6193 = vpop.f32.mrb[0].mxu0
      %v6194 = vadd.f32 0.0, %v6193
      %v6195 = vpop.f32.mrb[0].mxu0
      %6196 = vmatprep.mubr.bf16.mxu0 0
      %6197 = vmatmul.mubr.bf16.gmra.mrb[0].mxu0 %v5983
      %v6198 = vpop.f32.mrb[0].mxu0
      %v6199 = vadd.f32 0.0, %v6198
      %v6200 = vpop.f32.mrb[0].mxu0
      %v6201 = vpop.f32.mrb[0].mxu0
      %v6202 = vadd.f32 0.0, %v6201
      %v6203 = vpop.f32.mrb[0].mxu0
      %6204 = vmatprep.mubr.bf16.mxu0 0
      %6205 = vmatmul.mubr.bf16.gmra.mrb[0].mxu0 %v5985
      %v6206 = vpop.f32.mrb[0].mxu0
      %v6207 = vadd.f32 0.0, %v6206
      %v6208 = vpop.f32.mrb[0].mxu0
      %v6209 = vpop.f32.mrb[0].mxu0
      %v6210 = vadd.f32 0.0, %v6209
      %v6211 = vpop.f32.mrb[0].mxu0
      %6212 = vmatprep.mubr.bf16.mxu0 0
      %6213 = vmatmul.mubr.bf16.gmra.mrb[0].mxu0 %v5987
      %v6214 = vpop.f32.mrb[0].mxu0
      %v6215 = vadd.f32 0.0, %v6214
      %v6216 = vpop.f32.mrb[0].mxu0
      %v6217 = vpop.f32.mrb[0].mxu0
      %v6218 = vadd.f32 0.0, %v6217
      %v6219 = vpop.f32.mrb[0].mxu0
      %6220 = vmatprep.mubr.bf16.mxu0 0
      %6221 = vmatmul.mubr.bf16.gmra.mrb[0].mxu0 %v5989
      %v6222 = vpop.f32.mrb[0].mxu0
      %v6223 = vadd.f32 0.0, %v6222
      %v6224 = vpop.f32.mrb[0].mxu0
      %v6225 = vpop.f32.mrb[0].mxu0
      %v6226 = vadd.f32 0.0, %v6225
      %v6227 = vpop.f32.mrb[0].mxu0
      %6228 = vmatprep.mubr.bf16.mxu0 0
      %6229 = vmatmul.mubr.bf16.gmra.mrb[0].mxu0 %v5991
      %v6230 = vpop.f32.mrb[0].mxu0
      %v6231 = vadd.f32 0.0, %v6230
      %v6232 = vpop.f32.mrb[0].mxu0
      %v6233 = vpop.f32.mrb[0].mxu0
      %v6234 = vadd.f32 0.0, %v6233
      %v6235 = vpop.f32.mrb[0].mxu0
      %6236 = vmatprep.mubr.bf16.mxu0 0
      %6237 = vmatmul.mubr.bf16.gmra.mrb[0].mxu0 %v5993
      %v6238 = vpop.f32.mrb[0].mxu0
      %v6239 = vadd.f32 0.0, %v6238
      %v6240 = vpop.f32.mrb[0].mxu0
      %v6241 = vpop.f32.mrb[0].mxu0
      %v6242 = vadd.f32 0.0, %v6241
      %v6243 = vpop.f32.mrb[0].mxu0
      %6244 = vmatprep.mubr.bf16.mxu0 0
      %6245 = vmatmul.mubr.bf16.gmra.mrb[0].mxu0 %v5995
      %v6246 = vpop.f32.mrb[0].mxu0
      %v6247 = vadd.f32 0.0, %v6246
      %v6248 = vpop.f32.mrb[0].mxu0
      %v6249 = vpop.f32.mrb[0].mxu0
      %v6250 = vadd.f32 0.0, %v6249
      %v6251 = vpop.f32.mrb[0].mxu0
      %6252 = vmatprep.mubr.bf16.mxu0 0
      %6253 = vmatmul.mubr.bf16.gmra.mrb[0].mxu0 %v5997
      %v6254 = vpop.f32.mrb[0].mxu0
      %v6255 = vadd.f32 0.0, %v6254
      %v6256 = vpop.f32.mrb[0].mxu0
      %v6257 = vpop.f32.mrb[0].mxu0
      %v6258 = vadd.f32 0.0, %v6257
      %v6259 = vpop.f32.mrb[0].mxu0
      %6260 = vmatprep.mubr.bf16.mxu0 0
      %6261 = vmatmul.mubr.bf16.gmra.mrb[0].mxu0 %v5999
      %v6262 = vpop.f32.mrb[0].mxu0
      %v6263 = vadd.f32 0.0, %v6262
      %v6264 = vpop.f32.mrb[0].mxu0
      %v6265 = vpop.f32.mrb[0].mxu0
      %v6266 = vadd.f32 0.0, %v6265
      %v6267 = vpop.f32.mrb[0].mxu0
      %6268 = vmatprep.mubr.bf16.mxu0 0
      %6269 = vmatmul.mubr.bf16.gmra.mrb[0].mxu0 %v6001
      %v6270 = vpop.f32.mrb[0].mxu0
      %v6271 = vadd.f32 0.0, %v6270
      %v6272 = vpop.f32.mrb[0].mxu0
      %v6273 = vpop.f32.mrb[0].mxu0
      %v6274 = vadd.f32 0.0, %v6273
      %v6275 = vpop.f32.mrb[0].mxu0
      %6276 = vmatprep.mubr.bf16.mxu0 0
      %6277 = vmatmul.mubr.bf16.gmra.mrb[0].mxu0 %v6003
      %v6278 = vpop.f32.mrb[0].mxu0
      %v6279 = vadd.f32 0.0, %v6278
      %v6280 = vpop.f32.mrb[0].mxu0
      %v6281 = vpop.f32.mrb[0].mxu0
      %v6282 = vadd.f32 0.0, %v6281
      %v6283 = vpop.f32.mrb[0].mxu0
      %6284 = vmatprep.mubr.bf16.mxu0 0
      %6285 = vmatmul.mubr.bf16.gmra.mrb[0].mxu0 %v6005
      %v6286 = vpop.f32.mrb[0].mxu0
      %v6287 = vadd.f32 0.0, %v6286
      %v6288 = vpop.f32.mrb[0].mxu0
      %v6289 = vpop.f32.mrb[0].mxu0
      %v6290 = vadd.f32 0.0, %v6289
      %v6291 = vpop.f32.mrb[0].mxu0
      %6292 = vmatprep.mubr.bf16.mxu0 0
      %6293 = vmatmul.mubr.bf16.gmra.mrb[0].mxu0 %v6007
      %v6294 = vpop.f32.mrb[0].mxu0
      %v6295 = vadd.f32 0.0, %v6294
      %v6296 = vpop.f32.mrb[0].mxu0
      %v6297 = vpop.f32.mrb[0].mxu0
      %v6298 = vadd.f32 0.0, %v6297
      %v6299 = vpop.f32.mrb[0].mxu0
      %6300 = vdwg.mxu0
      %v6301 = vadd.f32 %v5879, %v6047
      %v6302 = vadd.f32 %v5880, %v6050
      %v6303 = vadd.f32 %v5881, %v6055
      %v6304 = vadd.f32 %v5882, %v6058
      %v6305 = vadd.f32 %v5883, %v6063
      %v6306 = vadd.f32 %v5884, %v6066
      %v6307 = vadd.f32 %v5885, %v6071
      %v6308 = vadd.f32 %v5886, %v6074
      %v6309 = vadd.f32 %v5887, %v6079
      %v6310 = vadd.f32 %v5888, %v6082
      %v6311 = vadd.f32 %v5889, %v6087
      %v6312 = vadd.f32 %v5890, %v6090
      %v6313 = vadd.f32 %v5891, %v6095
      %v6314 = vadd.f32 %v5892, %v6098
      %v6315 = vadd.f32 %v5893, %v6103
      %v6316 = vadd.f32 %v5894, %v6106
      %v6317 = vadd.f32 %v5895, %v6111
      %v6318 = vadd.f32 %v5896, %v6114
      %v6319 = vadd.f32 %v5897, %v6119
      %v6320 = vadd.f32 %v5898, %v6122
      %v6321 = vadd.f32 %v5899, %v6127
      %v6322 = vadd.f32 %v5900, %v6130
      %v6323 = vadd.f32 %v5901, %v6135
      %v6324 = vadd.f32 %v5902, %v6138
      %v6325 = vadd.f32 %v5903, %v6143
      %v6326 = vadd.f32 %v5904, %v6146
      %v6327 = vadd.f32 %v5905, %v6151
      %v6328 = vadd.f32 %v5906, %v6154
      %v6329 = vadd.f32 %v5907, %v6159
      %v6330 = vadd.f32 %v5908, %v6162
      %v6331 = vadd.f32 %v5909, %v6167
      %v6332 = vadd.f32 %v5910, %v6170
      %v6333 = vadd.f32 %v5911, %v6175
      %v6334 = vadd.f32 %v5912, %v6178
      %v6335 = vadd.f32 %v5913, %v6183
      %v6336 = vadd.f32 %v5914, %v6186
      %v6337 = vadd.f32 %v5915, %v6191
      %v6338 = vadd.f32 %v5916, %v6194
      %v6339 = vadd.f32 %v5917, %v6199
      %v6340 = vadd.f32 %v5918, %v6202
      %v6341 = vadd.f32 %v5919, %v6207
      %v6342 = vadd.f32 %v5920, %v6210
      %v6343 = vadd.f32 %v5921, %v6215
      %v6344 = vadd.f32 %v5922, %v6218
      %v6345 = vadd.f32 %v5923, %v6223
      %v6346 = vadd.f32 %v5924, %v6226
      %v6347 = vadd.f32 %v5925, %v6231
      %v6348 = vadd.f32 %v5926, %v6234
      %v6349 = vadd.f32 %v5927, %v6239
      %v6350 = vadd.f32 %v5928, %v6242
      %v6351 = vadd.f32 %v5929, %v6247
      %v6352 = vadd.f32 %v5930, %v6250
      %v6353 = vadd.f32 %v5931, %v6255
      %v6354 = vadd.f32 %v5932, %v6258
      %v6355 = vadd.f32 %v5933, %v6263
      %v6356 = vadd.f32 %v5934, %v6266
      %v6357 = vadd.f32 %v5935, %v6271
      %v6358 = vadd.f32 %v5936, %v6274
      %v6359 = vadd.f32 %v5937, %v6279
      %v6360 = vadd.f32 %v5938, %v6282
      %v6361 = vadd.f32 %v5939, %v6287
      %v6362 = vadd.f32 %v5940, %v6290
      %v6363 = vadd.f32 %v5941, %v6295
      %v6364 = vadd.f32 %v5942, %v6298
      %v6365 = vrot.slane %v5221, 1
      %v6366 = vor.u32 %v5218, %v6365
      %v6367 = vrot.slane %v5228, 1
      %v6368 = vsel %vm2484, %v6366, %v6367
      %v6369 = vor.u32 %v5225, %v6367
      %v6370 = vrot.slane %v5236, 1
      %v6371 = vor.u32 %v5233, %v6370
      %v6372 = vrot.slane %v5243, 1
      %v6373 = vsel %vm2484, %v6371, %v6372
      %v6374 = vor.u32 %v5240, %v6372
      %v6375 = vrot.slane %v5251, 1
      %v6376 = vor.u32 %v5248, %v6375
      %v6377 = vrot.slane %v5258, 1
      %v6378 = vsel %vm2484, %v6376, %v6377
      %v6379 = vor.u32 %v5255, %v6377
      %v6380 = vrot.slane %v5266, 1
      %v6381 = vor.u32 %v5263, %v6380
      %v6382 = vrot.slane %v5273, 1
      %v6383 = vsel %vm2484, %v6381, %v6382
      %v6384 = vor.u32 %v5270, %v6382
      %v6385 = vrot.slane %v5281, 1
      %v6386 = vor.u32 %v5278, %v6385
      %v6387 = vrot.slane %v5288, 1
      %v6388 = vsel %vm2484, %v6386, %v6387
      %v6389 = vor.u32 %v5285, %v6387
      %v6390 = vrot.slane %v5296, 1
      %v6391 = vor.u32 %v5293, %v6390
      %v6392 = vrot.slane %v5303, 1
      %v6393 = vsel %vm2484, %v6391, %v6392
      %v6394 = vor.u32 %v5300, %v6392
      %v6395 = vrot.slane %v5311, 1
      %v6396 = vor.u32 %v5308, %v6395
      %v6397 = vrot.slane %v5318, 1
      %v6398 = vsel %vm2484, %v6396, %v6397
      %v6399 = vor.u32 %v5315, %v6397
      %v6400 = vrot.slane %v5326, 1
      %v6401 = vor.u32 %v5323, %v6400
      %v6402 = vrot.slane %v5333, 1
      %v6403 = vsel %vm2484, %v6401, %v6402
      %v6404 = vor.u32 %v5330, %v6402
      %v6405 = vrot.slane %v5341, 1
      %v6406 = vor.u32 %v5338, %v6405
      %v6407 = vrot.slane %v5348, 1
      %v6408 = vsel %vm2484, %v6406, %v6407
      %v6409 = vor.u32 %v5345, %v6407
      %v6410 = vrot.slane %v5356, 1
      %v6411 = vor.u32 %v5353, %v6410
      %v6412 = vrot.slane %v5363, 1
      %v6413 = vsel %vm2484, %v6411, %v6412
      %v6414 = vor.u32 %v5360, %v6412
      %v6415 = vrot.slane %v5371, 1
      %v6416 = vor.u32 %v5368, %v6415
      %v6417 = vrot.slane %v5378, 1
      %v6418 = vsel %vm2484, %v6416, %v6417
      %v6419 = vor.u32 %v5375, %v6417
      %v6420 = vrot.slane %v5386, 1
      %v6421 = vor.u32 %v5383, %v6420
      %v6422 = vrot.slane %v5393, 1
      %v6423 = vsel %vm2484, %v6421, %v6422
      %v6424 = vor.u32 %v5390, %v6422
      %v6425 = vrot.slane %v5401, 1
      %v6426 = vor.u32 %v5398, %v6425
      %v6427 = vrot.slane %v5408, 1
      %v6428 = vsel %vm2484, %v6426, %v6427
      %v6429 = vor.u32 %v5405, %v6427
      %v6430 = vrot.slane %v5416, 1
      %v6431 = vor.u32 %v5413, %v6430
      %v6432 = vrot.slane %v5423, 1
      %v6433 = vsel %vm2484, %v6431, %v6432
      %v6434 = vor.u32 %v5420, %v6432
      %v6435 = vrot.slane %v5431, 1
      %v6436 = vor.u32 %v5428, %v6435
      %v6437 = vrot.slane %v5438, 1
      %v6438 = vsel %vm2484, %v6436, %v6437
      %v6439 = vor.u32 %v5435, %v6437
      %v6440 = vrot.slane %v5446, 1
      %v6441 = vor.u32 %v5443, %v6440
      %v6442 = vrot.slane %v5453, 1
      %v6443 = vsel %vm2484, %v6441, %v6442
      %v6444 = vor.u32 %v5450, %v6442
      %v6461 = vsel %vm2582, %v6369, 0
      %v6462 = vsel %vm2582, %v6374, 0
      %v6463 = vsel %vm2582, %v6379, 0
      %v6464 = vsel %vm2582, %v6384, 0
      %v6465 = vsel %vm2582, %v6389, 0
      %v6466 = vsel %vm2582, %v6394, 0
      %v6467 = vsel %vm2582, %v6399, 0
      %v6468 = vsel %vm2582, %v6404, 0
      %v6469 = vsel %vm2582, %v6409, 0
      %v6470 = vsel %vm2582, %v6414, 0
      %v6471 = vsel %vm2582, %v6419, 0
      %v6472 = vsel %vm2582, %v6424, 0
      %v6473 = vsel %vm2582, %v6429, 0
      %v6474 = vsel %vm2582, %v6434, 0
      %v6475 = vsel %vm2582, %v6439, 0
      %v6476 = vsel %vm2582, %v6444, 0
      %s6477 = scalar_lea.vmem %s1, 32
      %v6478 = vld [vmem:[%s6477] sm:$0xf]
      %v6480 = vsel %vm1738, %v6368, 0
      %v6483 = vsel %vm1738, %v6461, 0
      %v6486 = vsel %vm1738, %v6373, 0
      %v6489 = vsel %vm1738, %v6462, 0
      %v6492 = vsel %vm1738, %v6378, 0
      %v6495 = vsel %vm1738, %v6463, 0
      %v6498 = vsel %vm1738, %v6383, 0
      %v6501 = vsel %vm1738, %v6464, 0
      %v6504 = vsel %vm1738, %v6388, 0
      %v6507 = vsel %vm1738, %v6465, 0
      %v6510 = vsel %vm1738, %v6393, 0
      %v6513 = vsel %vm1738, %v6466, 0
      %v6516 = vsel %vm1738, %v6398, 0
      %v6519 = vsel %vm1738, %v6467, 0
      %v6522 = vsel %vm1738, %v6403, 0
      %v6525 = vsel %vm1738, %v6468, 0
      %v6528 = vsel %vm1738, %v6408, 0
      %v6531 = vsel %vm1738, %v6469, 0
      %v6534 = vsel %vm1738, %v6413, 0
      %v6537 = vsel %vm1738, %v6470, 0
      %v6540 = vsel %vm1738, %v6418, 0
      %v6543 = vsel %vm1738, %v6471, 0
      %v6546 = vsel %vm1738, %v6423, 0
      %v6549 = vsel %vm1738, %v6472, 0
      %v6552 = vsel %vm1738, %v6428, 0
      %v6555 = vsel %vm1738, %v6473, 0
      %v6558 = vsel %vm1738, %v6433, 0
      %v6561 = vsel %vm1738, %v6474, 0
      %v6564 = vsel %vm1738, %v6438, 0
      %v6567 = vsel %vm1738, %v6475, 0
      %v6570 = vsel %vm1738, %v6443, 0
      %v6573 = vsel %vm1738, %v6476, 0
      %v6576 = vsel %vm1803, %v6478, 0
      %6578 = vmatprep.subr.bf16.mxu0 0
      %6579 = vmatpush1.bf16.msra.mxu0 %v6576
      %6580 = vmatprep.subr.bf16.mxu0 0
      %6581 = vmatpush1.bf16.msra.mxu0 0
      %6582 = vmatprep.subr.bf16.mxu0 0
      %6583 = vmatpush1.bf16.msra.mxu0 0
      %6584 = vmatprep.subr.bf16.mxu0 0
      %6585 = vmatpush1.bf16.msra.mxu0 0
      %6586 = vmatprep.subr.bf16.mxu0 0
      %6587 = vmatpush1.bf16.msra.mxu0 0
      %6588 = vmatprep.subr.bf16.mxu0 0
      %6589 = vmatpush1.bf16.msra.mxu0 0
      %6590 = vmatprep.subr.bf16.mxu0 0
      %6591 = vmatpush1.bf16.msra.mxu0 0
      %6592 = vmatprep.subr.bf16.mxu0 0
      %6593 = vmatpush1.bf16.msra.mxu0 0
      %6594 = vmatprep.subr.bf16.mxu0 0
      %6595 = vmatpush1.bf16.msra.mxu0 0
      %6596 = vmatprep.subr.bf16.mxu0 0
      %6597 = vmatpush1.bf16.msra.mxu0 0
      %6598 = vmatprep.subr.bf16.mxu0 0
      %6599 = vmatpush1.bf16.msra.mxu0 0
      %6600 = vmatprep.subr.bf16.mxu0 0
      %6601 = vmatpush1.bf16.msra.mxu0 0
      %6602 = vmatprep.subr.bf16.mxu0 0
      %6603 = vmatpush1.bf16.msra.mxu0 0
      %6604 = vmatprep.subr.bf16.mxu0 0
      %6605 = vmatpush1.bf16.msra.mxu0 0
      %6606 = vmatprep.subr.bf16.mxu0 0
      %6607 = vmatpush1.bf16.msra.mxu0 0
      %6608 = vmatprep.subr.bf16.mxu0 0
      %6609 = vmatpush1.bf16.msra.mxu0 0
      %6610 = vmatprep.mubr.bf16.mxu0 0
      %6611 = vmatmul.mubr.bf16.gmra.mrb[0].mxu0 %v6480
      %v6612 = vpop.f32.mrb[0].mxu0
      %v6613 = vadd.f32 0.0, %v6612
      %v6614 = vpop.f32.mrb[0].mxu0
      %v6615 = vpop.f32.mrb[0].mxu0
      %v6616 = vadd.f32 0.0, %v6615
      %v6617 = vpop.f32.mrb[0].mxu0
      %6618 = vmatprep.mubr.bf16.mxu0 0
      %6619 = vmatmul.mubr.bf16.gmra.mrb[0].mxu0 %v6483
      %v6620 = vpop.f32.mrb[0].mxu0
      %v6621 = vadd.f32 0.0, %v6620
      %v6622 = vpop.f32.mrb[0].mxu0
      %v6623 = vpop.f32.mrb[0].mxu0
      %v6624 = vadd.f32 0.0, %v6623
      %v6625 = vpop.f32.mrb[0].mxu0
      %6626 = vmatprep.mubr.bf16.mxu0 0
      %6627 = vmatmul.mubr.bf16.gmra.mrb[0].mxu0 %v6486
      %v6628 = vpop.f32.mrb[0].mxu0
      %v6629 = vadd.f32 0.0, %v6628
      %v6630 = vpop.f32.mrb[0].mxu0
      %v6631 = vpop.f32.mrb[0].mxu0
      %v6632 = vadd.f32 0.0, %v6631
      %v6633 = vpop.f32.mrb[0].mxu0
      %6634 = vmatprep.mubr.bf16.mxu0 0
      %6635 = vmatmul.mubr.bf16.gmra.mrb[0].mxu0 %v6489
      %v6636 = vpop.f32.mrb[0].mxu0
      %v6637 = vadd.f32 0.0, %v6636
      %v6638 = vpop.f32.mrb[0].mxu0
      %v6639 = vpop.f32.mrb[0].mxu0
      %v6640 = vadd.f32 0.0, %v6639
      %v6641 = vpop.f32.mrb[0].mxu0
      %6642 = vmatprep.mubr.bf16.mxu0 0
      %6643 = vmatmul.mubr.bf16.gmra.mrb[0].mxu0 %v6492
      %v6644 = vpop.f32.mrb[0].mxu0
      %v6645 = vadd.f32 0.0, %v6644
      %v6646 = vpop.f32.mrb[0].mxu0
      %v6647 = vpop.f32.mrb[0].mxu0
      %v6648 = vadd.f32 0.0, %v6647
      %v6649 = vpop.f32.mrb[0].mxu0
      %6650 = vmatprep.mubr.bf16.mxu0 0
      %6651 = vmatmul.mubr.bf16.gmra.mrb[0].mxu0 %v6495
      %v6652 = vpop.f32.mrb[0].mxu0
      %v6653 = vadd.f32 0.0, %v6652
      %v6654 = vpop.f32.mrb[0].mxu0
      %v6655 = vpop.f32.mrb[0].mxu0
      %v6656 = vadd.f32 0.0, %v6655
      %v6657 = vpop.f32.mrb[0].mxu0
      %6658 = vmatprep.mubr.bf16.mxu0 0
      %6659 = vmatmul.mubr.bf16.gmra.mrb[0].mxu0 %v6498
      %v6660 = vpop.f32.mrb[0].mxu0
      %v6661 = vadd.f32 0.0, %v6660
      %v6662 = vpop.f32.mrb[0].mxu0
      %v6663 = vpop.f32.mrb[0].mxu0
      %v6664 = vadd.f32 0.0, %v6663
      %v6665 = vpop.f32.mrb[0].mxu0
      %6666 = vmatprep.mubr.bf16.mxu0 0
      %6667 = vmatmul.mubr.bf16.gmra.mrb[0].mxu0 %v6501
      %v6668 = vpop.f32.mrb[0].mxu0
      %v6669 = vadd.f32 0.0, %v6668
      %v6670 = vpop.f32.mrb[0].mxu0
      %v6671 = vpop.f32.mrb[0].mxu0
      %v6672 = vadd.f32 0.0, %v6671
      %v6673 = vpop.f32.mrb[0].mxu0
      %6674 = vmatprep.mubr.bf16.mxu0 0
      %6675 = vmatmul.mubr.bf16.gmra.mrb[0].mxu0 %v6504
      %v6676 = vpop.f32.mrb[0].mxu0
      %v6677 = vadd.f32 0.0, %v6676
      %v6678 = vpop.f32.mrb[0].mxu0
      %v6679 = vpop.f32.mrb[0].mxu0
      %v6680 = vadd.f32 0.0, %v6679
      %v6681 = vpop.f32.mrb[0].mxu0
      %6682 = vmatprep.mubr.bf16.mxu0 0
      %6683 = vmatmul.mubr.bf16.gmra.mrb[0].mxu0 %v6507
      %v6684 = vpop.f32.mrb[0].mxu0
      %v6685 = vadd.f32 0.0, %v6684
      %v6686 = vpop.f32.mrb[0].mxu0
      %v6687 = vpop.f32.mrb[0].mxu0
      %v6688 = vadd.f32 0.0, %v6687
      %v6689 = vpop.f32.mrb[0].mxu0
      %6690 = vmatprep.mubr.bf16.mxu0 0
      %6691 = vmatmul.mubr.bf16.gmra.mrb[0].mxu0 %v6510
      %v6692 = vpop.f32.mrb[0].mxu0
      %v6693 = vadd.f32 0.0, %v6692
      %v6694 = vpop.f32.mrb[0].mxu0
      %v6695 = vpop.f32.mrb[0].mxu0
      %v6696 = vadd.f32 0.0, %v6695
      %v6697 = vpop.f32.mrb[0].mxu0
      %6698 = vmatprep.mubr.bf16.mxu0 0
      %6699 = vmatmul.mubr.bf16.gmra.mrb[0].mxu0 %v6513
      %v6700 = vpop.f32.mrb[0].mxu0
      %v6701 = vadd.f32 0.0, %v6700
      %v6702 = vpop.f32.mrb[0].mxu0
      %v6703 = vpop.f32.mrb[0].mxu0
      %v6704 = vadd.f32 0.0, %v6703
      %v6705 = vpop.f32.mrb[0].mxu0
      %6706 = vmatprep.mubr.bf16.mxu0 0
      %6707 = vmatmul.mubr.bf16.gmra.mrb[0].mxu0 %v6516
      %v6708 = vpop.f32.mrb[0].mxu0
      %v6709 = vadd.f32 0.0, %v6708
      %v6710 = vpop.f32.mrb[0].mxu0
      %v6711 = vpop.f32.mrb[0].mxu0
      %v6712 = vadd.f32 0.0, %v6711
      %v6713 = vpop.f32.mrb[0].mxu0
      %6714 = vmatprep.mubr.bf16.mxu0 0
      %6715 = vmatmul.mubr.bf16.gmra.mrb[0].mxu0 %v6519
      %v6716 = vpop.f32.mrb[0].mxu0
      %v6717 = vadd.f32 0.0, %v6716
      %v6718 = vpop.f32.mrb[0].mxu0
      %v6719 = vpop.f32.mrb[0].mxu0
      %v6720 = vadd.f32 0.0, %v6719
      %v6721 = vpop.f32.mrb[0].mxu0
      %6722 = vmatprep.mubr.bf16.mxu0 0
      %6723 = vmatmul.mubr.bf16.gmra.mrb[0].mxu0 %v6522
      %v6724 = vpop.f32.mrb[0].mxu0
      %v6725 = vadd.f32 0.0, %v6724
      %v6726 = vpop.f32.mrb[0].mxu0
      %v6727 = vpop.f32.mrb[0].mxu0
      %v6728 = vadd.f32 0.0, %v6727
      %v6729 = vpop.f32.mrb[0].mxu0
      %6730 = vmatprep.mubr.bf16.mxu0 0
      %6731 = vmatmul.mubr.bf16.gmra.mrb[0].mxu0 %v6525
      %v6732 = vpop.f32.mrb[0].mxu0
      %v6733 = vadd.f32 0.0, %v6732
      %v6734 = vpop.f32.mrb[0].mxu0
      %v6735 = vpop.f32.mrb[0].mxu0
      %v6736 = vadd.f32 0.0, %v6735
      %v6737 = vpop.f32.mrb[0].mxu0
      %6738 = vmatprep.mubr.bf16.mxu0 0
      %6739 = vmatmul.mubr.bf16.gmra.mrb[0].mxu0 %v6528
      %v6740 = vpop.f32.mrb[0].mxu0
      %v6741 = vadd.f32 0.0, %v6740
      %v6742 = vpop.f32.mrb[0].mxu0
      %v6743 = vpop.f32.mrb[0].mxu0
      %v6744 = vadd.f32 0.0, %v6743
      %v6745 = vpop.f32.mrb[0].mxu0
      %6746 = vmatprep.mubr.bf16.mxu0 0
      %6747 = vmatmul.mubr.bf16.gmra.mrb[0].mxu0 %v6531
      %v6748 = vpop.f32.mrb[0].mxu0
      %v6749 = vadd.f32 0.0, %v6748
      %v6750 = vpop.f32.mrb[0].mxu0
      %v6751 = vpop.f32.mrb[0].mxu0
      %v6752 = vadd.f32 0.0, %v6751
      %v6753 = vpop.f32.mrb[0].mxu0
      %6754 = vmatprep.mubr.bf16.mxu0 0
      %6755 = vmatmul.mubr.bf16.gmra.mrb[0].mxu0 %v6534
      %v6756 = vpop.f32.mrb[0].mxu0
      %v6757 = vadd.f32 0.0, %v6756
      %v6758 = vpop.f32.mrb[0].mxu0
      %v6759 = vpop.f32.mrb[0].mxu0
      %v6760 = vadd.f32 0.0, %v6759
      %v6761 = vpop.f32.mrb[0].mxu0
      %6762 = vmatprep.mubr.bf16.mxu0 0
      %6763 = vmatmul.mubr.bf16.gmra.mrb[0].mxu0 %v6537
      %v6764 = vpop.f32.mrb[0].mxu0
      %v6765 = vadd.f32 0.0, %v6764
      %v6766 = vpop.f32.mrb[0].mxu0
      %v6767 = vpop.f32.mrb[0].mxu0
      %v6768 = vadd.f32 0.0, %v6767
      %v6769 = vpop.f32.mrb[0].mxu0
      %6770 = vmatprep.mubr.bf16.mxu0 0
      %6771 = vmatmul.mubr.bf16.gmra.mrb[0].mxu0 %v6540
      %v6772 = vpop.f32.mrb[0].mxu0
      %v6773 = vadd.f32 0.0, %v6772
      %v6774 = vpop.f32.mrb[0].mxu0
      %v6775 = vpop.f32.mrb[0].mxu0
      %v6776 = vadd.f32 0.0, %v6775
      %v6777 = vpop.f32.mrb[0].mxu0
      %6778 = vmatprep.mubr.bf16.mxu0 0
      %6779 = vmatmul.mubr.bf16.gmra.mrb[0].mxu0 %v6543
      %v6780 = vpop.f32.mrb[0].mxu0
      %v6781 = vadd.f32 0.0, %v6780
      %v6782 = vpop.f32.mrb[0].mxu0
      %v6783 = vpop.f32.mrb[0].mxu0
      %v6784 = vadd.f32 0.0, %v6783
      %v6785 = vpop.f32.mrb[0].mxu0
      %6786 = vmatprep.mubr.bf16.mxu0 0
      %6787 = vmatmul.mubr.bf16.gmra.mrb[0].mxu0 %v6546
      %v6788 = vpop.f32.mrb[0].mxu0
      %v6789 = vadd.f32 0.0, %v6788
      %v6790 = vpop.f32.mrb[0].mxu0
      %v6791 = vpop.f32.mrb[0].mxu0
      %v6792 = vadd.f32 0.0, %v6791
      %v6793 = vpop.f32.mrb[0].mxu0
      %6794 = vmatprep.mubr.bf16.mxu0 0
      %6795 = vmatmul.mubr.bf16.gmra.mrb[0].mxu0 %v6549
      %v6796 = vpop.f32.mrb[0].mxu0
      %v6797 = vadd.f32 0.0, %v6796
      %v6798 = vpop.f32.mrb[0].mxu0
      %v6799 = vpop.f32.mrb[0].mxu0
      %v6800 = vadd.f32 0.0, %v6799
      %v6801 = vpop.f32.mrb[0].mxu0
      %6802 = vmatprep.mubr.bf16.mxu0 0
      %6803 = vmatmul.mubr.bf16.gmra.mrb[0].mxu0 %v6552
      %v6804 = vpop.f32.mrb[0].mxu0
      %v6805 = vadd.f32 0.0, %v6804
      %v6806 = vpop.f32.mrb[0].mxu0
      %v6807 = vpop.f32.mrb[0].mxu0
      %v6808 = vadd.f32 0.0, %v6807
      %v6809 = vpop.f32.mrb[0].mxu0
      %6810 = vmatprep.mubr.bf16.mxu0 0
      %6811 = vmatmul.mubr.bf16.gmra.mrb[0].mxu0 %v6555
      %v6812 = vpop.f32.mrb[0].mxu0
      %v6813 = vadd.f32 0.0, %v6812
      %v6814 = vpop.f32.mrb[0].mxu0
      %v6815 = vpop.f32.mrb[0].mxu0
      %v6816 = vadd.f32 0.0, %v6815
      %v6817 = vpop.f32.mrb[0].mxu0
      %6818 = vmatprep.mubr.bf16.mxu0 0
      %6819 = vmatmul.mubr.bf16.gmra.mrb[0].mxu0 %v6558
      %v6820 = vpop.f32.mrb[0].mxu0
      %v6821 = vadd.f32 0.0, %v6820
      %v6822 = vpop.f32.mrb[0].mxu0
      %v6823 = vpop.f32.mrb[0].mxu0
      %v6824 = vadd.f32 0.0, %v6823
      %v6825 = vpop.f32.mrb[0].mxu0
      %6826 = vmatprep.mubr.bf16.mxu0 0
      %6827 = vmatmul.mubr.bf16.gmra.mrb[0].mxu0 %v6561
      %v6828 = vpop.f32.mrb[0].mxu0
      %v6829 = vadd.f32 0.0, %v6828
      %v6830 = vpop.f32.mrb[0].mxu0
      %v6831 = vpop.f32.mrb[0].mxu0
      %v6832 = vadd.f32 0.0, %v6831
      %v6833 = vpop.f32.mrb[0].mxu0
      %6834 = vmatprep.mubr.bf16.mxu0 0
      %6835 = vmatmul.mubr.bf16.gmra.mrb[0].mxu0 %v6564
      %v6836 = vpop.f32.mrb[0].mxu0
      %v6837 = vadd.f32 0.0, %v6836
      %v6838 = vpop.f32.mrb[0].mxu0
      %v6839 = vpop.f32.mrb[0].mxu0
      %v6840 = vadd.f32 0.0, %v6839
      %v6841 = vpop.f32.mrb[0].mxu0
      %6842 = vmatprep.mubr.bf16.mxu0 0
      %6843 = vmatmul.mubr.bf16.gmra.mrb[0].mxu0 %v6567
      %v6844 = vpop.f32.mrb[0].mxu0
      %v6845 = vadd.f32 0.0, %v6844
      %v6846 = vpop.f32.mrb[0].mxu0
      %v6847 = vpop.f32.mrb[0].mxu0
      %v6848 = vadd.f32 0.0, %v6847
      %v6849 = vpop.f32.mrb[0].mxu0
      %6850 = vmatprep.mubr.bf16.mxu0 0
      %6851 = vmatmul.mubr.bf16.gmra.mrb[0].mxu0 %v6570
      %v6852 = vpop.f32.mrb[0].mxu0
      %v6853 = vadd.f32 0.0, %v6852
      %v6854 = vpop.f32.mrb[0].mxu0
      %v6855 = vpop.f32.mrb[0].mxu0
      %v6856 = vadd.f32 0.0, %v6855
      %v6857 = vpop.f32.mrb[0].mxu0
      %6858 = vmatprep.mubr.bf16.mxu0 0
      %6859 = vmatmul.mubr.bf16.gmra.mrb[0].mxu0 %v6573
      %v6860 = vpop.f32.mrb[0].mxu0
      %v6861 = vadd.f32 0.0, %v6860
      %v6862 = vpop.f32.mrb[0].mxu0
      %v6863 = vpop.f32.mrb[0].mxu0
      %v6864 = vadd.f32 0.0, %v6863
      %v6865 = vpop.f32.mrb[0].mxu0
      %6866 = vdwg.mxu0
      %v6867 = vadd.f32 %v6301, %v6613
      %v6868 = vadd.f32 %v6302, %v6616
      %v6869 = vadd.f32 %v6303, %v6621
      %v6870 = vadd.f32 %v6304, %v6624
      %v6871 = vadd.f32 %v6305, %v6629
      %v6872 = vadd.f32 %v6306, %v6632
      %v6873 = vadd.f32 %v6307, %v6637
      %v6874 = vadd.f32 %v6308, %v6640
      %v6875 = vadd.f32 %v6309, %v6645
      %v6876 = vadd.f32 %v6310, %v6648
      %v6877 = vadd.f32 %v6311, %v6653
      %v6878 = vadd.f32 %v6312, %v6656
      %v6879 = vadd.f32 %v6313, %v6661
      %v6880 = vadd.f32 %v6314, %v6664
      %v6881 = vadd.f32 %v6315, %v6669
      %v6882 = vadd.f32 %v6316, %v6672
      %v6883 = vadd.f32 %v6317, %v6677
      %v6884 = vadd.f32 %v6318, %v6680
      %v6885 = vadd.f32 %v6319, %v6685
      %v6886 = vadd.f32 %v6320, %v6688
      %v6887 = vadd.f32 %v6321, %v6693
      %v6888 = vadd.f32 %v6322, %v6696
      %v6889 = vadd.f32 %v6323, %v6701
      %v6890 = vadd.f32 %v6324, %v6704
      %v6891 = vadd.f32 %v6325, %v6709
      %v6892 = vadd.f32 %v6326, %v6712
      %v6893 = vadd.f32 %v6327, %v6717
      %v6894 = vadd.f32 %v6328, %v6720
      %v6895 = vadd.f32 %v6329, %v6725
      %v6896 = vadd.f32 %v6330, %v6728
      %v6897 = vadd.f32 %v6331, %v6733
      %v6898 = vadd.f32 %v6332, %v6736
      %v6899 = vadd.f32 %v6333, %v6741
      %v6900 = vadd.f32 %v6334, %v6744
      %v6901 = vadd.f32 %v6335, %v6749
      %v6902 = vadd.f32 %v6336, %v6752
      %v6903 = vadd.f32 %v6337, %v6757
      %v6904 = vadd.f32 %v6338, %v6760
      %v6905 = vadd.f32 %v6339, %v6765
      %v6906 = vadd.f32 %v6340, %v6768
      %v6907 = vadd.f32 %v6341, %v6773
      %v6908 = vadd.f32 %v6342, %v6776
      %v6909 = vadd.f32 %v6343, %v6781
      %v6910 = vadd.f32 %v6344, %v6784
      %v6911 = vadd.f32 %v6345, %v6789
      %v6912 = vadd.f32 %v6346, %v6792
      %v6913 = vadd.f32 %v6347, %v6797
      %v6914 = vadd.f32 %v6348, %v6800
      %v6915 = vadd.f32 %v6349, %v6805
      %v6916 = vadd.f32 %v6350, %v6808
      %v6917 = vadd.f32 %v6351, %v6813
      %v6918 = vadd.f32 %v6352, %v6816
      %v6919 = vadd.f32 %v6353, %v6821
      %v6920 = vadd.f32 %v6354, %v6824
      %v6921 = vadd.f32 %v6355, %v6829
      %v6922 = vadd.f32 %v6356, %v6832
      %v6923 = vadd.f32 %v6357, %v6837
      %v6924 = vadd.f32 %v6358, %v6840
      %v6925 = vadd.f32 %v6359, %v6845
      %v6926 = vadd.f32 %v6360, %v6848
      %v6927 = vadd.f32 %v6361, %v6853
      %v6928 = vadd.f32 %v6362, %v6856
      %v6929 = vadd.f32 %v6363, %v6861
      %v6930 = vadd.f32 %v6364, %v6864
      %v6932 = vlaneseq
      %v6933 = vshrl.u32 %v6932, 7
      %v6934 = vsub.s32 0, %v6933
      %v6935 = vrot.slane %v1234, %v6934
      %v6937 = vmul.f32 %v6867, %v6935
      %v6938 = vmul.f32 %v6868, %v6935
      %v6939 = vmul.f32 %v6869, %v6935
      %v6940 = vmul.f32 %v6870, %v6935
      %v6941 = vmul.f32 %v6871, %v6935
      %v6942 = vmul.f32 %v6872, %v6935
      %v6943 = vmul.f32 %v6873, %v6935
      %v6944 = vmul.f32 %v6874, %v6935
      %v6945 = vmul.f32 %v6875, %v6935
      %v6946 = vmul.f32 %v6876, %v6935
      %v6947 = vmul.f32 %v6877, %v6935
      %v6948 = vmul.f32 %v6878, %v6935
      %v6949 = vmul.f32 %v6879, %v6935
      %v6950 = vmul.f32 %v6880, %v6935
      %v6951 = vmul.f32 %v6881, %v6935
      %v6952 = vmul.f32 %v6882, %v6935
      %v6953 = vmul.f32 %v6883, %v6935
      %v6954 = vmul.f32 %v6884, %v6935
      %v6955 = vmul.f32 %v6885, %v6935
      %v6956 = vmul.f32 %v6886, %v6935
      %v6957 = vmul.f32 %v6887, %v6935
      %v6958 = vmul.f32 %v6888, %v6935
      %v6959 = vmul.f32 %v6889, %v6935
      %v6960 = vmul.f32 %v6890, %v6935
      %v6961 = vmul.f32 %v6891, %v6935
      %v6962 = vmul.f32 %v6892, %v6935
      %v6963 = vmul.f32 %v6893, %v6935
      %v6964 = vmul.f32 %v6894, %v6935
      %v6965 = vmul.f32 %v6895, %v6935
      %v6966 = vmul.f32 %v6896, %v6935
      %v6967 = vmul.f32 %v6897, %v6935
      %v6968 = vmul.f32 %v6898, %v6935
      %v6969 = vmul.f32 %v6899, %v6935
      %v6970 = vmul.f32 %v6900, %v6935
      %v6971 = vmul.f32 %v6901, %v6935
      %v6972 = vmul.f32 %v6902, %v6935
      %v6973 = vmul.f32 %v6903, %v6935
      %v6974 = vmul.f32 %v6904, %v6935
      %v6975 = vmul.f32 %v6905, %v6935
      %v6976 = vmul.f32 %v6906, %v6935
      %v6977 = vmul.f32 %v6907, %v6935
      %v6978 = vmul.f32 %v6908, %v6935
      %v6979 = vmul.f32 %v6909, %v6935
      %v6980 = vmul.f32 %v6910, %v6935
      %v6981 = vmul.f32 %v6911, %v6935
      %v6982 = vmul.f32 %v6912, %v6935
      %v6983 = vmul.f32 %v6913, %v6935
      %v6984 = vmul.f32 %v6914, %v6935
      %v6985 = vmul.f32 %v6915, %v6935
      %v6986 = vmul.f32 %v6916, %v6935
      %v6987 = vmul.f32 %v6917, %v6935
      %v6988 = vmul.f32 %v6918, %v6935
      %v6989 = vmul.f32 %v6919, %v6935
      %v6990 = vmul.f32 %v6920, %v6935
      %v6991 = vmul.f32 %v6921, %v6935
      %v6992 = vmul.f32 %v6922, %v6935
      %v6993 = vmul.f32 %v6923, %v6935
      %v6994 = vmul.f32 %v6924, %v6935
      %v6995 = vmul.f32 %v6925, %v6935
      %v6996 = vmul.f32 %v6926, %v6935
      %v6997 = vmul.f32 %v6927, %v6935
      %v6998 = vmul.f32 %v6928, %v6935
      %v6999 = vmul.f32 %v6929, %v6935
      %v7000 = vmul.f32 %v6930, %v6935
      %v7002 = vlaneseq
      %v7003 = vshrl.u32 %v7002, 7
      %v7004 = vsub.s32 0, %v7003
      %v7005 = vrot.slane %v1235, %v7004
      %v7007 = vadd.f32 %v6937, %v7005
      %v7008 = vadd.f32 %v6938, %v7005
      %v7009 = vadd.f32 %v6939, %v7005
      %v7010 = vadd.f32 %v6940, %v7005
      %v7011 = vadd.f32 %v6941, %v7005
      %v7012 = vadd.f32 %v6942, %v7005
      %v7013 = vadd.f32 %v6943, %v7005
      %v7014 = vadd.f32 %v6944, %v7005
      %v7015 = vadd.f32 %v6945, %v7005
      %v7016 = vadd.f32 %v6946, %v7005
      %v7017 = vadd.f32 %v6947, %v7005
      %v7018 = vadd.f32 %v6948, %v7005
      %v7019 = vadd.f32 %v6949, %v7005
      %v7020 = vadd.f32 %v6950, %v7005
      %v7021 = vadd.f32 %v6951, %v7005
      %v7022 = vadd.f32 %v6952, %v7005
      %v7023 = vadd.f32 %v6953, %v7005
      %v7024 = vadd.f32 %v6954, %v7005
      %v7025 = vadd.f32 %v6955, %v7005
      %v7026 = vadd.f32 %v6956, %v7005
      %v7027 = vadd.f32 %v6957, %v7005
      %v7028 = vadd.f32 %v6958, %v7005
      %v7029 = vadd.f32 %v6959, %v7005
      %v7030 = vadd.f32 %v6960, %v7005
      %v7031 = vadd.f32 %v6961, %v7005
      %v7032 = vadd.f32 %v6962, %v7005
      %v7033 = vadd.f32 %v6963, %v7005
      %v7034 = vadd.f32 %v6964, %v7005
      %v7035 = vadd.f32 %v6965, %v7005
      %v7036 = vadd.f32 %v6966, %v7005
      %v7037 = vadd.f32 %v6967, %v7005
      %v7038 = vadd.f32 %v6968, %v7005
      %v7039 = vadd.f32 %v6969, %v7005
      %v7040 = vadd.f32 %v6970, %v7005
      %v7041 = vadd.f32 %v6971, %v7005
      %v7042 = vadd.f32 %v6972, %v7005
      %v7043 = vadd.f32 %v6973, %v7005
      %v7044 = vadd.f32 %v6974, %v7005
      %v7045 = vadd.f32 %v6975, %v7005
      %v7046 = vadd.f32 %v6976, %v7005
      %v7047 = vadd.f32 %v6977, %v7005
      %v7048 = vadd.f32 %v6978, %v7005
      %v7049 = vadd.f32 %v6979, %v7005
      %v7050 = vadd.f32 %v6980, %v7005
      %v7051 = vadd.f32 %v6981, %v7005
      %v7052 = vadd.f32 %v6982, %v7005
      %v7053 = vadd.f32 %v6983, %v7005
      %v7054 = vadd.f32 %v6984, %v7005
      %v7055 = vadd.f32 %v6985, %v7005
      %v7056 = vadd.f32 %v6986, %v7005
      %v7057 = vadd.f32 %v6987, %v7005
      %v7058 = vadd.f32 %v6988, %v7005
      %v7059 = vadd.f32 %v6989, %v7005
      %v7060 = vadd.f32 %v6990, %v7005
      %v7061 = vadd.f32 %v6991, %v7005
      %v7062 = vadd.f32 %v6992, %v7005
      %v7063 = vadd.f32 %v6993, %v7005
      %v7064 = vadd.f32 %v6994, %v7005
      %v7065 = vadd.f32 %v6995, %v7005
      %v7066 = vadd.f32 %v6996, %v7005
      %v7067 = vadd.f32 %v6997, %v7005
      %v7068 = vadd.f32 %v6998, %v7005
      %v7069 = vadd.f32 %v6999, %v7005
      %v7070 = vadd.f32 %v7000, %v7005
      %v7071 = vmax.f32 %v7007, 0.0
      %v7072 = vmax.f32 %v7008, 0.0
      %v7073 = vmax.f32 %v7009, 0.0
      %v7074 = vmax.f32 %v7010, 0.0
      %v7075 = vmax.f32 %v7011, 0.0
      %v7076 = vmax.f32 %v7012, 0.0
      %v7077 = vmax.f32 %v7013, 0.0
      %v7078 = vmax.f32 %v7014, 0.0
      %v7079 = vmax.f32 %v7015, 0.0
      %v7080 = vmax.f32 %v7016, 0.0
      %v7081 = vmax.f32 %v7017, 0.0
      %v7082 = vmax.f32 %v7018, 0.0
      %v7083 = vmax.f32 %v7019, 0.0
      %v7084 = vmax.f32 %v7020, 0.0
      %v7085 = vmax.f32 %v7021, 0.0
      %v7086 = vmax.f32 %v7022, 0.0
      %v7087 = vmax.f32 %v7023, 0.0
      %v7088 = vmax.f32 %v7024, 0.0
      %v7089 = vmax.f32 %v7025, 0.0
      %v7090 = vmax.f32 %v7026, 0.0
      %v7091 = vmax.f32 %v7027, 0.0
      %v7092 = vmax.f32 %v7028, 0.0
      %v7093 = vmax.f32 %v7029, 0.0
      %v7094 = vmax.f32 %v7030, 0.0
      %v7095 = vmax.f32 %v7031, 0.0
      %v7096 = vmax.f32 %v7032, 0.0
      %v7097 = vmax.f32 %v7033, 0.0
      %v7098 = vmax.f32 %v7034, 0.0
      %v7099 = vmax.f32 %v7035, 0.0
      %v7100 = vmax.f32 %v7036, 0.0
      %v7101 = vmax.f32 %v7037, 0.0
      %v7102 = vmax.f32 %v7038, 0.0
      %v7103 = vmax.f32 %v7039, 0.0
      %v7104 = vmax.f32 %v7040, 0.0
      %v7105 = vmax.f32 %v7041, 0.0
      %v7106 = vmax.f32 %v7042, 0.0
      %v7107 = vmax.f32 %v7043, 0.0
      %v7108 = vmax.f32 %v7044, 0.0
      %v7109 = vmax.f32 %v7045, 0.0
      %v7110 = vmax.f32 %v7046, 0.0
      %v7111 = vmax.f32 %v7047, 0.0
      %v7112 = vmax.f32 %v7048, 0.0
      %v7113 = vmax.f32 %v7049, 0.0
      %v7114 = vmax.f32 %v7050, 0.0
      %v7115 = vmax.f32 %v7051, 0.0
      %v7116 = vmax.f32 %v7052, 0.0
      %v7117 = vmax.f32 %v7053, 0.0
      %v7118 = vmax.f32 %v7054, 0.0
      %v7119 = vmax.f32 %v7055, 0.0
      %v7120 = vmax.f32 %v7056, 0.0
      %v7121 = vmax.f32 %v7057, 0.0
      %v7122 = vmax.f32 %v7058, 0.0
      %v7123 = vmax.f32 %v7059, 0.0
      %v7124 = vmax.f32 %v7060, 0.0
      %v7125 = vmax.f32 %v7061, 0.0
      %v7126 = vmax.f32 %v7062, 0.0
      %v7127 = vmax.f32 %v7063, 0.0
      %v7128 = vmax.f32 %v7064, 0.0
      %v7129 = vmax.f32 %v7065, 0.0
      %v7130 = vmax.f32 %v7066, 0.0
      %v7131 = vmax.f32 %v7067, 0.0
      %v7132 = vmax.f32 %v7068, 0.0
      %v7133 = vmax.f32 %v7069, 0.0
      %v7134 = vmax.f32 %v7070, 0.0
      %v7135 = vsel %vm1170, 1, 0
      %v7136 = vsel %vm1171, 1, 0
      %v7137 = vsel %vm1172, 1, 0
      %v7138 = vsel %vm1173, 1, 0
      %v7139 = vsel %vm1174, 1, 0
      %v7140 = vsel %vm1175, 1, 0
      %v7141 = vsel %vm1176, 1, 0
      %v7142 = vsel %vm1177, 1, 0
      %v7143 = vsel %vm1178, 1, 0
      %v7144 = vsel %vm1179, 1, 0
      %v7145 = vsel %vm1180, 1, 0
      %v7146 = vsel %vm1181, 1, 0
      %v7147 = vsel %vm1182, 1, 0
      %v7148 = vsel %vm1183, 1, 0
      %v7149 = vsel %vm1184, 1, 0
      %v7150 = vsel %vm1185, 1, 0
      %v7151 = vsel %vm1186, 1, 0
      %v7152 = vsel %vm1187, 1, 0
      %v7153 = vsel %vm1188, 1, 0
      %v7154 = vsel %vm1189, 1, 0
      %v7155 = vsel %vm1190, 1, 0
      %v7156 = vsel %vm1191, 1, 0
      %v7157 = vsel %vm1192, 1, 0
      %v7158 = vsel %vm1193, 1, 0
      %v7159 = vsel %vm1194, 1, 0
      %v7160 = vsel %vm1195, 1, 0
      %v7161 = vsel %vm1196, 1, 0
      %v7162 = vsel %vm1197, 1, 0
      %v7163 = vsel %vm1198, 1, 0
      %v7164 = vsel %vm1199, 1, 0
      %v7165 = vsel %vm1200, 1, 0
      %v7166 = vsel %vm1201, 1, 0
      %v7167 = vsel %vm1202, 1, 0
      %v7168 = vsel %vm1203, 1, 0
      %v7169 = vsel %vm1204, 1, 0
      %v7170 = vsel %vm1205, 1, 0
      %v7171 = vsel %vm1206, 1, 0
      %v7172 = vsel %vm1207, 1, 0
      %v7173 = vsel %vm1208, 1, 0
      %v7174 = vsel %vm1209, 1, 0
      %v7175 = vsel %vm1210, 1, 0
      %v7176 = vsel %vm1211, 1, 0
      %v7177 = vsel %vm1212, 1, 0
      %v7178 = vsel %vm1213, 1, 0
      %v7179 = vsel %vm1214, 1, 0
      %v7180 = vsel %vm1215, 1, 0
      %v7181 = vsel %vm1216, 1, 0
      %v7182 = vsel %vm1217, 1, 0
      %v7183 = vsel %vm1218, 1, 0
      %v7184 = vsel %vm1219, 1, 0
      %v7185 = vsel %vm1220, 1, 0
      %v7186 = vsel %vm1221, 1, 0
      %v7187 = vsel %vm1222, 1, 0
      %v7188 = vsel %vm1223, 1, 0
      %v7189 = vsel %vm1224, 1, 0
      %v7190 = vsel %vm1225, 1, 0
      %v7191 = vsel %vm1226, 1, 0
      %v7192 = vsel %vm1227, 1, 0
      %v7193 = vsel %vm1228, 1, 0
      %v7194 = vsel %vm1229, 1, 0
      %v7195 = vsel %vm1230, 1, 0
      %v7196 = vsel %vm1231, 1, 0
      %v7197 = vsel %vm1232, 1, 0
      %v7198 = vsel %vm1233, 1, 0
      %vm7199 = vcmp.eq.s32.totalorder %v7135, 1
      %vm7200 = vcmp.eq.s32.totalorder %v7136, 1
      %vm7201 = vcmp.eq.s32.totalorder %v7137, 1
      %vm7202 = vcmp.eq.s32.totalorder %v7138, 1
      %vm7203 = vcmp.eq.s32.totalorder %v7139, 1
      %vm7204 = vcmp.eq.s32.totalorder %v7140, 1
      %vm7205 = vcmp.eq.s32.totalorder %v7141, 1
      %vm7206 = vcmp.eq.s32.totalorder %v7142, 1
      %vm7207 = vcmp.eq.s32.totalorder %v7143, 1
      %vm7208 = vcmp.eq.s32.totalorder %v7144, 1
      %vm7209 = vcmp.eq.s32.totalorder %v7145, 1
      %vm7210 = vcmp.eq.s32.totalorder %v7146, 1
      %vm7211 = vcmp.eq.s32.totalorder %v7147, 1
      %vm7212 = vcmp.eq.s32.totalorder %v7148, 1
      %vm7213 = vcmp.eq.s32.totalorder %v7149, 1
      %vm7214 = vcmp.eq.s32.totalorder %v7150, 1
      %vm7215 = vcmp.eq.s32.totalorder %v7151, 1
      %vm7216 = vcmp.eq.s32.totalorder %v7152, 1
      %vm7217 = vcmp.eq.s32.totalorder %v7153, 1
      %vm7218 = vcmp.eq.s32.totalorder %v7154, 1
      %vm7219 = vcmp.eq.s32.totalorder %v7155, 1
      %vm7220 = vcmp.eq.s32.totalorder %v7156, 1
      %vm7221 = vcmp.eq.s32.totalorder %v7157, 1
      %vm7222 = vcmp.eq.s32.totalorder %v7158, 1
      %vm7223 = vcmp.eq.s32.totalorder %v7159, 1
      %vm7224 = vcmp.eq.s32.totalorder %v7160, 1
      %vm7225 = vcmp.eq.s32.totalorder %v7161, 1
      %vm7226 = vcmp.eq.s32.totalorder %v7162, 1
      %vm7227 = vcmp.eq.s32.totalorder %v7163, 1
      %vm7228 = vcmp.eq.s32.totalorder %v7164, 1
      %vm7229 = vcmp.eq.s32.totalorder %v7165, 1
      %vm7230 = vcmp.eq.s32.totalorder %v7166, 1
      %vm7231 = vcmp.eq.s32.totalorder %v7167, 1
      %vm7232 = vcmp.eq.s32.totalorder %v7168, 1
      %vm7233 = vcmp.eq.s32.totalorder %v7169, 1
      %vm7234 = vcmp.eq.s32.totalorder %v7170, 1
      %vm7235 = vcmp.eq.s32.totalorder %v7171, 1
      %vm7236 = vcmp.eq.s32.totalorder %v7172, 1
      %vm7237 = vcmp.eq.s32.totalorder %v7173, 1
      %vm7238 = vcmp.eq.s32.totalorder %v7174, 1
      %vm7239 = vcmp.eq.s32.totalorder %v7175, 1
      %vm7240 = vcmp.eq.s32.totalorder %v7176, 1
      %vm7241 = vcmp.eq.s32.totalorder %v7177, 1
      %vm7242 = vcmp.eq.s32.totalorder %v7178, 1
      %vm7243 = vcmp.eq.s32.totalorder %v7179, 1
      %vm7244 = vcmp.eq.s32.totalorder %v7180, 1
      %vm7245 = vcmp.eq.s32.totalorder %v7181, 1
      %vm7246 = vcmp.eq.s32.totalorder %v7182, 1
      %vm7247 = vcmp.eq.s32.totalorder %v7183, 1
      %vm7248 = vcmp.eq.s32.totalorder %v7184, 1
      %vm7249 = vcmp.eq.s32.totalorder %v7185, 1
      %vm7250 = vcmp.eq.s32.totalorder %v7186, 1
      %vm7251 = vcmp.eq.s32.totalorder %v7187, 1
      %vm7252 = vcmp.eq.s32.totalorder %v7188, 1
      %vm7253 = vcmp.eq.s32.totalorder %v7189, 1
      %vm7254 = vcmp.eq.s32.totalorder %v7190, 1
      %vm7255 = vcmp.eq.s32.totalorder %v7191, 1
      %vm7256 = vcmp.eq.s32.totalorder %v7192, 1
      %vm7257 = vcmp.eq.s32.totalorder %v7193, 1
      %vm7258 = vcmp.eq.s32.totalorder %v7194, 1
      %vm7259 = vcmp.eq.s32.totalorder %v7195, 1
      %vm7260 = vcmp.eq.s32.totalorder %v7196, 1
      %vm7261 = vcmp.eq.s32.totalorder %v7197, 1
      %vm7262 = vcmp.eq.s32.totalorder %v7198, 1
      %v7263 = vsel %vm7199, %v7071, 0.0
      %v7264 = vsel %vm7200, %v7072, 0.0
      %v7265 = vsel %vm7201, %v7073, 0.0
      %v7266 = vsel %vm7202, %v7074, 0.0
      %v7267 = vsel %vm7203, %v7075, 0.0
      %v7268 = vsel %vm7204, %v7076, 0.0
      %v7269 = vsel %vm7205, %v7077, 0.0
      %v7270 = vsel %vm7206, %v7078, 0.0
      %v7271 = vsel %vm7207, %v7079, 0.0
      %v7272 = vsel %vm7208, %v7080, 0.0
      %v7273 = vsel %vm7209, %v7081, 0.0
      %v7274 = vsel %vm7210, %v7082, 0.0
      %v7275 = vsel %vm7211, %v7083, 0.0
      %v7276 = vsel %vm7212, %v7084, 0.0
      %v7277 = vsel %vm7213, %v7085, 0.0
      %v7278 = vsel %vm7214, %v7086, 0.0
      %v7279 = vsel %vm7215, %v7087, 0.0
      %v7280 = vsel %vm7216, %v7088, 0.0
      %v7281 = vsel %vm7217, %v7089, 0.0
      %v7282 = vsel %vm7218, %v7090, 0.0
      %v7283 = vsel %vm7219, %v7091, 0.0
      %v7284 = vsel %vm7220, %v7092, 0.0
      %v7285 = vsel %vm7221, %v7093, 0.0
      %v7286 = vsel %vm7222, %v7094, 0.0
      %v7287 = vsel %vm7223, %v7095, 0.0
      %v7288 = vsel %vm7224, %v7096, 0.0
      %v7289 = vsel %vm7225, %v7097, 0.0
      %v7290 = vsel %vm7226, %v7098, 0.0
      %v7291 = vsel %vm7227, %v7099, 0.0
      %v7292 = vsel %vm7228, %v7100, 0.0
      %v7293 = vsel %vm7229, %v7101, 0.0
      %v7294 = vsel %vm7230, %v7102, 0.0
      %v7295 = vsel %vm7231, %v7103, 0.0
      %v7296 = vsel %vm7232, %v7104, 0.0
      %v7297 = vsel %vm7233, %v7105, 0.0
      %v7298 = vsel %vm7234, %v7106, 0.0
      %v7299 = vsel %vm7235, %v7107, 0.0
      %v7300 = vsel %vm7236, %v7108, 0.0
      %v7301 = vsel %vm7237, %v7109, 0.0
      %v7302 = vsel %vm7238, %v7110, 0.0
      %v7303 = vsel %vm7239, %v7111, 0.0
      %v7304 = vsel %vm7240, %v7112, 0.0
      %v7305 = vsel %vm7241, %v7113, 0.0
      %v7306 = vsel %vm7242, %v7114, 0.0
      %v7307 = vsel %vm7243, %v7115, 0.0
      %v7308 = vsel %vm7244, %v7116, 0.0
      %v7309 = vsel %vm7245, %v7117, 0.0
      %v7310 = vsel %vm7246, %v7118, 0.0
      %v7311 = vsel %vm7247, %v7119, 0.0
      %v7312 = vsel %vm7248, %v7120, 0.0
      %v7313 = vsel %vm7249, %v7121, 0.0
      %v7314 = vsel %vm7250, %v7122, 0.0
      %v7315 = vsel %vm7251, %v7123, 0.0
      %v7316 = vsel %vm7252, %v7124, 0.0
      %v7317 = vsel %vm7253, %v7125, 0.0
      %v7318 = vsel %vm7254, %v7126, 0.0
      %v7319 = vsel %vm7255, %v7127, 0.0
      %v7320 = vsel %vm7256, %v7128, 0.0
      %v7321 = vsel %vm7257, %v7129, 0.0
      %v7322 = vsel %vm7258, %v7130, 0.0
      %v7323 = vsel %vm7259, %v7131, 0.0
      %v7324 = vsel %vm7260, %v7132, 0.0
      %v7325 = vsel %vm7261, %v7133, 0.0
      %v7326 = vsel %vm7262, %v7134, 0.0
      %v7327 = vpack.c.bf16 %v7264, %v7263
      %v7328 = vpack.c.bf16 %v7266, %v7265
      %v7329 = vpack.c.bf16 %v7268, %v7267
      %v7330 = vpack.c.bf16 %v7270, %v7269
      %v7331 = vpack.c.bf16 %v7272, %v7271
      %v7332 = vpack.c.bf16 %v7274, %v7273
      %v7333 = vpack.c.bf16 %v7276, %v7275
      %v7334 = vpack.c.bf16 %v7278, %v7277
      %v7335 = vpack.c.bf16 %v7280, %v7279
      %v7336 = vpack.c.bf16 %v7282, %v7281
      %v7337 = vpack.c.bf16 %v7284, %v7283
      %v7338 = vpack.c.bf16 %v7286, %v7285
      %v7339 = vpack.c.bf16 %v7288, %v7287
      %v7340 = vpack.c.bf16 %v7290, %v7289
      %v7341 = vpack.c.bf16 %v7292, %v7291
      %v7342 = vpack.c.bf16 %v7294, %v7293
      %v7343 = vpack.c.bf16 %v7296, %v7295
      %v7344 = vpack.c.bf16 %v7298, %v7297
      %v7345 = vpack.c.bf16 %v7300, %v7299
      %v7346 = vpack.c.bf16 %v7302, %v7301
      %v7347 = vpack.c.bf16 %v7304, %v7303
      %v7348 = vpack.c.bf16 %v7306, %v7305
      %v7349 = vpack.c.bf16 %v7308, %v7307
      %v7350 = vpack.c.bf16 %v7310, %v7309
      %v7351 = vpack.c.bf16 %v7312, %v7311
      %v7352 = vpack.c.bf16 %v7314, %v7313
      %v7353 = vpack.c.bf16 %v7316, %v7315
      %v7354 = vpack.c.bf16 %v7318, %v7317
      %v7355 = vpack.c.bf16 %v7320, %v7319
      %v7356 = vpack.c.bf16 %v7322, %v7321
      %v7357 = vpack.c.bf16 %v7324, %v7323
      %v7358 = vpack.c.bf16 %v7326, %v7325
      %v7391 = vunpack.c.l.b16 %v7327
      %v7392 = vunpack.c.h.b16 %v7327
      %v7393 = vunpack.c.l.b16 %v7328
      %v7394 = vunpack.c.h.b16 %v7328
      %v7395 = vunpack.c.l.b16 %v7329
      %v7396 = vunpack.c.h.b16 %v7329
      %v7397 = vunpack.c.l.b16 %v7330
      %v7398 = vunpack.c.h.b16 %v7330
      %v7399 = vunpack.c.l.b16 %v7331
      %v7400 = vunpack.c.h.b16 %v7331
      %v7401 = vunpack.c.l.b16 %v7332
      %v7402 = vunpack.c.h.b16 %v7332
      %v7403 = vunpack.c.l.b16 %v7333
      %v7404 = vunpack.c.h.b16 %v7333
      %v7405 = vunpack.c.l.b16 %v7334
      %v7406 = vunpack.c.h.b16 %v7334
      %v7407 = vunpack.c.l.b16 %v7335
      %v7408 = vunpack.c.h.b16 %v7335
      %v7409 = vunpack.c.l.b16 %v7336
      %v7410 = vunpack.c.h.b16 %v7336
      %v7411 = vunpack.c.l.b16 %v7337
      %v7412 = vunpack.c.h.b16 %v7337
      %v7413 = vunpack.c.l.b16 %v7338
      %v7414 = vunpack.c.h.b16 %v7338
      %v7415 = vunpack.c.l.b16 %v7339
      %v7416 = vunpack.c.h.b16 %v7339
      %v7417 = vunpack.c.l.b16 %v7340
      %v7418 = vunpack.c.h.b16 %v7340
      %v7419 = vunpack.c.l.b16 %v7341
      %v7420 = vunpack.c.h.b16 %v7341
      %v7421 = vunpack.c.l.b16 %v7342
      %v7422 = vunpack.c.h.b16 %v7342
      %v7423 = vunpack.c.l.b16 %v7343
      %v7424 = vunpack.c.h.b16 %v7343
      %v7425 = vunpack.c.l.b16 %v7344
      %v7426 = vunpack.c.h.b16 %v7344
      %v7427 = vunpack.c.l.b16 %v7345
      %v7428 = vunpack.c.h.b16 %v7345
      %v7429 = vunpack.c.l.b16 %v7346
      %v7430 = vunpack.c.h.b16 %v7346
      %v7431 = vunpack.c.l.b16 %v7347
      %v7432 = vunpack.c.h.b16 %v7347
      %v7433 = vunpack.c.l.b16 %v7348
      %v7434 = vunpack.c.h.b16 %v7348
      %v7435 = vunpack.c.l.b16 %v7349
      %v7436 = vunpack.c.h.b16 %v7349
      %v7437 = vunpack.c.l.b16 %v7350
      %v7438 = vunpack.c.h.b16 %v7350
      %v7439 = vunpack.c.l.b16 %v7351
      %v7440 = vunpack.c.h.b16 %v7351
      %v7441 = vunpack.c.l.b16 %v7352
      %v7442 = vunpack.c.h.b16 %v7352
      %v7443 = vunpack.c.l.b16 %v7353
      %v7444 = vunpack.c.h.b16 %v7353
      %v7445 = vunpack.c.l.b16 %v7354
      %v7446 = vunpack.c.h.b16 %v7354
      %v7447 = vunpack.c.l.b16 %v7355
      %v7448 = vunpack.c.h.b16 %v7355
      %v7449 = vunpack.c.l.b16 %v7356
      %v7450 = vunpack.c.h.b16 %v7356
      %v7451 = vunpack.c.l.b16 %v7357
      %v7452 = vunpack.c.h.b16 %v7357
      %v7453 = vunpack.c.l.b16 %v7358
      %v7454 = vunpack.c.h.b16 %v7358
      %v7455 = vpack.c.b16 %v7391, %v7391
      %v7456 = vpack.c.b16 %v7392, %v7392
      %v7457 = vpack.c.b16 %v7393, %v7393
      %v7458 = vpack.c.b16 %v7394, %v7394
      %v7459 = vpack.c.b16 %v7395, %v7395
      %v7460 = vpack.c.b16 %v7396, %v7396
      %v7461 = vpack.c.b16 %v7397, %v7397
      %v7462 = vpack.c.b16 %v7398, %v7398
      %v7463 = vpack.c.b16 %v7399, %v7399
      %v7464 = vpack.c.b16 %v7400, %v7400
      %v7465 = vpack.c.b16 %v7401, %v7401
      %v7466 = vpack.c.b16 %v7402, %v7402
      %v7467 = vpack.c.b16 %v7403, %v7403
      %v7468 = vpack.c.b16 %v7404, %v7404
      %v7469 = vpack.c.b16 %v7405, %v7405
      %v7470 = vpack.c.b16 %v7406, %v7406
      %v7471 = vpack.c.b16 %v7407, %v7407
      %v7472 = vpack.c.b16 %v7408, %v7408
      %v7473 = vpack.c.b16 %v7409, %v7409
      %v7474 = vpack.c.b16 %v7410, %v7410
      %v7475 = vpack.c.b16 %v7411, %v7411
      %v7476 = vpack.c.b16 %v7412, %v7412
      %v7477 = vpack.c.b16 %v7413, %v7413
      %v7478 = vpack.c.b16 %v7414, %v7414
      %v7479 = vpack.c.b16 %v7415, %v7415
      %v7480 = vpack.c.b16 %v7416, %v7416
      %v7481 = vpack.c.b16 %v7417, %v7417
      %v7482 = vpack.c.b16 %v7418, %v7418
      %v7483 = vpack.c.b16 %v7419, %v7419
      %v7484 = vpack.c.b16 %v7420, %v7420
      %v7485 = vpack.c.b16 %v7421, %v7421
      %v7486 = vpack.c.b16 %v7422, %v7422
      %v7487 = vpack.c.b16 %v7423, %v7423
      %v7488 = vpack.c.b16 %v7424, %v7424
      %v7489 = vpack.c.b16 %v7425, %v7425
      %v7490 = vpack.c.b16 %v7426, %v7426
      %v7491 = vpack.c.b16 %v7427, %v7427
      %v7492 = vpack.c.b16 %v7428, %v7428
      %v7493 = vpack.c.b16 %v7429, %v7429
      %v7494 = vpack.c.b16 %v7430, %v7430
      %v7495 = vpack.c.b16 %v7431, %v7431
      %v7496 = vpack.c.b16 %v7432, %v7432
      %v7497 = vpack.c.b16 %v7433, %v7433
      %v7498 = vpack.c.b16 %v7434, %v7434
      %v7499 = vpack.c.b16 %v7435, %v7435
      %v7500 = vpack.c.b16 %v7436, %v7436
      %v7501 = vpack.c.b16 %v7437, %v7437
      %v7502 = vpack.c.b16 %v7438, %v7438
      %v7503 = vpack.c.b16 %v7439, %v7439
      %v7504 = vpack.c.b16 %v7440, %v7440
      %v7505 = vpack.c.b16 %v7441, %v7441
      %v7506 = vpack.c.b16 %v7442, %v7442
      %v7507 = vpack.c.b16 %v7443, %v7443
      %v7508 = vpack.c.b16 %v7444, %v7444
      %v7509 = vpack.c.b16 %v7445, %v7445
      %v7510 = vpack.c.b16 %v7446, %v7446
      %v7511 = vpack.c.b16 %v7447, %v7447
      %v7512 = vpack.c.b16 %v7448, %v7448
      %v7513 = vpack.c.b16 %v7449, %v7449
      %v7514 = vpack.c.b16 %v7450, %v7450
      %v7515 = vpack.c.b16 %v7451, %v7451
      %v7516 = vpack.c.b16 %v7452, %v7452
      %v7517 = vpack.c.b16 %v7453, %v7453
      %v7518 = vpack.c.b16 %v7454, %v7454
      %s7583 = scalar_lea.vmem %s197, 16
      %7584 = vst.msk [vmem:[%s7583] sm:$0xf] %vm199, %v7455
      %7585 = vst.msk [vmem:[%s7583 + $0x4] sm:$0xf] %vm199, %v7456
      %7586 = vst.msk [vmem:[%s7583 + $0x8] sm:$0xf] %vm199, %v7457
      %7587 = vst.msk [vmem:[%s7583 + $0xc] sm:$0xf] %vm199, %v7458
      %7588 = vst.msk [vmem:[%s7583 + $0x10] sm:$0xf] %vm199, %v7459
      %7589 = vst.msk [vmem:[%s7583 + $0x14] sm:$0xf] %vm199, %v7460
      %7590 = vst.msk [vmem:[%s7583 + $0x18] sm:$0xf] %vm199, %v7461
      %7591 = vst.msk [vmem:[%s7583 + $0x1c] sm:$0xf] %vm199, %v7462
      %7592 = vst.msk [vmem:[%s7583 + $0x20] sm:$0xf] %vm199, %v7463
      %7593 = vst.msk [vmem:[%s7583 + $0x24] sm:$0xf] %vm199, %v7464
      %7594 = vst.msk [vmem:[%s7583 + $0x28] sm:$0xf] %vm199, %v7465
      %7595 = vst.msk [vmem:[%s7583 + $0x2c] sm:$0xf] %vm199, %v7466
      %7596 = vst.msk [vmem:[%s7583 + $0x30] sm:$0xf] %vm199, %v7467
      %7597 = vst.msk [vmem:[%s7583 + $0x34] sm:$0xf] %vm199, %v7468
      %7598 = vst.msk [vmem:[%s7583 + $0x38] sm:$0xf] %vm199, %v7469
      %7599 = vst.msk [vmem:[%s7583 + $0x3c] sm:$0xf] %vm199, %v7470
      %7600 = vst.msk [vmem:[%s7583 + $0x40] sm:$0xf] %vm199, %v7471
      %7601 = vst.msk [vmem:[%s7583 + $0x44] sm:$0xf] %vm199, %v7472
      %7602 = vst.msk [vmem:[%s7583 + $0x48] sm:$0xf] %vm199, %v7473
      %7603 = vst.msk [vmem:[%s7583 + $0x4c] sm:$0xf] %vm199, %v7474
      %7604 = vst.msk [vmem:[%s7583 + $0x50] sm:$0xf] %vm199, %v7475
      %7605 = vst.msk [vmem:[%s7583 + $0x54] sm:$0xf] %vm199, %v7476
      %7606 = vst.msk [vmem:[%s7583 + $0x58] sm:$0xf] %vm199, %v7477
      %7607 = vst.msk [vmem:[%s7583 + $0x5c] sm:$0xf] %vm199, %v7478
      %7608 = vst.msk [vmem:[%s7583 + $0x60] sm:$0xf] %vm199, %v7479
      %7609 = vst.msk [vmem:[%s7583 + $0x64] sm:$0xf] %vm199, %v7480
      %7610 = vst.msk [vmem:[%s7583 + $0x68] sm:$0xf] %vm199, %v7481
      %7611 = vst.msk [vmem:[%s7583 + $0x6c] sm:$0xf] %vm199, %v7482
      %7612 = vst.msk [vmem:[%s7583 + $0x70] sm:$0xf] %vm199, %v7483
      %7613 = vst.msk [vmem:[%s7583 + $0x74] sm:$0xf] %vm199, %v7484
      %7614 = vst.msk [vmem:[%s7583 + $0x78] sm:$0xf] %vm199, %v7485
      %7615 = vst.msk [vmem:[%s7583 + $0x7c] sm:$0xf] %vm199, %v7486
      %7616 = vst.msk [vmem:[%s7583 + $0x80] sm:$0xf] %vm199, %v7487
      %7617 = vst.msk [vmem:[%s7583 + $0x84] sm:$0xf] %vm199, %v7488
      %7618 = vst.msk [vmem:[%s7583 + $0x88] sm:$0xf] %vm199, %v7489
      %7619 = vst.msk [vmem:[%s7583 + $0x8c] sm:$0xf] %vm199, %v7490
      %7620 = vst.msk [vmem:[%s7583 + $0x90] sm:$0xf] %vm199, %v7491
      %7621 = vst.msk [vmem:[%s7583 + $0x94] sm:$0xf] %vm199, %v7492
      %7622 = vst.msk [vmem:[%s7583 + $0x98] sm:$0xf] %vm199, %v7493
      %7623 = vst.msk [vmem:[%s7583 + $0x9c] sm:$0xf] %vm199, %v7494
      %7624 = vst.msk [vmem:[%s7583 + $0xa0] sm:$0xf] %vm199, %v7495
      %7625 = vst.msk [vmem:[%s7583 + $0xa4] sm:$0xf] %vm199, %v7496
      %7626 = vst.msk [vmem:[%s7583 + $0xa8] sm:$0xf] %vm199, %v7497
      %7627 = vst.msk [vmem:[%s7583 + $0xac] sm:$0xf] %vm199, %v7498
      %7628 = vst.msk [vmem:[%s7583 + $0xb0] sm:$0xf] %vm199, %v7499
      %7629 = vst.msk [vmem:[%s7583 + $0xb4] sm:$0xf] %vm199, %v7500
      %7630 = vst.msk [vmem:[%s7583 + $0xb8] sm:$0xf] %vm199, %v7501
      %7631 = vst.msk [vmem:[%s7583 + $0xbc] sm:$0xf] %vm199, %v7502
      %7632 = vst.msk [vmem:[%s7583 + $0xc0] sm:$0xf] %vm199, %v7503
      %7633 = vst.msk [vmem:[%s7583 + $0xc4] sm:$0xf] %vm199, %v7504
      %7634 = vst.msk [vmem:[%s7583 + $0xc8] sm:$0xf] %vm199, %v7505
      %7635 = vst.msk [vmem:[%s7583 + $0xcc] sm:$0xf] %vm199, %v7506
      %7636 = vst.msk [vmem:[%s7583 + $0xd0] sm:$0xf] %vm199, %v7507
      %7637 = vst.msk [vmem:[%s7583 + $0xd4] sm:$0xf] %vm199, %v7508
      %7638 = vst.msk [vmem:[%s7583 + $0xd8] sm:$0xf] %vm199, %v7509
      %7639 = vst.msk [vmem:[%s7583 + $0xdc] sm:$0xf] %vm199, %v7510
      %7640 = vst.msk [vmem:[%s7583 + $0xe0] sm:$0xf] %vm199, %v7511
      %7641 = vst.msk [vmem:[%s7583 + $0xe4] sm:$0xf] %vm199, %v7512
      %7642 = vst.msk [vmem:[%s7583 + $0xe8] sm:$0xf] %vm199, %v7513
      %7643 = vst.msk [vmem:[%s7583 + $0xec] sm:$0xf] %vm199, %v7514
      %7644 = vst.msk [vmem:[%s7583 + $0xf0] sm:$0xf] %vm199, %v7515
      %7645 = vst.msk [vmem:[%s7583 + $0xf4] sm:$0xf] %vm199, %v7516
      %7646 = vst.msk [vmem:[%s7583 + $0xf8] sm:$0xf] %vm199, %v7517
      %7647 = vst.msk [vmem:[%s7583 + $0xfc] sm:$0xf] %vm199, %v7518
      %p7648 = scmp.lt.s32.totalorder %s15, 1
      %s7649 = scalar_select %p7648, %s15, 1
      %s7650 = smul.addr %s7649, 72
      %s7651 = smul.addr %s7650, 4
      %s7652 = scalar_lea.vmem %s4, %s7651
      // Predicated region
      $region37: #{dht_layer_forward.8} parent=35 // pred_check
        %p7653 = pneg %p122
      $region38: #{dht_layer_forward.8} parent=35 // pred_check_branch
        %7655 = sbr.rel (%p7653) target = $region40
      $region39: #{dht_layer_forward.8} parent=35 // pred_region
        _
      $region40: #{dht_layer_forward.8} parent=35 // pred_fallthru
        _
    $region36: #{dht_layer_forward.8} parent=5 // pred_fallthru
      _
    %p7656 = scmp.le.s32.totalorder 2, %s10
    // Predicated region
    $region41: #{dht_layer_forward.8} parent=5 // pred_check
      %p7657 = pneg %p7656
    $region42: #{dht_layer_forward.8} parent=5 // pred_check_branch
      %7659 = sbr.rel (%p7657) target = $region44
    $region43: #{dht_layer_forward.8} parent=5 // pred_region
      %s7660 = ssub.s32 %s10, 2
      // Predicated region
      $region45: #{dht_layer_forward.8} parent=43 // pred_check
        %p7661 = pneg %p128
      $region46: #{dht_layer_forward.8} parent=43 // pred_check_branch
        %7663 = sbr.rel (%p7661) target = $region48
      $region47: #{dht_layer_forward.8} parent=43 // pred_region
        %p7664 = scmp.lt.s32.totalorder %s16, 1
        %s7665 = scalar_select %p7664, %s16, 1
        %s7666 = smul.addr %s7665, 72
        %s7667 = smul.addr %s7666, 4
        %s7668 = scalar_lea.vmem %s4, %s7667
      $region48: #{dht_layer_forward.8} parent=43 // pred_fallthru
        _
    $region44: #{dht_layer_forward.8} parent=5 // pred_fallthru
      _
  $region6: #{dht_layer_forward.8} parent=0 // loop_footer
    %s14 = sadd.s32 1, %s10
  $region7: #{dht_layer_forward.8} parent=0 // loop_footer_branch
    %9 = sbr.rel target = $region3
  $region8: #{dht_layer_forward.8} parent=0 // loop_exit
    _

</llo_original>
